<compile_context>
chip_gen: v7x
topology: tpu7x:2x2x1
jax: 0.10.0
libtpu: 0.0.40
codegen_flags: <defaults>
</compile_context>

<pallas_src>
import functools
import math

import jax
import jax.numpy as jnp
from jax import lax
from jax.experimental import pallas as pl
from jax.experimental.pallas import tpu as pltpu

EPS = 1e-5  # nn.BatchNorm2d default eps


# ----------------------------- Pallas kernels -----------------------------

def _bn_relu(y, gamma, beta):
    """Train-mode BatchNorm (exact biased batch stats over all rows) + ReLU, f32."""
    inv_m = 1.0 / y.shape[0]
    mean = jnp.sum(y, axis=0, keepdims=True) * inv_m
    yc = y - mean                                   # one pass, no cancellation
    var = jnp.sum(yc * yc, axis=0, keepdims=True) * inv_m
    inv = lax.rsqrt(var + EPS)                      # EUP slot
    return jnp.maximum(yc * (inv * gamma) + beta, 0.0)


def _matmul_bias_kernel(x_ref, w_ref, b_ref, o_ref):
    y = jnp.dot(x_ref[...], w_ref[...], preferred_element_type=jnp.float32)
    o_ref[...] = (y + b_ref[...]).astype(o_ref.dtype)


def _fused_cbr_kernel(up_ref, dn_ref, cb_ref, mask_ref,
                      w1u_ref, w1d_ref, g1_ref, b1_ref,
                      w2_ref, g2_ref, b2_ref, o_ref, *, ww):
    """convr1 (CoordConv 1x1) -> BN -> ReLU -> convr2 (3x3, pad 1) -> BN -> ReLU.

    The full M = N*H*W row axis is resident, so both BatchNorms use exact
    train-mode batch statistics.  convr2 is 9 masked + row-rolled matmuls:
    tap (dh, dw) of a 3x3 / pad-1 conv reads flat row m + (dh-1)*W + (dw-1);
    rows whose tap falls outside the zero-padded image are masked to zero.
    """
    m = up_ref.shape[0]

    # convr1: split contraction over [up | down-skip | coords] (coords arrive as
    # a precomputed per-pixel f32 bias -> K stays lane-aligned, concat fused away).
    y1 = jnp.dot(up_ref[...], w1u_ref[...], preferred_element_type=jnp.float32)
    y1 = y1 + jnp.dot(dn_ref[...], w1d_ref[...], preferred_element_type=jnp.float32)
    y1 = y1 + cb_ref[...]
    a1 = _bn_relu(y1, g1_ref[...], b1_ref[...])

    # convr2 (3x3, stride 1, padding 1): im2col fused in-register.
    acc = jnp.zeros(o_ref.shape, jnp.float32)
    for dh in range(3):
        for dw in range(3):
            t = dh * 3 + dw
            s = (dh - 1) * ww + (dw - 1)                         # flat-row shift of this tap
            src = a1 if s == 0 else pltpu.roll(a1, shift=(-s) % m, axis=0)
            src = (src * mask_ref[:, t:t + 1]).astype(jnp.bfloat16)
            acc = acc + jnp.dot(src, w2_ref[t], preferred_element_type=jnp.float32)

    o_ref[...] = _bn_relu(acc, g2_ref[...], b2_ref[...]).astype(o_ref.dtype)
    # TODO(synk): Cout < 128 makes this final store lane-masked; a lane-dense
    # (M/2, 2*Cout) relayout would remove that if the store ever became the bottleneck.


# ------------------------------ kernel wrappers -----------------------------

def transpose_conv2x2(x_nhwc, tw, tb):
    """ConvTranspose2d(kernel=(2,2), stride=2): non-overlapping -> one matmul+bias
    kernel tiled over the (kh,kw,Cout) output columns, then a tiny bf16 pixel
    shuffle in XLA glue.

    tw layout: (Cin, [kh, kw, Cout]) flattened; porting PyTorch weights
    (Cin, Cout, 2, 2) requires transpose(0, 2, 3, 1) first.
    """
    N, H, W, Cin = x_nhwc.shape
    Cout4 = tw.shape[1]
    Cout = Cout4 // 4
    M = N * H * W
    x2 = x_nhwc.reshape(M, Cin).astype(jnp.bfloat16)
    wb = tw.astype(jnp.bfloat16)
    bias = jnp.tile(tb, 4).reshape(1, Cout4).astype(jnp.float32)
    tn = 128 if Cout4 % 128 == 0 else Cout4   # lane-aligned Cout tiles (>=2 cells -> both v7x cores)

    y = pl.pallas_call(
        _matmul_bias_kernel,
        out_shape=jax.ShapeDtypeStruct((M, Cout4), jnp.bfloat16),
        grid_spec=pltpu.PrefetchScalarGridSpec(
            num_scalar_prefetch=0,
            grid=(Cout4 // tn,),
            in_specs=[
                pl.BlockSpec((M, Cin), lambda j: (0, 0)),    # LHS resident across Cout tiles
                pl.BlockSpec((Cin, tn), lambda j: (0, j)),
                pl.BlockSpec((1, tn), lambda j: (0, j)),
            ],
            out_specs=pl.BlockSpec((M, tn), lambda j: (0, j)),
        ),
        compiler_params=pltpu.CompilerParams(
            dimension_semantics=("parallel",),
            vmem_limit_bytes=32 * 1024 * 1024),
        cost_estimate=pl.CostEstimate(
            flops=2 * M * Cin * Cout4,
            transcendentals=0,
            bytes_accessed=M * Cin * 2 + Cin * Cout4 * 2 + Cout4 * 4 + M * Cout4 * 2),
    )(x2, wb, bias)

    # Pixel shuffle (M, kh, kw, Cout) -> (N, 2H, 2W, Cout): a few tens of KiB of bf16 glue.
    # TODO(synk): fold this shuffle into the producing kernel's output DMA.
    y = jnp.transpose(y.reshape(N, H, W, 2, 2, Cout), (0, 1, 3, 2, 4, 5))
    return y.reshape(N, 2 * H, 2 * W, Cout)


def _conv3x3_tap_masks(n, h, w):
    """(n*h*w, 9) f32: column dh*3+dw is 1 where input pixel (h+dh-1, w+dw-1)
    of a 3x3 / pad-1 conv lies inside the image, else 0 (zero padding)."""
    hi = jnp.arange(h)
    wi = jnp.arange(w)
    cols = []
    for dh in range(3):
        vh = (hi + dh - 1 >= 0) & (hi + dh - 1 < h)
        for dw in range(3):
            vw = (wi + dw - 1 >= 0) & (wi + dw - 1 < w)
            cols.append((vh[:, None] & vw[None, :]).astype(jnp.float32).reshape(h * w, 1))
    return jnp.tile(jnp.concatenate(cols, axis=1), (n, 1))


def fused_coordconv_cbr2(up, dn, p):
    """convr1 (CoordConv 1x1 -> BN -> ReLU) + convr2 (3x3 -> BN -> ReLU) as one
    pallas_call; the intermediate activation never round-trips through HBM."""
    N, H, W, C = up.shape
    Cd = dn.shape[-1]
    Cout = p["w1_up"].shape[1]
    M = N * H * W

    up2 = up.reshape(M, C)                           # bf16 straight from the tconv kernel
    dn2 = dn.reshape(M, Cd).astype(jnp.bfloat16)

    # CoordConv coordinate channels -> per-pixel f32 bias map
    # (PyTorch order: xx varies along H, yy along W, both normalized to [-1, 1]).
    xx = 2.0 * jnp.arange(H, dtype=jnp.float32) / (H - 1) - 1.0
    yy = 2.0 * jnp.arange(W, dtype=jnp.float32) / (W - 1) - 1.0
    cmap = (xx[:, None, None] * p["w1_coord"][0][None, None, :]
            + yy[None, :, None] * p["w1_coord"][1][None, None, :])     # (H, W, Cout)
    cb1 = jnp.tile(cmap.reshape(H * W, Cout), (N, 1))                  # (M, Cout) f32

    masks = _conv3x3_tap_masks(N, H, W)                                # (M, 9) f32

    w1u = p["w1_up"].astype(jnp.bfloat16)
    w1d = p["w1_dn"].astype(jnp.bfloat16)
    w2b = p["w2"].astype(jnp.bfloat16)                                 # (9, Cout, Cout)
    g1 = p["gamma1"].reshape(1, Cout).astype(jnp.float32)
    b1 = p["beta1"].reshape(1, Cout).astype(jnp.float32)
    g2 = p["gamma2"].reshape(1, Cout).astype(jnp.float32)
    b2 = p["beta2"].reshape(1, Cout).astype(jnp.float32)

    flops = 2 * M * (C + Cd) * Cout + 2 * M * 9 * Cout * Cout
    bytes_accessed = ((M * C + M * Cd + Cout * (C + Cd) + 9 * Cout * Cout) * 2
                      + (M * Cout + M * 9 + 4 * Cout) * 4 + M * Cout * 4)

    y = pl.pallas_call(
        functools.partial(_fused_cbr_kernel, ww=W),
        out_shape=jax.ShapeDtypeStruct((M, Cout), jnp.float32),
        grid_spec=pltpu.PrefetchScalarGridSpec(
            num_scalar_prefetch=0,
            grid=(1,),                       # exact BN stats require the whole M axis resident
            in_specs=[
                pl.BlockSpec((M, C), lambda i: (0, 0)),
                pl.BlockSpec((M, Cd), lambda i: (0, 0)),
                pl.BlockSpec((M, Cout), lambda i: (0, 0)),
                pl.BlockSpec((M, 9), lambda i: (0, 0)),
                pl.BlockSpec((C, Cout), lambda i: (0, 0)),
                pl.BlockSpec((Cd, Cout), lambda i: (0, 0)),
                pl.BlockSpec((1, Cout), lambda i: (0, 0)),
                pl.BlockSpec((1, Cout), lambda i: (0, 0)),
                pl.BlockSpec((9, Cout, Cout), lambda i: (0, 0, 0)),
                pl.BlockSpec((1, Cout), lambda i: (0, 0)),
                pl.BlockSpec((1, Cout), lambda i: (0, 0)),
            ],
            out_specs=pl.BlockSpec((M, Cout), lambda i: (0, 0)),
        ),
        compiler_params=pltpu.CompilerParams(
            dimension_semantics=("arbitrary",),
            vmem_limit_bytes=32 * 1024 * 1024),
        cost_estimate=pl.CostEstimate(
            flops=int(flops), transcendentals=4 * Cout,
            bytes_accessed=int(bytes_accessed)),
    )(up2, dn2, cb1, masks, w1u, w1d, g1, b1, w2b, g2, b2)
    return y.reshape(N, H, W, Cout)


# ------------------------------- JAX glue ---------------------------------

def _crop_like(bypass, up):
    """StackDecoder._crop_concat's crop half (NHWC); the concat itself is fused
    into the convr1 contraction inside the kernel."""
    margin = bypass.shape[1] - up.shape[1]
    c = margin // 2
    Hb, Wb = bypass.shape[1], bypass.shape[2]
    if margin % 2 == 1:
        return bypass[:, c:Hb - (c + 1), c:Wb - (c + 1), :]
    if margin > 0:
        return bypass[:, c:Hb - c, c:Wb - c, :]
    return bypass


def stack_decoder_nchw(x_nchw, down_nchw, p):
    """PyTorch StackDecoder.forward (NCHW in / NCHW out), coordconv=True config.

    TODO(synk): the coordconv=False variant (plain 3x3 convr1) is not wired into
    the fused kernel; only the CoordConv configuration demoed below is implemented.
    TODO(synk): self.upSample (nn.Upsample) is defined but never used in the
    PyTorch forward, so it is intentionally omitted.
    """
    x = jnp.transpose(x_nchw, (0, 2, 3, 1)).astype(jnp.float32)    # NCHW -> NHWC
    d = jnp.transpose(down_nchw, (0, 2, 3, 1)).astype(jnp.float32)
    up = transpose_conv2x2(x, p["tw"], p["tb"])                    # (N, 2H, 2W, Cout) bf16
    dn = _crop_like(d, up)
    y = fused_coordconv_cbr2(up, dn, p)                            # (N, 2H, 2W, Cout) f32
    return jnp.transpose(y, (0, 3, 1, 2))                          # NHWC -> NCHW


# --------------------------- parameter creation ----------------------------

def init_stack_decoder(key, in_channels, out_channels):
    """Random params in the kernels' layouts.

    Porting real PyTorch weights:
      transpose_conv.weight (Cin, Cout, 2, 2) -> transpose(0,2,3,1).reshape(Cin, 4*Cout)
      convr1 CoordConv weight (Cout, Cin+2, 1, 1) -> [:, :, 0, 0].T split into
        rows [0:Cout] (tconv output), [Cout:Cin] (down skip), [Cin:Cin+2] (xx, yy)
      convr2 weight (Cout, Cout, 3, 3) -> transpose(2,3,1,0).reshape(9, Cout, Cout)
    convr1/convr2 conv biases are omitted: a per-channel bias followed by
    train-mode BatchNorm cancels exactly.
    """
    cin, cout = in_channels, out_channels
    cd = cin - cout
    k1, k2, k3, k4, k5, k6 = jax.random.split(key, 6)
    s1 = 1.0 / math.sqrt(cin + 2)
    return dict(
        tw=jax.random.normal(k1, (cin, 4 * cout), jnp.float32) / math.sqrt(cin),
        tb=jax.random.normal(k2, (cout,), jnp.float32) * 0.01,
        w1_up=jax.random.normal(k3, (cout, cout), jnp.float32) * s1,
        w1_dn=jax.random.normal(k4, (cd, cout), jnp.float32) * s1,
        w1_coord=jax.random.normal(k5, (2, cout), jnp.float32) * s1,
        gamma1=jnp.ones((cout,), jnp.float32), beta1=jnp.zeros((cout,), jnp.float32),
        w2=jax.random.normal(k6, (9, cout, cout), jnp.float32) / math.sqrt(9 * cout),
        gamma2=jnp.ones((cout,), jnp.float32), beta2=jnp.zeros((cout,), jnp.float32),
    )


# ------------------------- pure-JAX reference check -------------------------

def reference_forward(x_nchw, down_nchw, p):
    """Pure-JAX/XLA reference (concat + im2col formulation), bf16 matmul operands
    with f32 accumulation to mirror the kernels' numerics."""
    def mm(a, w):
        return jnp.dot(a.astype(jnp.bfloat16), w.astype(jnp.bfloat16),
                       preferred_element_type=jnp.float32)

    def bn_relu(y, g, b):
        mean = jnp.mean(y, axis=0, keepdims=True)
        var = jnp.mean((y - mean) ** 2, axis=0, keepdims=True)
        return jnp.maximum((y - mean) * lax.rsqrt(var + EPS) * g[None, :] + b[None, :], 0.0)

    x = jnp.transpose(x_nchw, (0, 2, 3, 1)).astype(jnp.float32)
    d = jnp.transpose(down_nchw, (0, 2, 3, 1)).astype(jnp.float32)
    N, H, W, Cin = x.shape
    Cout = p["tb"].shape[0]
    t = mm(x.reshape(N * H * W, Cin), p["tw"]) + jnp.tile(p["tb"], 4)[None, :]
    up = jnp.transpose(t.reshape(N, H, W, 2, 2, Cout), (0, 1, 3, 2, 4, 5))
    up = up.reshape(N, 2 * H, 2 * W, Cout)
    dn = _crop_like(d, up)
    H2, W2 = up.shape[1], up.shape[2]
    xx = (2.0 * jnp.arange(H2, dtype=jnp.float32) / (H2 - 1) - 1.0)[None, :, None, None]
    yy = (2.0 * jnp.arange(W2, dtype=jnp.float32) / (W2 - 1) - 1.0)[None, None, :, None]
    xc = jnp.concatenate([up, dn,
                          jnp.broadcast_to(xx, (N, H2, W2, 1)),
                          jnp.broadcast_to(yy, (N, H2, W2, 1))], axis=-1)
    w1 = jnp.concatenate([p["w1_up"], p["w1_dn"], p["w1_coord"]], axis=0)
    a1 = bn_relu(mm(xc.reshape(N * H2 * W2, -1), w1), p["gamma1"], p["beta1"])
    a1 = a1.reshape(N, H2, W2, Cout)
    ap = jnp.pad(a1, ((0, 0), (1, 1), (1, 1), (0, 0)))
    cols = jnp.concatenate([ap[:, dh:dh + H2, dw:dw + W2, :]
                            for dh in range(3) for dw in range(3)], axis=-1)
    a2 = bn_relu(mm(cols.reshape(N * H2 * W2, -1), p["w2"].reshape(9 * Cout, Cout)),
                 p["gamma2"], p["beta2"])
    return jnp.transpose(a2.reshape(N, H2, W2, Cout), (0, 3, 1, 2))


# ---------------------------------- main -----------------------------------

if __name__ == "__main__":
    key = jax.random.PRNGKey(0)
    kx, kd, kp = jax.random.split(key, 3)

    # StackDecoder(in_channels=128, out_channels=64, padding=1, coordconv=True)
    # x: (N, 128, 8, 8) bottom feature map; down_tensor: (N, 64, 16, 16) skip
    # (64 = in_channels - out_channels, so convr1's input has in_channels chans).
    N, cin, cout, H, W = 2, 128, 64, 8, 8
    x = jax.random.normal(kx, (N, cin, H, W), jnp.float32)
    down = jax.random.normal(kd, (N, cin - cout, 2 * H, 2 * W), jnp.float32)
    params = init_stack_decoder(kp, cin, cout)

    # Close over params so Python config (shapes, tap order) stays static.
    fwd = jax.jit(lambda a, b: stack_decoder_nchw(a, b, params))
    out = jax.block_until_ready(fwd(x, down))

    assert out.shape == (N, cout, 2 * H, 2 * W), out.shape
    assert bool(jnp.all(jnp.isfinite(out)))

    ref = reference_forward(x, down, params)
    err = float(jnp.max(jnp.abs(out - ref)))
    assert err < 0.1, f"kernel vs pure-JAX reference: max abs err {err}"
    print("KERNEL_OK")
</pallas_src>

<mosaic_0001>
module attributes {stable_mosaic.version = 11 : i64} {
  func.func @_matmul_bias_kernel(%arg0: i32, %arg1: memref<128x128xbf16, #tpu.memory_space<vmem>>, %arg2: memref<128x128xbf16, #tpu.memory_space<vmem>>, %arg3: memref<1x128xf32, #tpu.memory_space<vmem>>, %arg4: memref<128x128xbf16, #tpu.memory_space<vmem>>) attributes {dimension_semantics = [#tpu.dimension_semantics<parallel>], iteration_bounds = array<i64: 2>, scalar_prefetch = 0 : i64, scratch_operands = 0 : i64, tpu.core_type = #tpu.core_type<tc>, window_params = [{pipeline_mode = #tpu.pipeline_mode<synchronous>, transform_indices = @transform_0, window_bounds = array<i64: 128, 128>}, {transform_indices = @transform_1, window_bounds = array<i64: 128, 128>}, {transform_indices = @transform_2, window_bounds = array<i64: 1, 128>}, {transform_indices = @transform_3, window_bounds = array<i64: 128, 128>}]} {
    %c0 = arith.constant 0 : index
    %c0_0 = arith.constant 0 : index
    %0 = vector.load %arg1[%c0, %c0_0] : memref<128x128xbf16, #tpu.memory_space<vmem>>, vector<128x128xbf16>
    %c0_1 = arith.constant 0 : index
    %c0_2 = arith.constant 0 : index
    %1 = vector.load %arg2[%c0_1, %c0_2] : memref<128x128xbf16, #tpu.memory_space<vmem>>, vector<128x128xbf16>
    %cst = arith.constant dense<0.000000e+00> : vector<128x128xf32>
    %2 = tpu.matmul %0, %1, %cst {dimension_numbers = #tpu.dot_dimension_numbers<[1], [0], [0], [1], [0, 0, 1, 1], [], []>} : vector<128x128xbf16>, vector<128x128xbf16>, vector<128x128xf32> -> vector<128x128xf32>
    %c0_3 = arith.constant 0 : index
    %c0_4 = arith.constant 0 : index
    %3 = vector.load %arg3[%c0_3, %c0_4] : memref<1x128xf32, #tpu.memory_space<vmem>>, vector<1x128xf32>
    %4 = vector.broadcast %3 : vector<1x128xf32> to vector<128x128xf32>
    %5 = arith.addf %2, %4 : vector<128x128xf32>
    %6 = arith.truncf %5 : vector<128x128xf32> to vector<128x128xbf16>
    %c0_5 = arith.constant 0 : index
    %c0_6 = arith.constant 0 : index
    %7 = vector.load %arg4[%c0_5, %c0_6] : memref<128x128xbf16, #tpu.memory_space<vmem>>, vector<128x128xbf16>
    tpu.vector_store %arg4[%c0_5, %c0_6], %6 {strides = array<i32>} : memref<128x128xbf16, #tpu.memory_space<vmem>>, vector<128x128xbf16>,
    return
  }
  func.func @transform_0(%arg0: i32) -> (i32, i32) {
    %c0_i32 = arith.constant 0 : i32
    %c0_i32_0 = arith.constant 0 : i32
    %c0_i32_1 = arith.constant 0 : i32
    return %c0_i32, %c0_i32_0 : i32, i32
  }
  func.func @transform_1(%arg0: i32) -> (i32, i32) {
    %c0_i32 = arith.constant 0 : i32
    %c0_i32_0 = arith.constant 0 : i32
    return %c0_i32, %arg0 : i32, i32
  }
  func.func @transform_2(%arg0: i32) -> (i32, i32) {
    %c0_i32 = arith.constant 0 : i32
    %c0_i32_0 = arith.constant 0 : i32
    return %c0_i32, %arg0 : i32, i32
  }
  func.func @transform_3(%arg0: i32) -> (i32, i32) {
    %c0_i32 = arith.constant 0 : i32
    %c0_i32_0 = arith.constant 0 : i32
    return %c0_i32, %arg0 : i32, i32
  }
}

module attributes {stable_mosaic.version = 11 : i64} {
  func.func @_fused_cbr_kernel(%arg0: i32, %arg1: memref<512x64xbf16, #tpu.memory_space<vmem>>, %arg2: memref<512x64xbf16, #tpu.memory_space<vmem>>, %arg3: memref<512x64xf32, #tpu.memory_space<vmem>>, %arg4: memref<512x9xf32, #tpu.memory_space<vmem>>, %arg5: memref<64x64xbf16, #tpu.memory_space<vmem>>, %arg6: memref<64x64xbf16, #tpu.memory_space<vmem>>, %arg7: memref<1x64xf32, #tpu.memory_space<vmem>>, %arg8: memref<1x64xf32, #tpu.memory_space<vmem>>, %arg9: memref<9x64x64xbf16, #tpu.memory_space<vmem>>, %arg10: memref<1x64xf32, #tpu.memory_space<vmem>>, %arg11: memref<1x64xf32, #tpu.memory_space<vmem>>, %arg12: memref<512x64xf32, #tpu.memory_space<vmem>>) attributes {dimension_semantics = [#tpu.dimension_semantics<arbitrary>], iteration_bounds = array<i64: 1>, scalar_prefetch = 0 : i64, scratch_operands = 0 : i64, tpu.core_type = #tpu.core_type<tc>, window_params = [{pipeline_mode = #tpu.pipeline_mode<synchronous>, transform_indices = @transform_0, window_bounds = array<i64: 512, 64>}, {pipeline_mode = #tpu.pipeline_mode<synchronous>, transform_indices = @transform_1, window_bounds = array<i64: 512, 64>}, {pipeline_mode = #tpu.pipeline_mode<synchronous>, transform_indices = @transform_2, window_bounds = array<i64: 512, 64>}, {pipeline_mode = #tpu.pipeline_mode<synchronous>, transform_indices = @transform_3, window_bounds = array<i64: 512, 9>}, {pipeline_mode = #tpu.pipeline_mode<synchronous>, transform_indices = @transform_4, window_bounds = array<i64: 64, 64>}, {pipeline_mode = #tpu.pipeline_mode<synchronous>, transform_indices = @transform_5, window_bounds = array<i64: 64, 64>}, {pipeline_mode = #tpu.pipeline_mode<synchronous>, transform_indices = @transform_6, window_bounds = array<i64: 1, 64>}, {pipeline_mode = #tpu.pipeline_mode<synchronous>, transform_indices = @transform_7, window_bounds = array<i64: 1, 64>}, {pipeline_mode = #tpu.pipeline_mode<synchronous>, transform_indices = @transform_8, window_bounds = array<i64: 9, 64, 64>}, {pipeline_mode = #tpu.pipeline_mode<synchronous>, transform_indices = @transform_9, window_bounds = array<i64: 1, 64>}, {pipeline_mode = #tpu.pipeline_mode<synchronous>, transform_indices = @transform_10, window_bounds = array<i64: 1, 64>}, {pipeline_mode = #tpu.pipeline_mode<synchronous>, transform_indices = @transform_11, window_bounds = array<i64: 512, 64>}]} {
    %c0 = arith.constant 0 : index
    %c0_0 = arith.constant 0 : index
    %0 = vector.load %arg1[%c0, %c0_0] : memref<512x64xbf16, #tpu.memory_space<vmem>>, vector<512x64xbf16>
    %c0_1 = arith.constant 0 : index
    %c0_2 = arith.constant 0 : index
    %1 = vector.load %arg5[%c0_1, %c0_2] : memref<64x64xbf16, #tpu.memory_space<vmem>>, vector<64x64xbf16>
    %cst = arith.constant dense<0.000000e+00> : vector<512x64xf32>
    %2 = tpu.matmul %0, %1, %cst {dimension_numbers = #tpu.dot_dimension_numbers<[1], [0], [0], [1], [0, 0, 1, 1], [], []>} : vector<512x64xbf16>, vector<64x64xbf16>, vector<512x64xf32> -> vector<512x64xf32>
    %c0_3 = arith.constant 0 : index
    %c0_4 = arith.constant 0 : index
    %3 = vector.load %arg2[%c0_3, %c0_4] : memref<512x64xbf16, #tpu.memory_space<vmem>>, vector<512x64xbf16>
    %c0_5 = arith.constant 0 : index
    %c0_6 = arith.constant 0 : index
    %4 = vector.load %arg6[%c0_5, %c0_6] : memref<64x64xbf16, #tpu.memory_space<vmem>>, vector<64x64xbf16>
    %cst_7 = arith.constant dense<0.000000e+00> : vector<512x64xf32>
    %5 = tpu.matmul %3, %4, %cst_7 {dimension_numbers = #tpu.dot_dimension_numbers<[1], [0], [0], [1], [0, 0, 1, 1], [], []>} : vector<512x64xbf16>, vector<64x64xbf16>, vector<512x64xf32> -> vector<512x64xf32>
    %6 = arith.addf %2, %5 : vector<512x64xf32>
    %c0_8 = arith.constant 0 : index
    %c0_9 = arith.constant 0 : index
    %7 = vector.load %arg3[%c0_8, %c0_9] : memref<512x64xf32, #tpu.memory_space<vmem>>, vector<512x64xf32>
    %8 = arith.addf %6, %7 : vector<512x64xf32>
    %c0_10 = arith.constant 0 : index
    %c0_11 = arith.constant 0 : index
    %9 = vector.load %arg7[%c0_10, %c0_11] : memref<1x64xf32, #tpu.memory_space<vmem>>, vector<1x64xf32>
    %c0_12 = arith.constant 0 : index
    %c0_13 = arith.constant 0 : index
    %10 = vector.load %arg8[%c0_12, %c0_13] : memref<1x64xf32, #tpu.memory_space<vmem>>, vector<1x64xf32>
    %cst_14 = arith.constant dense<0.000000e+00> : vector<64xf32>
    %11 = vector.multi_reduction <add>, %8, %cst_14 [0] : vector<512x64xf32> to vector<64xf32>
    %12 = vector.shape_cast %11 : vector<64xf32> to vector<1x64xf32>
    %cst_15 = arith.constant 0.001953125 : f32
    %13 = vector.broadcast %cst_15 : f32 to vector<1x64xf32>
    %14 = arith.mulf %12, %13 : vector<1x64xf32>
    %15 = vector.broadcast %14 : vector<1x64xf32> to vector<512x64xf32>
    %16 = arith.subf %8, %15 : vector<512x64xf32>
    %17 = arith.mulf %16, %16 : vector<512x64xf32>
    %cst_16 = arith.constant dense<0.000000e+00> : vector<64xf32>
    %18 = vector.multi_reduction <add>, %17, %cst_16 [0] : vector<512x64xf32> to vector<64xf32>
    %19 = vector.shape_cast %18 : vector<64xf32> to vector<1x64xf32>
    %cst_17 = arith.constant 0.001953125 : f32
    %20 = vector.broadcast %cst_17 : f32 to vector<1x64xf32>
    %21 = arith.mulf %19, %20 : vector<1x64xf32>
    %cst_18 = arith.constant 9.99999974E-6 : f32
    %22 = vector.broadcast %cst_18 : f32 to vector<1x64xf32>
    %23 = arith.addf %21, %22 : vector<1x64xf32>
    %24 = math.rsqrt %23 : vector<1x64xf32>
    %25 = arith.mulf %24, %9 : vector<1x64xf32>
    %26 = vector.broadcast %25 : vector<1x64xf32> to vector<512x64xf32>
    %27 = arith.mulf %16, %26 : vector<512x64xf32>
    %28 = vector.broadcast %10 : vector<1x64xf32> to vector<512x64xf32>
    %29 = arith.addf %27, %28 : vector<512x64xf32>
    %cst_19 = arith.constant 0.000000e+00 : f32
    %30 = vector.broadcast %cst_19 : f32 to vector<512x64xf32>
    %31 = arith.maximumf %29, %30 : vector<512x64xf32>
    %cst_20 = arith.constant 0.000000e+00 : f32
    %32 = vector.broadcast %cst_20 : f32 to vector<512x64xf32>
    %c17_i32 = arith.constant 17 : i32
    %33 = tpu.dynamic_rotate %31 by %c17_i32 dim 0 : vector<512x64xf32>, i32 -> vector<512x64xf32>
    %c0_21 = arith.constant 0 : index
    %c0_22 = arith.constant 0 : index
    %34 = vector.load %arg4[%c0_21, %c0_22] : memref<512x9xf32, #tpu.memory_space<vmem>>, vector<512x1xf32>
    %35 = vector.broadcast %34 : vector<512x1xf32> to vector<512x64xf32>
    %36 = arith.mulf %33, %35 : vector<512x64xf32>
    %37 = arith.truncf %36 : vector<512x64xf32> to vector<512x64xbf16>
    %c0_23 = arith.constant 0 : index
    %c0_24 = arith.constant 0 : index
    %c0_25 = arith.constant 0 : index
    %38 = vector.load %arg9[%c0_23, %c0_24, %c0_25] : memref<9x64x64xbf16, #tpu.memory_space<vmem>>, vector<1x64x64xbf16>
    %39 = vector.shape_cast %38 : vector<1x64x64xbf16> to vector<64x64xbf16>
    %cst_26 = arith.constant dense<0.000000e+00> : vector<512x64xf32>
    %40 = tpu.matmul %37, %39, %cst_26 {dimension_numbers = #tpu.dot_dimension_numbers<[1], [0], [0], [1], [0, 0, 1, 1], [], []>} : vector<512x64xbf16>, vector<64x64xbf16>, vector<512x64xf32> -> vector<512x64xf32>
    %41 = arith.addf %32, %40 : vector<512x64xf32>
    %c16_i32 = arith.constant 16 : i32
    %42 = tpu.dynamic_rotate %31 by %c16_i32 dim 0 : vector<512x64xf32>, i32 -> vector<512x64xf32>
    %c0_27 = arith.constant 0 : index
    %c1 = arith.constant 1 : index
    %43 = vector.load %arg4[%c0_27, %c1] : memref<512x9xf32, #tpu.memory_space<vmem>>, vector<512x1xf32>
    %44 = vector.broadcast %43 : vector<512x1xf32> to vector<512x64xf32>
    %45 = arith.mulf %42, %44 : vector<512x64xf32>
    %46 = arith.truncf %45 : vector<512x64xf32> to vector<512x64xbf16>
    %c1_28 = arith.constant 1 : index
    %c0_29 = arith.constant 0 : index
    %c0_30 = arith.constant 0 : index
    %47 = vector.load %arg9[%c1_28, %c0_29, %c0_30] : memref<9x64x64xbf16, #tpu.memory_space<vmem>>, vector<1x64x64xbf16>
    %48 = vector.shape_cast %47 : vector<1x64x64xbf16> to vector<64x64xbf16>
    %cst_31 = arith.constant dense<0.000000e+00> : vector<512x64xf32>
    %49 = tpu.matmul %46, %48, %cst_31 {dimension_numbers = #tpu.dot_dimension_numbers<[1], [0], [0], [1], [0, 0, 1, 1], [], []>} : vector<512x64xbf16>, vector<64x64xbf16>, vector<512x64xf32> -> vector<512x64xf32>
    %50 = arith.addf %41, %49 : vector<512x64xf32>
    %c15_i32 = arith.constant 15 : i32
    %51 = tpu.dynamic_rotate %31 by %c15_i32 dim 0 : vector<512x64xf32>, i32 -> vector<512x64xf32>
    %c0_32 = arith.constant 0 : index
    %c2 = arith.constant 2 : index
    %52 = vector.load %arg4[%c0_32, %c2] : memref<512x9xf32, #tpu.memory_space<vmem>>, vector<512x1xf32>
    %53 = vector.broadcast %52 : vector<512x1xf32> to vector<512x64xf32>
    %54 = arith.mulf %51, %53 : vector<512x64xf32>
    %55 = arith.truncf %54 : vector<512x64xf32> to vector<512x64xbf16>
    %c2_33 = arith.constant 2 : index
    %c0_34 = arith.constant 0 : index
    %c0_35 = arith.constant 0 : index
    %56 = vector.load %arg9[%c2_33, %c0_34, %c0_35] : memref<9x64x64xbf16, #tpu.memory_space<vmem>>, vector<1x64x64xbf16>
    %57 = vector.shape_cast %56 : vector<1x64x64xbf16> to vector<64x64xbf16>
    %cst_36 = arith.constant dense<0.000000e+00> : vector<512x64xf32>
    %58 = tpu.matmul %55, %57, %cst_36 {dimension_numbers = #tpu.dot_dimension_numbers<[1], [0], [0], [1], [0, 0, 1, 1], [], []>} : vector<512x64xbf16>, vector<64x64xbf16>, vector<512x64xf32> -> vector<512x64xf32>
    %59 = arith.addf %50, %58 : vector<512x64xf32>
    %c1_i32 = arith.constant 1 : i32
    %60 = tpu.dynamic_rotate %31 by %c1_i32 dim 0 : vector<512x64xf32>, i32 -> vector<512x64xf32>
    %c0_37 = arith.constant 0 : index
    %c3 = arith.constant 3 : index
    %61 = vector.load %arg4[%c0_37, %c3] : memref<512x9xf32, #tpu.memory_space<vmem>>, vector<512x1xf32>
    %62 = vector.broadcast %61 : vector<512x1xf32> to vector<512x64xf32>
    %63 = arith.mulf %60, %62 : vector<512x64xf32>
    %64 = arith.truncf %63 : vector<512x64xf32> to vector<512x64xbf16>
    %c3_38 = arith.constant 3 : index
    %c0_39 = arith.constant 0 : index
    %c0_40 = arith.constant 0 : index
    %65 = vector.load %arg9[%c3_38, %c0_39, %c0_40] : memref<9x64x64xbf16, #tpu.memory_space<vmem>>, vector<1x64x64xbf16>
    %66 = vector.shape_cast %65 : vector<1x64x64xbf16> to vector<64x64xbf16>
    %cst_41 = arith.constant dense<0.000000e+00> : vector<512x64xf32>
    %67 = tpu.matmul %64, %66, %cst_41 {dimension_numbers = #tpu.dot_dimension_numbers<[1], [0], [0], [1], [0, 0, 1, 1], [], []>} : vector<512x64xbf16>, vector<64x64xbf16>, vector<512x64xf32> -> vector<512x64xf32>
    %68 = arith.addf %59, %67 : vector<512x64xf32>
    %c0_42 = arith.constant 0 : index
    %c4 = arith.constant 4 : index
    %69 = vector.load %arg4[%c0_42, %c4] : memref<512x9xf32, #tpu.memory_space<vmem>>, vector<512x1xf32>
    %70 = vector.broadcast %69 : vector<512x1xf32> to vector<512x64xf32>
    %71 = arith.mulf %31, %70 : vector<512x64xf32>
    %72 = arith.truncf %71 : vector<512x64xf32> to vector<512x64xbf16>
    %c4_43 = arith.constant 4 : index
    %c0_44 = arith.constant 0 : index
    %c0_45 = arith.constant 0 : index
    %73 = vector.load %arg9[%c4_43, %c0_44, %c0_45] : memref<9x64x64xbf16, #tpu.memory_space<vmem>>, vector<1x64x64xbf16>
    %74 = vector.shape_cast %73 : vector<1x64x64xbf16> to vector<64x64xbf16>
    %cst_46 = arith.constant dense<0.000000e+00> : vector<512x64xf32>
    %75 = tpu.matmul %72, %74, %cst_46 {dimension_numbers = #tpu.dot_dimension_numbers<[1], [0], [0], [1], [0, 0, 1, 1], [], []>} : vector<512x64xbf16>, vector<64x64xbf16>, vector<512x64xf32> -> vector<512x64xf32>
    %76 = arith.addf %68, %75 : vector<512x64xf32>
    %c511_i32 = arith.constant 511 : i32
    %77 = tpu.dynamic_rotate %31 by %c511_i32 dim 0 : vector<512x64xf32>, i32 -> vector<512x64xf32>
    %c0_47 = arith.constant 0 : index
    %c5 = arith.constant 5 : index
    %78 = vector.load %arg4[%c0_47, %c5] : memref<512x9xf32, #tpu.memory_space<vmem>>, vector<512x1xf32>
    %79 = vector.broadcast %78 : vector<512x1xf32> to vector<512x64xf32>
    %80 = arith.mulf %77, %79 : vector<512x64xf32>
    %81 = arith.truncf %80 : vector<512x64xf32> to vector<512x64xbf16>
    %c5_48 = arith.constant 5 : index
    %c0_49 = arith.constant 0 : index
    %c0_50 = arith.constant 0 : index
    %82 = vector.load %arg9[%c5_48, %c0_49, %c0_50] : memref<9x64x64xbf16, #tpu.memory_space<vmem>>, vector<1x64x64xbf16>
    %83 = vector.shape_cast %82 : vector<1x64x64xbf16> to vector<64x64xbf16>
    %cst_51 = arith.constant dense<0.000000e+00> : vector<512x64xf32>
    %84 = tpu.matmul %81, %83, %cst_51 {dimension_numbers = #tpu.dot_dimension_numbers<[1], [0], [0], [1], [0, 0, 1, 1], [], []>} : vector<512x64xbf16>, vector<64x64xbf16>, vector<512x64xf32> -> vector<512x64xf32>
    %85 = arith.addf %76, %84 : vector<512x64xf32>
    %c497_i32 = arith.constant 497 : i32
    %86 = tpu.dynamic_rotate %31 by %c497_i32 dim 0 : vector<512x64xf32>, i32 -> vector<512x64xf32>
    %c0_52 = arith.constant 0 : index
    %c6 = arith.constant 6 : index
    %87 = vector.load %arg4[%c0_52, %c6] : memref<512x9xf32, #tpu.memory_space<vmem>>, vector<512x1xf32>
    %88 = vector.broadcast %87 : vector<512x1xf32> to vector<512x64xf32>
    %89 = arith.mulf %86, %88 : vector<512x64xf32>
    %90 = arith.truncf %89 : vector<512x64xf32> to vector<512x64xbf16>
    %c6_53 = arith.constant 6 : index
    %c0_54 = arith.constant 0 : index
    %c0_55 = arith.constant 0 : index
    %91 = vector.load %arg9[%c6_53, %c0_54, %c0_55] : memref<9x64x64xbf16, #tpu.memory_space<vmem>>, vector<1x64x64xbf16>
    %92 = vector.shape_cast %91 : vector<1x64x64xbf16> to vector<64x64xbf16>
    %cst_56 = arith.constant dense<0.000000e+00> : vector<512x64xf32>
    %93 = tpu.matmul %90, %92, %cst_56 {dimension_numbers = #tpu.dot_dimension_numbers<[1], [0], [0], [1], [0, 0, 1, 1], [], []>} : vector<512x64xbf16>, vector<64x64xbf16>, vector<512x64xf32> -> vector<512x64xf32>
    %94 = arith.addf %85, %93 : vector<512x64xf32>
    %c496_i32 = arith.constant 496 : i32
    %95 = tpu.dynamic_rotate %31 by %c496_i32 dim 0 : vector<512x64xf32>, i32 -> vector<512x64xf32>
    %c0_57 = arith.constant 0 : index
    %c7 = arith.constant 7 : index
    %96 = vector.load %arg4[%c0_57, %c7] : memref<512x9xf32, #tpu.memory_space<vmem>>, vector<512x1xf32>
    %97 = vector.broadcast %96 : vector<512x1xf32> to vector<512x64xf32>
    %98 = arith.mulf %95, %97 : vector<512x64xf32>
    %99 = arith.truncf %98 : vector<512x64xf32> to vector<512x64xbf16>
    %c7_58 = arith.constant 7 : index
    %c0_59 = arith.constant 0 : index
    %c0_60 = arith.constant 0 : index
    %100 = vector.load %arg9[%c7_58, %c0_59, %c0_60] : memref<9x64x64xbf16, #tpu.memory_space<vmem>>, vector<1x64x64xbf16>
    %101 = vector.shape_cast %100 : vector<1x64x64xbf16> to vector<64x64xbf16>
    %cst_61 = arith.constant dense<0.000000e+00> : vector<512x64xf32>
    %102 = tpu.matmul %99, %101, %cst_61 {dimension_numbers = #tpu.dot_dimension_numbers<[1], [0], [0], [1], [0, 0, 1, 1], [], []>} : vector<512x64xbf16>, vector<64x64xbf16>, vector<512x64xf32> -> vector<512x64xf32>
    %103 = arith.addf %94, %102 : vector<512x64xf32>
    %c495_i32 = arith.constant 495 : i32
    %104 = tpu.dynamic_rotate %31 by %c495_i32 dim 0 : vector<512x64xf32>, i32 -> vector<512x64xf32>
    %c0_62 = arith.constant 0 : index
    %c8 = arith.constant 8 : index
    %105 = vector.load %arg4[%c0_62, %c8] : memref<512x9xf32, #tpu.memory_space<vmem>>, vector<512x1xf32>
    %106 = vector.broadcast %105 : vector<512x1xf32> to vector<512x64xf32>
    %107 = arith.mulf %104, %106 : vector<512x64xf32>
    %108 = arith.truncf %107 : vector<512x64xf32> to vector<512x64xbf16>
    %c8_63 = arith.constant 8 : index
    %c0_64 = arith.constant 0 : index
    %c0_65 = arith.constant 0 : index
    %109 = vector.load %arg9[%c8_63, %c0_64, %c0_65] : memref<9x64x64xbf16, #tpu.memory_space<vmem>>, vector<1x64x64xbf16>
    %110 = vector.shape_cast %109 : vector<1x64x64xbf16> to vector<64x64xbf16>
    %cst_66 = arith.constant dense<0.000000e+00> : vector<512x64xf32>
    %111 = tpu.matmul %108, %110, %cst_66 {dimension_numbers = #tpu.dot_dimension_numbers<[1], [0], [0], [1], [0, 0, 1, 1], [], []>} : vector<512x64xbf16>, vector<64x64xbf16>, vector<512x64xf32> -> vector<512x64xf32>
    %112 = arith.addf %103, %111 : vector<512x64xf32>
    %c0_67 = arith.constant 0 : index
    %c0_68 = arith.constant 0 : index
    %113 = vector.load %arg10[%c0_67, %c0_68] : memref<1x64xf32, #tpu.memory_space<vmem>>, vector<1x64xf32>
    %c0_69 = arith.constant 0 : index
    %c0_70 = arith.constant 0 : index
    %114 = vector.load %arg11[%c0_69, %c0_70] : memref<1x64xf32, #tpu.memory_space<vmem>>, vector<1x64xf32>
    %cst_71 = arith.constant dense<0.000000e+00> : vector<64xf32>
    %115 = vector.multi_reduction <add>, %112, %cst_71 [0] : vector<512x64xf32> to vector<64xf32>
    %116 = vector.shape_cast %115 : vector<64xf32> to vector<1x64xf32>
    %cst_72 = arith.constant 0.001953125 : f32
    %117 = vector.broadcast %cst_72 : f32 to vector<1x64xf32>
    %118 = arith.mulf %116, %117 : vector<1x64xf32>
    %119 = vector.broadcast %118 : vector<1x64xf32> to vector<512x64xf32>
    %120 = arith.subf %112, %119 : vector<512x64xf32>
    %121 = arith.mulf %120, %120 : vector<512x64xf32>
    %cst_73 = arith.constant dense<0.000000e+00> : vector<64xf32>
    %122 = vector.multi_reduction <add>, %121, %cst_73 [0] : vector<512x64xf32> to vector<64xf32>
    %123 = vector.shape_cast %122 : vector<64xf32> to vector<1x64xf32>
    %cst_74 = arith.constant 0.001953125 : f32
    %124 = vector.broadcast %cst_74 : f32 to vector<1x64xf32>
    %125 = arith.mulf %123, %124 : vector<1x64xf32>
    %cst_75 = arith.constant 9.99999974E-6 : f32
    %126 = vector.broadcast %cst_75 : f32 to vector<1x64xf32>
    %127 = arith.addf %125, %126 : vector<1x64xf32>
    %128 = math.rsqrt %127 : vector<1x64xf32>
    %129 = arith.mulf %128, %113 : vector<1x64xf32>
    %130 = vector.broadcast %129 : vector<1x64xf32> to vector<512x64xf32>
    %131 = arith.mulf %120, %130 : vector<512x64xf32>
    %132 = vector.broadcast %114 : vector<1x64xf32> to vector<512x64xf32>
    %133 = arith.addf %131, %132 : vector<512x64xf32>
    %cst_76 = arith.constant 0.000000e+00 : f32
    %134 = vector.broadcast %cst_76 : f32 to vector<512x64xf32>
    %135 = arith.maximumf %133, %134 : vector<512x64xf32>
    %c0_77 = arith.constant 0 : index
    %c0_78 = arith.constant 0 : index
    %136 = vector.load %arg12[%c0_77, %c0_78] : memref<512x64xf32, #tpu.memory_space<vmem>>, vector<512x64xf32>
    tpu.vector_store %arg12[%c0_77, %c0_78], %135 {strides = array<i32>} : memref<512x64xf32, #tpu.memory_space<vmem>>, vector<512x64xf32>,
    return
  }
  func.func @transform_0(%arg0: i32) -> (i32, i32) {
    %c0_i32 = arith.constant 0 : i32
    %c0_i32_0 = arith.constant 0 : i32
    %c0_i32_1 = arith.constant 0 : i32
    return %c0_i32, %c0_i32_0 : i32, i32
  }
  func.func @transform_1(%arg0: i32) -> (i32, i32) {
    %c0_i32 = arith.constant 0 : i32
    %c0_i32_0 = arith.constant 0 : i32
    %c0_i32_1 = arith.constant 0 : i32
    return %c0_i32, %c0_i32_0 : i32, i32
  }
  func.func @transform_2(%arg0: i32) -> (i32, i32) {
    %c0_i32 = arith.constant 0 : i32
    %c0_i32_0 = arith.constant 0 : i32
    %c0_i32_1 = arith.constant 0 : i32
    return %c0_i32, %c0_i32_0 : i32, i32
  }
  func.func @transform_3(%arg0: i32) -> (i32, i32) {
    %c0_i32 = arith.constant 0 : i32
    %c0_i32_0 = arith.constant 0 : i32
    %c0_i32_1 = arith.constant 0 : i32
    return %c0_i32, %c0_i32_0 : i32, i32
  }
  func.func @transform_4(%arg0: i32) -> (i32, i32) {
    %c0_i32 = arith.constant 0 : i32
    %c0_i32_0 = arith.constant 0 : i32
    %c0_i32_1 = arith.constant 0 : i32
    return %c0_i32, %c0_i32_0 : i32, i32
  }
  func.func @transform_5(%arg0: i32) -> (i32, i32) {
    %c0_i32 = arith.constant 0 : i32
    %c0_i32_0 = arith.constant 0 : i32
    %c0_i32_1 = arith.constant 0 : i32
    return %c0_i32, %c0_i32_0 : i32, i32
  }
  func.func @transform_6(%arg0: i32) -> (i32, i32) {
    %c0_i32 = arith.constant 0 : i32
    %c0_i32_0 = arith.constant 0 : i32
    %c0_i32_1 = arith.constant 0 : i32
    return %c0_i32, %c0_i32_0 : i32, i32
  }
  func.func @transform_7(%arg0: i32) -> (i32, i32) {
    %c0_i32 = arith.constant 0 : i32
    %c0_i32_0 = arith.constant 0 : i32
    %c0_i32_1 = arith.constant 0 : i32
    return %c0_i32, %c0_i32_0 : i32, i32
  }
  func.func @transform_8(%arg0: i32) -> (i32, i32, i32) {
    %c0_i32 = arith.constant 0 : i32
    %c0_i32_0 = arith.constant 0 : i32
    %c0_i32_1 = arith.constant 0 : i32
    %c0_i32_2 = arith.constant 0 : i32
    return %c0_i32, %c0_i32_0, %c0_i32_1 : i32, i32, i32
  }
  func.func @transform_9(%arg0: i32) -> (i32, i32) {
    %c0_i32 = arith.constant 0 : i32
    %c0_i32_0 = arith.constant 0 : i32
    %c0_i32_1 = arith.constant 0 : i32
    return %c0_i32, %c0_i32_0 : i32, i32
  }
  func.func @transform_10(%arg0: i32) -> (i32, i32) {
    %c0_i32 = arith.constant 0 : i32
    %c0_i32_0 = arith.constant 0 : i32
    %c0_i32_1 = arith.constant 0 : i32
    return %c0_i32, %c0_i32_0 : i32, i32
  }
  func.func @transform_11(%arg0: i32) -> (i32, i32) {
    %c0_i32 = arith.constant 0 : i32
    %c0_i32_0 = arith.constant 0 : i32
    %c0_i32_1 = arith.constant 0 : i32
    return %c0_i32, %c0_i32_0 : i32, i32
  }
}

</mosaic_0001>

<llo_original>
// kernel: tile.15
$region0: #{tile.15}
  #allocation0 [shape = 's32[1]{0}', space=sflag, size = 0x4, scoped, tag = 'scoped memory for tile.15']
  %s0 = inlined_call_operand.vmem [shape: f32[64], index: 0, kind: input, shape index: {}]
  %s1 = inlined_call_operand.vmem [shape: f32[4,64], index: 1, kind: output, shape index: {}]
  // Predicated region
  $region2: #{tile.15} parent=0 // pred_check
    _
  $region3: #{tile.15} parent=0 // pred_check_branch
    %3 = sbr.rel (0) target = $region5
  $region4: #{tile.15} parent=0 // pred_region
    _
  $region5: #{tile.15} parent=0 // pred_fallthru
    _
  %v4 = vld [vmem:[%s0] ss:$0 sm:$0xff]
  %5 = vst [vmem:[%s1] sm:$0xf] %v4

// kernel: tile.16
$region0: #{tile.16}
  %s0 = inlined_call_operand.vmem [shape: f32[4,64], index: 0, kind: input, shape index: {}]
  %s1 = inlined_call_operand.vmem [shape: f32[1,256], index: 1, kind: output, shape index: {}]
  $region1: #{tile.16} parent=0
    #allocation0 [shape = 'u8[8192]{0}', space=vmem, size = 0x2000, scoped, tag = 'scoped mem for output reshape']
    #allocation1 [shape = 'u8[4096]{0}', space=vmem, size = 0x1000, scoped, tag = 'scoped mem for input reshape']
    %s3 = sshllo.u32 0, 4
    %v4 = vld [vmem:[%s0] sm:%s3]
    %5 = vst [vmem:[#allocation1] sm:%s3] %v4
    %s6 = smov 3
    %v7 = vld [vmem:[#allocation1] ss:$2 sm:%s6]
    %vm8 = vcmask 523264
    %9 = vst.msk [vmem:[#allocation0] ss:$8 sm:$0x3] %vm8, %v7
    %s10 = scalar_lea.vmem [#allocation1], 1
    %s11 = smov 3
    %v12 = vld [vmem:[%s10] ss:$2 sm:%s11]
    %13 = vrot.lane.b32.xlu0 %v12, 64
    %v14 = vpop.permute.xlu0 %13
    %vm15 = vcmask 1048064
    %16 = vst.msk [vmem:[#allocation0] ss:$8 sm:$0x3] %vm15, %v14
    %s18 = sshllo.u32 0, 1
    %v20 = vld [vmem:[#allocation0] sm:%s18]
    %s21 = sshllo.u32 0, 1
    %22 = vst [vmem:[%s1] sm:%s21] %v20
    %s23 = scalar_lea.vmem [#allocation0], 8
    %v24 = vld [vmem:[%s23] sm:%s18]
    %s25 = sshllo.u32 0, 1
    %s26 = scalar_lea.vmem %s1, 1
    %27 = vst [vmem:[%s26] sm:%s25] %v24

// kernel: _lambda_.2
$region0: #{_lambda_.2}
  #allocation0 [shape = 'u32[]', space=smem, size = 0x4, offset = 0x4, fixed_abs, tag = 'smem constant byte address 0x4 - core index']
  #allocation1 [shape = 'u32[144,128]{1,0:T(1,128)}', space=vmem, size = 0x12000, scoped, tag = 'internal scratch']
  %s0 = inlined_call_operand.vmem [shape: bf16[128,128], index: 0, kind: input, shape index: {}]
  %s1 = inlined_call_operand.vmem [shape: bf16[128,256], index: 1, kind: input, shape index: {}]
  %s2 = inlined_call_operand.vmem [shape: f32[1,256], index: 2, kind: input, shape index: {}]
  %s3 = inlined_call_operand.vmem [shape: bf16[128,256], index: 3, kind: output, shape index: {}]
  %s4 = sld [smem:[#allocation0]]
  $region123: #{_lambda_.2} parent=0
    _
  %s6 = ssub.s32 1, %s4
  %s7 = scalar_select 0, %s6, %s4
  $region1: #{_lambda_.2} parent=0
    #allocation2 [shape = 'u8[65536]{0}', space=vmem, size = 0x10000, scoped, tag = 'input window, operand 1']
    #allocation3 [shape = 'u8[65536]{0}', space=vmem, size = 0x10000, scoped, tag = 'output window, operand 0']
    loop: start=0, step=1, limit=4
    $region2: #{_lambda_.2} parent=1 // loop_pre_header
      _
    $region3: #{_lambda_.2} parent=1 // loop_header
      %s9 = sphi 0, %s13
      %p10 = scmp.ge.s32.totalorder %s9, 4
      %s17 = sphi 0, %s17
      %s19 = sphi 0, %s17
      %s20 = sphi 0, %s19
      %s34 = sphi 0, %s20
      %s40 = sphi 0, %s42
      %s43 = sphi 0, %s40
      %s44 = sphi 0, %s43
      %s60 = sphi 0, %s44
      %s66 = sphi 0, %s68
      %s69 = sphi 0, %s66
      %s70 = sphi 0, %s69
      %s86 = sphi 0, %s70
      %s92 = sphi 0, %s94
      %s95 = sphi 0, %s92
      %s96 = sphi 0, %s95
      %s112 = sphi 0, %s96
    $region4: #{_lambda_.2} parent=1 // loop_header_branch
      %12 = sbr.rel (%p10) target = $region8
    $region5: #{_lambda_.2} parent=1 // loop_body
      %s14 = ssub.s32 %s9, 1
      %s15 = ssub.s32 %s9, 2
      %s16 = sadd.s32 %s9, 1
      %s18 = sadd.s32 %s17, 1
      %p21 = scmp.eq.s32.totalorder %s9, 1
      %p22 = scmp.ne.s32.totalorder %s17, %s19
      %p23 = scmp.eq.s32.totalorder %s9, 0
      %p24 = por %p22, %p23
      %p25 = scmp.ne.s32.totalorder %s17, %s19
      %p26 = scmp.eq.s32.totalorder %s14, 1
      %p27 = por %p25, %p26
      %p28 = scmp.ne.s32.totalorder %s19, %s20
      %p29 = scmp.eq.s32.totalorder %s14, 0
      %p30 = por %p28, %p29
      %p31 = scmp.ne.s32.totalorder %s19, %s20
      %p32 = scmp.eq.s32.totalorder %s15, 1
      %p33 = por %p31, %p32
      %p35 = scmp.ne.s32.totalorder %s20, %s34
      %p36 = scmp.eq.s32.totalorder %s15, 0
      %p37 = por %p35, %p36
      %s38 = ssub.s32 %s9, %s16
      %p39 = scmp.eq.s32.totalorder %s38, 0
      %s41 = sadd.s32 %s40, 1
      %s42 = scalar_select %p39, %s40, %s41
      %p45 = pneg %p39
      %p46 = scmp.eq.s32.totalorder %s9, 1
      %p47 = por %p45, %p46
      %p48 = scmp.ne.s32.totalorder %s40, %s43
      %p49 = scmp.eq.s32.totalorder %s9, 0
      %p50 = por %p48, %p49
      %p51 = scmp.ne.s32.totalorder %s40, %s43
      %p52 = scmp.eq.s32.totalorder %s14, 1
      %p53 = por %p51, %p52
      %p54 = scmp.ne.s32.totalorder %s43, %s44
      %p55 = scmp.eq.s32.totalorder %s14, 0
      %p56 = por %p54, %p55
      %p57 = scmp.ne.s32.totalorder %s43, %s44
      %p58 = scmp.eq.s32.totalorder %s15, 1
      %p59 = por %p57, %p58
      %p61 = scmp.ne.s32.totalorder %s44, %s60
      %p62 = scmp.eq.s32.totalorder %s15, 0
      %p63 = por %p61, %p62
      %s64 = ssub.s32 %s9, %s16
      %p65 = scmp.eq.s32.totalorder %s64, 0
      %s67 = sadd.s32 %s66, 1
      %s68 = scalar_select %p65, %s66, %s67
      %p71 = pneg %p65
      %p72 = scmp.eq.s32.totalorder %s9, 1
      %p73 = por %p71, %p72
      %p74 = scmp.ne.s32.totalorder %s66, %s69
      %p75 = scmp.eq.s32.totalorder %s9, 0
      %p76 = por %p74, %p75
      %p77 = scmp.ne.s32.totalorder %s66, %s69
      %p78 = scmp.eq.s32.totalorder %s14, 1
      %p79 = por %p77, %p78
      %p80 = scmp.ne.s32.totalorder %s69, %s70
      %p81 = scmp.eq.s32.totalorder %s14, 0
      %p82 = por %p80, %p81
      %p83 = scmp.ne.s32.totalorder %s69, %s70
      %p84 = scmp.eq.s32.totalorder %s15, 1
      %p85 = por %p83, %p84
      %p87 = scmp.ne.s32.totalorder %s70, %s86
      %p88 = scmp.eq.s32.totalorder %s15, 0
      %p89 = por %p87, %p88
      %s90 = ssub.s32 %s9, %s16
      %p91 = scmp.eq.s32.totalorder %s90, 0
      %s93 = sadd.s32 %s92, 1
      %s94 = scalar_select %p91, %s92, %s93
      %p97 = pneg %p91
      %p98 = scmp.eq.s32.totalorder %s9, 1
      %p99 = por %p97, %p98
      %p100 = scmp.ne.s32.totalorder %s92, %s95
      %p101 = scmp.eq.s32.totalorder %s9, 0
      %p102 = por %p100, %p101
      %p103 = scmp.ne.s32.totalorder %s92, %s95
      %p104 = scmp.eq.s32.totalorder %s14, 1
      %p105 = por %p103, %p104
      %p106 = scmp.ne.s32.totalorder %s95, %s96
      %p107 = scmp.eq.s32.totalorder %s14, 0
      %p108 = por %p106, %p107
      %p109 = scmp.ne.s32.totalorder %s95, %s96
      %p110 = scmp.eq.s32.totalorder %s15, 1
      %p111 = por %p109, %p110
      %p113 = scmp.ne.s32.totalorder %s96, %s112
      %p114 = scmp.eq.s32.totalorder %s15, 0
      %p115 = por %p113, %p114
      %p116 = scmp.le.s32.totalorder 1, %s9
      %p117 = scmp.lt.s32.totalorder %s9, 3
      %p118 = pnand %p116, %p117
      %p119 = pneg %p118
      // Predicated region
      $region9: #{_lambda_.2} parent=5 // pred_check
        _
      $region10: #{_lambda_.2} parent=5 // pred_check_branch
        %121 = sbr.rel (%p118) target = $region12
      $region11: #{_lambda_.2} parent=5 // pred_region
        %s122 = ssub.s32 %s9, 1
        // Predicated region
        $region13: #{_lambda_.2} parent=11 // pred_check
          %p123 = pneg %p30
        $region14: #{_lambda_.2} parent=11 // pred_check_branch
          %125 = sbr.rel (%p123) target = $region16
        $region15: #{_lambda_.2} parent=11 // pred_region
          _
        $region16: #{_lambda_.2} parent=11 // pred_fallthru
          _
      $region12: #{_lambda_.2} parent=5 // pred_fallthru
        _
      %p126 = scmp.lt.s32.totalorder %s9, 2
      // Predicated region
      $region17: #{_lambda_.2} parent=5 // pred_check
        %p127 = pneg %p126
      $region18: #{_lambda_.2} parent=5 // pred_check_branch
        %129 = sbr.rel (%p127) target = $region20
      $region19: #{_lambda_.2} parent=5 // pred_region
        // Predicated region
        $region21: #{_lambda_.2} parent=19 // pred_check
          %p130 = pneg %p50
        $region22: #{_lambda_.2} parent=19 // pred_check_branch
          %132 = sbr.rel (%p130) target = $region24
        $region23: #{_lambda_.2} parent=19 // pred_region
          %s133 = sand.u32 %s40, 1
          %s134 = sand.u32 %s40, 1
          %s135 = smul.addr %s134, 64
          %s136 = scalar_lea.vmem [#allocation2], %s135
          %s137 = smul.addr %s9, 4
          %s138 = scalar_lea.vmem %s1, %s137
          // Predicated region
          $region25: #{_lambda_.2} parent=23 // pred_check
            _
          $region26: #{_lambda_.2} parent=23 // pred_check_branch
            %140 = sbr.rel (0) target = $region28
          $region27: #{_lambda_.2} parent=23 // pred_region
            // Predicated region
            $region29: #{_lambda_.2} parent=27 // pred_check
              _
            $region30: #{_lambda_.2} parent=27 // pred_check_branch
              %142 = sbr.rel target = $region32
            $region31: #{_lambda_.2} parent=27 // pred_region
              // Predicated region
              $region44: #{_lambda_.2} parent=31 // pred_check
                _
              $region45: #{_lambda_.2} parent=31 // pred_check_branch
                %187 = sbr.rel (0) target = $region47
              $region46: #{_lambda_.2} parent=31 // pred_region
                loop: start=0, step=1, limit=1
                $region48: #{_lambda_.2} parent=46 // loop_pre_header
                  _
                $region49: #{_lambda_.2} parent=46 // loop_header
                  %s189 = sphi 0, %s193
                  %p190 = scmp.ge.s32.totalorder %s189, 1
                  %s194 = sphi %s138, %s138
                  %s195 = sphi %s136, %s136
                $region50: #{_lambda_.2} parent=46 // loop_header_branch
                  %192 = sbr.rel (%p190) target = $region54
                $region51: #{_lambda_.2} parent=46 // loop_body
                  _
                $region52: #{_lambda_.2} parent=46 // loop_footer
                  %s193 = sadd.s32 1, %s189
                $region53: #{_lambda_.2} parent=46 // loop_footer_branch
                  %188 = sbr.rel target = $region49
                $region54: #{_lambda_.2} parent=46 // loop_exit
                  _
                loop: start=0, step=1, limit=1
                $region55: #{_lambda_.2} parent=46 // loop_pre_header
                  _
                $region56: #{_lambda_.2} parent=46 // loop_header
                  %s198 = sphi 0, %s202
                  %p199 = scmp.ge.s32.totalorder %s198, 1
                  %s203 = sphi %s138, %s138
                  %s204 = sphi %s136, %s136
                $region57: #{_lambda_.2} parent=46 // loop_header_branch
                  %201 = sbr.rel (%p199) target = $region61
                $region58: #{_lambda_.2} parent=46 // loop_body
                  %v205 = vld [vmem:[%s203] sm:$0xf]
                  %206 = vst [vmem:[%s204] sm:$0xf] %v205
                  %v207 = vld [vmem:[%s203 + $0x8] sm:$0xf]
                  %208 = vst [vmem:[%s204 + $0x4] sm:$0xf] %v207
                  %v209 = vld [vmem:[%s203 + $0x10] sm:$0xf]
                  %210 = vst [vmem:[%s204 + $0x8] sm:$0xf] %v209
                  %v211 = vld [vmem:[%s203 + $0x18] sm:$0xf]
                  %212 = vst [vmem:[%s204 + $0xc] sm:$0xf] %v211
                  %v213 = vld [vmem:[%s203 + $0x20] sm:$0xf]
                  %214 = vst [vmem:[%s204 + $0x10] sm:$0xf] %v213
                  %v215 = vld [vmem:[%s203 + $0x28] sm:$0xf]
                  %216 = vst [vmem:[%s204 + $0x14] sm:$0xf] %v215
                  %v217 = vld [vmem:[%s203 + $0x30] sm:$0xf]
                  %218 = vst [vmem:[%s204 + $0x18] sm:$0xf] %v217
                  %v219 = vld [vmem:[%s203 + $0x38] sm:$0xf]
                  %220 = vst [vmem:[%s204 + $0x1c] sm:$0xf] %v219
                  %v221 = vld [vmem:[%s203 + $0x40] sm:$0xf]
                  %222 = vst [vmem:[%s204 + $0x20] sm:$0xf] %v221
                  %v223 = vld [vmem:[%s203 + $0x48] sm:$0xf]
                  %224 = vst [vmem:[%s204 + $0x24] sm:$0xf] %v223
                  %v225 = vld [vmem:[%s203 + $0x50] sm:$0xf]
                  %226 = vst [vmem:[%s204 + $0x28] sm:$0xf] %v225
                  %v227 = vld [vmem:[%s203 + $0x58] sm:$0xf]
                  %228 = vst [vmem:[%s204 + $0x2c] sm:$0xf] %v227
                  %v229 = vld [vmem:[%s203 + $0x60] sm:$0xf]
                  %230 = vst [vmem:[%s204 + $0x30] sm:$0xf] %v229
                  %v231 = vld [vmem:[%s203 + $0x68] sm:$0xf]
                  %232 = vst [vmem:[%s204 + $0x34] sm:$0xf] %v231
                  %v233 = vld [vmem:[%s203 + $0x70] sm:$0xf]
                  %234 = vst [vmem:[%s204 + $0x38] sm:$0xf] %v233
                  %v235 = vld [vmem:[%s203 + $0x78] sm:$0xf]
                  %236 = vst [vmem:[%s204 + $0x3c] sm:$0xf] %v235
                $region59: #{_lambda_.2} parent=46 // loop_footer
                  %s202 = sadd.s32 1, %s198
                $region60: #{_lambda_.2} parent=46 // loop_footer_branch
                  %197 = sbr.rel target = $region56
                $region61: #{_lambda_.2} parent=46 // loop_exit
                  _
              $region47: #{_lambda_.2} parent=31 // pred_fallthru
                _
            $region32: #{_lambda_.2} parent=27 // pred_fallthru
              _
            // Predicated region
            $region33: #{_lambda_.2} parent=27 // pred_check
              _
            $region34: #{_lambda_.2} parent=27 // pred_check_branch
              %144 = sbr.rel (0) target = $region36
            $region35: #{_lambda_.2} parent=27 // pred_region
              loop: start=0, step=1, limit=1
              $region37: #{_lambda_.2} parent=35 // loop_pre_header
                _
              $region38: #{_lambda_.2} parent=35 // loop_header
                %s147 = sphi 0, %s151
                %p148 = scmp.ge.s32.totalorder %s147, 1
                %s152 = sphi %s138, %s138
                %s153 = sphi %s136, %s136
              $region39: #{_lambda_.2} parent=35 // loop_header_branch
                %150 = sbr.rel (%p148) target = $region43
              $region40: #{_lambda_.2} parent=35 // loop_body
                %v154 = vld [vmem:[%s152] sm:$0xf]
                %155 = vst [vmem:[%s153] sm:$0xf] %v154
                %v156 = vld [vmem:[%s152 + $0x8] sm:$0xf]
                %157 = vst [vmem:[%s153 + $0x4] sm:$0xf] %v156
                %v158 = vld [vmem:[%s152 + $0x10] sm:$0xf]
                %159 = vst [vmem:[%s153 + $0x8] sm:$0xf] %v158
                %v160 = vld [vmem:[%s152 + $0x18] sm:$0xf]
                %161 = vst [vmem:[%s153 + $0xc] sm:$0xf] %v160
                %v162 = vld [vmem:[%s152 + $0x20] sm:$0xf]
                %163 = vst [vmem:[%s153 + $0x10] sm:$0xf] %v162
                %v164 = vld [vmem:[%s152 + $0x28] sm:$0xf]
                %165 = vst [vmem:[%s153 + $0x14] sm:$0xf] %v164
                %v166 = vld [vmem:[%s152 + $0x30] sm:$0xf]
                %167 = vst [vmem:[%s153 + $0x18] sm:$0xf] %v166
                %v168 = vld [vmem:[%s152 + $0x38] sm:$0xf]
                %169 = vst [vmem:[%s153 + $0x1c] sm:$0xf] %v168
                %v170 = vld [vmem:[%s152 + $0x40] sm:$0xf]
                %171 = vst [vmem:[%s153 + $0x20] sm:$0xf] %v170
                %v172 = vld [vmem:[%s152 + $0x48] sm:$0xf]
                %173 = vst [vmem:[%s153 + $0x24] sm:$0xf] %v172
                %v174 = vld [vmem:[%s152 + $0x50] sm:$0xf]
                %175 = vst [vmem:[%s153 + $0x28] sm:$0xf] %v174
                %v176 = vld [vmem:[%s152 + $0x58] sm:$0xf]
                %177 = vst [vmem:[%s153 + $0x2c] sm:$0xf] %v176
                %v178 = vld [vmem:[%s152 + $0x60] sm:$0xf]
                %179 = vst [vmem:[%s153 + $0x30] sm:$0xf] %v178
                %v180 = vld [vmem:[%s152 + $0x68] sm:$0xf]
                %181 = vst [vmem:[%s153 + $0x34] sm:$0xf] %v180
                %v182 = vld [vmem:[%s152 + $0x70] sm:$0xf]
                %183 = vst [vmem:[%s153 + $0x38] sm:$0xf] %v182
                %v184 = vld [vmem:[%s152 + $0x78] sm:$0xf]
                %185 = vst [vmem:[%s153 + $0x3c] sm:$0xf] %v184
              $region41: #{_lambda_.2} parent=35 // loop_footer
                %s151 = sadd.s32 1, %s147
              $region42: #{_lambda_.2} parent=35 // loop_footer_branch
                %146 = sbr.rel target = $region38
              $region43: #{_lambda_.2} parent=35 // loop_exit
                _
            $region36: #{_lambda_.2} parent=27 // pred_fallthru
              _
          $region28: #{_lambda_.2} parent=23 // pred_fallthru
            _
          %237 = vnop
        $region24: #{_lambda_.2} parent=19 // pred_fallthru
          _
        // Predicated region
        $region62: #{_lambda_.2} parent=19 // pred_check
          %p238 = pneg %p76
        $region63: #{_lambda_.2} parent=19 // pred_check_branch
          %240 = sbr.rel (%p238) target = $region65
        $region64: #{_lambda_.2} parent=19 // pred_region
          %p241 = scmp.lt.s32.totalorder %s9, 1
          %s242 = scalar_select %p241, %s9, 1
          %s243 = scalar_lea.vmem %s2, %s242
        $region65: #{_lambda_.2} parent=19 // pred_fallthru
          _
      $region20: #{_lambda_.2} parent=5 // pred_fallthru
        _
      %p244 = scmp.le.s32.totalorder 1, %s9
      %p245 = scmp.lt.s32.totalorder %s9, 3
      %p246 = pnand %p244, %p245
      %p247 = pneg %p246
      // Predicated region
      $region66: #{_lambda_.2} parent=5 // pred_check
        _
      $region67: #{_lambda_.2} parent=5 // pred_check_branch
        %249 = sbr.rel (%p246) target = $region69
      $region68: #{_lambda_.2} parent=5 // pred_region
        %s250 = ssub.s32 %s9, 1
        %s251 = sand.u32 %s43, 1
        %s252 = sand.u32 %s43, 1
        %s253 = smul.addr %s252, 64
        %s254 = scalar_lea.vmem [#allocation2], %s253
        // Predicated region
        $region70: #{_lambda_.2} parent=68 // pred_check
          %p255 = pneg %p56
        $region71: #{_lambda_.2} parent=68 // pred_check_branch
          %257 = sbr.rel (%p255) target = $region73
        $region72: #{_lambda_.2} parent=68 // pred_region
          _
        $region73: #{_lambda_.2} parent=68 // pred_fallthru
          _
        %p258 = pneg %p30
        %p259 = pneg %p27
        %s260 = sand.u32 %s43, 1
        %s261 = sand.u32 %s43, 1
        %s262 = smul.addr %s261, 64
        %s263 = scalar_lea.vmem [#allocation2], %s262
        %p264 = pneg %p56
        %p265 = pneg %p53
        %p266 = scmp.lt.s32.totalorder %s14, 1
        %s267 = scalar_select %p266, %s14, 1
        %s268 = scalar_lea.vmem %s2, %s267
        %p269 = pneg %p82
        %p270 = pneg %p79
        %p271 = pneg %p108
        %p272 = pneg %p105
        %s273 = sand.u32 %s95, 1
        %s274 = sand.u32 %s95, 1
        %s275 = smul.addr %s274, 64
        %s276 = scalar_lea.vmem [#allocation3], %s275
        %p277 = scmp.lt.s32.totalorder %s14, 1
        %s278 = scalar_select %p277, %s14, 1
        %s279 = scalar_lea.vmem %s2, %s278
        %v281 = vld [vmem:[%s0] sm:$0xf]
        %v282 = vld [vmem:[%s0 + $0x4] sm:$0xf]
        %v283 = vld [vmem:[%s0 + $0x8] sm:$0xf]
        %v284 = vld [vmem:[%s0 + $0xc] sm:$0xf]
        %v285 = vld [vmem:[%s0 + $0x10] sm:$0xf]
        %v286 = vld [vmem:[%s0 + $0x14] sm:$0xf]
        %v287 = vld [vmem:[%s0 + $0x18] sm:$0xf]
        %v288 = vld [vmem:[%s0 + $0x1c] sm:$0xf]
        %v289 = vld [vmem:[%s0 + $0x20] sm:$0xf]
        %v290 = vld [vmem:[%s0 + $0x24] sm:$0xf]
        %v291 = vld [vmem:[%s0 + $0x28] sm:$0xf]
        %v292 = vld [vmem:[%s0 + $0x2c] sm:$0xf]
        %v293 = vld [vmem:[%s0 + $0x30] sm:$0xf]
        %v294 = vld [vmem:[%s0 + $0x34] sm:$0xf]
        %v295 = vld [vmem:[%s0 + $0x38] sm:$0xf]
        %v296 = vld [vmem:[%s0 + $0x3c] sm:$0xf]
        %v297 = vld [vmem:[%s254] sm:$0xf]
        %v298 = vld [vmem:[%s254 + $0x4] sm:$0xf]
        %v299 = vld [vmem:[%s254 + $0x8] sm:$0xf]
        %v300 = vld [vmem:[%s254 + $0xc] sm:$0xf]
        %v301 = vld [vmem:[%s254 + $0x10] sm:$0xf]
        %v302 = vld [vmem:[%s254 + $0x14] sm:$0xf]
        %v303 = vld [vmem:[%s254 + $0x18] sm:$0xf]
        %v304 = vld [vmem:[%s254 + $0x1c] sm:$0xf]
        %v305 = vld [vmem:[%s254 + $0x20] sm:$0xf]
        %v306 = vld [vmem:[%s254 + $0x24] sm:$0xf]
        %v307 = vld [vmem:[%s254 + $0x28] sm:$0xf]
        %v308 = vld [vmem:[%s254 + $0x2c] sm:$0xf]
        %v309 = vld [vmem:[%s254 + $0x30] sm:$0xf]
        %v310 = vld [vmem:[%s254 + $0x34] sm:$0xf]
        %v311 = vld [vmem:[%s254 + $0x38] sm:$0xf]
        %v312 = vld [vmem:[%s254 + $0x3c] sm:$0xf]
        %v313 = vld [vmem:[%s279] sm:$0x1]
        %v315 = vlaneseq
        %v316 = vshrl.u32 %v315, 7
        %v317 = vsub.s32 0, %v316
        %v318 = vrot.slane %v313, %v317
        %v336 = vunpack.c.l.b16 %v281
        %v337 = vunpack.c.l.b16 %v282
        %v338 = vunpack.c.l.b16 %v283
        %v339 = vunpack.c.l.b16 %v284
        %v340 = vunpack.c.l.b16 %v285
        %v341 = vunpack.c.l.b16 %v286
        %v342 = vunpack.c.l.b16 %v287
        %v343 = vunpack.c.l.b16 %v288
        %v344 = vunpack.c.l.b16 %v289
        %v345 = vunpack.c.l.b16 %v290
        %v346 = vunpack.c.l.b16 %v291
        %v347 = vunpack.c.l.b16 %v292
        %v348 = vunpack.c.l.b16 %v293
        %v349 = vunpack.c.l.b16 %v294
        %v350 = vunpack.c.l.b16 %v295
        %v351 = vunpack.c.l.b16 %v296
        %v352 = vpack.c.b16 %v337, %v336
        %v353 = vpack.c.b16 %v339, %v338
        %v354 = vpack.c.b16 %v341, %v340
        %v355 = vpack.c.b16 %v343, %v342
        %v356 = vpack.c.b16 %v345, %v344
        %v357 = vpack.c.b16 %v347, %v346
        %v358 = vpack.c.b16 %v349, %v348
        %v359 = vpack.c.b16 %v351, %v350
        %v384 = vunpack.c.l.b16 %v297
        %v385 = vunpack.c.l.b16 %v298
        %v386 = vunpack.c.l.b16 %v299
        %v387 = vunpack.c.l.b16 %v300
        %v388 = vunpack.c.l.b16 %v301
        %v389 = vunpack.c.l.b16 %v302
        %v390 = vunpack.c.l.b16 %v303
        %v391 = vunpack.c.l.b16 %v304
        %v392 = vunpack.c.l.b16 %v305
        %v393 = vunpack.c.l.b16 %v306
        %v394 = vunpack.c.l.b16 %v307
        %v395 = vunpack.c.l.b16 %v308
        %v396 = vunpack.c.l.b16 %v309
        %v397 = vunpack.c.l.b16 %v310
        %v398 = vunpack.c.l.b16 %v311
        %v399 = vunpack.c.l.b16 %v312
        %v400 = vpack.c.b16 %v385, %v384
        %v401 = vpack.c.b16 %v387, %v386
        %v402 = vpack.c.b16 %v389, %v388
        %v403 = vpack.c.b16 %v391, %v390
        %v404 = vpack.c.b16 %v393, %v392
        %v405 = vpack.c.b16 %v395, %v394
        %v406 = vpack.c.b16 %v397, %v396
        %v407 = vpack.c.b16 %v399, %v398
        %416 = vmatprep.subr.bf16.mxu0 0
        %417 = vmatpush1.bf16.msra.mxu0 %v400
        %418 = vmatprep.subr.bf16.mxu0 0
        %419 = vmatpush1.bf16.msra.mxu0 %v401
        %420 = vmatprep.subr.bf16.mxu0 0
        %421 = vmatpush1.bf16.msra.mxu0 %v402
        %422 = vmatprep.subr.bf16.mxu0 0
        %423 = vmatpush1.bf16.msra.mxu0 %v403
        %424 = vmatprep.subr.bf16.mxu0 0
        %425 = vmatpush1.bf16.msra.mxu0 %v404
        %426 = vmatprep.subr.bf16.mxu0 0
        %427 = vmatpush1.bf16.msra.mxu0 %v405
        %428 = vmatprep.subr.bf16.mxu0 0
        %429 = vmatpush1.bf16.msra.mxu0 %v406
        %430 = vmatprep.subr.bf16.mxu0 0
        %431 = vmatpush1.bf16.msra.mxu0 %v407
        %432 = vmatprep.subr.bf16.mxu0 0
        %433 = vmatpush1.bf16.msra.mxu0 0
        %434 = vmatprep.subr.bf16.mxu0 0
        %435 = vmatpush1.bf16.msra.mxu0 0
        %436 = vmatprep.subr.bf16.mxu0 0
        %437 = vmatpush1.bf16.msra.mxu0 0
        %438 = vmatprep.subr.bf16.mxu0 0
        %439 = vmatpush1.bf16.msra.mxu0 0
        %440 = vmatprep.subr.bf16.mxu0 0
        %441 = vmatpush1.bf16.msra.mxu0 0
        %442 = vmatprep.subr.bf16.mxu0 0
        %443 = vmatpush1.bf16.msra.mxu0 0
        %444 = vmatprep.subr.bf16.mxu0 0
        %445 = vmatpush1.bf16.msra.mxu0 0
        %446 = vmatprep.subr.bf16.mxu0 0
        %447 = vmatpush1.bf16.msra.mxu0 0
        %448 = vmatprep.mubr.bf16.mxu0 0
        %449 = vmatmul.mubr.bf16.gmra.mrb[0].mxu0 %v352
        %v450 = vpop.f32.mrb[0].mxu0
        %v451 = vadd.f32 %v318, %v450
        %v452 = vpop.f32.mrb[0].mxu0
        %v453 = vpop.f32.mrb[0].mxu0
        %v454 = vadd.f32 %v318, %v453
        %v455 = vpop.f32.mrb[0].mxu0
        %456 = vmatprep.mubr.bf16.mxu0 0
        %457 = vmatmul.mubr.bf16.gmra.mrb[0].mxu0 %v353
        %v458 = vpop.f32.mrb[0].mxu0
        %v459 = vadd.f32 %v318, %v458
        %v460 = vpop.f32.mrb[0].mxu0
        %v461 = vpop.f32.mrb[0].mxu0
        %v462 = vadd.f32 %v318, %v461
        %v463 = vpop.f32.mrb[0].mxu0
        %464 = vmatprep.mubr.bf16.mxu0 0
        %465 = vmatmul.mubr.bf16.gmra.mrb[0].mxu0 %v354
        %v466 = vpop.f32.mrb[0].mxu0
        %v467 = vadd.f32 %v318, %v466
        %v468 = vpop.f32.mrb[0].mxu0
        %v469 = vpop.f32.mrb[0].mxu0
        %v470 = vadd.f32 %v318, %v469
        %v471 = vpop.f32.mrb[0].mxu0
        %472 = vmatprep.mubr.bf16.mxu0 0
        %473 = vmatmul.mubr.bf16.gmra.mrb[0].mxu0 %v355
        %v474 = vpop.f32.mrb[0].mxu0
        %v475 = vadd.f32 %v318, %v474
        %v476 = vpop.f32.mrb[0].mxu0
        %v477 = vpop.f32.mrb[0].mxu0
        %v478 = vadd.f32 %v318, %v477
        %v479 = vpop.f32.mrb[0].mxu0
        %480 = vmatprep.mubr.bf16.mxu0 0
        %481 = vmatmul.mubr.bf16.gmra.mrb[0].mxu0 %v356
        %v482 = vpop.f32.mrb[0].mxu0
        %v483 = vadd.f32 %v318, %v482
        %v484 = vpop.f32.mrb[0].mxu0
        %v485 = vpop.f32.mrb[0].mxu0
        %v486 = vadd.f32 %v318, %v485
        %v487 = vpop.f32.mrb[0].mxu0
        %488 = vmatprep.mubr.bf16.mxu0 0
        %489 = vmatmul.mubr.bf16.gmra.mrb[0].mxu0 %v357
        %v490 = vpop.f32.mrb[0].mxu0
        %v491 = vadd.f32 %v318, %v490
        %v492 = vpop.f32.mrb[0].mxu0
        %v493 = vpop.f32.mrb[0].mxu0
        %v494 = vadd.f32 %v318, %v493
        %v495 = vpop.f32.mrb[0].mxu0
        %496 = vmatprep.mubr.bf16.mxu0 0
        %497 = vmatmul.mubr.bf16.gmra.mrb[0].mxu0 %v358
        %v498 = vpop.f32.mrb[0].mxu0
        %v499 = vadd.f32 %v318, %v498
        %v500 = vpop.f32.mrb[0].mxu0
        %v501 = vpop.f32.mrb[0].mxu0
        %v502 = vadd.f32 %v318, %v501
        %v503 = vpop.f32.mrb[0].mxu0
        %504 = vmatprep.mubr.bf16.mxu0 0
        %505 = vmatmul.mubr.bf16.gmra.mrb[0].mxu0 %v359
        %v506 = vpop.f32.mrb[0].mxu0
        %v507 = vadd.f32 %v318, %v506
        %v508 = vpop.f32.mrb[0].mxu0
        %v509 = vpop.f32.mrb[0].mxu0
        %v510 = vadd.f32 %v318, %v509
        %v511 = vpop.f32.mrb[0].mxu0
        %512 = vdwg.mxu0
        %v513 = vpack.c.bf16 %v454, %v451
        %v514 = vpack.c.bf16 %v462, %v459
        %v515 = vpack.c.bf16 %v470, %v467
        %v516 = vpack.c.bf16 %v478, %v475
        %v517 = vpack.c.bf16 %v486, %v483
        %v518 = vpack.c.bf16 %v494, %v491
        %v519 = vpack.c.bf16 %v502, %v499
        %v520 = vpack.c.bf16 %v510, %v507
        %v529 = vunpack.c.l.b16 %v513
        %v530 = vunpack.c.h.b16 %v513
        %v531 = vunpack.c.l.b16 %v514
        %v532 = vunpack.c.h.b16 %v514
        %v533 = vunpack.c.l.b16 %v515
        %v534 = vunpack.c.h.b16 %v515
        %v535 = vunpack.c.l.b16 %v516
        %v536 = vunpack.c.h.b16 %v516
        %v537 = vunpack.c.l.b16 %v517
        %v538 = vunpack.c.h.b16 %v517
        %v539 = vunpack.c.l.b16 %v518
        %v540 = vunpack.c.h.b16 %v518
        %v541 = vunpack.c.l.b16 %v519
        %v542 = vunpack.c.h.b16 %v519
        %v543 = vunpack.c.l.b16 %v520
        %v544 = vunpack.c.h.b16 %v520
        %v545 = vpack.c.b16 %v529, %v529
        %v546 = vpack.c.b16 %v530, %v530
        %v547 = vpack.c.b16 %v531, %v531
        %v548 = vpack.c.b16 %v532, %v532
        %v549 = vpack.c.b16 %v533, %v533
        %v550 = vpack.c.b16 %v534, %v534
        %v551 = vpack.c.b16 %v535, %v535
        %v552 = vpack.c.b16 %v536, %v536
        %v553 = vpack.c.b16 %v537, %v537
        %v554 = vpack.c.b16 %v538, %v538
        %v555 = vpack.c.b16 %v539, %v539
        %v556 = vpack.c.b16 %v540, %v540
        %v557 = vpack.c.b16 %v541, %v541
        %v558 = vpack.c.b16 %v542, %v542
        %v559 = vpack.c.b16 %v543, %v543
        %v560 = vpack.c.b16 %v544, %v544
        %577 = vst [vmem:[%s276] sm:$0xf] %v545
        %578 = vst [vmem:[%s276 + $0x4] sm:$0xf] %v546
        %579 = vst [vmem:[%s276 + $0x8] sm:$0xf] %v547
        %580 = vst [vmem:[%s276 + $0xc] sm:$0xf] %v548
        %581 = vst [vmem:[%s276 + $0x10] sm:$0xf] %v549
        %582 = vst [vmem:[%s276 + $0x14] sm:$0xf] %v550
        %583 = vst [vmem:[%s276 + $0x18] sm:$0xf] %v551
        %584 = vst [vmem:[%s276 + $0x1c] sm:$0xf] %v552
        %585 = vst [vmem:[%s276 + $0x20] sm:$0xf] %v553
        %586 = vst [vmem:[%s276 + $0x24] sm:$0xf] %v554
        %587 = vst [vmem:[%s276 + $0x28] sm:$0xf] %v555
        %588 = vst [vmem:[%s276 + $0x2c] sm:$0xf] %v556
        %589 = vst [vmem:[%s276 + $0x30] sm:$0xf] %v557
        %590 = vst [vmem:[%s276 + $0x34] sm:$0xf] %v558
        %591 = vst [vmem:[%s276 + $0x38] sm:$0xf] %v559
        %592 = vst [vmem:[%s276 + $0x3c] sm:$0xf] %v560
        %s593 = sand.u32 %s95, 1
        %s594 = sand.u32 %s95, 1
        %s595 = smul.addr %s594, 64
        %s596 = scalar_lea.vmem [#allocation3], %s595
        // Predicated region
        $region74: #{_lambda_.2} parent=68 // pred_check
          %p597 = pneg %p105
        $region75: #{_lambda_.2} parent=68 // pred_check_branch
          %599 = sbr.rel (%p597) target = $region77
        $region76: #{_lambda_.2} parent=68 // pred_region
          %s600 = smul.addr %s14, 4
          %s601 = scalar_lea.vmem %s3, %s600
          // Predicated region
          $region78: #{_lambda_.2} parent=76 // pred_check
            _
          $region79: #{_lambda_.2} parent=76 // pred_check_branch
            %603 = sbr.rel (0) target = $region81
          $region80: #{_lambda_.2} parent=76 // pred_region
            // Predicated region
            $region82: #{_lambda_.2} parent=80 // pred_check
              _
            $region83: #{_lambda_.2} parent=80 // pred_check_branch
              %605 = sbr.rel target = $region85
            $region84: #{_lambda_.2} parent=80 // pred_region
              // Predicated region
              $region97: #{_lambda_.2} parent=84 // pred_check
                _
              $region98: #{_lambda_.2} parent=84 // pred_check_branch
                %650 = sbr.rel (0) target = $region100
              $region99: #{_lambda_.2} parent=84 // pred_region
                loop: start=0, step=1, limit=1
                $region101: #{_lambda_.2} parent=99 // loop_pre_header
                  _
                $region102: #{_lambda_.2} parent=99 // loop_header
                  %s652 = sphi 0, %s656
                  %p653 = scmp.ge.s32.totalorder %s652, 1
                  %s657 = sphi %s596, %s596
                  %s658 = sphi %s601, %s601
                $region103: #{_lambda_.2} parent=99 // loop_header_branch
                  %655 = sbr.rel (%p653) target = $region107
                $region104: #{_lambda_.2} parent=99 // loop_body
                  _
                $region105: #{_lambda_.2} parent=99 // loop_footer
                  %s656 = sadd.s32 1, %s652
                $region106: #{_lambda_.2} parent=99 // loop_footer_branch
                  %651 = sbr.rel target = $region102
                $region107: #{_lambda_.2} parent=99 // loop_exit
                  _
                loop: start=0, step=1, limit=1
                $region108: #{_lambda_.2} parent=99 // loop_pre_header
                  _
                $region109: #{_lambda_.2} parent=99 // loop_header
                  %s661 = sphi 0, %s665
                  %p662 = scmp.ge.s32.totalorder %s661, 1
                  %s666 = sphi %s596, %s596
                  %s667 = sphi %s601, %s601
                $region110: #{_lambda_.2} parent=99 // loop_header_branch
                  %664 = sbr.rel (%p662) target = $region114
                $region111: #{_lambda_.2} parent=99 // loop_body
                  %v668 = vld [vmem:[%s666] sm:$0xf]
                  %669 = vst [vmem:[%s667] sm:$0xf] %v668
                  %v670 = vld [vmem:[%s666 + $0x4] sm:$0xf]
                  %671 = vst [vmem:[%s667 + $0x8] sm:$0xf] %v670
                  %v672 = vld [vmem:[%s666 + $0x8] sm:$0xf]
                  %673 = vst [vmem:[%s667 + $0x10] sm:$0xf] %v672
                  %v674 = vld [vmem:[%s666 + $0xc] sm:$0xf]
                  %675 = vst [vmem:[%s667 + $0x18] sm:$0xf] %v674
                  %v676 = vld [vmem:[%s666 + $0x10] sm:$0xf]
                  %677 = vst [vmem:[%s667 + $0x20] sm:$0xf] %v676
                  %v678 = vld [vmem:[%s666 + $0x14] sm:$0xf]
                  %679 = vst [vmem:[%s667 + $0x28] sm:$0xf] %v678
                  %v680 = vld [vmem:[%s666 + $0x18] sm:$0xf]
                  %681 = vst [vmem:[%s667 + $0x30] sm:$0xf] %v680
                  %v682 = vld [vmem:[%s666 + $0x1c] sm:$0xf]
                  %683 = vst [vmem:[%s667 + $0x38] sm:$0xf] %v682
                  %v684 = vld [vmem:[%s666 + $0x20] sm:$0xf]
                  %685 = vst [vmem:[%s667 + $0x40] sm:$0xf] %v684
                  %v686 = vld [vmem:[%s666 + $0x24] sm:$0xf]
                  %687 = vst [vmem:[%s667 + $0x48] sm:$0xf] %v686
                  %v688 = vld [vmem:[%s666 + $0x28] sm:$0xf]
                  %689 = vst [vmem:[%s667 + $0x50] sm:$0xf] %v688
                  %v690 = vld [vmem:[%s666 + $0x2c] sm:$0xf]
                  %691 = vst [vmem:[%s667 + $0x58] sm:$0xf] %v690
                  %v692 = vld [vmem:[%s666 + $0x30] sm:$0xf]
                  %693 = vst [vmem:[%s667 + $0x60] sm:$0xf] %v692
                  %v694 = vld [vmem:[%s666 + $0x34] sm:$0xf]
                  %695 = vst [vmem:[%s667 + $0x68] sm:$0xf] %v694
                  %v696 = vld [vmem:[%s666 + $0x38] sm:$0xf]
                  %697 = vst [vmem:[%s667 + $0x70] sm:$0xf] %v696
                  %v698 = vld [vmem:[%s666 + $0x3c] sm:$0xf]
                  %699 = vst [vmem:[%s667 + $0x78] sm:$0xf] %v698
                $region112: #{_lambda_.2} parent=99 // loop_footer
                  %s665 = sadd.s32 1, %s661
                $region113: #{_lambda_.2} parent=99 // loop_footer_branch
                  %660 = sbr.rel target = $region109
                $region114: #{_lambda_.2} parent=99 // loop_exit
                  _
              $region100: #{_lambda_.2} parent=84 // pred_fallthru
                _
            $region85: #{_lambda_.2} parent=80 // pred_fallthru
              _
            // Predicated region
            $region86: #{_lambda_.2} parent=80 // pred_check
              _
            $region87: #{_lambda_.2} parent=80 // pred_check_branch
              %607 = sbr.rel (0) target = $region89
            $region88: #{_lambda_.2} parent=80 // pred_region
              loop: start=0, step=1, limit=1
              $region90: #{_lambda_.2} parent=88 // loop_pre_header
                _
              $region91: #{_lambda_.2} parent=88 // loop_header
                %s610 = sphi 0, %s614
                %p611 = scmp.ge.s32.totalorder %s610, 1
                %s615 = sphi %s596, %s596
                %s616 = sphi %s601, %s601
              $region92: #{_lambda_.2} parent=88 // loop_header_branch
                %613 = sbr.rel (%p611) target = $region96
              $region93: #{_lambda_.2} parent=88 // loop_body
                %v617 = vld [vmem:[%s615] sm:$0xf]
                %618 = vst [vmem:[%s616] sm:$0xf] %v617
                %v619 = vld [vmem:[%s615 + $0x4] sm:$0xf]
                %620 = vst [vmem:[%s616 + $0x8] sm:$0xf] %v619
                %v621 = vld [vmem:[%s615 + $0x8] sm:$0xf]
                %622 = vst [vmem:[%s616 + $0x10] sm:$0xf] %v621
                %v623 = vld [vmem:[%s615 + $0xc] sm:$0xf]
                %624 = vst [vmem:[%s616 + $0x18] sm:$0xf] %v623
                %v625 = vld [vmem:[%s615 + $0x10] sm:$0xf]
                %626 = vst [vmem:[%s616 + $0x20] sm:$0xf] %v625
                %v627 = vld [vmem:[%s615 + $0x14] sm:$0xf]
                %628 = vst [vmem:[%s616 + $0x28] sm:$0xf] %v627
                %v629 = vld [vmem:[%s615 + $0x18] sm:$0xf]
                %630 = vst [vmem:[%s616 + $0x30] sm:$0xf] %v629
                %v631 = vld [vmem:[%s615 + $0x1c] sm:$0xf]
                %632 = vst [vmem:[%s616 + $0x38] sm:$0xf] %v631
                %v633 = vld [vmem:[%s615 + $0x20] sm:$0xf]
                %634 = vst [vmem:[%s616 + $0x40] sm:$0xf] %v633
                %v635 = vld [vmem:[%s615 + $0x24] sm:$0xf]
                %636 = vst [vmem:[%s616 + $0x48] sm:$0xf] %v635
                %v637 = vld [vmem:[%s615 + $0x28] sm:$0xf]
                %638 = vst [vmem:[%s616 + $0x50] sm:$0xf] %v637
                %v639 = vld [vmem:[%s615 + $0x2c] sm:$0xf]
                %640 = vst [vmem:[%s616 + $0x58] sm:$0xf] %v639
                %v641 = vld [vmem:[%s615 + $0x30] sm:$0xf]
                %642 = vst [vmem:[%s616 + $0x60] sm:$0xf] %v641
                %v643 = vld [vmem:[%s615 + $0x34] sm:$0xf]
                %644 = vst [vmem:[%s616 + $0x68] sm:$0xf] %v643
                %v645 = vld [vmem:[%s615 + $0x38] sm:$0xf]
                %646 = vst [vmem:[%s616 + $0x70] sm:$0xf] %v645
                %v647 = vld [vmem:[%s615 + $0x3c] sm:$0xf]
                %648 = vst [vmem:[%s616 + $0x78] sm:$0xf] %v647
              $region94: #{_lambda_.2} parent=88 // loop_footer
                %s614 = sadd.s32 1, %s610
              $region95: #{_lambda_.2} parent=88 // loop_footer_branch
                %609 = sbr.rel target = $region91
              $region96: #{_lambda_.2} parent=88 // loop_exit
                _
            $region89: #{_lambda_.2} parent=80 // pred_fallthru
              _
          $region81: #{_lambda_.2} parent=76 // pred_fallthru
            _
          %700 = vnop
        $region77: #{_lambda_.2} parent=68 // pred_fallthru
          _
      $region69: #{_lambda_.2} parent=5 // pred_fallthru
        _
      %p701 = scmp.le.s32.totalorder 2, %s9
      // Predicated region
      $region115: #{_lambda_.2} parent=5 // pred_check
        %p702 = pneg %p701
      $region116: #{_lambda_.2} parent=5 // pred_check_branch
        %704 = sbr.rel (%p702) target = $region118
      $region117: #{_lambda_.2} parent=5 // pred_region
        %s705 = ssub.s32 %s9, 2
        // Predicated region
        $region119: #{_lambda_.2} parent=117 // pred_check
          %p706 = pneg %p111
        $region120: #{_lambda_.2} parent=117 // pred_check_branch
          %708 = sbr.rel (%p706) target = $region122
        $region121: #{_lambda_.2} parent=117 // pred_region
          %s709 = sand.u32 %s96, 1
          %s710 = sand.u32 %s96, 1
          %s711 = smul.addr %s710, 64
          %s712 = scalar_lea.vmem [#allocation3], %s711
        $region122: #{_lambda_.2} parent=117 // pred_fallthru
          _
      $region118: #{_lambda_.2} parent=5 // pred_fallthru
        _
    $region6: #{_lambda_.2} parent=1 // loop_footer
      %s13 = sadd.s32 1, %s9
    $region7: #{_lambda_.2} parent=1 // loop_footer_branch
      %8 = sbr.rel target = $region3
    $region8: #{_lambda_.2} parent=1 // loop_exit
      _

// kernel: _lambda_.3
$region0: #{_lambda_.3}
  #allocation0 [shape = 'u32[]', space=smem, size = 0x4, offset = 0x4, fixed_abs, tag = 'smem constant byte address 0x4 - core index']
  #allocation1 [shape = 'u32[144,128]{1,0:T(1,128)}', space=vmem, size = 0x12000, scoped, tag = 'internal scratch']
  %s0 = inlined_call_operand.vmem [shape: bf16[512,64], index: 0, kind: input, shape index: {}]
  %s1 = inlined_call_operand.vmem [shape: bf16[512,64], index: 1, kind: input, shape index: {}]
  %s2 = inlined_call_operand.vmem [shape: f32[512,64], index: 2, kind: input, shape index: {}]
  %s3 = inlined_call_operand.vmem [shape: f32[512,9], index: 3, kind: input, shape index: {}]
  %s4 = inlined_call_operand.vmem [shape: bf16[64,64], index: 4, kind: input, shape index: {}]
  %s5 = inlined_call_operand.vmem [shape: bf16[64,64], index: 5, kind: input, shape index: {}]
  %s6 = inlined_call_operand.vmem [shape: f32[1,64], index: 6, kind: input, shape index: {}, may-alias: {6,9}]
  %s7 = inlined_call_operand.vmem [shape: f32[1,64], index: 7, kind: input, shape index: {}, may-alias: {7,10}]
  %s8 = inlined_call_operand.vmem [shape: bf16[9,64,64], index: 8, kind: input, shape index: {}]
  %s9 = inlined_call_operand.vmem [shape: f32[1,64], index: 9, kind: input, shape index: {}, may-alias: {6,9}]
  %s10 = inlined_call_operand.vmem [shape: f32[1,64], index: 10, kind: input, shape index: {}, may-alias: {7,10}]
  %s11 = inlined_call_operand.hbm [shape: f32[512,64], index: 11, kind: output, shape index: {}]
  %s12 = sld [smem:[#allocation0]]
  $region54: #{_lambda_.3} parent=0
    _
  %s14 = ssub.s32 1, %s12
  %s15 = scalar_select 0, %s14, %s12
  $region1: #{_lambda_.3} parent=0
    #allocation2 [shape = 'u8[262144]{0}', space=vmem, size = 0x40000, scoped, tag = 'output window, operand 0, single buffered']
    #allocation3 [shape = 's32[1]{0}', space=sflag, size = 0x4, scoped, tag = 'scoped memory for _lambda_.3']
    %16 = vsyncpa [#allocation3], 0
    // Predicated region
    $region2: #{_lambda_.3} parent=1 // pred_check
      _
    $region3: #{_lambda_.3} parent=1 // pred_check_branch
      %18 = sbr.rel (0) target = $region5
    $region4: #{_lambda_.3} parent=1 // pred_region
      _
    $region5: #{_lambda_.3} parent=1 // pred_fallthru
      _
    // Predicated region
    $region6: #{_lambda_.3} parent=1 // pred_check
      _
    $region7: #{_lambda_.3} parent=1 // pred_check_branch
      %20 = sbr.rel (0) target = $region9
    $region8: #{_lambda_.3} parent=1 // pred_region
      _
    $region9: #{_lambda_.3} parent=1 // pred_fallthru
      _
    // Predicated region
    $region10: #{_lambda_.3} parent=1 // pred_check
      _
    $region11: #{_lambda_.3} parent=1 // pred_check_branch
      %22 = sbr.rel (0) target = $region13
    $region12: #{_lambda_.3} parent=1 // pred_region
      _
    $region13: #{_lambda_.3} parent=1 // pred_fallthru
      _
    // Predicated region
    $region14: #{_lambda_.3} parent=1 // pred_check
      _
    $region15: #{_lambda_.3} parent=1 // pred_check_branch
      %24 = sbr.rel (0) target = $region17
    $region16: #{_lambda_.3} parent=1 // pred_region
      _
    $region17: #{_lambda_.3} parent=1 // pred_fallthru
      _
    // Predicated region
    $region18: #{_lambda_.3} parent=1 // pred_check
      _
    $region19: #{_lambda_.3} parent=1 // pred_check_branch
      %26 = sbr.rel (0) target = $region21
    $region20: #{_lambda_.3} parent=1 // pred_region
      _
    $region21: #{_lambda_.3} parent=1 // pred_fallthru
      _
    // Predicated region
    $region22: #{_lambda_.3} parent=1 // pred_check
      _
    $region23: #{_lambda_.3} parent=1 // pred_check_branch
      %28 = sbr.rel (0) target = $region25
    $region24: #{_lambda_.3} parent=1 // pred_region
      _
    $region25: #{_lambda_.3} parent=1 // pred_fallthru
      _
    // Predicated region
    $region26: #{_lambda_.3} parent=1 // pred_check
      _
    $region27: #{_lambda_.3} parent=1 // pred_check_branch
      %30 = sbr.rel (0) target = $region29
    $region28: #{_lambda_.3} parent=1 // pred_region
      _
    $region29: #{_lambda_.3} parent=1 // pred_fallthru
      _
    // Predicated region
    $region30: #{_lambda_.3} parent=1 // pred_check
      _
    $region31: #{_lambda_.3} parent=1 // pred_check_branch
      %32 = sbr.rel (0) target = $region33
    $region32: #{_lambda_.3} parent=1 // pred_region
      _
    $region33: #{_lambda_.3} parent=1 // pred_fallthru
      _
    // Predicated region
    $region34: #{_lambda_.3} parent=1 // pred_check
      _
    $region35: #{_lambda_.3} parent=1 // pred_check_branch
      %34 = sbr.rel (0) target = $region37
    $region36: #{_lambda_.3} parent=1 // pred_region
      _
    $region37: #{_lambda_.3} parent=1 // pred_fallthru
      _
    // Predicated region
    $region38: #{_lambda_.3} parent=1 // pred_check
      _
    $region39: #{_lambda_.3} parent=1 // pred_check_branch
      %36 = sbr.rel (0) target = $region41
    $region40: #{_lambda_.3} parent=1 // pred_region
      _
    $region41: #{_lambda_.3} parent=1 // pred_fallthru
      _
    // Predicated region
    $region42: #{_lambda_.3} parent=1 // pred_check
      _
    $region43: #{_lambda_.3} parent=1 // pred_check_branch
      %38 = sbr.rel (0) target = $region45
    $region44: #{_lambda_.3} parent=1 // pred_region
      _
    $region45: #{_lambda_.3} parent=1 // pred_fallthru
      _
    %v40 = vld [vmem:[%s0] sm:$0xf]
    %v41 = vld [vmem:[%s0 + $0x4] sm:$0xf]
    %v42 = vld [vmem:[%s0 + $0x8] sm:$0xf]
    %v43 = vld [vmem:[%s0 + $0xc] sm:$0xf]
    %v44 = vld [vmem:[%s0 + $0x10] sm:$0xf]
    %v45 = vld [vmem:[%s0 + $0x14] sm:$0xf]
    %v46 = vld [vmem:[%s0 + $0x18] sm:$0xf]
    %v47 = vld [vmem:[%s0 + $0x1c] sm:$0xf]
    %v48 = vld [vmem:[%s0 + $0x20] sm:$0xf]
    %v49 = vld [vmem:[%s0 + $0x24] sm:$0xf]
    %v50 = vld [vmem:[%s0 + $0x28] sm:$0xf]
    %v51 = vld [vmem:[%s0 + $0x2c] sm:$0xf]
    %v52 = vld [vmem:[%s0 + $0x30] sm:$0xf]
    %v53 = vld [vmem:[%s0 + $0x34] sm:$0xf]
    %v54 = vld [vmem:[%s0 + $0x38] sm:$0xf]
    %v55 = vld [vmem:[%s0 + $0x3c] sm:$0xf]
    %v56 = vld [vmem:[%s0 + $0x40] sm:$0xf]
    %v57 = vld [vmem:[%s0 + $0x44] sm:$0xf]
    %v58 = vld [vmem:[%s0 + $0x48] sm:$0xf]
    %v59 = vld [vmem:[%s0 + $0x4c] sm:$0xf]
    %v60 = vld [vmem:[%s0 + $0x50] sm:$0xf]
    %v61 = vld [vmem:[%s0 + $0x54] sm:$0xf]
    %v62 = vld [vmem:[%s0 + $0x58] sm:$0xf]
    %v63 = vld [vmem:[%s0 + $0x5c] sm:$0xf]
    %v64 = vld [vmem:[%s0 + $0x60] sm:$0xf]
    %v65 = vld [vmem:[%s0 + $0x64] sm:$0xf]
    %v66 = vld [vmem:[%s0 + $0x68] sm:$0xf]
    %v67 = vld [vmem:[%s0 + $0x6c] sm:$0xf]
    %v68 = vld [vmem:[%s0 + $0x70] sm:$0xf]
    %v69 = vld [vmem:[%s0 + $0x74] sm:$0xf]
    %v70 = vld [vmem:[%s0 + $0x78] sm:$0xf]
    %v71 = vld [vmem:[%s0 + $0x7c] sm:$0xf]
    %v72 = vld [vmem:[%s0 + $0x80] sm:$0xf]
    %v73 = vld [vmem:[%s0 + $0x84] sm:$0xf]
    %v74 = vld [vmem:[%s0 + $0x88] sm:$0xf]
    %v75 = vld [vmem:[%s0 + $0x8c] sm:$0xf]
    %v76 = vld [vmem:[%s0 + $0x90] sm:$0xf]
    %v77 = vld [vmem:[%s0 + $0x94] sm:$0xf]
    %v78 = vld [vmem:[%s0 + $0x98] sm:$0xf]
    %v79 = vld [vmem:[%s0 + $0x9c] sm:$0xf]
    %v80 = vld [vmem:[%s0 + $0xa0] sm:$0xf]
    %v81 = vld [vmem:[%s0 + $0xa4] sm:$0xf]
    %v82 = vld [vmem:[%s0 + $0xa8] sm:$0xf]
    %v83 = vld [vmem:[%s0 + $0xac] sm:$0xf]
    %v84 = vld [vmem:[%s0 + $0xb0] sm:$0xf]
    %v85 = vld [vmem:[%s0 + $0xb4] sm:$0xf]
    %v86 = vld [vmem:[%s0 + $0xb8] sm:$0xf]
    %v87 = vld [vmem:[%s0 + $0xbc] sm:$0xf]
    %v88 = vld [vmem:[%s0 + $0xc0] sm:$0xf]
    %v89 = vld [vmem:[%s0 + $0xc4] sm:$0xf]
    %v90 = vld [vmem:[%s0 + $0xc8] sm:$0xf]
    %v91 = vld [vmem:[%s0 + $0xcc] sm:$0xf]
    %v92 = vld [vmem:[%s0 + $0xd0] sm:$0xf]
    %v93 = vld [vmem:[%s0 + $0xd4] sm:$0xf]
    %v94 = vld [vmem:[%s0 + $0xd8] sm:$0xf]
    %v95 = vld [vmem:[%s0 + $0xdc] sm:$0xf]
    %v96 = vld [vmem:[%s0 + $0xe0] sm:$0xf]
    %v97 = vld [vmem:[%s0 + $0xe4] sm:$0xf]
    %v98 = vld [vmem:[%s0 + $0xe8] sm:$0xf]
    %v99 = vld [vmem:[%s0 + $0xec] sm:$0xf]
    %v100 = vld [vmem:[%s0 + $0xf0] sm:$0xf]
    %v101 = vld [vmem:[%s0 + $0xf4] sm:$0xf]
    %v102 = vld [vmem:[%s0 + $0xf8] sm:$0xf]
    %v103 = vld [vmem:[%s0 + $0xfc] sm:$0xf]
    %v104 = vld [vmem:[%s4] sm:$0xf]
    %v105 = vld [vmem:[%s4 + $0x4] sm:$0xf]
    %v106 = vld [vmem:[%s4 + $0x8] sm:$0xf]
    %v107 = vld [vmem:[%s4 + $0xc] sm:$0xf]
    %v108 = vld [vmem:[%s4 + $0x10] sm:$0xf]
    %v109 = vld [vmem:[%s4 + $0x14] sm:$0xf]
    %v110 = vld [vmem:[%s4 + $0x18] sm:$0xf]
    %v111 = vld [vmem:[%s4 + $0x1c] sm:$0xf]
    %v112 = vld [vmem:[%s1] sm:$0xf]
    %v113 = vld [vmem:[%s1 + $0x4] sm:$0xf]
    %v114 = vld [vmem:[%s1 + $0x8] sm:$0xf]
    %v115 = vld [vmem:[%s1 + $0xc] sm:$0xf]
    %v116 = vld [vmem:[%s1 + $0x10] sm:$0xf]
    %v117 = vld [vmem:[%s1 + $0x14] sm:$0xf]
    %v118 = vld [vmem:[%s1 + $0x18] sm:$0xf]
    %v119 = vld [vmem:[%s1 + $0x1c] sm:$0xf]
    %v120 = vld [vmem:[%s1 + $0x20] sm:$0xf]
    %v121 = vld [vmem:[%s1 + $0x24] sm:$0xf]
    %v122 = vld [vmem:[%s1 + $0x28] sm:$0xf]
    %v123 = vld [vmem:[%s1 + $0x2c] sm:$0xf]
    %v124 = vld [vmem:[%s1 + $0x30] sm:$0xf]
    %v125 = vld [vmem:[%s1 + $0x34] sm:$0xf]
    %v126 = vld [vmem:[%s1 + $0x38] sm:$0xf]
    %v127 = vld [vmem:[%s1 + $0x3c] sm:$0xf]
    %v128 = vld [vmem:[%s1 + $0x40] sm:$0xf]
    %v129 = vld [vmem:[%s1 + $0x44] sm:$0xf]
    %v130 = vld [vmem:[%s1 + $0x48] sm:$0xf]
    %v131 = vld [vmem:[%s1 + $0x4c] sm:$0xf]
    %v132 = vld [vmem:[%s1 + $0x50] sm:$0xf]
    %v133 = vld [vmem:[%s1 + $0x54] sm:$0xf]
    %v134 = vld [vmem:[%s1 + $0x58] sm:$0xf]
    %v135 = vld [vmem:[%s1 + $0x5c] sm:$0xf]
    %v136 = vld [vmem:[%s1 + $0x60] sm:$0xf]
    %v137 = vld [vmem:[%s1 + $0x64] sm:$0xf]
    %v138 = vld [vmem:[%s1 + $0x68] sm:$0xf]
    %v139 = vld [vmem:[%s1 + $0x6c] sm:$0xf]
    %v140 = vld [vmem:[%s1 + $0x70] sm:$0xf]
    %v141 = vld [vmem:[%s1 + $0x74] sm:$0xf]
    %v142 = vld [vmem:[%s1 + $0x78] sm:$0xf]
    %v143 = vld [vmem:[%s1 + $0x7c] sm:$0xf]
    %v144 = vld [vmem:[%s1 + $0x80] sm:$0xf]
    %v145 = vld [vmem:[%s1 + $0x84] sm:$0xf]
    %v146 = vld [vmem:[%s1 + $0x88] sm:$0xf]
    %v147 = vld [vmem:[%s1 + $0x8c] sm:$0xf]
    %v148 = vld [vmem:[%s1 + $0x90] sm:$0xf]
    %v149 = vld [vmem:[%s1 + $0x94] sm:$0xf]
    %v150 = vld [vmem:[%s1 + $0x98] sm:$0xf]
    %v151 = vld [vmem:[%s1 + $0x9c] sm:$0xf]
    %v152 = vld [vmem:[%s1 + $0xa0] sm:$0xf]
    %v153 = vld [vmem:[%s1 + $0xa4] sm:$0xf]
    %v154 = vld [vmem:[%s1 + $0xa8] sm:$0xf]
    %v155 = vld [vmem:[%s1 + $0xac] sm:$0xf]
    %v156 = vld [vmem:[%s1 + $0xb0] sm:$0xf]
    %v157 = vld [vmem:[%s1 + $0xb4] sm:$0xf]
    %v158 = vld [vmem:[%s1 + $0xb8] sm:$0xf]
    %v159 = vld [vmem:[%s1 + $0xbc] sm:$0xf]
    %v160 = vld [vmem:[%s1 + $0xc0] sm:$0xf]
    %v161 = vld [vmem:[%s1 + $0xc4] sm:$0xf]
    %v162 = vld [vmem:[%s1 + $0xc8] sm:$0xf]
    %v163 = vld [vmem:[%s1 + $0xcc] sm:$0xf]
    %v164 = vld [vmem:[%s1 + $0xd0] sm:$0xf]
    %v165 = vld [vmem:[%s1 + $0xd4] sm:$0xf]
    %v166 = vld [vmem:[%s1 + $0xd8] sm:$0xf]
    %v167 = vld [vmem:[%s1 + $0xdc] sm:$0xf]
    %v168 = vld [vmem:[%s1 + $0xe0] sm:$0xf]
    %v169 = vld [vmem:[%s1 + $0xe4] sm:$0xf]
    %v170 = vld [vmem:[%s1 + $0xe8] sm:$0xf]
    %v171 = vld [vmem:[%s1 + $0xec] sm:$0xf]
    %v172 = vld [vmem:[%s1 + $0xf0] sm:$0xf]
    %v173 = vld [vmem:[%s1 + $0xf4] sm:$0xf]
    %v174 = vld [vmem:[%s1 + $0xf8] sm:$0xf]
    %v175 = vld [vmem:[%s1 + $0xfc] sm:$0xf]
    %v176 = vld [vmem:[%s5] sm:$0xf]
    %v177 = vld [vmem:[%s5 + $0x4] sm:$0xf]
    %v178 = vld [vmem:[%s5 + $0x8] sm:$0xf]
    %v179 = vld [vmem:[%s5 + $0xc] sm:$0xf]
    %v180 = vld [vmem:[%s5 + $0x10] sm:$0xf]
    %v181 = vld [vmem:[%s5 + $0x14] sm:$0xf]
    %v182 = vld [vmem:[%s5 + $0x18] sm:$0xf]
    %v183 = vld [vmem:[%s5 + $0x1c] sm:$0xf]
    %v248 = vunpack.c.l.b16 %v112
    %v249 = vunpack.c.l.b16 %v113
    %v250 = vunpack.c.l.b16 %v114
    %v251 = vunpack.c.l.b16 %v115
    %v252 = vunpack.c.l.b16 %v116
    %v253 = vunpack.c.l.b16 %v117
    %v254 = vunpack.c.l.b16 %v118
    %v255 = vunpack.c.l.b16 %v119
    %v256 = vunpack.c.l.b16 %v120
    %v257 = vunpack.c.l.b16 %v121
    %v258 = vunpack.c.l.b16 %v122
    %v259 = vunpack.c.l.b16 %v123
    %v260 = vunpack.c.l.b16 %v124
    %v261 = vunpack.c.l.b16 %v125
    %v262 = vunpack.c.l.b16 %v126
    %v263 = vunpack.c.l.b16 %v127
    %v264 = vunpack.c.l.b16 %v128
    %v265 = vunpack.c.l.b16 %v129
    %v266 = vunpack.c.l.b16 %v130
    %v267 = vunpack.c.l.b16 %v131
    %v268 = vunpack.c.l.b16 %v132
    %v269 = vunpack.c.l.b16 %v133
    %v270 = vunpack.c.l.b16 %v134
    %v271 = vunpack.c.l.b16 %v135
    %v272 = vunpack.c.l.b16 %v136
    %v273 = vunpack.c.l.b16 %v137
    %v274 = vunpack.c.l.b16 %v138
    %v275 = vunpack.c.l.b16 %v139
    %v276 = vunpack.c.l.b16 %v140
    %v277 = vunpack.c.l.b16 %v141
    %v278 = vunpack.c.l.b16 %v142
    %v279 = vunpack.c.l.b16 %v143
    %v280 = vunpack.c.l.b16 %v144
    %v281 = vunpack.c.l.b16 %v145
    %v282 = vunpack.c.l.b16 %v146
    %v283 = vunpack.c.l.b16 %v147
    %v284 = vunpack.c.l.b16 %v148
    %v285 = vunpack.c.l.b16 %v149
    %v286 = vunpack.c.l.b16 %v150
    %v287 = vunpack.c.l.b16 %v151
    %v288 = vunpack.c.l.b16 %v152
    %v289 = vunpack.c.l.b16 %v153
    %v290 = vunpack.c.l.b16 %v154
    %v291 = vunpack.c.l.b16 %v155
    %v292 = vunpack.c.l.b16 %v156
    %v293 = vunpack.c.l.b16 %v157
    %v294 = vunpack.c.l.b16 %v158
    %v295 = vunpack.c.l.b16 %v159
    %v296 = vunpack.c.l.b16 %v160
    %v297 = vunpack.c.l.b16 %v161
    %v298 = vunpack.c.l.b16 %v162
    %v299 = vunpack.c.l.b16 %v163
    %v300 = vunpack.c.l.b16 %v164
    %v301 = vunpack.c.l.b16 %v165
    %v302 = vunpack.c.l.b16 %v166
    %v303 = vunpack.c.l.b16 %v167
    %v304 = vunpack.c.l.b16 %v168
    %v305 = vunpack.c.l.b16 %v169
    %v306 = vunpack.c.l.b16 %v170
    %v307 = vunpack.c.l.b16 %v171
    %v308 = vunpack.c.l.b16 %v172
    %v309 = vunpack.c.l.b16 %v173
    %v310 = vunpack.c.l.b16 %v174
    %v311 = vunpack.c.l.b16 %v175
    %v312 = vpack.c.b16 %v249, %v248
    %v313 = vpack.c.b16 %v251, %v250
    %v314 = vpack.c.b16 %v253, %v252
    %v315 = vpack.c.b16 %v255, %v254
    %v316 = vpack.c.b16 %v257, %v256
    %v317 = vpack.c.b16 %v259, %v258
    %v318 = vpack.c.b16 %v261, %v260
    %v319 = vpack.c.b16 %v263, %v262
    %v320 = vpack.c.b16 %v265, %v264
    %v321 = vpack.c.b16 %v267, %v266
    %v322 = vpack.c.b16 %v269, %v268
    %v323 = vpack.c.b16 %v271, %v270
    %v324 = vpack.c.b16 %v273, %v272
    %v325 = vpack.c.b16 %v275, %v274
    %v326 = vpack.c.b16 %v277, %v276
    %v327 = vpack.c.b16 %v279, %v278
    %v328 = vpack.c.b16 %v281, %v280
    %v329 = vpack.c.b16 %v283, %v282
    %v330 = vpack.c.b16 %v285, %v284
    %v331 = vpack.c.b16 %v287, %v286
    %v332 = vpack.c.b16 %v289, %v288
    %v333 = vpack.c.b16 %v291, %v290
    %v334 = vpack.c.b16 %v293, %v292
    %v335 = vpack.c.b16 %v295, %v294
    %v336 = vpack.c.b16 %v297, %v296
    %v337 = vpack.c.b16 %v299, %v298
    %v338 = vpack.c.b16 %v301, %v300
    %v339 = vpack.c.b16 %v303, %v302
    %v340 = vpack.c.b16 %v305, %v304
    %v341 = vpack.c.b16 %v307, %v306
    %v342 = vpack.c.b16 %v309, %v308
    %v343 = vpack.c.b16 %v311, %v310
    %v352 = vunpack.c.l.b16 %v176
    %v353 = vunpack.c.l.b16 %v177
    %v354 = vunpack.c.l.b16 %v178
    %v355 = vunpack.c.l.b16 %v179
    %v356 = vunpack.c.l.b16 %v180
    %v357 = vunpack.c.l.b16 %v181
    %v358 = vunpack.c.l.b16 %v182
    %v359 = vunpack.c.l.b16 %v183
    %v360 = vpack.c.b16 %v353, %v352
    %v361 = vpack.c.b16 %v355, %v354
    %v362 = vpack.c.b16 %v357, %v356
    %v363 = vpack.c.b16 %v359, %v358
    %vm368 = vcmask 523264
    %v370 = vsel %vm368, %v312, 0
    %v373 = vsel %vm368, %v313, 0
    %v376 = vsel %vm368, %v314, 0
    %v379 = vsel %vm368, %v315, 0
    %v382 = vsel %vm368, %v316, 0
    %v385 = vsel %vm368, %v317, 0
    %v388 = vsel %vm368, %v318, 0
    %v391 = vsel %vm368, %v319, 0
    %v394 = vsel %vm368, %v320, 0
    %v397 = vsel %vm368, %v321, 0
    %v400 = vsel %vm368, %v322, 0
    %v403 = vsel %vm368, %v323, 0
    %v406 = vsel %vm368, %v324, 0
    %v409 = vsel %vm368, %v325, 0
    %v412 = vsel %vm368, %v326, 0
    %v415 = vsel %vm368, %v327, 0
    %v418 = vsel %vm368, %v328, 0
    %v421 = vsel %vm368, %v329, 0
    %v424 = vsel %vm368, %v330, 0
    %v427 = vsel %vm368, %v331, 0
    %v430 = vsel %vm368, %v332, 0
    %v433 = vsel %vm368, %v333, 0
    %v436 = vsel %vm368, %v334, 0
    %v439 = vsel %vm368, %v335, 0
    %v442 = vsel %vm368, %v336, 0
    %v445 = vsel %vm368, %v337, 0
    %v448 = vsel %vm368, %v338, 0
    %v451 = vsel %vm368, %v339, 0
    %v454 = vsel %vm368, %v340, 0
    %v457 = vsel %vm368, %v341, 0
    %v460 = vsel %vm368, %v342, 0
    %v463 = vsel %vm368, %v343, 0
    %465 = vmatprep.subr.bf16.mxu0 0
    %466 = vmatpush1.bf16.msra.mxu0 %v360
    %467 = vmatprep.subr.bf16.mxu0 0
    %468 = vmatpush1.bf16.msra.mxu0 %v361
    %469 = vmatprep.subr.bf16.mxu0 0
    %470 = vmatpush1.bf16.msra.mxu0 %v362
    %471 = vmatprep.subr.bf16.mxu0 0
    %472 = vmatpush1.bf16.msra.mxu0 %v363
    %473 = vmatprep.subr.bf16.mxu0 0
    %474 = vmatpush1.bf16.msra.mxu0 0
    %475 = vmatprep.subr.bf16.mxu0 0
    %476 = vmatpush1.bf16.msra.mxu0 0
    %477 = vmatprep.subr.bf16.mxu0 0
    %478 = vmatpush1.bf16.msra.mxu0 0
    %479 = vmatprep.subr.bf16.mxu0 0
    %480 = vmatpush1.bf16.msra.mxu0 0
    %481 = vmatprep.subr.bf16.mxu0 0
    %482 = vmatpush1.bf16.msra.mxu0 0
    %483 = vmatprep.subr.bf16.mxu0 0
    %484 = vmatpush1.bf16.msra.mxu0 0
    %485 = vmatprep.subr.bf16.mxu0 0
    %486 = vmatpush1.bf16.msra.mxu0 0
    %487 = vmatprep.subr.bf16.mxu0 0
    %488 = vmatpush1.bf16.msra.mxu0 0
    %489 = vmatprep.subr.bf16.mxu0 0
    %490 = vmatpush1.bf16.msra.mxu0 0
    %491 = vmatprep.subr.bf16.mxu0 0
    %492 = vmatpush1.bf16.msra.mxu0 0
    %493 = vmatprep.subr.bf16.mxu0 0
    %494 = vmatpush1.bf16.msra.mxu0 0
    %495 = vmatprep.subr.bf16.mxu0 0
    %496 = vmatpush1.bf16.msra.mxu0 0
    %497 = vmatprep.mubr.bf16.mxu0 0
    %498 = vmatmul.mubr.bf16.gmra.mrb[0].mxu0 %v370
    %v499 = vpop.f32.mrb[0].mxu0
    %v500 = vadd.f32 0.0, %v499
    %v501 = vpop.f32.mrb[0].mxu0
    %v502 = vpop.f32.mrb[0].mxu0
    %v503 = vadd.f32 0.0, %v502
    %v504 = vpop.f32.mrb[0].mxu0
    %505 = vmatprep.mubr.bf16.mxu0 0
    %506 = vmatmul.mubr.bf16.gmra.mrb[0].mxu0 %v373
    %v507 = vpop.f32.mrb[0].mxu0
    %v508 = vadd.f32 0.0, %v507
    %v509 = vpop.f32.mrb[0].mxu0
    %v510 = vpop.f32.mrb[0].mxu0
    %v511 = vadd.f32 0.0, %v510
    %v512 = vpop.f32.mrb[0].mxu0
    %513 = vmatprep.mubr.bf16.mxu0 0
    %514 = vmatmul.mubr.bf16.gmra.mrb[0].mxu0 %v376
    %v515 = vpop.f32.mrb[0].mxu0
    %v516 = vadd.f32 0.0, %v515
    %v517 = vpop.f32.mrb[0].mxu0
    %v518 = vpop.f32.mrb[0].mxu0
    %v519 = vadd.f32 0.0, %v518
    %v520 = vpop.f32.mrb[0].mxu0
    %521 = vmatprep.mubr.bf16.mxu0 0
    %522 = vmatmul.mubr.bf16.gmra.mrb[0].mxu0 %v379
    %v523 = vpop.f32.mrb[0].mxu0
    %v524 = vadd.f32 0.0, %v523
    %v525 = vpop.f32.mrb[0].mxu0
    %v526 = vpop.f32.mrb[0].mxu0
    %v527 = vadd.f32 0.0, %v526
    %v528 = vpop.f32.mrb[0].mxu0
    %529 = vmatprep.mubr.bf16.mxu0 0
    %530 = vmatmul.mubr.bf16.gmra.mrb[0].mxu0 %v382
    %v531 = vpop.f32.mrb[0].mxu0
    %v532 = vadd.f32 0.0, %v531
    %v533 = vpop.f32.mrb[0].mxu0
    %v534 = vpop.f32.mrb[0].mxu0
    %v535 = vadd.f32 0.0, %v534
    %v536 = vpop.f32.mrb[0].mxu0
    %537 = vmatprep.mubr.bf16.mxu0 0
    %538 = vmatmul.mubr.bf16.gmra.mrb[0].mxu0 %v385
    %v539 = vpop.f32.mrb[0].mxu0
    %v540 = vadd.f32 0.0, %v539
    %v541 = vpop.f32.mrb[0].mxu0
    %v542 = vpop.f32.mrb[0].mxu0
    %v543 = vadd.f32 0.0, %v542
    %v544 = vpop.f32.mrb[0].mxu0
    %545 = vmatprep.mubr.bf16.mxu0 0
    %546 = vmatmul.mubr.bf16.gmra.mrb[0].mxu0 %v388
    %v547 = vpop.f32.mrb[0].mxu0
    %v548 = vadd.f32 0.0, %v547
    %v549 = vpop.f32.mrb[0].mxu0
    %v550 = vpop.f32.mrb[0].mxu0
    %v551 = vadd.f32 0.0, %v550
    %v552 = vpop.f32.mrb[0].mxu0
    %553 = vmatprep.mubr.bf16.mxu0 0
    %554 = vmatmul.mubr.bf16.gmra.mrb[0].mxu0 %v391
    %v555 = vpop.f32.mrb[0].mxu0
    %v556 = vadd.f32 0.0, %v555
    %v557 = vpop.f32.mrb[0].mxu0
    %v558 = vpop.f32.mrb[0].mxu0
    %v559 = vadd.f32 0.0, %v558
    %v560 = vpop.f32.mrb[0].mxu0
    %561 = vmatprep.mubr.bf16.mxu0 0
    %562 = vmatmul.mubr.bf16.gmra.mrb[0].mxu0 %v394
    %v563 = vpop.f32.mrb[0].mxu0
    %v564 = vadd.f32 0.0, %v563
    %v565 = vpop.f32.mrb[0].mxu0
    %v566 = vpop.f32.mrb[0].mxu0
    %v567 = vadd.f32 0.0, %v566
    %v568 = vpop.f32.mrb[0].mxu0
    %569 = vmatprep.mubr.bf16.mxu0 0
    %570 = vmatmul.mubr.bf16.gmra.mrb[0].mxu0 %v397
    %v571 = vpop.f32.mrb[0].mxu0
    %v572 = vadd.f32 0.0, %v571
    %v573 = vpop.f32.mrb[0].mxu0
    %v574 = vpop.f32.mrb[0].mxu0
    %v575 = vadd.f32 0.0, %v574
    %v576 = vpop.f32.mrb[0].mxu0
    %577 = vmatprep.mubr.bf16.mxu0 0
    %578 = vmatmul.mubr.bf16.gmra.mrb[0].mxu0 %v400
    %v579 = vpop.f32.mrb[0].mxu0
    %v580 = vadd.f32 0.0, %v579
    %v581 = vpop.f32.mrb[0].mxu0
    %v582 = vpop.f32.mrb[0].mxu0
    %v583 = vadd.f32 0.0, %v582
    %v584 = vpop.f32.mrb[0].mxu0
    %585 = vmatprep.mubr.bf16.mxu0 0
    %586 = vmatmul.mubr.bf16.gmra.mrb[0].mxu0 %v403
    %v587 = vpop.f32.mrb[0].mxu0
    %v588 = vadd.f32 0.0, %v587
    %v589 = vpop.f32.mrb[0].mxu0
    %v590 = vpop.f32.mrb[0].mxu0
    %v591 = vadd.f32 0.0, %v590
    %v592 = vpop.f32.mrb[0].mxu0
    %593 = vmatprep.mubr.bf16.mxu0 0
    %594 = vmatmul.mubr.bf16.gmra.mrb[0].mxu0 %v406
    %v595 = vpop.f32.mrb[0].mxu0
    %v596 = vadd.f32 0.0, %v595
    %v597 = vpop.f32.mrb[0].mxu0
    %v598 = vpop.f32.mrb[0].mxu0
    %v599 = vadd.f32 0.0, %v598
    %v600 = vpop.f32.mrb[0].mxu0
    %601 = vmatprep.mubr.bf16.mxu0 0
    %602 = vmatmul.mubr.bf16.gmra.mrb[0].mxu0 %v409
    %v603 = vpop.f32.mrb[0].mxu0
    %v604 = vadd.f32 0.0, %v603
    %v605 = vpop.f32.mrb[0].mxu0
    %v606 = vpop.f32.mrb[0].mxu0
    %v607 = vadd.f32 0.0, %v606
    %v608 = vpop.f32.mrb[0].mxu0
    %609 = vmatprep.mubr.bf16.mxu0 0
    %610 = vmatmul.mubr.bf16.gmra.mrb[0].mxu0 %v412
    %v611 = vpop.f32.mrb[0].mxu0
    %v612 = vadd.f32 0.0, %v611
    %v613 = vpop.f32.mrb[0].mxu0
    %v614 = vpop.f32.mrb[0].mxu0
    %v615 = vadd.f32 0.0, %v614
    %v616 = vpop.f32.mrb[0].mxu0
    %617 = vmatprep.mubr.bf16.mxu0 0
    %618 = vmatmul.mubr.bf16.gmra.mrb[0].mxu0 %v415
    %v619 = vpop.f32.mrb[0].mxu0
    %v620 = vadd.f32 0.0, %v619
    %v621 = vpop.f32.mrb[0].mxu0
    %v622 = vpop.f32.mrb[0].mxu0
    %v623 = vadd.f32 0.0, %v622
    %v624 = vpop.f32.mrb[0].mxu0
    %625 = vmatprep.mubr.bf16.mxu0 0
    %626 = vmatmul.mubr.bf16.gmra.mrb[0].mxu0 %v418
    %v627 = vpop.f32.mrb[0].mxu0
    %v628 = vadd.f32 0.0, %v627
    %v629 = vpop.f32.mrb[0].mxu0
    %v630 = vpop.f32.mrb[0].mxu0
    %v631 = vadd.f32 0.0, %v630
    %v632 = vpop.f32.mrb[0].mxu0
    %633 = vmatprep.mubr.bf16.mxu0 0
    %634 = vmatmul.mubr.bf16.gmra.mrb[0].mxu0 %v421
    %v635 = vpop.f32.mrb[0].mxu0
    %v636 = vadd.f32 0.0, %v635
    %v637 = vpop.f32.mrb[0].mxu0
    %v638 = vpop.f32.mrb[0].mxu0
    %v639 = vadd.f32 0.0, %v638
    %v640 = vpop.f32.mrb[0].mxu0
    %641 = vmatprep.mubr.bf16.mxu0 0
    %642 = vmatmul.mubr.bf16.gmra.mrb[0].mxu0 %v424
    %v643 = vpop.f32.mrb[0].mxu0
    %v644 = vadd.f32 0.0, %v643
    %v645 = vpop.f32.mrb[0].mxu0
    %v646 = vpop.f32.mrb[0].mxu0
    %v647 = vadd.f32 0.0, %v646
    %v648 = vpop.f32.mrb[0].mxu0
    %649 = vmatprep.mubr.bf16.mxu0 0
    %650 = vmatmul.mubr.bf16.gmra.mrb[0].mxu0 %v427
    %v651 = vpop.f32.mrb[0].mxu0
    %v652 = vadd.f32 0.0, %v651
    %v653 = vpop.f32.mrb[0].mxu0
    %v654 = vpop.f32.mrb[0].mxu0
    %v655 = vadd.f32 0.0, %v654
    %v656 = vpop.f32.mrb[0].mxu0
    %657 = vmatprep.mubr.bf16.mxu0 0
    %658 = vmatmul.mubr.bf16.gmra.mrb[0].mxu0 %v430
    %v659 = vpop.f32.mrb[0].mxu0
    %v660 = vadd.f32 0.0, %v659
    %v661 = vpop.f32.mrb[0].mxu0
    %v662 = vpop.f32.mrb[0].mxu0
    %v663 = vadd.f32 0.0, %v662
    %v664 = vpop.f32.mrb[0].mxu0
    %665 = vmatprep.mubr.bf16.mxu0 0
    %666 = vmatmul.mubr.bf16.gmra.mrb[0].mxu0 %v433
    %v667 = vpop.f32.mrb[0].mxu0
    %v668 = vadd.f32 0.0, %v667
    %v669 = vpop.f32.mrb[0].mxu0
    %v670 = vpop.f32.mrb[0].mxu0
    %v671 = vadd.f32 0.0, %v670
    %v672 = vpop.f32.mrb[0].mxu0
    %673 = vmatprep.mubr.bf16.mxu0 0
    %674 = vmatmul.mubr.bf16.gmra.mrb[0].mxu0 %v436
    %v675 = vpop.f32.mrb[0].mxu0
    %v676 = vadd.f32 0.0, %v675
    %v677 = vpop.f32.mrb[0].mxu0
    %v678 = vpop.f32.mrb[0].mxu0
    %v679 = vadd.f32 0.0, %v678
    %v680 = vpop.f32.mrb[0].mxu0
    %681 = vmatprep.mubr.bf16.mxu0 0
    %682 = vmatmul.mubr.bf16.gmra.mrb[0].mxu0 %v439
    %v683 = vpop.f32.mrb[0].mxu0
    %v684 = vadd.f32 0.0, %v683
    %v685 = vpop.f32.mrb[0].mxu0
    %v686 = vpop.f32.mrb[0].mxu0
    %v687 = vadd.f32 0.0, %v686
    %v688 = vpop.f32.mrb[0].mxu0
    %689 = vmatprep.mubr.bf16.mxu0 0
    %690 = vmatmul.mubr.bf16.gmra.mrb[0].mxu0 %v442
    %v691 = vpop.f32.mrb[0].mxu0
    %v692 = vadd.f32 0.0, %v691
    %v693 = vpop.f32.mrb[0].mxu0
    %v694 = vpop.f32.mrb[0].mxu0
    %v695 = vadd.f32 0.0, %v694
    %v696 = vpop.f32.mrb[0].mxu0
    %697 = vmatprep.mubr.bf16.mxu0 0
    %698 = vmatmul.mubr.bf16.gmra.mrb[0].mxu0 %v445
    %v699 = vpop.f32.mrb[0].mxu0
    %v700 = vadd.f32 0.0, %v699
    %v701 = vpop.f32.mrb[0].mxu0
    %v702 = vpop.f32.mrb[0].mxu0
    %v703 = vadd.f32 0.0, %v702
    %v704 = vpop.f32.mrb[0].mxu0
    %705 = vmatprep.mubr.bf16.mxu0 0
    %706 = vmatmul.mubr.bf16.gmra.mrb[0].mxu0 %v448
    %v707 = vpop.f32.mrb[0].mxu0
    %v708 = vadd.f32 0.0, %v707
    %v709 = vpop.f32.mrb[0].mxu0
    %v710 = vpop.f32.mrb[0].mxu0
    %v711 = vadd.f32 0.0, %v710
    %v712 = vpop.f32.mrb[0].mxu0
    %713 = vmatprep.mubr.bf16.mxu0 0
    %714 = vmatmul.mubr.bf16.gmra.mrb[0].mxu0 %v451
    %v715 = vpop.f32.mrb[0].mxu0
    %v716 = vadd.f32 0.0, %v715
    %v717 = vpop.f32.mrb[0].mxu0
    %v718 = vpop.f32.mrb[0].mxu0
    %v719 = vadd.f32 0.0, %v718
    %v720 = vpop.f32.mrb[0].mxu0
    %721 = vmatprep.mubr.bf16.mxu0 0
    %722 = vmatmul.mubr.bf16.gmra.mrb[0].mxu0 %v454
    %v723 = vpop.f32.mrb[0].mxu0
    %v724 = vadd.f32 0.0, %v723
    %v725 = vpop.f32.mrb[0].mxu0
    %v726 = vpop.f32.mrb[0].mxu0
    %v727 = vadd.f32 0.0, %v726
    %v728 = vpop.f32.mrb[0].mxu0
    %729 = vmatprep.mubr.bf16.mxu0 0
    %730 = vmatmul.mubr.bf16.gmra.mrb[0].mxu0 %v457
    %v731 = vpop.f32.mrb[0].mxu0
    %v732 = vadd.f32 0.0, %v731
    %v733 = vpop.f32.mrb[0].mxu0
    %v734 = vpop.f32.mrb[0].mxu0
    %v735 = vadd.f32 0.0, %v734
    %v736 = vpop.f32.mrb[0].mxu0
    %737 = vmatprep.mubr.bf16.mxu0 0
    %738 = vmatmul.mubr.bf16.gmra.mrb[0].mxu0 %v460
    %v739 = vpop.f32.mrb[0].mxu0
    %v740 = vadd.f32 0.0, %v739
    %v741 = vpop.f32.mrb[0].mxu0
    %v742 = vpop.f32.mrb[0].mxu0
    %v743 = vadd.f32 0.0, %v742
    %v744 = vpop.f32.mrb[0].mxu0
    %745 = vmatprep.mubr.bf16.mxu0 0
    %746 = vmatmul.mubr.bf16.gmra.mrb[0].mxu0 %v463
    %v747 = vpop.f32.mrb[0].mxu0
    %v748 = vadd.f32 0.0, %v747
    %v749 = vpop.f32.mrb[0].mxu0
    %v750 = vpop.f32.mrb[0].mxu0
    %v751 = vadd.f32 0.0, %v750
    %v752 = vpop.f32.mrb[0].mxu0
    %753 = vdwg.mxu0
    %v818 = vunpack.c.l.b16 %v40
    %v819 = vunpack.c.l.b16 %v41
    %v820 = vunpack.c.l.b16 %v42
    %v821 = vunpack.c.l.b16 %v43
    %v822 = vunpack.c.l.b16 %v44
    %v823 = vunpack.c.l.b16 %v45
    %v824 = vunpack.c.l.b16 %v46
    %v825 = vunpack.c.l.b16 %v47
    %v826 = vunpack.c.l.b16 %v48
    %v827 = vunpack.c.l.b16 %v49
    %v828 = vunpack.c.l.b16 %v50
    %v829 = vunpack.c.l.b16 %v51
    %v830 = vunpack.c.l.b16 %v52
    %v831 = vunpack.c.l.b16 %v53
    %v832 = vunpack.c.l.b16 %v54
    %v833 = vunpack.c.l.b16 %v55
    %v834 = vunpack.c.l.b16 %v56
    %v835 = vunpack.c.l.b16 %v57
    %v836 = vunpack.c.l.b16 %v58
    %v837 = vunpack.c.l.b16 %v59
    %v838 = vunpack.c.l.b16 %v60
    %v839 = vunpack.c.l.b16 %v61
    %v840 = vunpack.c.l.b16 %v62
    %v841 = vunpack.c.l.b16 %v63
    %v842 = vunpack.c.l.b16 %v64
    %v843 = vunpack.c.l.b16 %v65
    %v844 = vunpack.c.l.b16 %v66
    %v845 = vunpack.c.l.b16 %v67
    %v846 = vunpack.c.l.b16 %v68
    %v847 = vunpack.c.l.b16 %v69
    %v848 = vunpack.c.l.b16 %v70
    %v849 = vunpack.c.l.b16 %v71
    %v850 = vunpack.c.l.b16 %v72
    %v851 = vunpack.c.l.b16 %v73
    %v852 = vunpack.c.l.b16 %v74
    %v853 = vunpack.c.l.b16 %v75
    %v854 = vunpack.c.l.b16 %v76
    %v855 = vunpack.c.l.b16 %v77
    %v856 = vunpack.c.l.b16 %v78
    %v857 = vunpack.c.l.b16 %v79
    %v858 = vunpack.c.l.b16 %v80
    %v859 = vunpack.c.l.b16 %v81
    %v860 = vunpack.c.l.b16 %v82
    %v861 = vunpack.c.l.b16 %v83
    %v862 = vunpack.c.l.b16 %v84
    %v863 = vunpack.c.l.b16 %v85
    %v864 = vunpack.c.l.b16 %v86
    %v865 = vunpack.c.l.b16 %v87
    %v866 = vunpack.c.l.b16 %v88
    %v867 = vunpack.c.l.b16 %v89
    %v868 = vunpack.c.l.b16 %v90
    %v869 = vunpack.c.l.b16 %v91
    %v870 = vunpack.c.l.b16 %v92
    %v871 = vunpack.c.l.b16 %v93
    %v872 = vunpack.c.l.b16 %v94
    %v873 = vunpack.c.l.b16 %v95
    %v874 = vunpack.c.l.b16 %v96
    %v875 = vunpack.c.l.b16 %v97
    %v876 = vunpack.c.l.b16 %v98
    %v877 = vunpack.c.l.b16 %v99
    %v878 = vunpack.c.l.b16 %v100
    %v879 = vunpack.c.l.b16 %v101
    %v880 = vunpack.c.l.b16 %v102
    %v881 = vunpack.c.l.b16 %v103
    %v882 = vpack.c.b16 %v819, %v818
    %v883 = vpack.c.b16 %v821, %v820
    %v884 = vpack.c.b16 %v823, %v822
    %v885 = vpack.c.b16 %v825, %v824
    %v886 = vpack.c.b16 %v827, %v826
    %v887 = vpack.c.b16 %v829, %v828
    %v888 = vpack.c.b16 %v831, %v830
    %v889 = vpack.c.b16 %v833, %v832
    %v890 = vpack.c.b16 %v835, %v834
    %v891 = vpack.c.b16 %v837, %v836
    %v892 = vpack.c.b16 %v839, %v838
    %v893 = vpack.c.b16 %v841, %v840
    %v894 = vpack.c.b16 %v843, %v842
    %v895 = vpack.c.b16 %v845, %v844
    %v896 = vpack.c.b16 %v847, %v846
    %v897 = vpack.c.b16 %v849, %v848
    %v898 = vpack.c.b16 %v851, %v850
    %v899 = vpack.c.b16 %v853, %v852
    %v900 = vpack.c.b16 %v855, %v854
    %v901 = vpack.c.b16 %v857, %v856
    %v902 = vpack.c.b16 %v859, %v858
    %v903 = vpack.c.b16 %v861, %v860
    %v904 = vpack.c.b16 %v863, %v862
    %v905 = vpack.c.b16 %v865, %v864
    %v906 = vpack.c.b16 %v867, %v866
    %v907 = vpack.c.b16 %v869, %v868
    %v908 = vpack.c.b16 %v871, %v870
    %v909 = vpack.c.b16 %v873, %v872
    %v910 = vpack.c.b16 %v875, %v874
    %v911 = vpack.c.b16 %v877, %v876
    %v912 = vpack.c.b16 %v879, %v878
    %v913 = vpack.c.b16 %v881, %v880
    %v922 = vunpack.c.l.b16 %v104
    %v923 = vunpack.c.l.b16 %v105
    %v924 = vunpack.c.l.b16 %v106
    %v925 = vunpack.c.l.b16 %v107
    %v926 = vunpack.c.l.b16 %v108
    %v927 = vunpack.c.l.b16 %v109
    %v928 = vunpack.c.l.b16 %v110
    %v929 = vunpack.c.l.b16 %v111
    %v930 = vpack.c.b16 %v923, %v922
    %v931 = vpack.c.b16 %v925, %v924
    %v932 = vpack.c.b16 %v927, %v926
    %v933 = vpack.c.b16 %v929, %v928
    %v939 = vsel %vm368, %v882, 0
    %v942 = vsel %vm368, %v883, 0
    %v945 = vsel %vm368, %v884, 0
    %v948 = vsel %vm368, %v885, 0
    %v951 = vsel %vm368, %v886, 0
    %v954 = vsel %vm368, %v887, 0
    %v957 = vsel %vm368, %v888, 0
    %v960 = vsel %vm368, %v889, 0
    %v963 = vsel %vm368, %v890, 0
    %v966 = vsel %vm368, %v891, 0
    %v969 = vsel %vm368, %v892, 0
    %v972 = vsel %vm368, %v893, 0
    %v975 = vsel %vm368, %v894, 0
    %v978 = vsel %vm368, %v895, 0
    %v981 = vsel %vm368, %v896, 0
    %v984 = vsel %vm368, %v897, 0
    %v987 = vsel %vm368, %v898, 0
    %v990 = vsel %vm368, %v899, 0
    %v993 = vsel %vm368, %v900, 0
    %v996 = vsel %vm368, %v901, 0
    %v999 = vsel %vm368, %v902, 0
    %v1002 = vsel %vm368, %v903, 0
    %v1005 = vsel %vm368, %v904, 0
    %v1008 = vsel %vm368, %v905, 0
    %v1011 = vsel %vm368, %v906, 0
    %v1014 = vsel %vm368, %v907, 0
    %v1017 = vsel %vm368, %v908, 0
    %v1020 = vsel %vm368, %v909, 0
    %v1023 = vsel %vm368, %v910, 0
    %v1026 = vsel %vm368, %v911, 0
    %v1029 = vsel %vm368, %v912, 0
    %v1032 = vsel %vm368, %v913, 0
    %1034 = vmatprep.subr.bf16.mxu0 0
    %1035 = vmatpush1.bf16.msra.mxu0 %v930
    %1036 = vmatprep.subr.bf16.mxu0 0
    %1037 = vmatpush1.bf16.msra.mxu0 %v931
    %1038 = vmatprep.subr.bf16.mxu0 0
    %1039 = vmatpush1.bf16.msra.mxu0 %v932
    %1040 = vmatprep.subr.bf16.mxu0 0
    %1041 = vmatpush1.bf16.msra.mxu0 %v933
    %1042 = vmatprep.subr.bf16.mxu0 0
    %1043 = vmatpush1.bf16.msra.mxu0 0
    %1044 = vmatprep.subr.bf16.mxu0 0
    %1045 = vmatpush1.bf16.msra.mxu0 0
    %1046 = vmatprep.subr.bf16.mxu0 0
    %1047 = vmatpush1.bf16.msra.mxu0 0
    %1048 = vmatprep.subr.bf16.mxu0 0
    %1049 = vmatpush1.bf16.msra.mxu0 0
    %1050 = vmatprep.subr.bf16.mxu0 0
    %1051 = vmatpush1.bf16.msra.mxu0 0
    %1052 = vmatprep.subr.bf16.mxu0 0
    %1053 = vmatpush1.bf16.msra.mxu0 0
    %1054 = vmatprep.subr.bf16.mxu0 0
    %1055 = vmatpush1.bf16.msra.mxu0 0
    %1056 = vmatprep.subr.bf16.mxu0 0
    %1057 = vmatpush1.bf16.msra.mxu0 0
    %1058 = vmatprep.subr.bf16.mxu0 0
    %1059 = vmatpush1.bf16.msra.mxu0 0
    %1060 = vmatprep.subr.bf16.mxu0 0
    %1061 = vmatpush1.bf16.msra.mxu0 0
    %1062 = vmatprep.subr.bf16.mxu0 0
    %1063 = vmatpush1.bf16.msra.mxu0 0
    %1064 = vmatprep.subr.bf16.mxu0 0
    %1065 = vmatpush1.bf16.msra.mxu0 0
    %1066 = vmatprep.mubr.bf16.mxu0 0
    %1067 = vmatmul.mubr.bf16.gmra.mrb[0].mxu0 %v939
    %v1068 = vpop.f32.mrb[0].mxu0
    %v1069 = vadd.f32 %v500, %v1068
    %v1070 = vpop.f32.mrb[0].mxu0
    %v1071 = vpop.f32.mrb[0].mxu0
    %v1072 = vadd.f32 %v503, %v1071
    %v1073 = vpop.f32.mrb[0].mxu0
    %1074 = vmatprep.mubr.bf16.mxu0 0
    %1075 = vmatmul.mubr.bf16.gmra.mrb[0].mxu0 %v942
    %v1076 = vpop.f32.mrb[0].mxu0
    %v1077 = vadd.f32 %v508, %v1076
    %v1078 = vpop.f32.mrb[0].mxu0
    %v1079 = vpop.f32.mrb[0].mxu0
    %v1080 = vadd.f32 %v511, %v1079
    %v1081 = vpop.f32.mrb[0].mxu0
    %1082 = vmatprep.mubr.bf16.mxu0 0
    %1083 = vmatmul.mubr.bf16.gmra.mrb[0].mxu0 %v945
    %v1084 = vpop.f32.mrb[0].mxu0
    %v1085 = vadd.f32 %v516, %v1084
    %v1086 = vpop.f32.mrb[0].mxu0
    %v1087 = vpop.f32.mrb[0].mxu0
    %v1088 = vadd.f32 %v519, %v1087
    %v1089 = vpop.f32.mrb[0].mxu0
    %1090 = vmatprep.mubr.bf16.mxu0 0
    %1091 = vmatmul.mubr.bf16.gmra.mrb[0].mxu0 %v948
    %v1092 = vpop.f32.mrb[0].mxu0
    %v1093 = vadd.f32 %v524, %v1092
    %v1094 = vpop.f32.mrb[0].mxu0
    %v1095 = vpop.f32.mrb[0].mxu0
    %v1096 = vadd.f32 %v527, %v1095
    %v1097 = vpop.f32.mrb[0].mxu0
    %1098 = vmatprep.mubr.bf16.mxu0 0
    %1099 = vmatmul.mubr.bf16.gmra.mrb[0].mxu0 %v951
    %v1100 = vpop.f32.mrb[0].mxu0
    %v1101 = vadd.f32 %v532, %v1100
    %v1102 = vpop.f32.mrb[0].mxu0
    %v1103 = vpop.f32.mrb[0].mxu0
    %v1104 = vadd.f32 %v535, %v1103
    %v1105 = vpop.f32.mrb[0].mxu0
    %1106 = vmatprep.mubr.bf16.mxu0 0
    %1107 = vmatmul.mubr.bf16.gmra.mrb[0].mxu0 %v954
    %v1108 = vpop.f32.mrb[0].mxu0
    %v1109 = vadd.f32 %v540, %v1108
    %v1110 = vpop.f32.mrb[0].mxu0
    %v1111 = vpop.f32.mrb[0].mxu0
    %v1112 = vadd.f32 %v543, %v1111
    %v1113 = vpop.f32.mrb[0].mxu0
    %1114 = vmatprep.mubr.bf16.mxu0 0
    %1115 = vmatmul.mubr.bf16.gmra.mrb[0].mxu0 %v957
    %v1116 = vpop.f32.mrb[0].mxu0
    %v1117 = vadd.f32 %v548, %v1116
    %v1118 = vpop.f32.mrb[0].mxu0
    %v1119 = vpop.f32.mrb[0].mxu0
    %v1120 = vadd.f32 %v551, %v1119
    %v1121 = vpop.f32.mrb[0].mxu0
    %1122 = vmatprep.mubr.bf16.mxu0 0
    %1123 = vmatmul.mubr.bf16.gmra.mrb[0].mxu0 %v960
    %v1124 = vpop.f32.mrb[0].mxu0
    %v1125 = vadd.f32 %v556, %v1124
    %v1126 = vpop.f32.mrb[0].mxu0
    %v1127 = vpop.f32.mrb[0].mxu0
    %v1128 = vadd.f32 %v559, %v1127
    %v1129 = vpop.f32.mrb[0].mxu0
    %1130 = vmatprep.mubr.bf16.mxu0 0
    %1131 = vmatmul.mubr.bf16.gmra.mrb[0].mxu0 %v963
    %v1132 = vpop.f32.mrb[0].mxu0
    %v1133 = vadd.f32 %v564, %v1132
    %v1134 = vpop.f32.mrb[0].mxu0
    %v1135 = vpop.f32.mrb[0].mxu0
    %v1136 = vadd.f32 %v567, %v1135
    %v1137 = vpop.f32.mrb[0].mxu0
    %1138 = vmatprep.mubr.bf16.mxu0 0
    %1139 = vmatmul.mubr.bf16.gmra.mrb[0].mxu0 %v966
    %v1140 = vpop.f32.mrb[0].mxu0
    %v1141 = vadd.f32 %v572, %v1140
    %v1142 = vpop.f32.mrb[0].mxu0
    %v1143 = vpop.f32.mrb[0].mxu0
    %v1144 = vadd.f32 %v575, %v1143
    %v1145 = vpop.f32.mrb[0].mxu0
    %1146 = vmatprep.mubr.bf16.mxu0 0
    %1147 = vmatmul.mubr.bf16.gmra.mrb[0].mxu0 %v969
    %v1148 = vpop.f32.mrb[0].mxu0
    %v1149 = vadd.f32 %v580, %v1148
    %v1150 = vpop.f32.mrb[0].mxu0
    %v1151 = vpop.f32.mrb[0].mxu0
    %v1152 = vadd.f32 %v583, %v1151
    %v1153 = vpop.f32.mrb[0].mxu0
    %1154 = vmatprep.mubr.bf16.mxu0 0
    %1155 = vmatmul.mubr.bf16.gmra.mrb[0].mxu0 %v972
    %v1156 = vpop.f32.mrb[0].mxu0
    %v1157 = vadd.f32 %v588, %v1156
    %v1158 = vpop.f32.mrb[0].mxu0
    %v1159 = vpop.f32.mrb[0].mxu0
    %v1160 = vadd.f32 %v591, %v1159
    %v1161 = vpop.f32.mrb[0].mxu0
    %1162 = vmatprep.mubr.bf16.mxu0 0
    %1163 = vmatmul.mubr.bf16.gmra.mrb[0].mxu0 %v975
    %v1164 = vpop.f32.mrb[0].mxu0
    %v1165 = vadd.f32 %v596, %v1164
    %v1166 = vpop.f32.mrb[0].mxu0
    %v1167 = vpop.f32.mrb[0].mxu0
    %v1168 = vadd.f32 %v599, %v1167
    %v1169 = vpop.f32.mrb[0].mxu0
    %1170 = vmatprep.mubr.bf16.mxu0 0
    %1171 = vmatmul.mubr.bf16.gmra.mrb[0].mxu0 %v978
    %v1172 = vpop.f32.mrb[0].mxu0
    %v1173 = vadd.f32 %v604, %v1172
    %v1174 = vpop.f32.mrb[0].mxu0
    %v1175 = vpop.f32.mrb[0].mxu0
    %v1176 = vadd.f32 %v607, %v1175
    %v1177 = vpop.f32.mrb[0].mxu0
    %1178 = vmatprep.mubr.bf16.mxu0 0
    %1179 = vmatmul.mubr.bf16.gmra.mrb[0].mxu0 %v981
    %v1180 = vpop.f32.mrb[0].mxu0
    %v1181 = vadd.f32 %v612, %v1180
    %v1182 = vpop.f32.mrb[0].mxu0
    %v1183 = vpop.f32.mrb[0].mxu0
    %v1184 = vadd.f32 %v615, %v1183
    %v1185 = vpop.f32.mrb[0].mxu0
    %1186 = vmatprep.mubr.bf16.mxu0 0
    %1187 = vmatmul.mubr.bf16.gmra.mrb[0].mxu0 %v984
    %v1188 = vpop.f32.mrb[0].mxu0
    %v1189 = vadd.f32 %v620, %v1188
    %v1190 = vpop.f32.mrb[0].mxu0
    %v1191 = vpop.f32.mrb[0].mxu0
    %v1192 = vadd.f32 %v623, %v1191
    %v1193 = vpop.f32.mrb[0].mxu0
    %1194 = vmatprep.mubr.bf16.mxu0 0
    %1195 = vmatmul.mubr.bf16.gmra.mrb[0].mxu0 %v987
    %v1196 = vpop.f32.mrb[0].mxu0
    %v1197 = vadd.f32 %v628, %v1196
    %v1198 = vpop.f32.mrb[0].mxu0
    %v1199 = vpop.f32.mrb[0].mxu0
    %v1200 = vadd.f32 %v631, %v1199
    %v1201 = vpop.f32.mrb[0].mxu0
    %1202 = vmatprep.mubr.bf16.mxu0 0
    %1203 = vmatmul.mubr.bf16.gmra.mrb[0].mxu0 %v990
    %v1204 = vpop.f32.mrb[0].mxu0
    %v1205 = vadd.f32 %v636, %v1204
    %v1206 = vpop.f32.mrb[0].mxu0
    %v1207 = vpop.f32.mrb[0].mxu0
    %v1208 = vadd.f32 %v639, %v1207
    %v1209 = vpop.f32.mrb[0].mxu0
    %1210 = vmatprep.mubr.bf16.mxu0 0
    %1211 = vmatmul.mubr.bf16.gmra.mrb[0].mxu0 %v993
    %v1212 = vpop.f32.mrb[0].mxu0
    %v1213 = vadd.f32 %v644, %v1212
    %v1214 = vpop.f32.mrb[0].mxu0
    %v1215 = vpop.f32.mrb[0].mxu0
    %v1216 = vadd.f32 %v647, %v1215
    %v1217 = vpop.f32.mrb[0].mxu0
    %1218 = vmatprep.mubr.bf16.mxu0 0
    %1219 = vmatmul.mubr.bf16.gmra.mrb[0].mxu0 %v996
    %v1220 = vpop.f32.mrb[0].mxu0
    %v1221 = vadd.f32 %v652, %v1220
    %v1222 = vpop.f32.mrb[0].mxu0
    %v1223 = vpop.f32.mrb[0].mxu0
    %v1224 = vadd.f32 %v655, %v1223
    %v1225 = vpop.f32.mrb[0].mxu0
    %1226 = vmatprep.mubr.bf16.mxu0 0
    %1227 = vmatmul.mubr.bf16.gmra.mrb[0].mxu0 %v999
    %v1228 = vpop.f32.mrb[0].mxu0
    %v1229 = vadd.f32 %v660, %v1228
    %v1230 = vpop.f32.mrb[0].mxu0
    %v1231 = vpop.f32.mrb[0].mxu0
    %v1232 = vadd.f32 %v663, %v1231
    %v1233 = vpop.f32.mrb[0].mxu0
    %1234 = vmatprep.mubr.bf16.mxu0 0
    %1235 = vmatmul.mubr.bf16.gmra.mrb[0].mxu0 %v1002
    %v1236 = vpop.f32.mrb[0].mxu0
    %v1237 = vadd.f32 %v668, %v1236
    %v1238 = vpop.f32.mrb[0].mxu0
    %v1239 = vpop.f32.mrb[0].mxu0
    %v1240 = vadd.f32 %v671, %v1239
    %v1241 = vpop.f32.mrb[0].mxu0
    %1242 = vmatprep.mubr.bf16.mxu0 0
    %1243 = vmatmul.mubr.bf16.gmra.mrb[0].mxu0 %v1005
    %v1244 = vpop.f32.mrb[0].mxu0
    %v1245 = vadd.f32 %v676, %v1244
    %v1246 = vpop.f32.mrb[0].mxu0
    %v1247 = vpop.f32.mrb[0].mxu0
    %v1248 = vadd.f32 %v679, %v1247
    %v1249 = vpop.f32.mrb[0].mxu0
    %1250 = vmatprep.mubr.bf16.mxu0 0
    %1251 = vmatmul.mubr.bf16.gmra.mrb[0].mxu0 %v1008
    %v1252 = vpop.f32.mrb[0].mxu0
    %v1253 = vadd.f32 %v684, %v1252
    %v1254 = vpop.f32.mrb[0].mxu0
    %v1255 = vpop.f32.mrb[0].mxu0
    %v1256 = vadd.f32 %v687, %v1255
    %v1257 = vpop.f32.mrb[0].mxu0
    %1258 = vmatprep.mubr.bf16.mxu0 0
    %1259 = vmatmul.mubr.bf16.gmra.mrb[0].mxu0 %v1011
    %v1260 = vpop.f32.mrb[0].mxu0
    %v1261 = vadd.f32 %v692, %v1260
    %v1262 = vpop.f32.mrb[0].mxu0
    %v1263 = vpop.f32.mrb[0].mxu0
    %v1264 = vadd.f32 %v695, %v1263
    %v1265 = vpop.f32.mrb[0].mxu0
    %1266 = vmatprep.mubr.bf16.mxu0 0
    %1267 = vmatmul.mubr.bf16.gmra.mrb[0].mxu0 %v1014
    %v1268 = vpop.f32.mrb[0].mxu0
    %v1269 = vadd.f32 %v700, %v1268
    %v1270 = vpop.f32.mrb[0].mxu0
    %v1271 = vpop.f32.mrb[0].mxu0
    %v1272 = vadd.f32 %v703, %v1271
    %v1273 = vpop.f32.mrb[0].mxu0
    %1274 = vmatprep.mubr.bf16.mxu0 0
    %1275 = vmatmul.mubr.bf16.gmra.mrb[0].mxu0 %v1017
    %v1276 = vpop.f32.mrb[0].mxu0
    %v1277 = vadd.f32 %v708, %v1276
    %v1278 = vpop.f32.mrb[0].mxu0
    %v1279 = vpop.f32.mrb[0].mxu0
    %v1280 = vadd.f32 %v711, %v1279
    %v1281 = vpop.f32.mrb[0].mxu0
    %1282 = vmatprep.mubr.bf16.mxu0 0
    %1283 = vmatmul.mubr.bf16.gmra.mrb[0].mxu0 %v1020
    %v1284 = vpop.f32.mrb[0].mxu0
    %v1285 = vadd.f32 %v716, %v1284
    %v1286 = vpop.f32.mrb[0].mxu0
    %v1287 = vpop.f32.mrb[0].mxu0
    %v1288 = vadd.f32 %v719, %v1287
    %v1289 = vpop.f32.mrb[0].mxu0
    %1290 = vmatprep.mubr.bf16.mxu0 0
    %1291 = vmatmul.mubr.bf16.gmra.mrb[0].mxu0 %v1023
    %v1292 = vpop.f32.mrb[0].mxu0
    %v1293 = vadd.f32 %v724, %v1292
    %v1294 = vpop.f32.mrb[0].mxu0
    %v1295 = vpop.f32.mrb[0].mxu0
    %v1296 = vadd.f32 %v727, %v1295
    %v1297 = vpop.f32.mrb[0].mxu0
    %1298 = vmatprep.mubr.bf16.mxu0 0
    %1299 = vmatmul.mubr.bf16.gmra.mrb[0].mxu0 %v1026
    %v1300 = vpop.f32.mrb[0].mxu0
    %v1301 = vadd.f32 %v732, %v1300
    %v1302 = vpop.f32.mrb[0].mxu0
    %v1303 = vpop.f32.mrb[0].mxu0
    %v1304 = vadd.f32 %v735, %v1303
    %v1305 = vpop.f32.mrb[0].mxu0
    %1306 = vmatprep.mubr.bf16.mxu0 0
    %1307 = vmatmul.mubr.bf16.gmra.mrb[0].mxu0 %v1029
    %v1308 = vpop.f32.mrb[0].mxu0
    %v1309 = vadd.f32 %v740, %v1308
    %v1310 = vpop.f32.mrb[0].mxu0
    %v1311 = vpop.f32.mrb[0].mxu0
    %v1312 = vadd.f32 %v743, %v1311
    %v1313 = vpop.f32.mrb[0].mxu0
    %1314 = vmatprep.mubr.bf16.mxu0 0
    %1315 = vmatmul.mubr.bf16.gmra.mrb[0].mxu0 %v1032
    %v1316 = vpop.f32.mrb[0].mxu0
    %v1317 = vadd.f32 %v748, %v1316
    %v1318 = vpop.f32.mrb[0].mxu0
    %v1319 = vpop.f32.mrb[0].mxu0
    %v1320 = vadd.f32 %v751, %v1319
    %v1321 = vpop.f32.mrb[0].mxu0
    %1322 = vdwg.mxu0
    %v1323 = vld [vmem:[%s2] sm:$0xff]
    %v1324 = vld [vmem:[%s2 + $0x8] sm:$0xff]
    %v1325 = vld [vmem:[%s2 + $0x10] sm:$0xff]
    %v1326 = vld [vmem:[%s2 + $0x18] sm:$0xff]
    %v1327 = vld [vmem:[%s2 + $0x20] sm:$0xff]
    %v1328 = vld [vmem:[%s2 + $0x28] sm:$0xff]
    %v1329 = vld [vmem:[%s2 + $0x30] sm:$0xff]
    %v1330 = vld [vmem:[%s2 + $0x38] sm:$0xff]
    %v1331 = vld [vmem:[%s2 + $0x40] sm:$0xff]
    %v1332 = vld [vmem:[%s2 + $0x48] sm:$0xff]
    %v1333 = vld [vmem:[%s2 + $0x50] sm:$0xff]
    %v1334 = vld [vmem:[%s2 + $0x58] sm:$0xff]
    %v1335 = vld [vmem:[%s2 + $0x60] sm:$0xff]
    %v1336 = vld [vmem:[%s2 + $0x68] sm:$0xff]
    %v1337 = vld [vmem:[%s2 + $0x70] sm:$0xff]
    %v1338 = vld [vmem:[%s2 + $0x78] sm:$0xff]
    %v1339 = vld [vmem:[%s2 + $0x80] sm:$0xff]
    %v1340 = vld [vmem:[%s2 + $0x88] sm:$0xff]
    %v1341 = vld [vmem:[%s2 + $0x90] sm:$0xff]
    %v1342 = vld [vmem:[%s2 + $0x98] sm:$0xff]
    %v1343 = vld [vmem:[%s2 + $0xa0] sm:$0xff]
    %v1344 = vld [vmem:[%s2 + $0xa8] sm:$0xff]
    %v1345 = vld [vmem:[%s2 + $0xb0] sm:$0xff]
    %v1346 = vld [vmem:[%s2 + $0xb8] sm:$0xff]
    %v1347 = vld [vmem:[%s2 + $0xc0] sm:$0xff]
    %v1348 = vld [vmem:[%s2 + $0xc8] sm:$0xff]
    %v1349 = vld [vmem:[%s2 + $0xd0] sm:$0xff]
    %v1350 = vld [vmem:[%s2 + $0xd8] sm:$0xff]
    %v1351 = vld [vmem:[%s2 + $0xe0] sm:$0xff]
    %v1352 = vld [vmem:[%s2 + $0xe8] sm:$0xff]
    %v1353 = vld [vmem:[%s2 + $0xf0] sm:$0xff]
    %v1354 = vld [vmem:[%s2 + $0xf8] sm:$0xff]
    %v1355 = vld [vmem:[%s2 + $0x100] sm:$0xff]
    %v1356 = vld [vmem:[%s2 + $0x108] sm:$0xff]
    %v1357 = vld [vmem:[%s2 + $0x110] sm:$0xff]
    %v1358 = vld [vmem:[%s2 + $0x118] sm:$0xff]
    %v1359 = vld [vmem:[%s2 + $0x120] sm:$0xff]
    %v1360 = vld [vmem:[%s2 + $0x128] sm:$0xff]
    %v1361 = vld [vmem:[%s2 + $0x130] sm:$0xff]
    %v1362 = vld [vmem:[%s2 + $0x138] sm:$0xff]
    %v1363 = vld [vmem:[%s2 + $0x140] sm:$0xff]
    %v1364 = vld [vmem:[%s2 + $0x148] sm:$0xff]
    %v1365 = vld [vmem:[%s2 + $0x150] sm:$0xff]
    %v1366 = vld [vmem:[%s2 + $0x158] sm:$0xff]
    %v1367 = vld [vmem:[%s2 + $0x160] sm:$0xff]
    %v1368 = vld [vmem:[%s2 + $0x168] sm:$0xff]
    %v1369 = vld [vmem:[%s2 + $0x170] sm:$0xff]
    %v1370 = vld [vmem:[%s2 + $0x178] sm:$0xff]
    %v1371 = vld [vmem:[%s2 + $0x180] sm:$0xff]
    %v1372 = vld [vmem:[%s2 + $0x188] sm:$0xff]
    %v1373 = vld [vmem:[%s2 + $0x190] sm:$0xff]
    %v1374 = vld [vmem:[%s2 + $0x198] sm:$0xff]
    %v1375 = vld [vmem:[%s2 + $0x1a0] sm:$0xff]
    %v1376 = vld [vmem:[%s2 + $0x1a8] sm:$0xff]
    %v1377 = vld [vmem:[%s2 + $0x1b0] sm:$0xff]
    %v1378 = vld [vmem:[%s2 + $0x1b8] sm:$0xff]
    %v1379 = vld [vmem:[%s2 + $0x1c0] sm:$0xff]
    %v1380 = vld [vmem:[%s2 + $0x1c8] sm:$0xff]
    %v1381 = vld [vmem:[%s2 + $0x1d0] sm:$0xff]
    %v1382 = vld [vmem:[%s2 + $0x1d8] sm:$0xff]
    %v1383 = vld [vmem:[%s2 + $0x1e0] sm:$0xff]
    %v1384 = vld [vmem:[%s2 + $0x1e8] sm:$0xff]
    %v1385 = vld [vmem:[%s2 + $0x1f0] sm:$0xff]
    %v1386 = vld [vmem:[%s2 + $0x1f8] sm:$0xff]
    %v1387 = vadd.f32 %v1069, %v1323
    %v1388 = vadd.f32 %v1072, %v1324
    %v1389 = vadd.f32 %v1077, %v1325
    %v1390 = vadd.f32 %v1080, %v1326
    %v1391 = vadd.f32 %v1085, %v1327
    %v1392 = vadd.f32 %v1088, %v1328
    %v1393 = vadd.f32 %v1093, %v1329
    %v1394 = vadd.f32 %v1096, %v1330
    %v1395 = vadd.f32 %v1101, %v1331
    %v1396 = vadd.f32 %v1104, %v1332
    %v1397 = vadd.f32 %v1109, %v1333
    %v1398 = vadd.f32 %v1112, %v1334
    %v1399 = vadd.f32 %v1117, %v1335
    %v1400 = vadd.f32 %v1120, %v1336
    %v1401 = vadd.f32 %v1125, %v1337
    %v1402 = vadd.f32 %v1128, %v1338
    %v1403 = vadd.f32 %v1133, %v1339
    %v1404 = vadd.f32 %v1136, %v1340
    %v1405 = vadd.f32 %v1141, %v1341
    %v1406 = vadd.f32 %v1144, %v1342
    %v1407 = vadd.f32 %v1149, %v1343
    %v1408 = vadd.f32 %v1152, %v1344
    %v1409 = vadd.f32 %v1157, %v1345
    %v1410 = vadd.f32 %v1160, %v1346
    %v1411 = vadd.f32 %v1165, %v1347
    %v1412 = vadd.f32 %v1168, %v1348
    %v1413 = vadd.f32 %v1173, %v1349
    %v1414 = vadd.f32 %v1176, %v1350
    %v1415 = vadd.f32 %v1181, %v1351
    %v1416 = vadd.f32 %v1184, %v1352
    %v1417 = vadd.f32 %v1189, %v1353
    %v1418 = vadd.f32 %v1192, %v1354
    %v1419 = vadd.f32 %v1197, %v1355
    %v1420 = vadd.f32 %v1200, %v1356
    %v1421 = vadd.f32 %v1205, %v1357
    %v1422 = vadd.f32 %v1208, %v1358
    %v1423 = vadd.f32 %v1213, %v1359
    %v1424 = vadd.f32 %v1216, %v1360
    %v1425 = vadd.f32 %v1221, %v1361
    %v1426 = vadd.f32 %v1224, %v1362
    %v1427 = vadd.f32 %v1229, %v1363
    %v1428 = vadd.f32 %v1232, %v1364
    %v1429 = vadd.f32 %v1237, %v1365
    %v1430 = vadd.f32 %v1240, %v1366
    %v1431 = vadd.f32 %v1245, %v1367
    %v1432 = vadd.f32 %v1248, %v1368
    %v1433 = vadd.f32 %v1253, %v1369
    %v1434 = vadd.f32 %v1256, %v1370
    %v1435 = vadd.f32 %v1261, %v1371
    %v1436 = vadd.f32 %v1264, %v1372
    %v1437 = vadd.f32 %v1269, %v1373
    %v1438 = vadd.f32 %v1272, %v1374
    %v1439 = vadd.f32 %v1277, %v1375
    %v1440 = vadd.f32 %v1280, %v1376
    %v1441 = vadd.f32 %v1285, %v1377
    %v1442 = vadd.f32 %v1288, %v1378
    %v1443 = vadd.f32 %v1293, %v1379
    %v1444 = vadd.f32 %v1296, %v1380
    %v1445 = vadd.f32 %v1301, %v1381
    %v1446 = vadd.f32 %v1304, %v1382
    %v1447 = vadd.f32 %v1309, %v1383
    %v1448 = vadd.f32 %v1312, %v1384
    %v1449 = vadd.f32 %v1317, %v1385
    %v1450 = vadd.f32 %v1320, %v1386
    %v1451 = vld [vmem:[%s6] sm:$0x1]
    %v1452 = vld [vmem:[%s7] sm:$0x1]
    %v1453 = vsel %vm368, %v1387, 0.0
    %v1454 = vsel %vm368, %v1388, 0.0
    %v1455 = vadd.f32 %v1453, %v1454
    %v1456 = vsel %vm368, %v1389, 0.0
    %v1457 = vadd.f32 %v1455, %v1456
    %v1458 = vsel %vm368, %v1390, 0.0
    %v1459 = vadd.f32 %v1457, %v1458
    %v1460 = vsel %vm368, %v1391, 0.0
    %v1461 = vadd.f32 %v1459, %v1460
    %v1462 = vsel %vm368, %v1392, 0.0
    %v1463 = vadd.f32 %v1461, %v1462
    %v1464 = vsel %vm368, %v1393, 0.0
    %v1465 = vadd.f32 %v1463, %v1464
    %v1466 = vsel %vm368, %v1394, 0.0
    %v1467 = vadd.f32 %v1465, %v1466
    %v1468 = vsel %vm368, %v1395, 0.0
    %v1469 = vadd.f32 %v1467, %v1468
    %v1470 = vsel %vm368, %v1396, 0.0
    %v1471 = vadd.f32 %v1469, %v1470
    %v1472 = vsel %vm368, %v1397, 0.0
    %v1473 = vadd.f32 %v1471, %v1472
    %v1474 = vsel %vm368, %v1398, 0.0
    %v1475 = vadd.f32 %v1473, %v1474
    %v1476 = vsel %vm368, %v1399, 0.0
    %v1477 = vadd.f32 %v1475, %v1476
    %v1478 = vsel %vm368, %v1400, 0.0
    %v1479 = vadd.f32 %v1477, %v1478
    %v1480 = vsel %vm368, %v1401, 0.0
    %v1481 = vadd.f32 %v1479, %v1480
    %v1482 = vsel %vm368, %v1402, 0.0
    %v1483 = vadd.f32 %v1481, %v1482
    %v1484 = vsel %vm368, %v1403, 0.0
    %v1485 = vadd.f32 %v1483, %v1484
    %v1486 = vsel %vm368, %v1404, 0.0
    %v1487 = vadd.f32 %v1485, %v1486
    %v1488 = vsel %vm368, %v1405, 0.0
    %v1489 = vadd.f32 %v1487, %v1488
    %v1490 = vsel %vm368, %v1406, 0.0
    %v1491 = vadd.f32 %v1489, %v1490
    %v1492 = vsel %vm368, %v1407, 0.0
    %v1493 = vadd.f32 %v1491, %v1492
    %v1494 = vsel %vm368, %v1408, 0.0
    %v1495 = vadd.f32 %v1493, %v1494
    %v1496 = vsel %vm368, %v1409, 0.0
    %v1497 = vadd.f32 %v1495, %v1496
    %v1498 = vsel %vm368, %v1410, 0.0
    %v1499 = vadd.f32 %v1497, %v1498
    %v1500 = vsel %vm368, %v1411, 0.0
    %v1501 = vadd.f32 %v1499, %v1500
    %v1502 = vsel %vm368, %v1412, 0.0
    %v1503 = vadd.f32 %v1501, %v1502
    %v1504 = vsel %vm368, %v1413, 0.0
    %v1505 = vadd.f32 %v1503, %v1504
    %v1506 = vsel %vm368, %v1414, 0.0
    %v1507 = vadd.f32 %v1505, %v1506
    %v1508 = vsel %vm368, %v1415, 0.0
    %v1509 = vadd.f32 %v1507, %v1508
    %v1510 = vsel %vm368, %v1416, 0.0
    %v1511 = vadd.f32 %v1509, %v1510
    %v1512 = vsel %vm368, %v1417, 0.0
    %v1513 = vadd.f32 %v1511, %v1512
    %v1514 = vsel %vm368, %v1418, 0.0
    %v1515 = vadd.f32 %v1513, %v1514
    %v1516 = vsel %vm368, %v1419, 0.0
    %v1517 = vadd.f32 %v1515, %v1516
    %v1518 = vsel %vm368, %v1420, 0.0
    %v1519 = vadd.f32 %v1517, %v1518
    %v1520 = vsel %vm368, %v1421, 0.0
    %v1521 = vadd.f32 %v1519, %v1520
    %v1522 = vsel %vm368, %v1422, 0.0
    %v1523 = vadd.f32 %v1521, %v1522
    %v1524 = vsel %vm368, %v1423, 0.0
    %v1525 = vadd.f32 %v1523, %v1524
    %v1526 = vsel %vm368, %v1424, 0.0
    %v1527 = vadd.f32 %v1525, %v1526
    %v1528 = vsel %vm368, %v1425, 0.0
    %v1529 = vadd.f32 %v1527, %v1528
    %v1530 = vsel %vm368, %v1426, 0.0
    %v1531 = vadd.f32 %v1529, %v1530
    %v1532 = vsel %vm368, %v1427, 0.0
    %v1533 = vadd.f32 %v1531, %v1532
    %v1534 = vsel %vm368, %v1428, 0.0
    %v1535 = vadd.f32 %v1533, %v1534
    %v1536 = vsel %vm368, %v1429, 0.0
    %v1537 = vadd.f32 %v1535, %v1536
    %v1538 = vsel %vm368, %v1430, 0.0
    %v1539 = vadd.f32 %v1537, %v1538
    %v1540 = vsel %vm368, %v1431, 0.0
    %v1541 = vadd.f32 %v1539, %v1540
    %v1542 = vsel %vm368, %v1432, 0.0
    %v1543 = vadd.f32 %v1541, %v1542
    %v1544 = vsel %vm368, %v1433, 0.0
    %v1545 = vadd.f32 %v1543, %v1544
    %v1546 = vsel %vm368, %v1434, 0.0
    %v1547 = vadd.f32 %v1545, %v1546
    %v1548 = vsel %vm368, %v1435, 0.0
    %v1549 = vadd.f32 %v1547, %v1548
    %v1550 = vsel %vm368, %v1436, 0.0
    %v1551 = vadd.f32 %v1549, %v1550
    %v1552 = vsel %vm368, %v1437, 0.0
    %v1553 = vadd.f32 %v1551, %v1552
    %v1554 = vsel %vm368, %v1438, 0.0
    %v1555 = vadd.f32 %v1553, %v1554
    %v1556 = vsel %vm368, %v1439, 0.0
    %v1557 = vadd.f32 %v1555, %v1556
    %v1558 = vsel %vm368, %v1440, 0.0
    %v1559 = vadd.f32 %v1557, %v1558
    %v1560 = vsel %vm368, %v1441, 0.0
    %v1561 = vadd.f32 %v1559, %v1560
    %v1562 = vsel %vm368, %v1442, 0.0
    %v1563 = vadd.f32 %v1561, %v1562
    %v1564 = vsel %vm368, %v1443, 0.0
    %v1565 = vadd.f32 %v1563, %v1564
    %v1566 = vsel %vm368, %v1444, 0.0
    %v1567 = vadd.f32 %v1565, %v1566
    %v1568 = vsel %vm368, %v1445, 0.0
    %v1569 = vadd.f32 %v1567, %v1568
    %v1570 = vsel %vm368, %v1446, 0.0
    %v1571 = vadd.f32 %v1569, %v1570
    %v1572 = vsel %vm368, %v1447, 0.0
    %v1573 = vadd.f32 %v1571, %v1572
    %v1574 = vsel %vm368, %v1448, 0.0
    %v1575 = vadd.f32 %v1573, %v1574
    %v1576 = vsel %vm368, %v1449, 0.0
    %v1577 = vadd.f32 %v1575, %v1576
    %v1578 = vsel %vm368, %v1450, 0.0
    %v1579 = vadd.f32 %v1577, %v1578
    %v1580 = vrot.slane %v1579, 4
    %v1581 = vadd.f32 %v1579, %v1580
    %v1582 = vrot.slane %v1581, 2
    %v1583 = vadd.f32 %v1581, %v1582
    %v1584 = vrot.slane %v1583, 1
    %v1585 = vadd.f32 %v1583, %v1584
    %v1586 = vmul.f32 %v1585, 0.001953125
    %v1587 = vsub.f32 %v1387, %v1586
    %v1588 = vsub.f32 %v1388, %v1586
    %v1589 = vsub.f32 %v1389, %v1586
    %v1590 = vsub.f32 %v1390, %v1586
    %v1591 = vsub.f32 %v1391, %v1586
    %v1592 = vsub.f32 %v1392, %v1586
    %v1593 = vsub.f32 %v1393, %v1586
    %v1594 = vsub.f32 %v1394, %v1586
    %v1595 = vsub.f32 %v1395, %v1586
    %v1596 = vsub.f32 %v1396, %v1586
    %v1597 = vsub.f32 %v1397, %v1586
    %v1598 = vsub.f32 %v1398, %v1586
    %v1599 = vsub.f32 %v1399, %v1586
    %v1600 = vsub.f32 %v1400, %v1586
    %v1601 = vsub.f32 %v1401, %v1586
    %v1602 = vsub.f32 %v1402, %v1586
    %v1603 = vsub.f32 %v1403, %v1586
    %v1604 = vsub.f32 %v1404, %v1586
    %v1605 = vsub.f32 %v1405, %v1586
    %v1606 = vsub.f32 %v1406, %v1586
    %v1607 = vsub.f32 %v1407, %v1586
    %v1608 = vsub.f32 %v1408, %v1586
    %v1609 = vsub.f32 %v1409, %v1586
    %v1610 = vsub.f32 %v1410, %v1586
    %v1611 = vsub.f32 %v1411, %v1586
    %v1612 = vsub.f32 %v1412, %v1586
    %v1613 = vsub.f32 %v1413, %v1586
    %v1614 = vsub.f32 %v1414, %v1586
    %v1615 = vsub.f32 %v1415, %v1586
    %v1616 = vsub.f32 %v1416, %v1586
    %v1617 = vsub.f32 %v1417, %v1586
    %v1618 = vsub.f32 %v1418, %v1586
    %v1619 = vsub.f32 %v1419, %v1586
    %v1620 = vsub.f32 %v1420, %v1586
    %v1621 = vsub.f32 %v1421, %v1586
    %v1622 = vsub.f32 %v1422, %v1586
    %v1623 = vsub.f32 %v1423, %v1586
    %v1624 = vsub.f32 %v1424, %v1586
    %v1625 = vsub.f32 %v1425, %v1586
    %v1626 = vsub.f32 %v1426, %v1586
    %v1627 = vsub.f32 %v1427, %v1586
    %v1628 = vsub.f32 %v1428, %v1586
    %v1629 = vsub.f32 %v1429, %v1586
    %v1630 = vsub.f32 %v1430, %v1586
    %v1631 = vsub.f32 %v1431, %v1586
    %v1632 = vsub.f32 %v1432, %v1586
    %v1633 = vsub.f32 %v1433, %v1586
    %v1634 = vsub.f32 %v1434, %v1586
    %v1635 = vsub.f32 %v1435, %v1586
    %v1636 = vsub.f32 %v1436, %v1586
    %v1637 = vsub.f32 %v1437, %v1586
    %v1638 = vsub.f32 %v1438, %v1586
    %v1639 = vsub.f32 %v1439, %v1586
    %v1640 = vsub.f32 %v1440, %v1586
    %v1641 = vsub.f32 %v1441, %v1586
    %v1642 = vsub.f32 %v1442, %v1586
    %v1643 = vsub.f32 %v1443, %v1586
    %v1644 = vsub.f32 %v1444, %v1586
    %v1645 = vsub.f32 %v1445, %v1586
    %v1646 = vsub.f32 %v1446, %v1586
    %v1647 = vsub.f32 %v1447, %v1586
    %v1648 = vsub.f32 %v1448, %v1586
    %v1649 = vsub.f32 %v1449, %v1586
    %v1650 = vsub.f32 %v1450, %v1586
    %v1651 = vmul.f32 %v1587, %v1587
    %v1652 = vmul.f32 %v1588, %v1588
    %v1653 = vmul.f32 %v1589, %v1589
    %v1654 = vmul.f32 %v1590, %v1590
    %v1655 = vmul.f32 %v1591, %v1591
    %v1656 = vmul.f32 %v1592, %v1592
    %v1657 = vmul.f32 %v1593, %v1593
    %v1658 = vmul.f32 %v1594, %v1594
    %v1659 = vmul.f32 %v1595, %v1595
    %v1660 = vmul.f32 %v1596, %v1596
    %v1661 = vmul.f32 %v1597, %v1597
    %v1662 = vmul.f32 %v1598, %v1598
    %v1663 = vmul.f32 %v1599, %v1599
    %v1664 = vmul.f32 %v1600, %v1600
    %v1665 = vmul.f32 %v1601, %v1601
    %v1666 = vmul.f32 %v1602, %v1602
    %v1667 = vmul.f32 %v1603, %v1603
    %v1668 = vmul.f32 %v1604, %v1604
    %v1669 = vmul.f32 %v1605, %v1605
    %v1670 = vmul.f32 %v1606, %v1606
    %v1671 = vmul.f32 %v1607, %v1607
    %v1672 = vmul.f32 %v1608, %v1608
    %v1673 = vmul.f32 %v1609, %v1609
    %v1674 = vmul.f32 %v1610, %v1610
    %v1675 = vmul.f32 %v1611, %v1611
    %v1676 = vmul.f32 %v1612, %v1612
    %v1677 = vmul.f32 %v1613, %v1613
    %v1678 = vmul.f32 %v1614, %v1614
    %v1679 = vmul.f32 %v1615, %v1615
    %v1680 = vmul.f32 %v1616, %v1616
    %v1681 = vmul.f32 %v1617, %v1617
    %v1682 = vmul.f32 %v1618, %v1618
    %v1683 = vmul.f32 %v1619, %v1619
    %v1684 = vmul.f32 %v1620, %v1620
    %v1685 = vmul.f32 %v1621, %v1621
    %v1686 = vmul.f32 %v1622, %v1622
    %v1687 = vmul.f32 %v1623, %v1623
    %v1688 = vmul.f32 %v1624, %v1624
    %v1689 = vmul.f32 %v1625, %v1625
    %v1690 = vmul.f32 %v1626, %v1626
    %v1691 = vmul.f32 %v1627, %v1627
    %v1692 = vmul.f32 %v1628, %v1628
    %v1693 = vmul.f32 %v1629, %v1629
    %v1694 = vmul.f32 %v1630, %v1630
    %v1695 = vmul.f32 %v1631, %v1631
    %v1696 = vmul.f32 %v1632, %v1632
    %v1697 = vmul.f32 %v1633, %v1633
    %v1698 = vmul.f32 %v1634, %v1634
    %v1699 = vmul.f32 %v1635, %v1635
    %v1700 = vmul.f32 %v1636, %v1636
    %v1701 = vmul.f32 %v1637, %v1637
    %v1702 = vmul.f32 %v1638, %v1638
    %v1703 = vmul.f32 %v1639, %v1639
    %v1704 = vmul.f32 %v1640, %v1640
    %v1705 = vmul.f32 %v1641, %v1641
    %v1706 = vmul.f32 %v1642, %v1642
    %v1707 = vmul.f32 %v1643, %v1643
    %v1708 = vmul.f32 %v1644, %v1644
    %v1709 = vmul.f32 %v1645, %v1645
    %v1710 = vmul.f32 %v1646, %v1646
    %v1711 = vmul.f32 %v1647, %v1647
    %v1712 = vmul.f32 %v1648, %v1648
    %v1713 = vmul.f32 %v1649, %v1649
    %v1714 = vmul.f32 %v1650, %v1650
    %v1715 = vsel %vm368, %v1651, 0.0
    %v1716 = vsel %vm368, %v1652, 0.0
    %v1717 = vadd.f32 %v1715, %v1716
    %v1718 = vsel %vm368, %v1653, 0.0
    %v1719 = vadd.f32 %v1717, %v1718
    %v1720 = vsel %vm368, %v1654, 0.0
    %v1721 = vadd.f32 %v1719, %v1720
    %v1722 = vsel %vm368, %v1655, 0.0
    %v1723 = vadd.f32 %v1721, %v1722
    %v1724 = vsel %vm368, %v1656, 0.0
    %v1725 = vadd.f32 %v1723, %v1724
    %v1726 = vsel %vm368, %v1657, 0.0
    %v1727 = vadd.f32 %v1725, %v1726
    %v1728 = vsel %vm368, %v1658, 0.0
    %v1729 = vadd.f32 %v1727, %v1728
    %v1730 = vsel %vm368, %v1659, 0.0
    %v1731 = vadd.f32 %v1729, %v1730
    %v1732 = vsel %vm368, %v1660, 0.0
    %v1733 = vadd.f32 %v1731, %v1732
    %v1734 = vsel %vm368, %v1661, 0.0
    %v1735 = vadd.f32 %v1733, %v1734
    %v1736 = vsel %vm368, %v1662, 0.0
    %v1737 = vadd.f32 %v1735, %v1736
    %v1738 = vsel %vm368, %v1663, 0.0
    %v1739 = vadd.f32 %v1737, %v1738
    %v1740 = vsel %vm368, %v1664, 0.0
    %v1741 = vadd.f32 %v1739, %v1740
    %v1742 = vsel %vm368, %v1665, 0.0
    %v1743 = vadd.f32 %v1741, %v1742
    %v1744 = vsel %vm368, %v1666, 0.0
    %v1745 = vadd.f32 %v1743, %v1744
    %v1746 = vsel %vm368, %v1667, 0.0
    %v1747 = vadd.f32 %v1745, %v1746
    %v1748 = vsel %vm368, %v1668, 0.0
    %v1749 = vadd.f32 %v1747, %v1748
    %v1750 = vsel %vm368, %v1669, 0.0
    %v1751 = vadd.f32 %v1749, %v1750
    %v1752 = vsel %vm368, %v1670, 0.0
    %v1753 = vadd.f32 %v1751, %v1752
    %v1754 = vsel %vm368, %v1671, 0.0
    %v1755 = vadd.f32 %v1753, %v1754
    %v1756 = vsel %vm368, %v1672, 0.0
    %v1757 = vadd.f32 %v1755, %v1756
    %v1758 = vsel %vm368, %v1673, 0.0
    %v1759 = vadd.f32 %v1757, %v1758
    %v1760 = vsel %vm368, %v1674, 0.0
    %v1761 = vadd.f32 %v1759, %v1760
    %v1762 = vsel %vm368, %v1675, 0.0
    %v1763 = vadd.f32 %v1761, %v1762
    %v1764 = vsel %vm368, %v1676, 0.0
    %v1765 = vadd.f32 %v1763, %v1764
    %v1766 = vsel %vm368, %v1677, 0.0
    %v1767 = vadd.f32 %v1765, %v1766
    %v1768 = vsel %vm368, %v1678, 0.0
    %v1769 = vadd.f32 %v1767, %v1768
    %v1770 = vsel %vm368, %v1679, 0.0
    %v1771 = vadd.f32 %v1769, %v1770
    %v1772 = vsel %vm368, %v1680, 0.0
    %v1773 = vadd.f32 %v1771, %v1772
    %v1774 = vsel %vm368, %v1681, 0.0
    %v1775 = vadd.f32 %v1773, %v1774
    %v1776 = vsel %vm368, %v1682, 0.0
    %v1777 = vadd.f32 %v1775, %v1776
    %v1778 = vsel %vm368, %v1683, 0.0
    %v1779 = vadd.f32 %v1777, %v1778
    %v1780 = vsel %vm368, %v1684, 0.0
    %v1781 = vadd.f32 %v1779, %v1780
    %v1782 = vsel %vm368, %v1685, 0.0
    %v1783 = vadd.f32 %v1781, %v1782
    %v1784 = vsel %vm368, %v1686, 0.0
    %v1785 = vadd.f32 %v1783, %v1784
    %v1786 = vsel %vm368, %v1687, 0.0
    %v1787 = vadd.f32 %v1785, %v1786
    %v1788 = vsel %vm368, %v1688, 0.0
    %v1789 = vadd.f32 %v1787, %v1788
    %v1790 = vsel %vm368, %v1689, 0.0
    %v1791 = vadd.f32 %v1789, %v1790
    %v1792 = vsel %vm368, %v1690, 0.0
    %v1793 = vadd.f32 %v1791, %v1792
    %v1794 = vsel %vm368, %v1691, 0.0
    %v1795 = vadd.f32 %v1793, %v1794
    %v1796 = vsel %vm368, %v1692, 0.0
    %v1797 = vadd.f32 %v1795, %v1796
    %v1798 = vsel %vm368, %v1693, 0.0
    %v1799 = vadd.f32 %v1797, %v1798
    %v1800 = vsel %vm368, %v1694, 0.0
    %v1801 = vadd.f32 %v1799, %v1800
    %v1802 = vsel %vm368, %v1695, 0.0
    %v1803 = vadd.f32 %v1801, %v1802
    %v1804 = vsel %vm368, %v1696, 0.0
    %v1805 = vadd.f32 %v1803, %v1804
    %v1806 = vsel %vm368, %v1697, 0.0
    %v1807 = vadd.f32 %v1805, %v1806
    %v1808 = vsel %vm368, %v1698, 0.0
    %v1809 = vadd.f32 %v1807, %v1808
    %v1810 = vsel %vm368, %v1699, 0.0
    %v1811 = vadd.f32 %v1809, %v1810
    %v1812 = vsel %vm368, %v1700, 0.0
    %v1813 = vadd.f32 %v1811, %v1812
    %v1814 = vsel %vm368, %v1701, 0.0
    %v1815 = vadd.f32 %v1813, %v1814
    %v1816 = vsel %vm368, %v1702, 0.0
    %v1817 = vadd.f32 %v1815, %v1816
    %v1818 = vsel %vm368, %v1703, 0.0
    %v1819 = vadd.f32 %v1817, %v1818
    %v1820 = vsel %vm368, %v1704, 0.0
    %v1821 = vadd.f32 %v1819, %v1820
    %v1822 = vsel %vm368, %v1705, 0.0
    %v1823 = vadd.f32 %v1821, %v1822
    %v1824 = vsel %vm368, %v1706, 0.0
    %v1825 = vadd.f32 %v1823, %v1824
    %v1826 = vsel %vm368, %v1707, 0.0
    %v1827 = vadd.f32 %v1825, %v1826
    %v1828 = vsel %vm368, %v1708, 0.0
    %v1829 = vadd.f32 %v1827, %v1828
    %v1830 = vsel %vm368, %v1709, 0.0
    %v1831 = vadd.f32 %v1829, %v1830
    %v1832 = vsel %vm368, %v1710, 0.0
    %v1833 = vadd.f32 %v1831, %v1832
    %v1834 = vsel %vm368, %v1711, 0.0
    %v1835 = vadd.f32 %v1833, %v1834
    %v1836 = vsel %vm368, %v1712, 0.0
    %v1837 = vadd.f32 %v1835, %v1836
    %v1838 = vsel %vm368, %v1713, 0.0
    %v1839 = vadd.f32 %v1837, %v1838
    %v1840 = vsel %vm368, %v1714, 0.0
    %v1841 = vadd.f32 %v1839, %v1840
    %v1842 = vrot.slane %v1841, 4
    %v1843 = vadd.f32 %v1841, %v1842
    %v1844 = vrot.slane %v1843, 2
    %v1845 = vadd.f32 %v1843, %v1844
    %v1846 = vrot.slane %v1845, 1
    %v1847 = vadd.f32 %v1845, %v1846
    %v1848 = vmul.f32 %v1847, 0.001953125
    %v1849 = vadd.f32 %v1848, 1e-05
    %v1850 = vrsqrt.pop %v1849
    %v1851 = vmul.f32 %v1850, %v1451
    %v1852 = vlaneseq
    %v1853 = vshrl.u32 %v1852, 7
    %v1854 = vsub.s32 0, %v1853
    %v1855 = vrot.slane %v1851, %v1854
    %v1856 = vmul.f32 %v1587, %v1855
    %v1857 = vmul.f32 %v1588, %v1855
    %v1858 = vmul.f32 %v1589, %v1855
    %v1859 = vmul.f32 %v1590, %v1855
    %v1860 = vmul.f32 %v1591, %v1855
    %v1861 = vmul.f32 %v1592, %v1855
    %v1862 = vmul.f32 %v1593, %v1855
    %v1863 = vmul.f32 %v1594, %v1855
    %v1864 = vmul.f32 %v1595, %v1855
    %v1865 = vmul.f32 %v1596, %v1855
    %v1866 = vmul.f32 %v1597, %v1855
    %v1867 = vmul.f32 %v1598, %v1855
    %v1868 = vmul.f32 %v1599, %v1855
    %v1869 = vmul.f32 %v1600, %v1855
    %v1870 = vmul.f32 %v1601, %v1855
    %v1871 = vmul.f32 %v1602, %v1855
    %v1872 = vmul.f32 %v1603, %v1855
    %v1873 = vmul.f32 %v1604, %v1855
    %v1874 = vmul.f32 %v1605, %v1855
    %v1875 = vmul.f32 %v1606, %v1855
    %v1876 = vmul.f32 %v1607, %v1855
    %v1877 = vmul.f32 %v1608, %v1855
    %v1878 = vmul.f32 %v1609, %v1855
    %v1879 = vmul.f32 %v1610, %v1855
    %v1880 = vmul.f32 %v1611, %v1855
    %v1881 = vmul.f32 %v1612, %v1855
    %v1882 = vmul.f32 %v1613, %v1855
    %v1883 = vmul.f32 %v1614, %v1855
    %v1884 = vmul.f32 %v1615, %v1855
    %v1885 = vmul.f32 %v1616, %v1855
    %v1886 = vmul.f32 %v1617, %v1855
    %v1887 = vmul.f32 %v1618, %v1855
    %v1888 = vmul.f32 %v1619, %v1855
    %v1889 = vmul.f32 %v1620, %v1855
    %v1890 = vmul.f32 %v1621, %v1855
    %v1891 = vmul.f32 %v1622, %v1855
    %v1892 = vmul.f32 %v1623, %v1855
    %v1893 = vmul.f32 %v1624, %v1855
    %v1894 = vmul.f32 %v1625, %v1855
    %v1895 = vmul.f32 %v1626, %v1855
    %v1896 = vmul.f32 %v1627, %v1855
    %v1897 = vmul.f32 %v1628, %v1855
    %v1898 = vmul.f32 %v1629, %v1855
    %v1899 = vmul.f32 %v1630, %v1855
    %v1900 = vmul.f32 %v1631, %v1855
    %v1901 = vmul.f32 %v1632, %v1855
    %v1902 = vmul.f32 %v1633, %v1855
    %v1903 = vmul.f32 %v1634, %v1855
    %v1904 = vmul.f32 %v1635, %v1855
    %v1905 = vmul.f32 %v1636, %v1855
    %v1906 = vmul.f32 %v1637, %v1855
    %v1907 = vmul.f32 %v1638, %v1855
    %v1908 = vmul.f32 %v1639, %v1855
    %v1909 = vmul.f32 %v1640, %v1855
    %v1910 = vmul.f32 %v1641, %v1855
    %v1911 = vmul.f32 %v1642, %v1855
    %v1912 = vmul.f32 %v1643, %v1855
    %v1913 = vmul.f32 %v1644, %v1855
    %v1914 = vmul.f32 %v1645, %v1855
    %v1915 = vmul.f32 %v1646, %v1855
    %v1916 = vmul.f32 %v1647, %v1855
    %v1917 = vmul.f32 %v1648, %v1855
    %v1918 = vmul.f32 %v1649, %v1855
    %v1919 = vmul.f32 %v1650, %v1855
    %v1921 = vlaneseq
    %v1922 = vshrl.u32 %v1921, 7
    %v1923 = vsub.s32 0, %v1922
    %v1924 = vrot.slane %v1452, %v1923
    %v1926 = vadd.f32 %v1856, %v1924
    %v1927 = vadd.f32 %v1857, %v1924
    %v1928 = vadd.f32 %v1858, %v1924
    %v1929 = vadd.f32 %v1859, %v1924
    %v1930 = vadd.f32 %v1860, %v1924
    %v1931 = vadd.f32 %v1861, %v1924
    %v1932 = vadd.f32 %v1862, %v1924
    %v1933 = vadd.f32 %v1863, %v1924
    %v1934 = vadd.f32 %v1864, %v1924
    %v1935 = vadd.f32 %v1865, %v1924
    %v1936 = vadd.f32 %v1866, %v1924
    %v1937 = vadd.f32 %v1867, %v1924
    %v1938 = vadd.f32 %v1868, %v1924
    %v1939 = vadd.f32 %v1869, %v1924
    %v1940 = vadd.f32 %v1870, %v1924
    %v1941 = vadd.f32 %v1871, %v1924
    %v1942 = vadd.f32 %v1872, %v1924
    %v1943 = vadd.f32 %v1873, %v1924
    %v1944 = vadd.f32 %v1874, %v1924
    %v1945 = vadd.f32 %v1875, %v1924
    %v1946 = vadd.f32 %v1876, %v1924
    %v1947 = vadd.f32 %v1877, %v1924
    %v1948 = vadd.f32 %v1878, %v1924
    %v1949 = vadd.f32 %v1879, %v1924
    %v1950 = vadd.f32 %v1880, %v1924
    %v1951 = vadd.f32 %v1881, %v1924
    %v1952 = vadd.f32 %v1882, %v1924
    %v1953 = vadd.f32 %v1883, %v1924
    %v1954 = vadd.f32 %v1884, %v1924
    %v1955 = vadd.f32 %v1885, %v1924
    %v1956 = vadd.f32 %v1886, %v1924
    %v1957 = vadd.f32 %v1887, %v1924
    %v1958 = vadd.f32 %v1888, %v1924
    %v1959 = vadd.f32 %v1889, %v1924
    %v1960 = vadd.f32 %v1890, %v1924
    %v1961 = vadd.f32 %v1891, %v1924
    %v1962 = vadd.f32 %v1892, %v1924
    %v1963 = vadd.f32 %v1893, %v1924
    %v1964 = vadd.f32 %v1894, %v1924
    %v1965 = vadd.f32 %v1895, %v1924
    %v1966 = vadd.f32 %v1896, %v1924
    %v1967 = vadd.f32 %v1897, %v1924
    %v1968 = vadd.f32 %v1898, %v1924
    %v1969 = vadd.f32 %v1899, %v1924
    %v1970 = vadd.f32 %v1900, %v1924
    %v1971 = vadd.f32 %v1901, %v1924
    %v1972 = vadd.f32 %v1902, %v1924
    %v1973 = vadd.f32 %v1903, %v1924
    %v1974 = vadd.f32 %v1904, %v1924
    %v1975 = vadd.f32 %v1905, %v1924
    %v1976 = vadd.f32 %v1906, %v1924
    %v1977 = vadd.f32 %v1907, %v1924
    %v1978 = vadd.f32 %v1908, %v1924
    %v1979 = vadd.f32 %v1909, %v1924
    %v1980 = vadd.f32 %v1910, %v1924
    %v1981 = vadd.f32 %v1911, %v1924
    %v1982 = vadd.f32 %v1912, %v1924
    %v1983 = vadd.f32 %v1913, %v1924
    %v1984 = vadd.f32 %v1914, %v1924
    %v1985 = vadd.f32 %v1915, %v1924
    %v1986 = vadd.f32 %v1916, %v1924
    %v1987 = vadd.f32 %v1917, %v1924
    %v1988 = vadd.f32 %v1918, %v1924
    %v1989 = vadd.f32 %v1919, %v1924
    %v1990 = vmax.f32 %v1926, 0.0
    %v1991 = vmax.f32 %v1927, 0.0
    %v1992 = vmax.f32 %v1928, 0.0
    %v1993 = vmax.f32 %v1929, 0.0
    %v1994 = vmax.f32 %v1930, 0.0
    %v1995 = vmax.f32 %v1931, 0.0
    %v1996 = vmax.f32 %v1932, 0.0
    %v1997 = vmax.f32 %v1933, 0.0
    %v1998 = vmax.f32 %v1934, 0.0
    %v1999 = vmax.f32 %v1935, 0.0
    %v2000 = vmax.f32 %v1936, 0.0
    %v2001 = vmax.f32 %v1937, 0.0
    %v2002 = vmax.f32 %v1938, 0.0
    %v2003 = vmax.f32 %v1939, 0.0
    %v2004 = vmax.f32 %v1940, 0.0
    %v2005 = vmax.f32 %v1941, 0.0
    %v2006 = vmax.f32 %v1942, 0.0
    %v2007 = vmax.f32 %v1943, 0.0
    %v2008 = vmax.f32 %v1944, 0.0
    %v2009 = vmax.f32 %v1945, 0.0
    %v2010 = vmax.f32 %v1946, 0.0
    %v2011 = vmax.f32 %v1947, 0.0
    %v2012 = vmax.f32 %v1948, 0.0
    %v2013 = vmax.f32 %v1949, 0.0
    %v2014 = vmax.f32 %v1950, 0.0
    %v2015 = vmax.f32 %v1951, 0.0
    %v2016 = vmax.f32 %v1952, 0.0
    %v2017 = vmax.f32 %v1953, 0.0
    %v2018 = vmax.f32 %v1954, 0.0
    %v2019 = vmax.f32 %v1955, 0.0
    %v2020 = vmax.f32 %v1956, 0.0
    %v2021 = vmax.f32 %v1957, 0.0
    %v2022 = vmax.f32 %v1958, 0.0
    %v2023 = vmax.f32 %v1959, 0.0
    %v2024 = vmax.f32 %v1960, 0.0
    %v2025 = vmax.f32 %v1961, 0.0
    %v2026 = vmax.f32 %v1962, 0.0
    %v2027 = vmax.f32 %v1963, 0.0
    %v2028 = vmax.f32 %v1964, 0.0
    %v2029 = vmax.f32 %v1965, 0.0
    %v2030 = vmax.f32 %v1966, 0.0
    %v2031 = vmax.f32 %v1967, 0.0
    %v2032 = vmax.f32 %v1968, 0.0
    %v2033 = vmax.f32 %v1969, 0.0
    %v2034 = vmax.f32 %v1970, 0.0
    %v2035 = vmax.f32 %v1971, 0.0
    %v2036 = vmax.f32 %v1972, 0.0
    %v2037 = vmax.f32 %v1973, 0.0
    %v2038 = vmax.f32 %v1974, 0.0
    %v2039 = vmax.f32 %v1975, 0.0
    %v2040 = vmax.f32 %v1976, 0.0
    %v2041 = vmax.f32 %v1977, 0.0
    %v2042 = vmax.f32 %v1978, 0.0
    %v2043 = vmax.f32 %v1979, 0.0
    %v2044 = vmax.f32 %v1980, 0.0
    %v2045 = vmax.f32 %v1981, 0.0
    %v2046 = vmax.f32 %v1982, 0.0
    %v2047 = vmax.f32 %v1983, 0.0
    %v2048 = vmax.f32 %v1984, 0.0
    %v2049 = vmax.f32 %v1985, 0.0
    %v2050 = vmax.f32 %v1986, 0.0
    %v2051 = vmax.f32 %v1987, 0.0
    %v2052 = vmax.f32 %v1988, 0.0
    %v2053 = vmax.f32 %v1989, 0.0
    %v2054 = vrot.slane %v1990, 7
    %v2055 = vrot.slane %v1991, 7
    %v2056 = vrot.slane %v1992, 7
    %v2057 = vrot.slane %v1993, 7
    %v2058 = vrot.slane %v1994, 7
    %v2059 = vrot.slane %v1995, 7
    %v2060 = vrot.slane %v1996, 7
    %v2061 = vrot.slane %v1997, 7
    %v2062 = vrot.slane %v1998, 7
    %v2063 = vrot.slane %v1999, 7
    %v2064 = vrot.slane %v2000, 7
    %v2065 = vrot.slane %v2001, 7
    %v2066 = vrot.slane %v2002, 7
    %v2067 = vrot.slane %v2003, 7
    %v2068 = vrot.slane %v2004, 7
    %v2069 = vrot.slane %v2005, 7
    %v2070 = vrot.slane %v2006, 7
    %v2071 = vrot.slane %v2007, 7
    %v2072 = vrot.slane %v2008, 7
    %v2073 = vrot.slane %v2009, 7
    %v2074 = vrot.slane %v2010, 7
    %v2075 = vrot.slane %v2011, 7
    %v2076 = vrot.slane %v2012, 7
    %v2077 = vrot.slane %v2013, 7
    %v2078 = vrot.slane %v2014, 7
    %v2079 = vrot.slane %v2015, 7
    %v2080 = vrot.slane %v2016, 7
    %v2081 = vrot.slane %v2017, 7
    %v2082 = vrot.slane %v2018, 7
    %v2083 = vrot.slane %v2019, 7
    %v2084 = vrot.slane %v2020, 7
    %v2085 = vrot.slane %v2021, 7
    %v2086 = vrot.slane %v2022, 7
    %v2087 = vrot.slane %v2023, 7
    %v2088 = vrot.slane %v2024, 7
    %v2089 = vrot.slane %v2025, 7
    %v2090 = vrot.slane %v2026, 7
    %v2091 = vrot.slane %v2027, 7
    %v2092 = vrot.slane %v2028, 7
    %v2093 = vrot.slane %v2029, 7
    %v2094 = vrot.slane %v2030, 7
    %v2095 = vrot.slane %v2031, 7
    %v2096 = vrot.slane %v2032, 7
    %v2097 = vrot.slane %v2033, 7
    %v2098 = vrot.slane %v2034, 7
    %v2099 = vrot.slane %v2035, 7
    %v2100 = vrot.slane %v2036, 7
    %v2101 = vrot.slane %v2037, 7
    %v2102 = vrot.slane %v2038, 7
    %v2103 = vrot.slane %v2039, 7
    %v2104 = vrot.slane %v2040, 7
    %v2105 = vrot.slane %v2041, 7
    %v2106 = vrot.slane %v2042, 7
    %v2107 = vrot.slane %v2043, 7
    %v2108 = vrot.slane %v2044, 7
    %v2109 = vrot.slane %v2045, 7
    %v2110 = vrot.slane %v2046, 7
    %v2111 = vrot.slane %v2047, 7
    %v2112 = vrot.slane %v2048, 7
    %v2113 = vrot.slane %v2049, 7
    %v2114 = vrot.slane %v2050, 7
    %v2115 = vrot.slane %v2051, 7
    %v2116 = vrot.slane %v2052, 7
    %v2117 = vrot.slane %v2053, 7
    %v2118 = vlaneseq
    %v2119 = vshrl.u32 %v2118, 7
    %vm2120 = vcmp.lt.s32.totalorder %v2119, 1
    %v2121 = vsel %vm2120, %v2116, %v2117
    %v2122 = vsel %vm2120, %v2115, %v2116
    %v2123 = vsel %vm2120, %v2114, %v2115
    %v2124 = vsel %vm2120, %v2113, %v2114
    %v2125 = vsel %vm2120, %v2112, %v2113
    %v2126 = vsel %vm2120, %v2111, %v2112
    %v2127 = vsel %vm2120, %v2110, %v2111
    %v2128 = vsel %vm2120, %v2109, %v2110
    %v2129 = vsel %vm2120, %v2108, %v2109
    %v2130 = vsel %vm2120, %v2107, %v2108
    %v2131 = vsel %vm2120, %v2106, %v2107
    %v2132 = vsel %vm2120, %v2105, %v2106
    %v2133 = vsel %vm2120, %v2104, %v2105
    %v2134 = vsel %vm2120, %v2103, %v2104
    %v2135 = vsel %vm2120, %v2102, %v2103
    %v2136 = vsel %vm2120, %v2101, %v2102
    %v2137 = vsel %vm2120, %v2100, %v2101
    %v2138 = vsel %vm2120, %v2099, %v2100
    %v2139 = vsel %vm2120, %v2098, %v2099
    %v2140 = vsel %vm2120, %v2097, %v2098
    %v2141 = vsel %vm2120, %v2096, %v2097
    %v2142 = vsel %vm2120, %v2095, %v2096
    %v2143 = vsel %vm2120, %v2094, %v2095
    %v2144 = vsel %vm2120, %v2093, %v2094
    %v2145 = vsel %vm2120, %v2092, %v2093
    %v2146 = vsel %vm2120, %v2091, %v2092
    %v2147 = vsel %vm2120, %v2090, %v2091
    %v2148 = vsel %vm2120, %v2089, %v2090
    %v2149 = vsel %vm2120, %v2088, %v2089
    %v2150 = vsel %vm2120, %v2087, %v2088
    %v2151 = vsel %vm2120, %v2086, %v2087
    %v2152 = vsel %vm2120, %v2085, %v2086
    %v2153 = vsel %vm2120, %v2084, %v2085
    %v2154 = vsel %vm2120, %v2083, %v2084
    %v2155 = vsel %vm2120, %v2082, %v2083
    %v2156 = vsel %vm2120, %v2081, %v2082
    %v2157 = vsel %vm2120, %v2080, %v2081
    %v2158 = vsel %vm2120, %v2079, %v2080
    %v2159 = vsel %vm2120, %v2078, %v2079
    %v2160 = vsel %vm2120, %v2077, %v2078
    %v2161 = vsel %vm2120, %v2076, %v2077
    %v2162 = vsel %vm2120, %v2075, %v2076
    %v2163 = vsel %vm2120, %v2074, %v2075
    %v2164 = vsel %vm2120, %v2073, %v2074
    %v2165 = vsel %vm2120, %v2072, %v2073
    %v2166 = vsel %vm2120, %v2071, %v2072
    %v2167 = vsel %vm2120, %v2070, %v2071
    %v2168 = vsel %vm2120, %v2069, %v2070
    %v2169 = vsel %vm2120, %v2068, %v2069
    %v2170 = vsel %vm2120, %v2067, %v2068
    %v2171 = vsel %vm2120, %v2066, %v2067
    %v2172 = vsel %vm2120, %v2065, %v2066
    %v2173 = vsel %vm2120, %v2064, %v2065
    %v2174 = vsel %vm2120, %v2063, %v2064
    %v2175 = vsel %vm2120, %v2062, %v2063
    %v2176 = vsel %vm2120, %v2061, %v2062
    %v2177 = vsel %vm2120, %v2060, %v2061
    %v2178 = vsel %vm2120, %v2059, %v2060
    %v2179 = vsel %vm2120, %v2058, %v2059
    %v2180 = vsel %vm2120, %v2057, %v2058
    %v2181 = vsel %vm2120, %v2056, %v2057
    %v2182 = vsel %vm2120, %v2055, %v2056
    %v2183 = vsel %vm2120, %v2054, %v2055
    %v2184 = vsel %vm2120, %v2117, %v2054
    %v2185 = vld [vmem:[%s3] sm:$0xff]
    %v2186 = vld [vmem:[%s3 + $0x8] sm:$0xff]
    %v2187 = vld [vmem:[%s3 + $0x10] sm:$0xff]
    %v2188 = vld [vmem:[%s3 + $0x18] sm:$0xff]
    %v2189 = vld [vmem:[%s3 + $0x20] sm:$0xff]
    %v2190 = vld [vmem:[%s3 + $0x28] sm:$0xff]
    %v2191 = vld [vmem:[%s3 + $0x30] sm:$0xff]
    %v2192 = vld [vmem:[%s3 + $0x38] sm:$0xff]
    %v2193 = vld [vmem:[%s3 + $0x40] sm:$0xff]
    %v2194 = vld [vmem:[%s3 + $0x48] sm:$0xff]
    %v2195 = vld [vmem:[%s3 + $0x50] sm:$0xff]
    %v2196 = vld [vmem:[%s3 + $0x58] sm:$0xff]
    %v2197 = vld [vmem:[%s3 + $0x60] sm:$0xff]
    %v2198 = vld [vmem:[%s3 + $0x68] sm:$0xff]
    %v2199 = vld [vmem:[%s3 + $0x70] sm:$0xff]
    %v2200 = vld [vmem:[%s3 + $0x78] sm:$0xff]
    %v2201 = vld [vmem:[%s3 + $0x80] sm:$0xff]
    %v2202 = vld [vmem:[%s3 + $0x88] sm:$0xff]
    %v2203 = vld [vmem:[%s3 + $0x90] sm:$0xff]
    %v2204 = vld [vmem:[%s3 + $0x98] sm:$0xff]
    %v2205 = vld [vmem:[%s3 + $0xa0] sm:$0xff]
    %v2206 = vld [vmem:[%s3 + $0xa8] sm:$0xff]
    %v2207 = vld [vmem:[%s3 + $0xb0] sm:$0xff]
    %v2208 = vld [vmem:[%s3 + $0xb8] sm:$0xff]
    %v2209 = vld [vmem:[%s3 + $0xc0] sm:$0xff]
    %v2210 = vld [vmem:[%s3 + $0xc8] sm:$0xff]
    %v2211 = vld [vmem:[%s3 + $0xd0] sm:$0xff]
    %v2212 = vld [vmem:[%s3 + $0xd8] sm:$0xff]
    %v2213 = vld [vmem:[%s3 + $0xe0] sm:$0xff]
    %v2214 = vld [vmem:[%s3 + $0xe8] sm:$0xff]
    %v2215 = vld [vmem:[%s3 + $0xf0] sm:$0xff]
    %v2216 = vld [vmem:[%s3 + $0xf8] sm:$0xff]
    %v2217 = vld [vmem:[%s3 + $0x100] sm:$0xff]
    %v2218 = vld [vmem:[%s3 + $0x108] sm:$0xff]
    %v2219 = vld [vmem:[%s3 + $0x110] sm:$0xff]
    %v2220 = vld [vmem:[%s3 + $0x118] sm:$0xff]
    %v2221 = vld [vmem:[%s3 + $0x120] sm:$0xff]
    %v2222 = vld [vmem:[%s3 + $0x128] sm:$0xff]
    %v2223 = vld [vmem:[%s3 + $0x130] sm:$0xff]
    %v2224 = vld [vmem:[%s3 + $0x138] sm:$0xff]
    %v2225 = vld [vmem:[%s3 + $0x140] sm:$0xff]
    %v2226 = vld [vmem:[%s3 + $0x148] sm:$0xff]
    %v2227 = vld [vmem:[%s3 + $0x150] sm:$0xff]
    %v2228 = vld [vmem:[%s3 + $0x158] sm:$0xff]
    %v2229 = vld [vmem:[%s3 + $0x160] sm:$0xff]
    %v2230 = vld [vmem:[%s3 + $0x168] sm:$0xff]
    %v2231 = vld [vmem:[%s3 + $0x170] sm:$0xff]
    %v2232 = vld [vmem:[%s3 + $0x178] sm:$0xff]
    %v2233 = vld [vmem:[%s3 + $0x180] sm:$0xff]
    %v2234 = vld [vmem:[%s3 + $0x188] sm:$0xff]
    %v2235 = vld [vmem:[%s3 + $0x190] sm:$0xff]
    %v2236 = vld [vmem:[%s3 + $0x198] sm:$0xff]
    %v2237 = vld [vmem:[%s3 + $0x1a0] sm:$0xff]
    %v2238 = vld [vmem:[%s3 + $0x1a8] sm:$0xff]
    %v2239 = vld [vmem:[%s3 + $0x1b0] sm:$0xff]
    %v2240 = vld [vmem:[%s3 + $0x1b8] sm:$0xff]
    %v2241 = vld [vmem:[%s3 + $0x1c0] sm:$0xff]
    %v2242 = vld [vmem:[%s3 + $0x1c8] sm:$0xff]
    %v2243 = vld [vmem:[%s3 + $0x1d0] sm:$0xff]
    %v2244 = vld [vmem:[%s3 + $0x1d8] sm:$0xff]
    %v2245 = vld [vmem:[%s3 + $0x1e0] sm:$0xff]
    %v2246 = vld [vmem:[%s3 + $0x1e8] sm:$0xff]
    %v2247 = vld [vmem:[%s3 + $0x1f0] sm:$0xff]
    %v2248 = vld [vmem:[%s3 + $0x1f8] sm:$0xff]
    %2250 = vset.pattern.permute.xlu0 0
    %2251 = vperm.xlu0 %2250, %v2185
    %v2252 = vpop.permute.xlu0 %2251
    %2255 = vset.pattern.permute.xlu0 0
    %2256 = vperm.xlu0 %2255, %v2186
    %v2257 = vpop.permute.xlu0 %2256
    %2260 = vset.pattern.permute.xlu0 0
    %2261 = vperm.xlu0 %2260, %v2187
    %v2262 = vpop.permute.xlu0 %2261
    %2265 = vset.pattern.permute.xlu0 0
    %2266 = vperm.xlu0 %2265, %v2188
    %v2267 = vpop.permute.xlu0 %2266
    %2270 = vset.pattern.permute.xlu0 0
    %2271 = vperm.xlu0 %2270, %v2189
    %v2272 = vpop.permute.xlu0 %2271
    %2275 = vset.pattern.permute.xlu0 0
    %2276 = vperm.xlu0 %2275, %v2190
    %v2277 = vpop.permute.xlu0 %2276
    %2280 = vset.pattern.permute.xlu0 0
    %2281 = vperm.xlu0 %2280, %v2191
    %v2282 = vpop.permute.xlu0 %2281
    %2285 = vset.pattern.permute.xlu0 0
    %2286 = vperm.xlu0 %2285, %v2192
    %v2287 = vpop.permute.xlu0 %2286
    %2290 = vset.pattern.permute.xlu0 0
    %2291 = vperm.xlu0 %2290, %v2193
    %v2292 = vpop.permute.xlu0 %2291
    %2295 = vset.pattern.permute.xlu0 0
    %2296 = vperm.xlu0 %2295, %v2194
    %v2297 = vpop.permute.xlu0 %2296
    %2300 = vset.pattern.permute.xlu0 0
    %2301 = vperm.xlu0 %2300, %v2195
    %v2302 = vpop.permute.xlu0 %2301
    %2305 = vset.pattern.permute.xlu0 0
    %2306 = vperm.xlu0 %2305, %v2196
    %v2307 = vpop.permute.xlu0 %2306
    %2310 = vset.pattern.permute.xlu0 0
    %2311 = vperm.xlu0 %2310, %v2197
    %v2312 = vpop.permute.xlu0 %2311
    %2315 = vset.pattern.permute.xlu0 0
    %2316 = vperm.xlu0 %2315, %v2198
    %v2317 = vpop.permute.xlu0 %2316
    %2320 = vset.pattern.permute.xlu0 0
    %2321 = vperm.xlu0 %2320, %v2199
    %v2322 = vpop.permute.xlu0 %2321
    %2325 = vset.pattern.permute.xlu0 0
    %2326 = vperm.xlu0 %2325, %v2200
    %v2327 = vpop.permute.xlu0 %2326
    %2330 = vset.pattern.permute.xlu0 0
    %2331 = vperm.xlu0 %2330, %v2201
    %v2332 = vpop.permute.xlu0 %2331
    %2335 = vset.pattern.permute.xlu0 0
    %2336 = vperm.xlu0 %2335, %v2202
    %v2337 = vpop.permute.xlu0 %2336
    %2340 = vset.pattern.permute.xlu0 0
    %2341 = vperm.xlu0 %2340, %v2203
    %v2342 = vpop.permute.xlu0 %2341
    %2345 = vset.pattern.permute.xlu0 0
    %2346 = vperm.xlu0 %2345, %v2204
    %v2347 = vpop.permute.xlu0 %2346
    %2350 = vset.pattern.permute.xlu0 0
    %2351 = vperm.xlu0 %2350, %v2205
    %v2352 = vpop.permute.xlu0 %2351
    %2355 = vset.pattern.permute.xlu0 0
    %2356 = vperm.xlu0 %2355, %v2206
    %v2357 = vpop.permute.xlu0 %2356
    %2360 = vset.pattern.permute.xlu0 0
    %2361 = vperm.xlu0 %2360, %v2207
    %v2362 = vpop.permute.xlu0 %2361
    %2365 = vset.pattern.permute.xlu0 0
    %2366 = vperm.xlu0 %2365, %v2208
    %v2367 = vpop.permute.xlu0 %2366
    %2370 = vset.pattern.permute.xlu0 0
    %2371 = vperm.xlu0 %2370, %v2209
    %v2372 = vpop.permute.xlu0 %2371
    %2375 = vset.pattern.permute.xlu0 0
    %2376 = vperm.xlu0 %2375, %v2210
    %v2377 = vpop.permute.xlu0 %2376
    %2380 = vset.pattern.permute.xlu0 0
    %2381 = vperm.xlu0 %2380, %v2211
    %v2382 = vpop.permute.xlu0 %2381
    %2385 = vset.pattern.permute.xlu0 0
    %2386 = vperm.xlu0 %2385, %v2212
    %v2387 = vpop.permute.xlu0 %2386
    %2390 = vset.pattern.permute.xlu0 0
    %2391 = vperm.xlu0 %2390, %v2213
    %v2392 = vpop.permute.xlu0 %2391
    %2395 = vset.pattern.permute.xlu0 0
    %2396 = vperm.xlu0 %2395, %v2214
    %v2397 = vpop.permute.xlu0 %2396
    %2400 = vset.pattern.permute.xlu0 0
    %2401 = vperm.xlu0 %2400, %v2215
    %v2402 = vpop.permute.xlu0 %2401
    %2405 = vset.pattern.permute.xlu0 0
    %2406 = vperm.xlu0 %2405, %v2216
    %v2407 = vpop.permute.xlu0 %2406
    %2410 = vset.pattern.permute.xlu0 0
    %2411 = vperm.xlu0 %2410, %v2217
    %v2412 = vpop.permute.xlu0 %2411
    %2415 = vset.pattern.permute.xlu0 0
    %2416 = vperm.xlu0 %2415, %v2218
    %v2417 = vpop.permute.xlu0 %2416
    %2420 = vset.pattern.permute.xlu0 0
    %2421 = vperm.xlu0 %2420, %v2219
    %v2422 = vpop.permute.xlu0 %2421
    %2425 = vset.pattern.permute.xlu0 0
    %2426 = vperm.xlu0 %2425, %v2220
    %v2427 = vpop.permute.xlu0 %2426
    %2430 = vset.pattern.permute.xlu0 0
    %2431 = vperm.xlu0 %2430, %v2221
    %v2432 = vpop.permute.xlu0 %2431
    %2435 = vset.pattern.permute.xlu0 0
    %2436 = vperm.xlu0 %2435, %v2222
    %v2437 = vpop.permute.xlu0 %2436
    %2440 = vset.pattern.permute.xlu0 0
    %2441 = vperm.xlu0 %2440, %v2223
    %v2442 = vpop.permute.xlu0 %2441
    %2445 = vset.pattern.permute.xlu0 0
    %2446 = vperm.xlu0 %2445, %v2224
    %v2447 = vpop.permute.xlu0 %2446
    %2450 = vset.pattern.permute.xlu0 0
    %2451 = vperm.xlu0 %2450, %v2225
    %v2452 = vpop.permute.xlu0 %2451
    %2455 = vset.pattern.permute.xlu0 0
    %2456 = vperm.xlu0 %2455, %v2226
    %v2457 = vpop.permute.xlu0 %2456
    %2460 = vset.pattern.permute.xlu0 0
    %2461 = vperm.xlu0 %2460, %v2227
    %v2462 = vpop.permute.xlu0 %2461
    %2465 = vset.pattern.permute.xlu0 0
    %2466 = vperm.xlu0 %2465, %v2228
    %v2467 = vpop.permute.xlu0 %2466
    %2470 = vset.pattern.permute.xlu0 0
    %2471 = vperm.xlu0 %2470, %v2229
    %v2472 = vpop.permute.xlu0 %2471
    %2475 = vset.pattern.permute.xlu0 0
    %2476 = vperm.xlu0 %2475, %v2230
    %v2477 = vpop.permute.xlu0 %2476
    %2480 = vset.pattern.permute.xlu0 0
    %2481 = vperm.xlu0 %2480, %v2231
    %v2482 = vpop.permute.xlu0 %2481
    %2485 = vset.pattern.permute.xlu0 0
    %2486 = vperm.xlu0 %2485, %v2232
    %v2487 = vpop.permute.xlu0 %2486
    %2490 = vset.pattern.permute.xlu0 0
    %2491 = vperm.xlu0 %2490, %v2233
    %v2492 = vpop.permute.xlu0 %2491
    %2495 = vset.pattern.permute.xlu0 0
    %2496 = vperm.xlu0 %2495, %v2234
    %v2497 = vpop.permute.xlu0 %2496
    %2500 = vset.pattern.permute.xlu0 0
    %2501 = vperm.xlu0 %2500, %v2235
    %v2502 = vpop.permute.xlu0 %2501
    %2505 = vset.pattern.permute.xlu0 0
    %2506 = vperm.xlu0 %2505, %v2236
    %v2507 = vpop.permute.xlu0 %2506
    %2510 = vset.pattern.permute.xlu0 0
    %2511 = vperm.xlu0 %2510, %v2237
    %v2512 = vpop.permute.xlu0 %2511
    %2515 = vset.pattern.permute.xlu0 0
    %2516 = vperm.xlu0 %2515, %v2238
    %v2517 = vpop.permute.xlu0 %2516
    %2520 = vset.pattern.permute.xlu0 0
    %2521 = vperm.xlu0 %2520, %v2239
    %v2522 = vpop.permute.xlu0 %2521
    %2525 = vset.pattern.permute.xlu0 0
    %2526 = vperm.xlu0 %2525, %v2240
    %v2527 = vpop.permute.xlu0 %2526
    %2530 = vset.pattern.permute.xlu0 0
    %2531 = vperm.xlu0 %2530, %v2241
    %v2532 = vpop.permute.xlu0 %2531
    %2535 = vset.pattern.permute.xlu0 0
    %2536 = vperm.xlu0 %2535, %v2242
    %v2537 = vpop.permute.xlu0 %2536
    %2540 = vset.pattern.permute.xlu0 0
    %2541 = vperm.xlu0 %2540, %v2243
    %v2542 = vpop.permute.xlu0 %2541
    %2545 = vset.pattern.permute.xlu0 0
    %2546 = vperm.xlu0 %2545, %v2244
    %v2547 = vpop.permute.xlu0 %2546
    %2550 = vset.pattern.permute.xlu0 0
    %2551 = vperm.xlu0 %2550, %v2245
    %v2552 = vpop.permute.xlu0 %2551
    %2555 = vset.pattern.permute.xlu0 0
    %2556 = vperm.xlu0 %2555, %v2246
    %v2557 = vpop.permute.xlu0 %2556
    %2560 = vset.pattern.permute.xlu0 0
    %2561 = vperm.xlu0 %2560, %v2247
    %v2562 = vpop.permute.xlu0 %2561
    %2565 = vset.pattern.permute.xlu0 0
    %2566 = vperm.xlu0 %2565, %v2248
    %v2567 = vpop.permute.xlu0 %2566
    %v2569 = vmul.f32 %v2122, %v2252
    %v2570 = vmul.f32 %v2121, %v2257
    %v2571 = vmul.f32 %v2184, %v2262
    %v2572 = vmul.f32 %v2183, %v2267
    %v2573 = vmul.f32 %v2182, %v2272
    %v2574 = vmul.f32 %v2181, %v2277
    %v2575 = vmul.f32 %v2180, %v2282
    %v2576 = vmul.f32 %v2179, %v2287
    %v2577 = vmul.f32 %v2178, %v2292
    %v2578 = vmul.f32 %v2177, %v2297
    %v2579 = vmul.f32 %v2176, %v2302
    %v2580 = vmul.f32 %v2175, %v2307
    %v2581 = vmul.f32 %v2174, %v2312
    %v2582 = vmul.f32 %v2173, %v2317
    %v2583 = vmul.f32 %v2172, %v2322
    %v2584 = vmul.f32 %v2171, %v2327
    %v2585 = vmul.f32 %v2170, %v2332
    %v2586 = vmul.f32 %v2169, %v2337
    %v2587 = vmul.f32 %v2168, %v2342
    %v2588 = vmul.f32 %v2167, %v2347
    %v2589 = vmul.f32 %v2166, %v2352
    %v2590 = vmul.f32 %v2165, %v2357
    %v2591 = vmul.f32 %v2164, %v2362
    %v2592 = vmul.f32 %v2163, %v2367
    %v2593 = vmul.f32 %v2162, %v2372
    %v2594 = vmul.f32 %v2161, %v2377
    %v2595 = vmul.f32 %v2160, %v2382
    %v2596 = vmul.f32 %v2159, %v2387
    %v2597 = vmul.f32 %v2158, %v2392
    %v2598 = vmul.f32 %v2157, %v2397
    %v2599 = vmul.f32 %v2156, %v2402
    %v2600 = vmul.f32 %v2155, %v2407
    %v2601 = vmul.f32 %v2154, %v2412
    %v2602 = vmul.f32 %v2153, %v2417
    %v2603 = vmul.f32 %v2152, %v2422
    %v2604 = vmul.f32 %v2151, %v2427
    %v2605 = vmul.f32 %v2150, %v2432
    %v2606 = vmul.f32 %v2149, %v2437
    %v2607 = vmul.f32 %v2148, %v2442
    %v2608 = vmul.f32 %v2147, %v2447
    %v2609 = vmul.f32 %v2146, %v2452
    %v2610 = vmul.f32 %v2145, %v2457
    %v2611 = vmul.f32 %v2144, %v2462
    %v2612 = vmul.f32 %v2143, %v2467
    %v2613 = vmul.f32 %v2142, %v2472
    %v2614 = vmul.f32 %v2141, %v2477
    %v2615 = vmul.f32 %v2140, %v2482
    %v2616 = vmul.f32 %v2139, %v2487
    %v2617 = vmul.f32 %v2138, %v2492
    %v2618 = vmul.f32 %v2137, %v2497
    %v2619 = vmul.f32 %v2136, %v2502
    %v2620 = vmul.f32 %v2135, %v2507
    %v2621 = vmul.f32 %v2134, %v2512
    %v2622 = vmul.f32 %v2133, %v2517
    %v2623 = vmul.f32 %v2132, %v2522
    %v2624 = vmul.f32 %v2131, %v2527
    %v2625 = vmul.f32 %v2130, %v2532
    %v2626 = vmul.f32 %v2129, %v2537
    %v2627 = vmul.f32 %v2128, %v2542
    %v2628 = vmul.f32 %v2127, %v2547
    %v2629 = vmul.f32 %v2126, %v2552
    %v2630 = vmul.f32 %v2125, %v2557
    %v2631 = vmul.f32 %v2124, %v2562
    %v2632 = vmul.f32 %v2123, %v2567
    %v2633 = vpack.c.bf16 %v2570, %v2569
    %v2634 = vpack.c.bf16 %v2572, %v2571
    %v2635 = vpack.c.bf16 %v2574, %v2573
    %v2636 = vpack.c.bf16 %v2576, %v2575
    %v2637 = vpack.c.bf16 %v2578, %v2577
    %v2638 = vpack.c.bf16 %v2580, %v2579
    %v2639 = vpack.c.bf16 %v2582, %v2581
    %v2640 = vpack.c.bf16 %v2584, %v2583
    %v2641 = vpack.c.bf16 %v2586, %v2585
    %v2642 = vpack.c.bf16 %v2588, %v2587
    %v2643 = vpack.c.bf16 %v2590, %v2589
    %v2644 = vpack.c.bf16 %v2592, %v2591
    %v2645 = vpack.c.bf16 %v2594, %v2593
    %v2646 = vpack.c.bf16 %v2596, %v2595
    %v2647 = vpack.c.bf16 %v2598, %v2597
    %v2648 = vpack.c.bf16 %v2600, %v2599
    %v2649 = vpack.c.bf16 %v2602, %v2601
    %v2650 = vpack.c.bf16 %v2604, %v2603
    %v2651 = vpack.c.bf16 %v2606, %v2605
    %v2652 = vpack.c.bf16 %v2608, %v2607
    %v2653 = vpack.c.bf16 %v2610, %v2609
    %v2654 = vpack.c.bf16 %v2612, %v2611
    %v2655 = vpack.c.bf16 %v2614, %v2613
    %v2656 = vpack.c.bf16 %v2616, %v2615
    %v2657 = vpack.c.bf16 %v2618, %v2617
    %v2658 = vpack.c.bf16 %v2620, %v2619
    %v2659 = vpack.c.bf16 %v2622, %v2621
    %v2660 = vpack.c.bf16 %v2624, %v2623
    %v2661 = vpack.c.bf16 %v2626, %v2625
    %v2662 = vpack.c.bf16 %v2628, %v2627
    %v2663 = vpack.c.bf16 %v2630, %v2629
    %v2664 = vpack.c.bf16 %v2632, %v2631
    %v2665 = vld [vmem:[%s8] sm:$0xf]
    %v2666 = vld [vmem:[%s8 + $0x4] sm:$0xf]
    %v2667 = vld [vmem:[%s8 + $0x8] sm:$0xf]
    %v2668 = vld [vmem:[%s8 + $0xc] sm:$0xf]
    %v2669 = vld [vmem:[%s8 + $0x10] sm:$0xf]
    %v2670 = vld [vmem:[%s8 + $0x14] sm:$0xf]
    %v2671 = vld [vmem:[%s8 + $0x18] sm:$0xf]
    %v2672 = vld [vmem:[%s8 + $0x1c] sm:$0xf]
    %2673 = vset.pattern.permute.xlu0 1
    %2674 = vperm.xlu0 %2673, %v2185
    %v2675 = vpop.permute.xlu0 %2674
    %2677 = vset.pattern.permute.xlu0 1
    %2678 = vperm.xlu0 %2677, %v2186
    %v2679 = vpop.permute.xlu0 %2678
    %2681 = vset.pattern.permute.xlu0 1
    %2682 = vperm.xlu0 %2681, %v2187
    %v2683 = vpop.permute.xlu0 %2682
    %2685 = vset.pattern.permute.xlu0 1
    %2686 = vperm.xlu0 %2685, %v2188
    %v2687 = vpop.permute.xlu0 %2686
    %2689 = vset.pattern.permute.xlu0 1
    %2690 = vperm.xlu0 %2689, %v2189
    %v2691 = vpop.permute.xlu0 %2690
    %2693 = vset.pattern.permute.xlu0 1
    %2694 = vperm.xlu0 %2693, %v2190
    %v2695 = vpop.permute.xlu0 %2694
    %2697 = vset.pattern.permute.xlu0 1
    %2698 = vperm.xlu0 %2697, %v2191
    %v2699 = vpop.permute.xlu0 %2698
    %2701 = vset.pattern.permute.xlu0 1
    %2702 = vperm.xlu0 %2701, %v2192
    %v2703 = vpop.permute.xlu0 %2702
    %2705 = vset.pattern.permute.xlu0 1
    %2706 = vperm.xlu0 %2705, %v2193
    %v2707 = vpop.permute.xlu0 %2706
    %2709 = vset.pattern.permute.xlu0 1
    %2710 = vperm.xlu0 %2709, %v2194
    %v2711 = vpop.permute.xlu0 %2710
    %2713 = vset.pattern.permute.xlu0 1
    %2714 = vperm.xlu0 %2713, %v2195
    %v2715 = vpop.permute.xlu0 %2714
    %2717 = vset.pattern.permute.xlu0 1
    %2718 = vperm.xlu0 %2717, %v2196
    %v2719 = vpop.permute.xlu0 %2718
    %2721 = vset.pattern.permute.xlu0 1
    %2722 = vperm.xlu0 %2721, %v2197
    %v2723 = vpop.permute.xlu0 %2722
    %2725 = vset.pattern.permute.xlu0 1
    %2726 = vperm.xlu0 %2725, %v2198
    %v2727 = vpop.permute.xlu0 %2726
    %2729 = vset.pattern.permute.xlu0 1
    %2730 = vperm.xlu0 %2729, %v2199
    %v2731 = vpop.permute.xlu0 %2730
    %2733 = vset.pattern.permute.xlu0 1
    %2734 = vperm.xlu0 %2733, %v2200
    %v2735 = vpop.permute.xlu0 %2734
    %2737 = vset.pattern.permute.xlu0 1
    %2738 = vperm.xlu0 %2737, %v2201
    %v2739 = vpop.permute.xlu0 %2738
    %2741 = vset.pattern.permute.xlu0 1
    %2742 = vperm.xlu0 %2741, %v2202
    %v2743 = vpop.permute.xlu0 %2742
    %2745 = vset.pattern.permute.xlu0 1
    %2746 = vperm.xlu0 %2745, %v2203
    %v2747 = vpop.permute.xlu0 %2746
    %2749 = vset.pattern.permute.xlu0 1
    %2750 = vperm.xlu0 %2749, %v2204
    %v2751 = vpop.permute.xlu0 %2750
    %2753 = vset.pattern.permute.xlu0 1
    %2754 = vperm.xlu0 %2753, %v2205
    %v2755 = vpop.permute.xlu0 %2754
    %2757 = vset.pattern.permute.xlu0 1
    %2758 = vperm.xlu0 %2757, %v2206
    %v2759 = vpop.permute.xlu0 %2758
    %2761 = vset.pattern.permute.xlu0 1
    %2762 = vperm.xlu0 %2761, %v2207
    %v2763 = vpop.permute.xlu0 %2762
    %2765 = vset.pattern.permute.xlu0 1
    %2766 = vperm.xlu0 %2765, %v2208
    %v2767 = vpop.permute.xlu0 %2766
    %2769 = vset.pattern.permute.xlu0 1
    %2770 = vperm.xlu0 %2769, %v2209
    %v2771 = vpop.permute.xlu0 %2770
    %2773 = vset.pattern.permute.xlu0 1
    %2774 = vperm.xlu0 %2773, %v2210
    %v2775 = vpop.permute.xlu0 %2774
    %2777 = vset.pattern.permute.xlu0 1
    %2778 = vperm.xlu0 %2777, %v2211
    %v2779 = vpop.permute.xlu0 %2778
    %2781 = vset.pattern.permute.xlu0 1
    %2782 = vperm.xlu0 %2781, %v2212
    %v2783 = vpop.permute.xlu0 %2782
    %2785 = vset.pattern.permute.xlu0 1
    %2786 = vperm.xlu0 %2785, %v2213
    %v2787 = vpop.permute.xlu0 %2786
    %2789 = vset.pattern.permute.xlu0 1
    %2790 = vperm.xlu0 %2789, %v2214
    %v2791 = vpop.permute.xlu0 %2790
    %2793 = vset.pattern.permute.xlu0 1
    %2794 = vperm.xlu0 %2793, %v2215
    %v2795 = vpop.permute.xlu0 %2794
    %2797 = vset.pattern.permute.xlu0 1
    %2798 = vperm.xlu0 %2797, %v2216
    %v2799 = vpop.permute.xlu0 %2798
    %2801 = vset.pattern.permute.xlu0 1
    %2802 = vperm.xlu0 %2801, %v2217
    %v2803 = vpop.permute.xlu0 %2802
    %2805 = vset.pattern.permute.xlu0 1
    %2806 = vperm.xlu0 %2805, %v2218
    %v2807 = vpop.permute.xlu0 %2806
    %2809 = vset.pattern.permute.xlu0 1
    %2810 = vperm.xlu0 %2809, %v2219
    %v2811 = vpop.permute.xlu0 %2810
    %2813 = vset.pattern.permute.xlu0 1
    %2814 = vperm.xlu0 %2813, %v2220
    %v2815 = vpop.permute.xlu0 %2814
    %2817 = vset.pattern.permute.xlu0 1
    %2818 = vperm.xlu0 %2817, %v2221
    %v2819 = vpop.permute.xlu0 %2818
    %2821 = vset.pattern.permute.xlu0 1
    %2822 = vperm.xlu0 %2821, %v2222
    %v2823 = vpop.permute.xlu0 %2822
    %2825 = vset.pattern.permute.xlu0 1
    %2826 = vperm.xlu0 %2825, %v2223
    %v2827 = vpop.permute.xlu0 %2826
    %2829 = vset.pattern.permute.xlu0 1
    %2830 = vperm.xlu0 %2829, %v2224
    %v2831 = vpop.permute.xlu0 %2830
    %2833 = vset.pattern.permute.xlu0 1
    %2834 = vperm.xlu0 %2833, %v2225
    %v2835 = vpop.permute.xlu0 %2834
    %2837 = vset.pattern.permute.xlu0 1
    %2838 = vperm.xlu0 %2837, %v2226
    %v2839 = vpop.permute.xlu0 %2838
    %2841 = vset.pattern.permute.xlu0 1
    %2842 = vperm.xlu0 %2841, %v2227
    %v2843 = vpop.permute.xlu0 %2842
    %2845 = vset.pattern.permute.xlu0 1
    %2846 = vperm.xlu0 %2845, %v2228
    %v2847 = vpop.permute.xlu0 %2846
    %2849 = vset.pattern.permute.xlu0 1
    %2850 = vperm.xlu0 %2849, %v2229
    %v2851 = vpop.permute.xlu0 %2850
    %2853 = vset.pattern.permute.xlu0 1
    %2854 = vperm.xlu0 %2853, %v2230
    %v2855 = vpop.permute.xlu0 %2854
    %2857 = vset.pattern.permute.xlu0 1
    %2858 = vperm.xlu0 %2857, %v2231
    %v2859 = vpop.permute.xlu0 %2858
    %2861 = vset.pattern.permute.xlu0 1
    %2862 = vperm.xlu0 %2861, %v2232
    %v2863 = vpop.permute.xlu0 %2862
    %2865 = vset.pattern.permute.xlu0 1
    %2866 = vperm.xlu0 %2865, %v2233
    %v2867 = vpop.permute.xlu0 %2866
    %2869 = vset.pattern.permute.xlu0 1
    %2870 = vperm.xlu0 %2869, %v2234
    %v2871 = vpop.permute.xlu0 %2870
    %2873 = vset.pattern.permute.xlu0 1
    %2874 = vperm.xlu0 %2873, %v2235
    %v2875 = vpop.permute.xlu0 %2874
    %2877 = vset.pattern.permute.xlu0 1
    %2878 = vperm.xlu0 %2877, %v2236
    %v2879 = vpop.permute.xlu0 %2878
    %2881 = vset.pattern.permute.xlu0 1
    %2882 = vperm.xlu0 %2881, %v2237
    %v2883 = vpop.permute.xlu0 %2882
    %2885 = vset.pattern.permute.xlu0 1
    %2886 = vperm.xlu0 %2885, %v2238
    %v2887 = vpop.permute.xlu0 %2886
    %2889 = vset.pattern.permute.xlu0 1
    %2890 = vperm.xlu0 %2889, %v2239
    %v2891 = vpop.permute.xlu0 %2890
    %2893 = vset.pattern.permute.xlu0 1
    %2894 = vperm.xlu0 %2893, %v2240
    %v2895 = vpop.permute.xlu0 %2894
    %2897 = vset.pattern.permute.xlu0 1
    %2898 = vperm.xlu0 %2897, %v2241
    %v2899 = vpop.permute.xlu0 %2898
    %2901 = vset.pattern.permute.xlu0 1
    %2902 = vperm.xlu0 %2901, %v2242
    %v2903 = vpop.permute.xlu0 %2902
    %2905 = vset.pattern.permute.xlu0 1
    %2906 = vperm.xlu0 %2905, %v2243
    %v2907 = vpop.permute.xlu0 %2906
    %2909 = vset.pattern.permute.xlu0 1
    %2910 = vperm.xlu0 %2909, %v2244
    %v2911 = vpop.permute.xlu0 %2910
    %2913 = vset.pattern.permute.xlu0 1
    %2914 = vperm.xlu0 %2913, %v2245
    %v2915 = vpop.permute.xlu0 %2914
    %2917 = vset.pattern.permute.xlu0 1
    %2918 = vperm.xlu0 %2917, %v2246
    %v2919 = vpop.permute.xlu0 %2918
    %2921 = vset.pattern.permute.xlu0 1
    %2922 = vperm.xlu0 %2921, %v2247
    %v2923 = vpop.permute.xlu0 %2922
    %2925 = vset.pattern.permute.xlu0 1
    %2926 = vperm.xlu0 %2925, %v2248
    %v2927 = vpop.permute.xlu0 %2926
    %v2929 = vmul.f32 %v2052, %v2675
    %v2930 = vmul.f32 %v2053, %v2679
    %v2931 = vmul.f32 %v1990, %v2683
    %v2932 = vmul.f32 %v1991, %v2687
    %v2933 = vmul.f32 %v1992, %v2691
    %v2934 = vmul.f32 %v1993, %v2695
    %v2935 = vmul.f32 %v1994, %v2699
    %v2936 = vmul.f32 %v1995, %v2703
    %v2937 = vmul.f32 %v1996, %v2707
    %v2938 = vmul.f32 %v1997, %v2711
    %v2939 = vmul.f32 %v1998, %v2715
    %v2940 = vmul.f32 %v1999, %v2719
    %v2941 = vmul.f32 %v2000, %v2723
    %v2942 = vmul.f32 %v2001, %v2727
    %v2943 = vmul.f32 %v2002, %v2731
    %v2944 = vmul.f32 %v2003, %v2735
    %v2945 = vmul.f32 %v2004, %v2739
    %v2946 = vmul.f32 %v2005, %v2743
    %v2947 = vmul.f32 %v2006, %v2747
    %v2948 = vmul.f32 %v2007, %v2751
    %v2949 = vmul.f32 %v2008, %v2755
    %v2950 = vmul.f32 %v2009, %v2759
    %v2951 = vmul.f32 %v2010, %v2763
    %v2952 = vmul.f32 %v2011, %v2767
    %v2953 = vmul.f32 %v2012, %v2771
    %v2954 = vmul.f32 %v2013, %v2775
    %v2955 = vmul.f32 %v2014, %v2779
    %v2956 = vmul.f32 %v2015, %v2783
    %v2957 = vmul.f32 %v2016, %v2787
    %v2958 = vmul.f32 %v2017, %v2791
    %v2959 = vmul.f32 %v2018, %v2795
    %v2960 = vmul.f32 %v2019, %v2799
    %v2961 = vmul.f32 %v2020, %v2803
    %v2962 = vmul.f32 %v2021, %v2807
    %v2963 = vmul.f32 %v2022, %v2811
    %v2964 = vmul.f32 %v2023, %v2815
    %v2965 = vmul.f32 %v2024, %v2819
    %v2966 = vmul.f32 %v2025, %v2823
    %v2967 = vmul.f32 %v2026, %v2827
    %v2968 = vmul.f32 %v2027, %v2831
    %v2969 = vmul.f32 %v2028, %v2835
    %v2970 = vmul.f32 %v2029, %v2839
    %v2971 = vmul.f32 %v2030, %v2843
    %v2972 = vmul.f32 %v2031, %v2847
    %v2973 = vmul.f32 %v2032, %v2851
    %v2974 = vmul.f32 %v2033, %v2855
    %v2975 = vmul.f32 %v2034, %v2859
    %v2976 = vmul.f32 %v2035, %v2863
    %v2977 = vmul.f32 %v2036, %v2867
    %v2978 = vmul.f32 %v2037, %v2871
    %v2979 = vmul.f32 %v2038, %v2875
    %v2980 = vmul.f32 %v2039, %v2879
    %v2981 = vmul.f32 %v2040, %v2883
    %v2982 = vmul.f32 %v2041, %v2887
    %v2983 = vmul.f32 %v2042, %v2891
    %v2984 = vmul.f32 %v2043, %v2895
    %v2985 = vmul.f32 %v2044, %v2899
    %v2986 = vmul.f32 %v2045, %v2903
    %v2987 = vmul.f32 %v2046, %v2907
    %v2988 = vmul.f32 %v2047, %v2911
    %v2989 = vmul.f32 %v2048, %v2915
    %v2990 = vmul.f32 %v2049, %v2919
    %v2991 = vmul.f32 %v2050, %v2923
    %v2992 = vmul.f32 %v2051, %v2927
    %v2993 = vpack.c.bf16 %v2930, %v2929
    %v2994 = vpack.c.bf16 %v2932, %v2931
    %v2995 = vpack.c.bf16 %v2934, %v2933
    %v2996 = vpack.c.bf16 %v2936, %v2935
    %v2997 = vpack.c.bf16 %v2938, %v2937
    %v2998 = vpack.c.bf16 %v2940, %v2939
    %v2999 = vpack.c.bf16 %v2942, %v2941
    %v3000 = vpack.c.bf16 %v2944, %v2943
    %v3001 = vpack.c.bf16 %v2946, %v2945
    %v3002 = vpack.c.bf16 %v2948, %v2947
    %v3003 = vpack.c.bf16 %v2950, %v2949
    %v3004 = vpack.c.bf16 %v2952, %v2951
    %v3005 = vpack.c.bf16 %v2954, %v2953
    %v3006 = vpack.c.bf16 %v2956, %v2955
    %v3007 = vpack.c.bf16 %v2958, %v2957
    %v3008 = vpack.c.bf16 %v2960, %v2959
    %v3009 = vpack.c.bf16 %v2962, %v2961
    %v3010 = vpack.c.bf16 %v2964, %v2963
    %v3011 = vpack.c.bf16 %v2966, %v2965
    %v3012 = vpack.c.bf16 %v2968, %v2967
    %v3013 = vpack.c.bf16 %v2970, %v2969
    %v3014 = vpack.c.bf16 %v2972, %v2971
    %v3015 = vpack.c.bf16 %v2974, %v2973
    %v3016 = vpack.c.bf16 %v2976, %v2975
    %v3017 = vpack.c.bf16 %v2978, %v2977
    %v3018 = vpack.c.bf16 %v2980, %v2979
    %v3019 = vpack.c.bf16 %v2982, %v2981
    %v3020 = vpack.c.bf16 %v2984, %v2983
    %v3021 = vpack.c.bf16 %v2986, %v2985
    %v3022 = vpack.c.bf16 %v2988, %v2987
    %v3023 = vpack.c.bf16 %v2990, %v2989
    %v3024 = vpack.c.bf16 %v2992, %v2991
    %s3025 = scalar_lea.vmem %s8, 32
    %v3026 = vld [vmem:[%s3025] sm:$0xf]
    %v3027 = vld [vmem:[%s3025 + $0x4] sm:$0xf]
    %v3028 = vld [vmem:[%s3025 + $0x8] sm:$0xf]
    %v3029 = vld [vmem:[%s3025 + $0xc] sm:$0xf]
    %v3030 = vld [vmem:[%s3025 + $0x10] sm:$0xf]
    %v3031 = vld [vmem:[%s3025 + $0x14] sm:$0xf]
    %v3032 = vld [vmem:[%s3025 + $0x18] sm:$0xf]
    %v3033 = vld [vmem:[%s3025 + $0x1c] sm:$0xf]
    %v3042 = vunpack.c.l.b16 %v3026
    %v3043 = vunpack.c.l.b16 %v3027
    %v3044 = vunpack.c.l.b16 %v3028
    %v3045 = vunpack.c.l.b16 %v3029
    %v3046 = vunpack.c.l.b16 %v3030
    %v3047 = vunpack.c.l.b16 %v3031
    %v3048 = vunpack.c.l.b16 %v3032
    %v3049 = vunpack.c.l.b16 %v3033
    %v3050 = vpack.c.b16 %v3043, %v3042
    %v3051 = vpack.c.b16 %v3045, %v3044
    %v3052 = vpack.c.b16 %v3047, %v3046
    %v3053 = vpack.c.b16 %v3049, %v3048
    %v3059 = vsel %vm368, %v2993, 0
    %v3062 = vsel %vm368, %v2994, 0
    %v3065 = vsel %vm368, %v2995, 0
    %v3068 = vsel %vm368, %v2996, 0
    %v3071 = vsel %vm368, %v2997, 0
    %v3074 = vsel %vm368, %v2998, 0
    %v3077 = vsel %vm368, %v2999, 0
    %v3080 = vsel %vm368, %v3000, 0
    %v3083 = vsel %vm368, %v3001, 0
    %v3086 = vsel %vm368, %v3002, 0
    %v3089 = vsel %vm368, %v3003, 0
    %v3092 = vsel %vm368, %v3004, 0
    %v3095 = vsel %vm368, %v3005, 0
    %v3098 = vsel %vm368, %v3006, 0
    %v3101 = vsel %vm368, %v3007, 0
    %v3104 = vsel %vm368, %v3008, 0
    %v3107 = vsel %vm368, %v3009, 0
    %v3110 = vsel %vm368, %v3010, 0
    %v3113 = vsel %vm368, %v3011, 0
    %v3116 = vsel %vm368, %v3012, 0
    %v3119 = vsel %vm368, %v3013, 0
    %v3122 = vsel %vm368, %v3014, 0
    %v3125 = vsel %vm368, %v3015, 0
    %v3128 = vsel %vm368, %v3016, 0
    %v3131 = vsel %vm368, %v3017, 0
    %v3134 = vsel %vm368, %v3018, 0
    %v3137 = vsel %vm368, %v3019, 0
    %v3140 = vsel %vm368, %v3020, 0
    %v3143 = vsel %vm368, %v3021, 0
    %v3146 = vsel %vm368, %v3022, 0
    %v3149 = vsel %vm368, %v3023, 0
    %v3152 = vsel %vm368, %v3024, 0
    %3154 = vmatprep.subr.bf16.mxu0 0
    %3155 = vmatpush1.bf16.msra.mxu0 %v3050
    %3156 = vmatprep.subr.bf16.mxu0 0
    %3157 = vmatpush1.bf16.msra.mxu0 %v3051
    %3158 = vmatprep.subr.bf16.mxu0 0
    %3159 = vmatpush1.bf16.msra.mxu0 %v3052
    %3160 = vmatprep.subr.bf16.mxu0 0
    %3161 = vmatpush1.bf16.msra.mxu0 %v3053
    %3162 = vmatprep.subr.bf16.mxu0 0
    %3163 = vmatpush1.bf16.msra.mxu0 0
    %3164 = vmatprep.subr.bf16.mxu0 0
    %3165 = vmatpush1.bf16.msra.mxu0 0
    %3166 = vmatprep.subr.bf16.mxu0 0
    %3167 = vmatpush1.bf16.msra.mxu0 0
    %3168 = vmatprep.subr.bf16.mxu0 0
    %3169 = vmatpush1.bf16.msra.mxu0 0
    %3170 = vmatprep.subr.bf16.mxu0 0
    %3171 = vmatpush1.bf16.msra.mxu0 0
    %3172 = vmatprep.subr.bf16.mxu0 0
    %3173 = vmatpush1.bf16.msra.mxu0 0
    %3174 = vmatprep.subr.bf16.mxu0 0
    %3175 = vmatpush1.bf16.msra.mxu0 0
    %3176 = vmatprep.subr.bf16.mxu0 0
    %3177 = vmatpush1.bf16.msra.mxu0 0
    %3178 = vmatprep.subr.bf16.mxu0 0
    %3179 = vmatpush1.bf16.msra.mxu0 0
    %3180 = vmatprep.subr.bf16.mxu0 0
    %3181 = vmatpush1.bf16.msra.mxu0 0
    %3182 = vmatprep.subr.bf16.mxu0 0
    %3183 = vmatpush1.bf16.msra.mxu0 0
    %3184 = vmatprep.subr.bf16.mxu0 0
    %3185 = vmatpush1.bf16.msra.mxu0 0
    %3186 = vmatprep.mubr.bf16.mxu0 0
    %3187 = vmatmul.mubr.bf16.gmra.mrb[0].mxu0 %v3059
    %v3188 = vpop.f32.mrb[0].mxu0
    %v3189 = vadd.f32 0.0, %v3188
    %v3190 = vpop.f32.mrb[0].mxu0
    %v3191 = vpop.f32.mrb[0].mxu0
    %v3192 = vadd.f32 0.0, %v3191
    %v3193 = vpop.f32.mrb[0].mxu0
    %3194 = vmatprep.mubr.bf16.mxu0 0
    %3195 = vmatmul.mubr.bf16.gmra.mrb[0].mxu0 %v3062
    %v3196 = vpop.f32.mrb[0].mxu0
    %v3197 = vadd.f32 0.0, %v3196
    %v3198 = vpop.f32.mrb[0].mxu0
    %v3199 = vpop.f32.mrb[0].mxu0
    %v3200 = vadd.f32 0.0, %v3199
    %v3201 = vpop.f32.mrb[0].mxu0
    %3202 = vmatprep.mubr.bf16.mxu0 0
    %3203 = vmatmul.mubr.bf16.gmra.mrb[0].mxu0 %v3065
    %v3204 = vpop.f32.mrb[0].mxu0
    %v3205 = vadd.f32 0.0, %v3204
    %v3206 = vpop.f32.mrb[0].mxu0
    %v3207 = vpop.f32.mrb[0].mxu0
    %v3208 = vadd.f32 0.0, %v3207
    %v3209 = vpop.f32.mrb[0].mxu0
    %3210 = vmatprep.mubr.bf16.mxu0 0
    %3211 = vmatmul.mubr.bf16.gmra.mrb[0].mxu0 %v3068
    %v3212 = vpop.f32.mrb[0].mxu0
    %v3213 = vadd.f32 0.0, %v3212
    %v3214 = vpop.f32.mrb[0].mxu0
    %v3215 = vpop.f32.mrb[0].mxu0
    %v3216 = vadd.f32 0.0, %v3215
    %v3217 = vpop.f32.mrb[0].mxu0
    %3218 = vmatprep.mubr.bf16.mxu0 0
    %3219 = vmatmul.mubr.bf16.gmra.mrb[0].mxu0 %v3071
    %v3220 = vpop.f32.mrb[0].mxu0
    %v3221 = vadd.f32 0.0, %v3220
    %v3222 = vpop.f32.mrb[0].mxu0
    %v3223 = vpop.f32.mrb[0].mxu0
    %v3224 = vadd.f32 0.0, %v3223
    %v3225 = vpop.f32.mrb[0].mxu0
    %3226 = vmatprep.mubr.bf16.mxu0 0
    %3227 = vmatmul.mubr.bf16.gmra.mrb[0].mxu0 %v3074
    %v3228 = vpop.f32.mrb[0].mxu0
    %v3229 = vadd.f32 0.0, %v3228
    %v3230 = vpop.f32.mrb[0].mxu0
    %v3231 = vpop.f32.mrb[0].mxu0
    %v3232 = vadd.f32 0.0, %v3231
    %v3233 = vpop.f32.mrb[0].mxu0
    %3234 = vmatprep.mubr.bf16.mxu0 0
    %3235 = vmatmul.mubr.bf16.gmra.mrb[0].mxu0 %v3077
    %v3236 = vpop.f32.mrb[0].mxu0
    %v3237 = vadd.f32 0.0, %v3236
    %v3238 = vpop.f32.mrb[0].mxu0
    %v3239 = vpop.f32.mrb[0].mxu0
    %v3240 = vadd.f32 0.0, %v3239
    %v3241 = vpop.f32.mrb[0].mxu0
    %3242 = vmatprep.mubr.bf16.mxu0 0
    %3243 = vmatmul.mubr.bf16.gmra.mrb[0].mxu0 %v3080
    %v3244 = vpop.f32.mrb[0].mxu0
    %v3245 = vadd.f32 0.0, %v3244
    %v3246 = vpop.f32.mrb[0].mxu0
    %v3247 = vpop.f32.mrb[0].mxu0
    %v3248 = vadd.f32 0.0, %v3247
    %v3249 = vpop.f32.mrb[0].mxu0
    %3250 = vmatprep.mubr.bf16.mxu0 0
    %3251 = vmatmul.mubr.bf16.gmra.mrb[0].mxu0 %v3083
    %v3252 = vpop.f32.mrb[0].mxu0
    %v3253 = vadd.f32 0.0, %v3252
    %v3254 = vpop.f32.mrb[0].mxu0
    %v3255 = vpop.f32.mrb[0].mxu0
    %v3256 = vadd.f32 0.0, %v3255
    %v3257 = vpop.f32.mrb[0].mxu0
    %3258 = vmatprep.mubr.bf16.mxu0 0
    %3259 = vmatmul.mubr.bf16.gmra.mrb[0].mxu0 %v3086
    %v3260 = vpop.f32.mrb[0].mxu0
    %v3261 = vadd.f32 0.0, %v3260
    %v3262 = vpop.f32.mrb[0].mxu0
    %v3263 = vpop.f32.mrb[0].mxu0
    %v3264 = vadd.f32 0.0, %v3263
    %v3265 = vpop.f32.mrb[0].mxu0
    %3266 = vmatprep.mubr.bf16.mxu0 0
    %3267 = vmatmul.mubr.bf16.gmra.mrb[0].mxu0 %v3089
    %v3268 = vpop.f32.mrb[0].mxu0
    %v3269 = vadd.f32 0.0, %v3268
    %v3270 = vpop.f32.mrb[0].mxu0
    %v3271 = vpop.f32.mrb[0].mxu0
    %v3272 = vadd.f32 0.0, %v3271
    %v3273 = vpop.f32.mrb[0].mxu0
    %3274 = vmatprep.mubr.bf16.mxu0 0
    %3275 = vmatmul.mubr.bf16.gmra.mrb[0].mxu0 %v3092
    %v3276 = vpop.f32.mrb[0].mxu0
    %v3277 = vadd.f32 0.0, %v3276
    %v3278 = vpop.f32.mrb[0].mxu0
    %v3279 = vpop.f32.mrb[0].mxu0
    %v3280 = vadd.f32 0.0, %v3279
    %v3281 = vpop.f32.mrb[0].mxu0
    %3282 = vmatprep.mubr.bf16.mxu0 0
    %3283 = vmatmul.mubr.bf16.gmra.mrb[0].mxu0 %v3095
    %v3284 = vpop.f32.mrb[0].mxu0
    %v3285 = vadd.f32 0.0, %v3284
    %v3286 = vpop.f32.mrb[0].mxu0
    %v3287 = vpop.f32.mrb[0].mxu0
    %v3288 = vadd.f32 0.0, %v3287
    %v3289 = vpop.f32.mrb[0].mxu0
    %3290 = vmatprep.mubr.bf16.mxu0 0
    %3291 = vmatmul.mubr.bf16.gmra.mrb[0].mxu0 %v3098
    %v3292 = vpop.f32.mrb[0].mxu0
    %v3293 = vadd.f32 0.0, %v3292
    %v3294 = vpop.f32.mrb[0].mxu0
    %v3295 = vpop.f32.mrb[0].mxu0
    %v3296 = vadd.f32 0.0, %v3295
    %v3297 = vpop.f32.mrb[0].mxu0
    %3298 = vmatprep.mubr.bf16.mxu0 0
    %3299 = vmatmul.mubr.bf16.gmra.mrb[0].mxu0 %v3101
    %v3300 = vpop.f32.mrb[0].mxu0
    %v3301 = vadd.f32 0.0, %v3300
    %v3302 = vpop.f32.mrb[0].mxu0
    %v3303 = vpop.f32.mrb[0].mxu0
    %v3304 = vadd.f32 0.0, %v3303
    %v3305 = vpop.f32.mrb[0].mxu0
    %3306 = vmatprep.mubr.bf16.mxu0 0
    %3307 = vmatmul.mubr.bf16.gmra.mrb[0].mxu0 %v3104
    %v3308 = vpop.f32.mrb[0].mxu0
    %v3309 = vadd.f32 0.0, %v3308
    %v3310 = vpop.f32.mrb[0].mxu0
    %v3311 = vpop.f32.mrb[0].mxu0
    %v3312 = vadd.f32 0.0, %v3311
    %v3313 = vpop.f32.mrb[0].mxu0
    %3314 = vmatprep.mubr.bf16.mxu0 0
    %3315 = vmatmul.mubr.bf16.gmra.mrb[0].mxu0 %v3107
    %v3316 = vpop.f32.mrb[0].mxu0
    %v3317 = vadd.f32 0.0, %v3316
    %v3318 = vpop.f32.mrb[0].mxu0
    %v3319 = vpop.f32.mrb[0].mxu0
    %v3320 = vadd.f32 0.0, %v3319
    %v3321 = vpop.f32.mrb[0].mxu0
    %3322 = vmatprep.mubr.bf16.mxu0 0
    %3323 = vmatmul.mubr.bf16.gmra.mrb[0].mxu0 %v3110
    %v3324 = vpop.f32.mrb[0].mxu0
    %v3325 = vadd.f32 0.0, %v3324
    %v3326 = vpop.f32.mrb[0].mxu0
    %v3327 = vpop.f32.mrb[0].mxu0
    %v3328 = vadd.f32 0.0, %v3327
    %v3329 = vpop.f32.mrb[0].mxu0
    %3330 = vmatprep.mubr.bf16.mxu0 0
    %3331 = vmatmul.mubr.bf16.gmra.mrb[0].mxu0 %v3113
    %v3332 = vpop.f32.mrb[0].mxu0
    %v3333 = vadd.f32 0.0, %v3332
    %v3334 = vpop.f32.mrb[0].mxu0
    %v3335 = vpop.f32.mrb[0].mxu0
    %v3336 = vadd.f32 0.0, %v3335
    %v3337 = vpop.f32.mrb[0].mxu0
    %3338 = vmatprep.mubr.bf16.mxu0 0
    %3339 = vmatmul.mubr.bf16.gmra.mrb[0].mxu0 %v3116
    %v3340 = vpop.f32.mrb[0].mxu0
    %v3341 = vadd.f32 0.0, %v3340
    %v3342 = vpop.f32.mrb[0].mxu0
    %v3343 = vpop.f32.mrb[0].mxu0
    %v3344 = vadd.f32 0.0, %v3343
    %v3345 = vpop.f32.mrb[0].mxu0
    %3346 = vmatprep.mubr.bf16.mxu0 0
    %3347 = vmatmul.mubr.bf16.gmra.mrb[0].mxu0 %v3119
    %v3348 = vpop.f32.mrb[0].mxu0
    %v3349 = vadd.f32 0.0, %v3348
    %v3350 = vpop.f32.mrb[0].mxu0
    %v3351 = vpop.f32.mrb[0].mxu0
    %v3352 = vadd.f32 0.0, %v3351
    %v3353 = vpop.f32.mrb[0].mxu0
    %3354 = vmatprep.mubr.bf16.mxu0 0
    %3355 = vmatmul.mubr.bf16.gmra.mrb[0].mxu0 %v3122
    %v3356 = vpop.f32.mrb[0].mxu0
    %v3357 = vadd.f32 0.0, %v3356
    %v3358 = vpop.f32.mrb[0].mxu0
    %v3359 = vpop.f32.mrb[0].mxu0
    %v3360 = vadd.f32 0.0, %v3359
    %v3361 = vpop.f32.mrb[0].mxu0
    %3362 = vmatprep.mubr.bf16.mxu0 0
    %3363 = vmatmul.mubr.bf16.gmra.mrb[0].mxu0 %v3125
    %v3364 = vpop.f32.mrb[0].mxu0
    %v3365 = vadd.f32 0.0, %v3364
    %v3366 = vpop.f32.mrb[0].mxu0
    %v3367 = vpop.f32.mrb[0].mxu0
    %v3368 = vadd.f32 0.0, %v3367
    %v3369 = vpop.f32.mrb[0].mxu0
    %3370 = vmatprep.mubr.bf16.mxu0 0
    %3371 = vmatmul.mubr.bf16.gmra.mrb[0].mxu0 %v3128
    %v3372 = vpop.f32.mrb[0].mxu0
    %v3373 = vadd.f32 0.0, %v3372
    %v3374 = vpop.f32.mrb[0].mxu0
    %v3375 = vpop.f32.mrb[0].mxu0
    %v3376 = vadd.f32 0.0, %v3375
    %v3377 = vpop.f32.mrb[0].mxu0
    %3378 = vmatprep.mubr.bf16.mxu0 0
    %3379 = vmatmul.mubr.bf16.gmra.mrb[0].mxu0 %v3131
    %v3380 = vpop.f32.mrb[0].mxu0
    %v3381 = vadd.f32 0.0, %v3380
    %v3382 = vpop.f32.mrb[0].mxu0
    %v3383 = vpop.f32.mrb[0].mxu0
    %v3384 = vadd.f32 0.0, %v3383
    %v3385 = vpop.f32.mrb[0].mxu0
    %3386 = vmatprep.mubr.bf16.mxu0 0
    %3387 = vmatmul.mubr.bf16.gmra.mrb[0].mxu0 %v3134
    %v3388 = vpop.f32.mrb[0].mxu0
    %v3389 = vadd.f32 0.0, %v3388
    %v3390 = vpop.f32.mrb[0].mxu0
    %v3391 = vpop.f32.mrb[0].mxu0
    %v3392 = vadd.f32 0.0, %v3391
    %v3393 = vpop.f32.mrb[0].mxu0
    %3394 = vmatprep.mubr.bf16.mxu0 0
    %3395 = vmatmul.mubr.bf16.gmra.mrb[0].mxu0 %v3137
    %v3396 = vpop.f32.mrb[0].mxu0
    %v3397 = vadd.f32 0.0, %v3396
    %v3398 = vpop.f32.mrb[0].mxu0
    %v3399 = vpop.f32.mrb[0].mxu0
    %v3400 = vadd.f32 0.0, %v3399
    %v3401 = vpop.f32.mrb[0].mxu0
    %3402 = vmatprep.mubr.bf16.mxu0 0
    %3403 = vmatmul.mubr.bf16.gmra.mrb[0].mxu0 %v3140
    %v3404 = vpop.f32.mrb[0].mxu0
    %v3405 = vadd.f32 0.0, %v3404
    %v3406 = vpop.f32.mrb[0].mxu0
    %v3407 = vpop.f32.mrb[0].mxu0
    %v3408 = vadd.f32 0.0, %v3407
    %v3409 = vpop.f32.mrb[0].mxu0
    %3410 = vmatprep.mubr.bf16.mxu0 0
    %3411 = vmatmul.mubr.bf16.gmra.mrb[0].mxu0 %v3143
    %v3412 = vpop.f32.mrb[0].mxu0
    %v3413 = vadd.f32 0.0, %v3412
    %v3414 = vpop.f32.mrb[0].mxu0
    %v3415 = vpop.f32.mrb[0].mxu0
    %v3416 = vadd.f32 0.0, %v3415
    %v3417 = vpop.f32.mrb[0].mxu0
    %3418 = vmatprep.mubr.bf16.mxu0 0
    %3419 = vmatmul.mubr.bf16.gmra.mrb[0].mxu0 %v3146
    %v3420 = vpop.f32.mrb[0].mxu0
    %v3421 = vadd.f32 0.0, %v3420
    %v3422 = vpop.f32.mrb[0].mxu0
    %v3423 = vpop.f32.mrb[0].mxu0
    %v3424 = vadd.f32 0.0, %v3423
    %v3425 = vpop.f32.mrb[0].mxu0
    %3426 = vmatprep.mubr.bf16.mxu0 0
    %3427 = vmatmul.mubr.bf16.gmra.mrb[0].mxu0 %v3149
    %v3428 = vpop.f32.mrb[0].mxu0
    %v3429 = vadd.f32 0.0, %v3428
    %v3430 = vpop.f32.mrb[0].mxu0
    %v3431 = vpop.f32.mrb[0].mxu0
    %v3432 = vadd.f32 0.0, %v3431
    %v3433 = vpop.f32.mrb[0].mxu0
    %3434 = vmatprep.mubr.bf16.mxu0 0
    %3435 = vmatmul.mubr.bf16.gmra.mrb[0].mxu0 %v3152
    %v3436 = vpop.f32.mrb[0].mxu0
    %v3437 = vadd.f32 0.0, %v3436
    %v3438 = vpop.f32.mrb[0].mxu0
    %v3439 = vpop.f32.mrb[0].mxu0
    %v3440 = vadd.f32 0.0, %v3439
    %v3441 = vpop.f32.mrb[0].mxu0
    %3442 = vdwg.mxu0
    %v3451 = vunpack.c.l.b16 %v2665
    %v3452 = vunpack.c.l.b16 %v2666
    %v3453 = vunpack.c.l.b16 %v2667
    %v3454 = vunpack.c.l.b16 %v2668
    %v3455 = vunpack.c.l.b16 %v2669
    %v3456 = vunpack.c.l.b16 %v2670
    %v3457 = vunpack.c.l.b16 %v2671
    %v3458 = vunpack.c.l.b16 %v2672
    %v3459 = vpack.c.b16 %v3452, %v3451
    %v3460 = vpack.c.b16 %v3454, %v3453
    %v3461 = vpack.c.b16 %v3456, %v3455
    %v3462 = vpack.c.b16 %v3458, %v3457
    %v3468 = vsel %vm368, %v2633, 0
    %v3471 = vsel %vm368, %v2634, 0
    %v3474 = vsel %vm368, %v2635, 0
    %v3477 = vsel %vm368, %v2636, 0
    %v3480 = vsel %vm368, %v2637, 0
    %v3483 = vsel %vm368, %v2638, 0
    %v3486 = vsel %vm368, %v2639, 0
    %v3489 = vsel %vm368, %v2640, 0
    %v3492 = vsel %vm368, %v2641, 0
    %v3495 = vsel %vm368, %v2642, 0
    %v3498 = vsel %vm368, %v2643, 0
    %v3501 = vsel %vm368, %v2644, 0
    %v3504 = vsel %vm368, %v2645, 0
    %v3507 = vsel %vm368, %v2646, 0
    %v3510 = vsel %vm368, %v2647, 0
    %v3513 = vsel %vm368, %v2648, 0
    %v3516 = vsel %vm368, %v2649, 0
    %v3519 = vsel %vm368, %v2650, 0
    %v3522 = vsel %vm368, %v2651, 0
    %v3525 = vsel %vm368, %v2652, 0
    %v3528 = vsel %vm368, %v2653, 0
    %v3531 = vsel %vm368, %v2654, 0
    %v3534 = vsel %vm368, %v2655, 0
    %v3537 = vsel %vm368, %v2656, 0
    %v3540 = vsel %vm368, %v2657, 0
    %v3543 = vsel %vm368, %v2658, 0
    %v3546 = vsel %vm368, %v2659, 0
    %v3549 = vsel %vm368, %v2660, 0
    %v3552 = vsel %vm368, %v2661, 0
    %v3555 = vsel %vm368, %v2662, 0
    %v3558 = vsel %vm368, %v2663, 0
    %v3561 = vsel %vm368, %v2664, 0
    %3563 = vmatprep.subr.bf16.mxu0 0
    %3564 = vmatpush1.bf16.msra.mxu0 %v3459
    %3565 = vmatprep.subr.bf16.mxu0 0
    %3566 = vmatpush1.bf16.msra.mxu0 %v3460
    %3567 = vmatprep.subr.bf16.mxu0 0
    %3568 = vmatpush1.bf16.msra.mxu0 %v3461
    %3569 = vmatprep.subr.bf16.mxu0 0
    %3570 = vmatpush1.bf16.msra.mxu0 %v3462
    %3571 = vmatprep.subr.bf16.mxu0 0
    %3572 = vmatpush1.bf16.msra.mxu0 0
    %3573 = vmatprep.subr.bf16.mxu0 0
    %3574 = vmatpush1.bf16.msra.mxu0 0
    %3575 = vmatprep.subr.bf16.mxu0 0
    %3576 = vmatpush1.bf16.msra.mxu0 0
    %3577 = vmatprep.subr.bf16.mxu0 0
    %3578 = vmatpush1.bf16.msra.mxu0 0
    %3579 = vmatprep.subr.bf16.mxu0 0
    %3580 = vmatpush1.bf16.msra.mxu0 0
    %3581 = vmatprep.subr.bf16.mxu0 0
    %3582 = vmatpush1.bf16.msra.mxu0 0
    %3583 = vmatprep.subr.bf16.mxu0 0
    %3584 = vmatpush1.bf16.msra.mxu0 0
    %3585 = vmatprep.subr.bf16.mxu0 0
    %3586 = vmatpush1.bf16.msra.mxu0 0
    %3587 = vmatprep.subr.bf16.mxu0 0
    %3588 = vmatpush1.bf16.msra.mxu0 0
    %3589 = vmatprep.subr.bf16.mxu0 0
    %3590 = vmatpush1.bf16.msra.mxu0 0
    %3591 = vmatprep.subr.bf16.mxu0 0
    %3592 = vmatpush1.bf16.msra.mxu0 0
    %3593 = vmatprep.subr.bf16.mxu0 0
    %3594 = vmatpush1.bf16.msra.mxu0 0
    %3595 = vmatprep.mubr.bf16.mxu0 0
    %3596 = vmatmul.mubr.bf16.gmra.mrb[0].mxu0 %v3468
    %v3597 = vpop.f32.mrb[0].mxu0
    %v3598 = vadd.f32 %v3189, %v3597
    %v3599 = vpop.f32.mrb[0].mxu0
    %v3600 = vpop.f32.mrb[0].mxu0
    %v3601 = vadd.f32 %v3192, %v3600
    %v3602 = vpop.f32.mrb[0].mxu0
    %3603 = vmatprep.mubr.bf16.mxu0 0
    %3604 = vmatmul.mubr.bf16.gmra.mrb[0].mxu0 %v3471
    %v3605 = vpop.f32.mrb[0].mxu0
    %v3606 = vadd.f32 %v3197, %v3605
    %v3607 = vpop.f32.mrb[0].mxu0
    %v3608 = vpop.f32.mrb[0].mxu0
    %v3609 = vadd.f32 %v3200, %v3608
    %v3610 = vpop.f32.mrb[0].mxu0
    %3611 = vmatprep.mubr.bf16.mxu0 0
    %3612 = vmatmul.mubr.bf16.gmra.mrb[0].mxu0 %v3474
    %v3613 = vpop.f32.mrb[0].mxu0
    %v3614 = vadd.f32 %v3205, %v3613
    %v3615 = vpop.f32.mrb[0].mxu0
    %v3616 = vpop.f32.mrb[0].mxu0
    %v3617 = vadd.f32 %v3208, %v3616
    %v3618 = vpop.f32.mrb[0].mxu0
    %3619 = vmatprep.mubr.bf16.mxu0 0
    %3620 = vmatmul.mubr.bf16.gmra.mrb[0].mxu0 %v3477
    %v3621 = vpop.f32.mrb[0].mxu0
    %v3622 = vadd.f32 %v3213, %v3621
    %v3623 = vpop.f32.mrb[0].mxu0
    %v3624 = vpop.f32.mrb[0].mxu0
    %v3625 = vadd.f32 %v3216, %v3624
    %v3626 = vpop.f32.mrb[0].mxu0
    %3627 = vmatprep.mubr.bf16.mxu0 0
    %3628 = vmatmul.mubr.bf16.gmra.mrb[0].mxu0 %v3480
    %v3629 = vpop.f32.mrb[0].mxu0
    %v3630 = vadd.f32 %v3221, %v3629
    %v3631 = vpop.f32.mrb[0].mxu0
    %v3632 = vpop.f32.mrb[0].mxu0
    %v3633 = vadd.f32 %v3224, %v3632
    %v3634 = vpop.f32.mrb[0].mxu0
    %3635 = vmatprep.mubr.bf16.mxu0 0
    %3636 = vmatmul.mubr.bf16.gmra.mrb[0].mxu0 %v3483
    %v3637 = vpop.f32.mrb[0].mxu0
    %v3638 = vadd.f32 %v3229, %v3637
    %v3639 = vpop.f32.mrb[0].mxu0
    %v3640 = vpop.f32.mrb[0].mxu0
    %v3641 = vadd.f32 %v3232, %v3640
    %v3642 = vpop.f32.mrb[0].mxu0
    %3643 = vmatprep.mubr.bf16.mxu0 0
    %3644 = vmatmul.mubr.bf16.gmra.mrb[0].mxu0 %v3486
    %v3645 = vpop.f32.mrb[0].mxu0
    %v3646 = vadd.f32 %v3237, %v3645
    %v3647 = vpop.f32.mrb[0].mxu0
    %v3648 = vpop.f32.mrb[0].mxu0
    %v3649 = vadd.f32 %v3240, %v3648
    %v3650 = vpop.f32.mrb[0].mxu0
    %3651 = vmatprep.mubr.bf16.mxu0 0
    %3652 = vmatmul.mubr.bf16.gmra.mrb[0].mxu0 %v3489
    %v3653 = vpop.f32.mrb[0].mxu0
    %v3654 = vadd.f32 %v3245, %v3653
    %v3655 = vpop.f32.mrb[0].mxu0
    %v3656 = vpop.f32.mrb[0].mxu0
    %v3657 = vadd.f32 %v3248, %v3656
    %v3658 = vpop.f32.mrb[0].mxu0
    %3659 = vmatprep.mubr.bf16.mxu0 0
    %3660 = vmatmul.mubr.bf16.gmra.mrb[0].mxu0 %v3492
    %v3661 = vpop.f32.mrb[0].mxu0
    %v3662 = vadd.f32 %v3253, %v3661
    %v3663 = vpop.f32.mrb[0].mxu0
    %v3664 = vpop.f32.mrb[0].mxu0
    %v3665 = vadd.f32 %v3256, %v3664
    %v3666 = vpop.f32.mrb[0].mxu0
    %3667 = vmatprep.mubr.bf16.mxu0 0
    %3668 = vmatmul.mubr.bf16.gmra.mrb[0].mxu0 %v3495
    %v3669 = vpop.f32.mrb[0].mxu0
    %v3670 = vadd.f32 %v3261, %v3669
    %v3671 = vpop.f32.mrb[0].mxu0
    %v3672 = vpop.f32.mrb[0].mxu0
    %v3673 = vadd.f32 %v3264, %v3672
    %v3674 = vpop.f32.mrb[0].mxu0
    %3675 = vmatprep.mubr.bf16.mxu0 0
    %3676 = vmatmul.mubr.bf16.gmra.mrb[0].mxu0 %v3498
    %v3677 = vpop.f32.mrb[0].mxu0
    %v3678 = vadd.f32 %v3269, %v3677
    %v3679 = vpop.f32.mrb[0].mxu0
    %v3680 = vpop.f32.mrb[0].mxu0
    %v3681 = vadd.f32 %v3272, %v3680
    %v3682 = vpop.f32.mrb[0].mxu0
    %3683 = vmatprep.mubr.bf16.mxu0 0
    %3684 = vmatmul.mubr.bf16.gmra.mrb[0].mxu0 %v3501
    %v3685 = vpop.f32.mrb[0].mxu0
    %v3686 = vadd.f32 %v3277, %v3685
    %v3687 = vpop.f32.mrb[0].mxu0
    %v3688 = vpop.f32.mrb[0].mxu0
    %v3689 = vadd.f32 %v3280, %v3688
    %v3690 = vpop.f32.mrb[0].mxu0
    %3691 = vmatprep.mubr.bf16.mxu0 0
    %3692 = vmatmul.mubr.bf16.gmra.mrb[0].mxu0 %v3504
    %v3693 = vpop.f32.mrb[0].mxu0
    %v3694 = vadd.f32 %v3285, %v3693
    %v3695 = vpop.f32.mrb[0].mxu0
    %v3696 = vpop.f32.mrb[0].mxu0
    %v3697 = vadd.f32 %v3288, %v3696
    %v3698 = vpop.f32.mrb[0].mxu0
    %3699 = vmatprep.mubr.bf16.mxu0 0
    %3700 = vmatmul.mubr.bf16.gmra.mrb[0].mxu0 %v3507
    %v3701 = vpop.f32.mrb[0].mxu0
    %v3702 = vadd.f32 %v3293, %v3701
    %v3703 = vpop.f32.mrb[0].mxu0
    %v3704 = vpop.f32.mrb[0].mxu0
    %v3705 = vadd.f32 %v3296, %v3704
    %v3706 = vpop.f32.mrb[0].mxu0
    %3707 = vmatprep.mubr.bf16.mxu0 0
    %3708 = vmatmul.mubr.bf16.gmra.mrb[0].mxu0 %v3510
    %v3709 = vpop.f32.mrb[0].mxu0
    %v3710 = vadd.f32 %v3301, %v3709
    %v3711 = vpop.f32.mrb[0].mxu0
    %v3712 = vpop.f32.mrb[0].mxu0
    %v3713 = vadd.f32 %v3304, %v3712
    %v3714 = vpop.f32.mrb[0].mxu0
    %3715 = vmatprep.mubr.bf16.mxu0 0
    %3716 = vmatmul.mubr.bf16.gmra.mrb[0].mxu0 %v3513
    %v3717 = vpop.f32.mrb[0].mxu0
    %v3718 = vadd.f32 %v3309, %v3717
    %v3719 = vpop.f32.mrb[0].mxu0
    %v3720 = vpop.f32.mrb[0].mxu0
    %v3721 = vadd.f32 %v3312, %v3720
    %v3722 = vpop.f32.mrb[0].mxu0
    %3723 = vmatprep.mubr.bf16.mxu0 0
    %3724 = vmatmul.mubr.bf16.gmra.mrb[0].mxu0 %v3516
    %v3725 = vpop.f32.mrb[0].mxu0
    %v3726 = vadd.f32 %v3317, %v3725
    %v3727 = vpop.f32.mrb[0].mxu0
    %v3728 = vpop.f32.mrb[0].mxu0
    %v3729 = vadd.f32 %v3320, %v3728
    %v3730 = vpop.f32.mrb[0].mxu0
    %3731 = vmatprep.mubr.bf16.mxu0 0
    %3732 = vmatmul.mubr.bf16.gmra.mrb[0].mxu0 %v3519
    %v3733 = vpop.f32.mrb[0].mxu0
    %v3734 = vadd.f32 %v3325, %v3733
    %v3735 = vpop.f32.mrb[0].mxu0
    %v3736 = vpop.f32.mrb[0].mxu0
    %v3737 = vadd.f32 %v3328, %v3736
    %v3738 = vpop.f32.mrb[0].mxu0
    %3739 = vmatprep.mubr.bf16.mxu0 0
    %3740 = vmatmul.mubr.bf16.gmra.mrb[0].mxu0 %v3522
    %v3741 = vpop.f32.mrb[0].mxu0
    %v3742 = vadd.f32 %v3333, %v3741
    %v3743 = vpop.f32.mrb[0].mxu0
    %v3744 = vpop.f32.mrb[0].mxu0
    %v3745 = vadd.f32 %v3336, %v3744
    %v3746 = vpop.f32.mrb[0].mxu0
    %3747 = vmatprep.mubr.bf16.mxu0 0
    %3748 = vmatmul.mubr.bf16.gmra.mrb[0].mxu0 %v3525
    %v3749 = vpop.f32.mrb[0].mxu0
    %v3750 = vadd.f32 %v3341, %v3749
    %v3751 = vpop.f32.mrb[0].mxu0
    %v3752 = vpop.f32.mrb[0].mxu0
    %v3753 = vadd.f32 %v3344, %v3752
    %v3754 = vpop.f32.mrb[0].mxu0
    %3755 = vmatprep.mubr.bf16.mxu0 0
    %3756 = vmatmul.mubr.bf16.gmra.mrb[0].mxu0 %v3528
    %v3757 = vpop.f32.mrb[0].mxu0
    %v3758 = vadd.f32 %v3349, %v3757
    %v3759 = vpop.f32.mrb[0].mxu0
    %v3760 = vpop.f32.mrb[0].mxu0
    %v3761 = vadd.f32 %v3352, %v3760
    %v3762 = vpop.f32.mrb[0].mxu0
    %3763 = vmatprep.mubr.bf16.mxu0 0
    %3764 = vmatmul.mubr.bf16.gmra.mrb[0].mxu0 %v3531
    %v3765 = vpop.f32.mrb[0].mxu0
    %v3766 = vadd.f32 %v3357, %v3765
    %v3767 = vpop.f32.mrb[0].mxu0
    %v3768 = vpop.f32.mrb[0].mxu0
    %v3769 = vadd.f32 %v3360, %v3768
    %v3770 = vpop.f32.mrb[0].mxu0
    %3771 = vmatprep.mubr.bf16.mxu0 0
    %3772 = vmatmul.mubr.bf16.gmra.mrb[0].mxu0 %v3534
    %v3773 = vpop.f32.mrb[0].mxu0
    %v3774 = vadd.f32 %v3365, %v3773
    %v3775 = vpop.f32.mrb[0].mxu0
    %v3776 = vpop.f32.mrb[0].mxu0
    %v3777 = vadd.f32 %v3368, %v3776
    %v3778 = vpop.f32.mrb[0].mxu0
    %3779 = vmatprep.mubr.bf16.mxu0 0
    %3780 = vmatmul.mubr.bf16.gmra.mrb[0].mxu0 %v3537
    %v3781 = vpop.f32.mrb[0].mxu0
    %v3782 = vadd.f32 %v3373, %v3781
    %v3783 = vpop.f32.mrb[0].mxu0
    %v3784 = vpop.f32.mrb[0].mxu0
    %v3785 = vadd.f32 %v3376, %v3784
    %v3786 = vpop.f32.mrb[0].mxu0
    %3787 = vmatprep.mubr.bf16.mxu0 0
    %3788 = vmatmul.mubr.bf16.gmra.mrb[0].mxu0 %v3540
    %v3789 = vpop.f32.mrb[0].mxu0
    %v3790 = vadd.f32 %v3381, %v3789
    %v3791 = vpop.f32.mrb[0].mxu0
    %v3792 = vpop.f32.mrb[0].mxu0
    %v3793 = vadd.f32 %v3384, %v3792
    %v3794 = vpop.f32.mrb[0].mxu0
    %3795 = vmatprep.mubr.bf16.mxu0 0
    %3796 = vmatmul.mubr.bf16.gmra.mrb[0].mxu0 %v3543
    %v3797 = vpop.f32.mrb[0].mxu0
    %v3798 = vadd.f32 %v3389, %v3797
    %v3799 = vpop.f32.mrb[0].mxu0
    %v3800 = vpop.f32.mrb[0].mxu0
    %v3801 = vadd.f32 %v3392, %v3800
    %v3802 = vpop.f32.mrb[0].mxu0
    %3803 = vmatprep.mubr.bf16.mxu0 0
    %3804 = vmatmul.mubr.bf16.gmra.mrb[0].mxu0 %v3546
    %v3805 = vpop.f32.mrb[0].mxu0
    %v3806 = vadd.f32 %v3397, %v3805
    %v3807 = vpop.f32.mrb[0].mxu0
    %v3808 = vpop.f32.mrb[0].mxu0
    %v3809 = vadd.f32 %v3400, %v3808
    %v3810 = vpop.f32.mrb[0].mxu0
    %3811 = vmatprep.mubr.bf16.mxu0 0
    %3812 = vmatmul.mubr.bf16.gmra.mrb[0].mxu0 %v3549
    %v3813 = vpop.f32.mrb[0].mxu0
    %v3814 = vadd.f32 %v3405, %v3813
    %v3815 = vpop.f32.mrb[0].mxu0
    %v3816 = vpop.f32.mrb[0].mxu0
    %v3817 = vadd.f32 %v3408, %v3816
    %v3818 = vpop.f32.mrb[0].mxu0
    %3819 = vmatprep.mubr.bf16.mxu0 0
    %3820 = vmatmul.mubr.bf16.gmra.mrb[0].mxu0 %v3552
    %v3821 = vpop.f32.mrb[0].mxu0
    %v3822 = vadd.f32 %v3413, %v3821
    %v3823 = vpop.f32.mrb[0].mxu0
    %v3824 = vpop.f32.mrb[0].mxu0
    %v3825 = vadd.f32 %v3416, %v3824
    %v3826 = vpop.f32.mrb[0].mxu0
    %3827 = vmatprep.mubr.bf16.mxu0 0
    %3828 = vmatmul.mubr.bf16.gmra.mrb[0].mxu0 %v3555
    %v3829 = vpop.f32.mrb[0].mxu0
    %v3830 = vadd.f32 %v3421, %v3829
    %v3831 = vpop.f32.mrb[0].mxu0
    %v3832 = vpop.f32.mrb[0].mxu0
    %v3833 = vadd.f32 %v3424, %v3832
    %v3834 = vpop.f32.mrb[0].mxu0
    %3835 = vmatprep.mubr.bf16.mxu0 0
    %3836 = vmatmul.mubr.bf16.gmra.mrb[0].mxu0 %v3558
    %v3837 = vpop.f32.mrb[0].mxu0
    %v3838 = vadd.f32 %v3429, %v3837
    %v3839 = vpop.f32.mrb[0].mxu0
    %v3840 = vpop.f32.mrb[0].mxu0
    %v3841 = vadd.f32 %v3432, %v3840
    %v3842 = vpop.f32.mrb[0].mxu0
    %3843 = vmatprep.mubr.bf16.mxu0 0
    %3844 = vmatmul.mubr.bf16.gmra.mrb[0].mxu0 %v3561
    %v3845 = vpop.f32.mrb[0].mxu0
    %v3846 = vadd.f32 %v3437, %v3845
    %v3847 = vpop.f32.mrb[0].mxu0
    %v3848 = vpop.f32.mrb[0].mxu0
    %v3849 = vadd.f32 %v3440, %v3848
    %v3850 = vpop.f32.mrb[0].mxu0
    %3851 = vdwg.mxu0
    %v3852 = vrot.slane %v1990, 1
    %v3853 = vrot.slane %v1991, 1
    %v3854 = vrot.slane %v1992, 1
    %v3855 = vrot.slane %v1993, 1
    %v3856 = vrot.slane %v1994, 1
    %v3857 = vrot.slane %v1995, 1
    %v3858 = vrot.slane %v1996, 1
    %v3859 = vrot.slane %v1997, 1
    %v3860 = vrot.slane %v1998, 1
    %v3861 = vrot.slane %v1999, 1
    %v3862 = vrot.slane %v2000, 1
    %v3863 = vrot.slane %v2001, 1
    %v3864 = vrot.slane %v2002, 1
    %v3865 = vrot.slane %v2003, 1
    %v3866 = vrot.slane %v2004, 1
    %v3867 = vrot.slane %v2005, 1
    %v3868 = vrot.slane %v2006, 1
    %v3869 = vrot.slane %v2007, 1
    %v3870 = vrot.slane %v2008, 1
    %v3871 = vrot.slane %v2009, 1
    %v3872 = vrot.slane %v2010, 1
    %v3873 = vrot.slane %v2011, 1
    %v3874 = vrot.slane %v2012, 1
    %v3875 = vrot.slane %v2013, 1
    %v3876 = vrot.slane %v2014, 1
    %v3877 = vrot.slane %v2015, 1
    %v3878 = vrot.slane %v2016, 1
    %v3879 = vrot.slane %v2017, 1
    %v3880 = vrot.slane %v2018, 1
    %v3881 = vrot.slane %v2019, 1
    %v3882 = vrot.slane %v2020, 1
    %v3883 = vrot.slane %v2021, 1
    %v3884 = vrot.slane %v2022, 1
    %v3885 = vrot.slane %v2023, 1
    %v3886 = vrot.slane %v2024, 1
    %v3887 = vrot.slane %v2025, 1
    %v3888 = vrot.slane %v2026, 1
    %v3889 = vrot.slane %v2027, 1
    %v3890 = vrot.slane %v2028, 1
    %v3891 = vrot.slane %v2029, 1
    %v3892 = vrot.slane %v2030, 1
    %v3893 = vrot.slane %v2031, 1
    %v3894 = vrot.slane %v2032, 1
    %v3895 = vrot.slane %v2033, 1
    %v3896 = vrot.slane %v2034, 1
    %v3897 = vrot.slane %v2035, 1
    %v3898 = vrot.slane %v2036, 1
    %v3899 = vrot.slane %v2037, 1
    %v3900 = vrot.slane %v2038, 1
    %v3901 = vrot.slane %v2039, 1
    %v3902 = vrot.slane %v2040, 1
    %v3903 = vrot.slane %v2041, 1
    %v3904 = vrot.slane %v2042, 1
    %v3905 = vrot.slane %v2043, 1
    %v3906 = vrot.slane %v2044, 1
    %v3907 = vrot.slane %v2045, 1
    %v3908 = vrot.slane %v2046, 1
    %v3909 = vrot.slane %v2047, 1
    %v3910 = vrot.slane %v2048, 1
    %v3911 = vrot.slane %v2049, 1
    %v3912 = vrot.slane %v2050, 1
    %v3913 = vrot.slane %v2051, 1
    %v3914 = vrot.slane %v2052, 1
    %v3915 = vrot.slane %v2053, 1
    %vm3916 = vcmp.lt.s32.totalorder %v2119, 7
    %v3917 = vsel %vm3916, %v3914, %v3915
    %v3918 = vsel %vm3916, %v3913, %v3914
    %v3919 = vsel %vm3916, %v3912, %v3913
    %v3920 = vsel %vm3916, %v3911, %v3912
    %v3921 = vsel %vm3916, %v3910, %v3911
    %v3922 = vsel %vm3916, %v3909, %v3910
    %v3923 = vsel %vm3916, %v3908, %v3909
    %v3924 = vsel %vm3916, %v3907, %v3908
    %v3925 = vsel %vm3916, %v3906, %v3907
    %v3926 = vsel %vm3916, %v3905, %v3906
    %v3927 = vsel %vm3916, %v3904, %v3905
    %v3928 = vsel %vm3916, %v3903, %v3904
    %v3929 = vsel %vm3916, %v3902, %v3903
    %v3930 = vsel %vm3916, %v3901, %v3902
    %v3931 = vsel %vm3916, %v3900, %v3901
    %v3932 = vsel %vm3916, %v3899, %v3900
    %v3933 = vsel %vm3916, %v3898, %v3899
    %v3934 = vsel %vm3916, %v3897, %v3898
    %v3935 = vsel %vm3916, %v3896, %v3897
    %v3936 = vsel %vm3916, %v3895, %v3896
    %v3937 = vsel %vm3916, %v3894, %v3895
    %v3938 = vsel %vm3916, %v3893, %v3894
    %v3939 = vsel %vm3916, %v3892, %v3893
    %v3940 = vsel %vm3916, %v3891, %v3892
    %v3941 = vsel %vm3916, %v3890, %v3891
    %v3942 = vsel %vm3916, %v3889, %v3890
    %v3943 = vsel %vm3916, %v3888, %v3889
    %v3944 = vsel %vm3916, %v3887, %v3888
    %v3945 = vsel %vm3916, %v3886, %v3887
    %v3946 = vsel %vm3916, %v3885, %v3886
    %v3947 = vsel %vm3916, %v3884, %v3885
    %v3948 = vsel %vm3916, %v3883, %v3884
    %v3949 = vsel %vm3916, %v3882, %v3883
    %v3950 = vsel %vm3916, %v3881, %v3882
    %v3951 = vsel %vm3916, %v3880, %v3881
    %v3952 = vsel %vm3916, %v3879, %v3880
    %v3953 = vsel %vm3916, %v3878, %v3879
    %v3954 = vsel %vm3916, %v3877, %v3878
    %v3955 = vsel %vm3916, %v3876, %v3877
    %v3956 = vsel %vm3916, %v3875, %v3876
    %v3957 = vsel %vm3916, %v3874, %v3875
    %v3958 = vsel %vm3916, %v3873, %v3874
    %v3959 = vsel %vm3916, %v3872, %v3873
    %v3960 = vsel %vm3916, %v3871, %v3872
    %v3961 = vsel %vm3916, %v3870, %v3871
    %v3962 = vsel %vm3916, %v3869, %v3870
    %v3963 = vsel %vm3916, %v3868, %v3869
    %v3964 = vsel %vm3916, %v3867, %v3868
    %v3965 = vsel %vm3916, %v3866, %v3867
    %v3966 = vsel %vm3916, %v3865, %v3866
    %v3967 = vsel %vm3916, %v3864, %v3865
    %v3968 = vsel %vm3916, %v3863, %v3864
    %v3969 = vsel %vm3916, %v3862, %v3863
    %v3970 = vsel %vm3916, %v3861, %v3862
    %v3971 = vsel %vm3916, %v3860, %v3861
    %v3972 = vsel %vm3916, %v3859, %v3860
    %v3973 = vsel %vm3916, %v3858, %v3859
    %v3974 = vsel %vm3916, %v3857, %v3858
    %v3975 = vsel %vm3916, %v3856, %v3857
    %v3976 = vsel %vm3916, %v3855, %v3856
    %v3977 = vsel %vm3916, %v3854, %v3855
    %v3978 = vsel %vm3916, %v3853, %v3854
    %v3979 = vsel %vm3916, %v3852, %v3853
    %v3980 = vsel %vm3916, %v3915, %v3852
    %3981 = vset.pattern.permute.xlu0 2
    %3982 = vperm.xlu0 %3981, %v2185
    %v3983 = vpop.permute.xlu0 %3982
    %3985 = vset.pattern.permute.xlu0 2
    %3986 = vperm.xlu0 %3985, %v2186
    %v3987 = vpop.permute.xlu0 %3986
    %3989 = vset.pattern.permute.xlu0 2
    %3990 = vperm.xlu0 %3989, %v2187
    %v3991 = vpop.permute.xlu0 %3990
    %3993 = vset.pattern.permute.xlu0 2
    %3994 = vperm.xlu0 %3993, %v2188
    %v3995 = vpop.permute.xlu0 %3994
    %3997 = vset.pattern.permute.xlu0 2
    %3998 = vperm.xlu0 %3997, %v2189
    %v3999 = vpop.permute.xlu0 %3998
    %4001 = vset.pattern.permute.xlu0 2
    %4002 = vperm.xlu0 %4001, %v2190
    %v4003 = vpop.permute.xlu0 %4002
    %4005 = vset.pattern.permute.xlu0 2
    %4006 = vperm.xlu0 %4005, %v2191
    %v4007 = vpop.permute.xlu0 %4006
    %4009 = vset.pattern.permute.xlu0 2
    %4010 = vperm.xlu0 %4009, %v2192
    %v4011 = vpop.permute.xlu0 %4010
    %4013 = vset.pattern.permute.xlu0 2
    %4014 = vperm.xlu0 %4013, %v2193
    %v4015 = vpop.permute.xlu0 %4014
    %4017 = vset.pattern.permute.xlu0 2
    %4018 = vperm.xlu0 %4017, %v2194
    %v4019 = vpop.permute.xlu0 %4018
    %4021 = vset.pattern.permute.xlu0 2
    %4022 = vperm.xlu0 %4021, %v2195
    %v4023 = vpop.permute.xlu0 %4022
    %4025 = vset.pattern.permute.xlu0 2
    %4026 = vperm.xlu0 %4025, %v2196
    %v4027 = vpop.permute.xlu0 %4026
    %4029 = vset.pattern.permute.xlu0 2
    %4030 = vperm.xlu0 %4029, %v2197
    %v4031 = vpop.permute.xlu0 %4030
    %4033 = vset.pattern.permute.xlu0 2
    %4034 = vperm.xlu0 %4033, %v2198
    %v4035 = vpop.permute.xlu0 %4034
    %4037 = vset.pattern.permute.xlu0 2
    %4038 = vperm.xlu0 %4037, %v2199
    %v4039 = vpop.permute.xlu0 %4038
    %4041 = vset.pattern.permute.xlu0 2
    %4042 = vperm.xlu0 %4041, %v2200
    %v4043 = vpop.permute.xlu0 %4042
    %4045 = vset.pattern.permute.xlu0 2
    %4046 = vperm.xlu0 %4045, %v2201
    %v4047 = vpop.permute.xlu0 %4046
    %4049 = vset.pattern.permute.xlu0 2
    %4050 = vperm.xlu0 %4049, %v2202
    %v4051 = vpop.permute.xlu0 %4050
    %4053 = vset.pattern.permute.xlu0 2
    %4054 = vperm.xlu0 %4053, %v2203
    %v4055 = vpop.permute.xlu0 %4054
    %4057 = vset.pattern.permute.xlu0 2
    %4058 = vperm.xlu0 %4057, %v2204
    %v4059 = vpop.permute.xlu0 %4058
    %4061 = vset.pattern.permute.xlu0 2
    %4062 = vperm.xlu0 %4061, %v2205
    %v4063 = vpop.permute.xlu0 %4062
    %4065 = vset.pattern.permute.xlu0 2
    %4066 = vperm.xlu0 %4065, %v2206
    %v4067 = vpop.permute.xlu0 %4066
    %4069 = vset.pattern.permute.xlu0 2
    %4070 = vperm.xlu0 %4069, %v2207
    %v4071 = vpop.permute.xlu0 %4070
    %4073 = vset.pattern.permute.xlu0 2
    %4074 = vperm.xlu0 %4073, %v2208
    %v4075 = vpop.permute.xlu0 %4074
    %4077 = vset.pattern.permute.xlu0 2
    %4078 = vperm.xlu0 %4077, %v2209
    %v4079 = vpop.permute.xlu0 %4078
    %4081 = vset.pattern.permute.xlu0 2
    %4082 = vperm.xlu0 %4081, %v2210
    %v4083 = vpop.permute.xlu0 %4082
    %4085 = vset.pattern.permute.xlu0 2
    %4086 = vperm.xlu0 %4085, %v2211
    %v4087 = vpop.permute.xlu0 %4086
    %4089 = vset.pattern.permute.xlu0 2
    %4090 = vperm.xlu0 %4089, %v2212
    %v4091 = vpop.permute.xlu0 %4090
    %4093 = vset.pattern.permute.xlu0 2
    %4094 = vperm.xlu0 %4093, %v2213
    %v4095 = vpop.permute.xlu0 %4094
    %4097 = vset.pattern.permute.xlu0 2
    %4098 = vperm.xlu0 %4097, %v2214
    %v4099 = vpop.permute.xlu0 %4098
    %4101 = vset.pattern.permute.xlu0 2
    %4102 = vperm.xlu0 %4101, %v2215
    %v4103 = vpop.permute.xlu0 %4102
    %4105 = vset.pattern.permute.xlu0 2
    %4106 = vperm.xlu0 %4105, %v2216
    %v4107 = vpop.permute.xlu0 %4106
    %4109 = vset.pattern.permute.xlu0 2
    %4110 = vperm.xlu0 %4109, %v2217
    %v4111 = vpop.permute.xlu0 %4110
    %4113 = vset.pattern.permute.xlu0 2
    %4114 = vperm.xlu0 %4113, %v2218
    %v4115 = vpop.permute.xlu0 %4114
    %4117 = vset.pattern.permute.xlu0 2
    %4118 = vperm.xlu0 %4117, %v2219
    %v4119 = vpop.permute.xlu0 %4118
    %4121 = vset.pattern.permute.xlu0 2
    %4122 = vperm.xlu0 %4121, %v2220
    %v4123 = vpop.permute.xlu0 %4122
    %4125 = vset.pattern.permute.xlu0 2
    %4126 = vperm.xlu0 %4125, %v2221
    %v4127 = vpop.permute.xlu0 %4126
    %4129 = vset.pattern.permute.xlu0 2
    %4130 = vperm.xlu0 %4129, %v2222
    %v4131 = vpop.permute.xlu0 %4130
    %4133 = vset.pattern.permute.xlu0 2
    %4134 = vperm.xlu0 %4133, %v2223
    %v4135 = vpop.permute.xlu0 %4134
    %4137 = vset.pattern.permute.xlu0 2
    %4138 = vperm.xlu0 %4137, %v2224
    %v4139 = vpop.permute.xlu0 %4138
    %4141 = vset.pattern.permute.xlu0 2
    %4142 = vperm.xlu0 %4141, %v2225
    %v4143 = vpop.permute.xlu0 %4142
    %4145 = vset.pattern.permute.xlu0 2
    %4146 = vperm.xlu0 %4145, %v2226
    %v4147 = vpop.permute.xlu0 %4146
    %4149 = vset.pattern.permute.xlu0 2
    %4150 = vperm.xlu0 %4149, %v2227
    %v4151 = vpop.permute.xlu0 %4150
    %4153 = vset.pattern.permute.xlu0 2
    %4154 = vperm.xlu0 %4153, %v2228
    %v4155 = vpop.permute.xlu0 %4154
    %4157 = vset.pattern.permute.xlu0 2
    %4158 = vperm.xlu0 %4157, %v2229
    %v4159 = vpop.permute.xlu0 %4158
    %4161 = vset.pattern.permute.xlu0 2
    %4162 = vperm.xlu0 %4161, %v2230
    %v4163 = vpop.permute.xlu0 %4162
    %4165 = vset.pattern.permute.xlu0 2
    %4166 = vperm.xlu0 %4165, %v2231
    %v4167 = vpop.permute.xlu0 %4166
    %4169 = vset.pattern.permute.xlu0 2
    %4170 = vperm.xlu0 %4169, %v2232
    %v4171 = vpop.permute.xlu0 %4170
    %4173 = vset.pattern.permute.xlu0 2
    %4174 = vperm.xlu0 %4173, %v2233
    %v4175 = vpop.permute.xlu0 %4174
    %4177 = vset.pattern.permute.xlu0 2
    %4178 = vperm.xlu0 %4177, %v2234
    %v4179 = vpop.permute.xlu0 %4178
    %4181 = vset.pattern.permute.xlu0 2
    %4182 = vperm.xlu0 %4181, %v2235
    %v4183 = vpop.permute.xlu0 %4182
    %4185 = vset.pattern.permute.xlu0 2
    %4186 = vperm.xlu0 %4185, %v2236
    %v4187 = vpop.permute.xlu0 %4186
    %4189 = vset.pattern.permute.xlu0 2
    %4190 = vperm.xlu0 %4189, %v2237
    %v4191 = vpop.permute.xlu0 %4190
    %4193 = vset.pattern.permute.xlu0 2
    %4194 = vperm.xlu0 %4193, %v2238
    %v4195 = vpop.permute.xlu0 %4194
    %4197 = vset.pattern.permute.xlu0 2
    %4198 = vperm.xlu0 %4197, %v2239
    %v4199 = vpop.permute.xlu0 %4198
    %4201 = vset.pattern.permute.xlu0 2
    %4202 = vperm.xlu0 %4201, %v2240
    %v4203 = vpop.permute.xlu0 %4202
    %4205 = vset.pattern.permute.xlu0 2
    %4206 = vperm.xlu0 %4205, %v2241
    %v4207 = vpop.permute.xlu0 %4206
    %4209 = vset.pattern.permute.xlu0 2
    %4210 = vperm.xlu0 %4209, %v2242
    %v4211 = vpop.permute.xlu0 %4210
    %4213 = vset.pattern.permute.xlu0 2
    %4214 = vperm.xlu0 %4213, %v2243
    %v4215 = vpop.permute.xlu0 %4214
    %4217 = vset.pattern.permute.xlu0 2
    %4218 = vperm.xlu0 %4217, %v2244
    %v4219 = vpop.permute.xlu0 %4218
    %4221 = vset.pattern.permute.xlu0 2
    %4222 = vperm.xlu0 %4221, %v2245
    %v4223 = vpop.permute.xlu0 %4222
    %4225 = vset.pattern.permute.xlu0 2
    %4226 = vperm.xlu0 %4225, %v2246
    %v4227 = vpop.permute.xlu0 %4226
    %4229 = vset.pattern.permute.xlu0 2
    %4230 = vperm.xlu0 %4229, %v2247
    %v4231 = vpop.permute.xlu0 %4230
    %4233 = vset.pattern.permute.xlu0 2
    %4234 = vperm.xlu0 %4233, %v2248
    %v4235 = vpop.permute.xlu0 %4234
    %v4237 = vmul.f32 %v3917, %v3983
    %v4238 = vmul.f32 %v3980, %v3987
    %v4239 = vmul.f32 %v3979, %v3991
    %v4240 = vmul.f32 %v3978, %v3995
    %v4241 = vmul.f32 %v3977, %v3999
    %v4242 = vmul.f32 %v3976, %v4003
    %v4243 = vmul.f32 %v3975, %v4007
    %v4244 = vmul.f32 %v3974, %v4011
    %v4245 = vmul.f32 %v3973, %v4015
    %v4246 = vmul.f32 %v3972, %v4019
    %v4247 = vmul.f32 %v3971, %v4023
    %v4248 = vmul.f32 %v3970, %v4027
    %v4249 = vmul.f32 %v3969, %v4031
    %v4250 = vmul.f32 %v3968, %v4035
    %v4251 = vmul.f32 %v3967, %v4039
    %v4252 = vmul.f32 %v3966, %v4043
    %v4253 = vmul.f32 %v3965, %v4047
    %v4254 = vmul.f32 %v3964, %v4051
    %v4255 = vmul.f32 %v3963, %v4055
    %v4256 = vmul.f32 %v3962, %v4059
    %v4257 = vmul.f32 %v3961, %v4063
    %v4258 = vmul.f32 %v3960, %v4067
    %v4259 = vmul.f32 %v3959, %v4071
    %v4260 = vmul.f32 %v3958, %v4075
    %v4261 = vmul.f32 %v3957, %v4079
    %v4262 = vmul.f32 %v3956, %v4083
    %v4263 = vmul.f32 %v3955, %v4087
    %v4264 = vmul.f32 %v3954, %v4091
    %v4265 = vmul.f32 %v3953, %v4095
    %v4266 = vmul.f32 %v3952, %v4099
    %v4267 = vmul.f32 %v3951, %v4103
    %v4268 = vmul.f32 %v3950, %v4107
    %v4269 = vmul.f32 %v3949, %v4111
    %v4270 = vmul.f32 %v3948, %v4115
    %v4271 = vmul.f32 %v3947, %v4119
    %v4272 = vmul.f32 %v3946, %v4123
    %v4273 = vmul.f32 %v3945, %v4127
    %v4274 = vmul.f32 %v3944, %v4131
    %v4275 = vmul.f32 %v3943, %v4135
    %v4276 = vmul.f32 %v3942, %v4139
    %v4277 = vmul.f32 %v3941, %v4143
    %v4278 = vmul.f32 %v3940, %v4147
    %v4279 = vmul.f32 %v3939, %v4151
    %v4280 = vmul.f32 %v3938, %v4155
    %v4281 = vmul.f32 %v3937, %v4159
    %v4282 = vmul.f32 %v3936, %v4163
    %v4283 = vmul.f32 %v3935, %v4167
    %v4284 = vmul.f32 %v3934, %v4171
    %v4285 = vmul.f32 %v3933, %v4175
    %v4286 = vmul.f32 %v3932, %v4179
    %v4287 = vmul.f32 %v3931, %v4183
    %v4288 = vmul.f32 %v3930, %v4187
    %v4289 = vmul.f32 %v3929, %v4191
    %v4290 = vmul.f32 %v3928, %v4195
    %v4291 = vmul.f32 %v3927, %v4199
    %v4292 = vmul.f32 %v3926, %v4203
    %v4293 = vmul.f32 %v3925, %v4207
    %v4294 = vmul.f32 %v3924, %v4211
    %v4295 = vmul.f32 %v3923, %v4215
    %v4296 = vmul.f32 %v3922, %v4219
    %v4297 = vmul.f32 %v3921, %v4223
    %v4298 = vmul.f32 %v3920, %v4227
    %v4299 = vmul.f32 %v3919, %v4231
    %v4300 = vmul.f32 %v3918, %v4235
    %v4301 = vpack.c.bf16 %v4238, %v4237
    %v4302 = vpack.c.bf16 %v4240, %v4239
    %v4303 = vpack.c.bf16 %v4242, %v4241
    %v4304 = vpack.c.bf16 %v4244, %v4243
    %v4305 = vpack.c.bf16 %v4246, %v4245
    %v4306 = vpack.c.bf16 %v4248, %v4247
    %v4307 = vpack.c.bf16 %v4250, %v4249
    %v4308 = vpack.c.bf16 %v4252, %v4251
    %v4309 = vpack.c.bf16 %v4254, %v4253
    %v4310 = vpack.c.bf16 %v4256, %v4255
    %v4311 = vpack.c.bf16 %v4258, %v4257
    %v4312 = vpack.c.bf16 %v4260, %v4259
    %v4313 = vpack.c.bf16 %v4262, %v4261
    %v4314 = vpack.c.bf16 %v4264, %v4263
    %v4315 = vpack.c.bf16 %v4266, %v4265
    %v4316 = vpack.c.bf16 %v4268, %v4267
    %v4317 = vpack.c.bf16 %v4270, %v4269
    %v4318 = vpack.c.bf16 %v4272, %v4271
    %v4319 = vpack.c.bf16 %v4274, %v4273
    %v4320 = vpack.c.bf16 %v4276, %v4275
    %v4321 = vpack.c.bf16 %v4278, %v4277
    %v4322 = vpack.c.bf16 %v4280, %v4279
    %v4323 = vpack.c.bf16 %v4282, %v4281
    %v4324 = vpack.c.bf16 %v4284, %v4283
    %v4325 = vpack.c.bf16 %v4286, %v4285
    %v4326 = vpack.c.bf16 %v4288, %v4287
    %v4327 = vpack.c.bf16 %v4290, %v4289
    %v4328 = vpack.c.bf16 %v4292, %v4291
    %v4329 = vpack.c.bf16 %v4294, %v4293
    %v4330 = vpack.c.bf16 %v4296, %v4295
    %v4331 = vpack.c.bf16 %v4298, %v4297
    %v4332 = vpack.c.bf16 %v4300, %v4299
    %s4333 = scalar_lea.vmem %s8, 64
    %v4334 = vld [vmem:[%s4333] sm:$0xf]
    %v4335 = vld [vmem:[%s4333 + $0x4] sm:$0xf]
    %v4336 = vld [vmem:[%s4333 + $0x8] sm:$0xf]
    %v4337 = vld [vmem:[%s4333 + $0xc] sm:$0xf]
    %v4338 = vld [vmem:[%s4333 + $0x10] sm:$0xf]
    %v4339 = vld [vmem:[%s4333 + $0x14] sm:$0xf]
    %v4340 = vld [vmem:[%s4333 + $0x18] sm:$0xf]
    %v4341 = vld [vmem:[%s4333 + $0x1c] sm:$0xf]
    %v4350 = vunpack.c.l.b16 %v4334
    %v4351 = vunpack.c.l.b16 %v4335
    %v4352 = vunpack.c.l.b16 %v4336
    %v4353 = vunpack.c.l.b16 %v4337
    %v4354 = vunpack.c.l.b16 %v4338
    %v4355 = vunpack.c.l.b16 %v4339
    %v4356 = vunpack.c.l.b16 %v4340
    %v4357 = vunpack.c.l.b16 %v4341
    %v4358 = vpack.c.b16 %v4351, %v4350
    %v4359 = vpack.c.b16 %v4353, %v4352
    %v4360 = vpack.c.b16 %v4355, %v4354
    %v4361 = vpack.c.b16 %v4357, %v4356
    %v4367 = vsel %vm368, %v4301, 0
    %v4370 = vsel %vm368, %v4302, 0
    %v4373 = vsel %vm368, %v4303, 0
    %v4376 = vsel %vm368, %v4304, 0
    %v4379 = vsel %vm368, %v4305, 0
    %v4382 = vsel %vm368, %v4306, 0
    %v4385 = vsel %vm368, %v4307, 0
    %v4388 = vsel %vm368, %v4308, 0
    %v4391 = vsel %vm368, %v4309, 0
    %v4394 = vsel %vm368, %v4310, 0
    %v4397 = vsel %vm368, %v4311, 0
    %v4400 = vsel %vm368, %v4312, 0
    %v4403 = vsel %vm368, %v4313, 0
    %v4406 = vsel %vm368, %v4314, 0
    %v4409 = vsel %vm368, %v4315, 0
    %v4412 = vsel %vm368, %v4316, 0
    %v4415 = vsel %vm368, %v4317, 0
    %v4418 = vsel %vm368, %v4318, 0
    %v4421 = vsel %vm368, %v4319, 0
    %v4424 = vsel %vm368, %v4320, 0
    %v4427 = vsel %vm368, %v4321, 0
    %v4430 = vsel %vm368, %v4322, 0
    %v4433 = vsel %vm368, %v4323, 0
    %v4436 = vsel %vm368, %v4324, 0
    %v4439 = vsel %vm368, %v4325, 0
    %v4442 = vsel %vm368, %v4326, 0
    %v4445 = vsel %vm368, %v4327, 0
    %v4448 = vsel %vm368, %v4328, 0
    %v4451 = vsel %vm368, %v4329, 0
    %v4454 = vsel %vm368, %v4330, 0
    %v4457 = vsel %vm368, %v4331, 0
    %v4460 = vsel %vm368, %v4332, 0
    %4462 = vmatprep.subr.bf16.mxu0 0
    %4463 = vmatpush1.bf16.msra.mxu0 %v4358
    %4464 = vmatprep.subr.bf16.mxu0 0
    %4465 = vmatpush1.bf16.msra.mxu0 %v4359
    %4466 = vmatprep.subr.bf16.mxu0 0
    %4467 = vmatpush1.bf16.msra.mxu0 %v4360
    %4468 = vmatprep.subr.bf16.mxu0 0
    %4469 = vmatpush1.bf16.msra.mxu0 %v4361
    %4470 = vmatprep.subr.bf16.mxu0 0
    %4471 = vmatpush1.bf16.msra.mxu0 0
    %4472 = vmatprep.subr.bf16.mxu0 0
    %4473 = vmatpush1.bf16.msra.mxu0 0
    %4474 = vmatprep.subr.bf16.mxu0 0
    %4475 = vmatpush1.bf16.msra.mxu0 0
    %4476 = vmatprep.subr.bf16.mxu0 0
    %4477 = vmatpush1.bf16.msra.mxu0 0
    %4478 = vmatprep.subr.bf16.mxu0 0
    %4479 = vmatpush1.bf16.msra.mxu0 0
    %4480 = vmatprep.subr.bf16.mxu0 0
    %4481 = vmatpush1.bf16.msra.mxu0 0
    %4482 = vmatprep.subr.bf16.mxu0 0
    %4483 = vmatpush1.bf16.msra.mxu0 0
    %4484 = vmatprep.subr.bf16.mxu0 0
    %4485 = vmatpush1.bf16.msra.mxu0 0
    %4486 = vmatprep.subr.bf16.mxu0 0
    %4487 = vmatpush1.bf16.msra.mxu0 0
    %4488 = vmatprep.subr.bf16.mxu0 0
    %4489 = vmatpush1.bf16.msra.mxu0 0
    %4490 = vmatprep.subr.bf16.mxu0 0
    %4491 = vmatpush1.bf16.msra.mxu0 0
    %4492 = vmatprep.subr.bf16.mxu0 0
    %4493 = vmatpush1.bf16.msra.mxu0 0
    %4494 = vmatprep.mubr.bf16.mxu0 0
    %4495 = vmatmul.mubr.bf16.gmra.mrb[0].mxu0 %v4367
    %v4496 = vpop.f32.mrb[0].mxu0
    %v4497 = vadd.f32 0.0, %v4496
    %v4498 = vpop.f32.mrb[0].mxu0
    %v4499 = vpop.f32.mrb[0].mxu0
    %v4500 = vadd.f32 0.0, %v4499
    %v4501 = vpop.f32.mrb[0].mxu0
    %4502 = vmatprep.mubr.bf16.mxu0 0
    %4503 = vmatmul.mubr.bf16.gmra.mrb[0].mxu0 %v4370
    %v4504 = vpop.f32.mrb[0].mxu0
    %v4505 = vadd.f32 0.0, %v4504
    %v4506 = vpop.f32.mrb[0].mxu0
    %v4507 = vpop.f32.mrb[0].mxu0
    %v4508 = vadd.f32 0.0, %v4507
    %v4509 = vpop.f32.mrb[0].mxu0
    %4510 = vmatprep.mubr.bf16.mxu0 0
    %4511 = vmatmul.mubr.bf16.gmra.mrb[0].mxu0 %v4373
    %v4512 = vpop.f32.mrb[0].mxu0
    %v4513 = vadd.f32 0.0, %v4512
    %v4514 = vpop.f32.mrb[0].mxu0
    %v4515 = vpop.f32.mrb[0].mxu0
    %v4516 = vadd.f32 0.0, %v4515
    %v4517 = vpop.f32.mrb[0].mxu0
    %4518 = vmatprep.mubr.bf16.mxu0 0
    %4519 = vmatmul.mubr.bf16.gmra.mrb[0].mxu0 %v4376
    %v4520 = vpop.f32.mrb[0].mxu0
    %v4521 = vadd.f32 0.0, %v4520
    %v4522 = vpop.f32.mrb[0].mxu0
    %v4523 = vpop.f32.mrb[0].mxu0
    %v4524 = vadd.f32 0.0, %v4523
    %v4525 = vpop.f32.mrb[0].mxu0
    %4526 = vmatprep.mubr.bf16.mxu0 0
    %4527 = vmatmul.mubr.bf16.gmra.mrb[0].mxu0 %v4379
    %v4528 = vpop.f32.mrb[0].mxu0
    %v4529 = vadd.f32 0.0, %v4528
    %v4530 = vpop.f32.mrb[0].mxu0
    %v4531 = vpop.f32.mrb[0].mxu0
    %v4532 = vadd.f32 0.0, %v4531
    %v4533 = vpop.f32.mrb[0].mxu0
    %4534 = vmatprep.mubr.bf16.mxu0 0
    %4535 = vmatmul.mubr.bf16.gmra.mrb[0].mxu0 %v4382
    %v4536 = vpop.f32.mrb[0].mxu0
    %v4537 = vadd.f32 0.0, %v4536
    %v4538 = vpop.f32.mrb[0].mxu0
    %v4539 = vpop.f32.mrb[0].mxu0
    %v4540 = vadd.f32 0.0, %v4539
    %v4541 = vpop.f32.mrb[0].mxu0
    %4542 = vmatprep.mubr.bf16.mxu0 0
    %4543 = vmatmul.mubr.bf16.gmra.mrb[0].mxu0 %v4385
    %v4544 = vpop.f32.mrb[0].mxu0
    %v4545 = vadd.f32 0.0, %v4544
    %v4546 = vpop.f32.mrb[0].mxu0
    %v4547 = vpop.f32.mrb[0].mxu0
    %v4548 = vadd.f32 0.0, %v4547
    %v4549 = vpop.f32.mrb[0].mxu0
    %4550 = vmatprep.mubr.bf16.mxu0 0
    %4551 = vmatmul.mubr.bf16.gmra.mrb[0].mxu0 %v4388
    %v4552 = vpop.f32.mrb[0].mxu0
    %v4553 = vadd.f32 0.0, %v4552
    %v4554 = vpop.f32.mrb[0].mxu0
    %v4555 = vpop.f32.mrb[0].mxu0
    %v4556 = vadd.f32 0.0, %v4555
    %v4557 = vpop.f32.mrb[0].mxu0
    %4558 = vmatprep.mubr.bf16.mxu0 0
    %4559 = vmatmul.mubr.bf16.gmra.mrb[0].mxu0 %v4391
    %v4560 = vpop.f32.mrb[0].mxu0
    %v4561 = vadd.f32 0.0, %v4560
    %v4562 = vpop.f32.mrb[0].mxu0
    %v4563 = vpop.f32.mrb[0].mxu0
    %v4564 = vadd.f32 0.0, %v4563
    %v4565 = vpop.f32.mrb[0].mxu0
    %4566 = vmatprep.mubr.bf16.mxu0 0
    %4567 = vmatmul.mubr.bf16.gmra.mrb[0].mxu0 %v4394
    %v4568 = vpop.f32.mrb[0].mxu0
    %v4569 = vadd.f32 0.0, %v4568
    %v4570 = vpop.f32.mrb[0].mxu0
    %v4571 = vpop.f32.mrb[0].mxu0
    %v4572 = vadd.f32 0.0, %v4571
    %v4573 = vpop.f32.mrb[0].mxu0
    %4574 = vmatprep.mubr.bf16.mxu0 0
    %4575 = vmatmul.mubr.bf16.gmra.mrb[0].mxu0 %v4397
    %v4576 = vpop.f32.mrb[0].mxu0
    %v4577 = vadd.f32 0.0, %v4576
    %v4578 = vpop.f32.mrb[0].mxu0
    %v4579 = vpop.f32.mrb[0].mxu0
    %v4580 = vadd.f32 0.0, %v4579
    %v4581 = vpop.f32.mrb[0].mxu0
    %4582 = vmatprep.mubr.bf16.mxu0 0
    %4583 = vmatmul.mubr.bf16.gmra.mrb[0].mxu0 %v4400
    %v4584 = vpop.f32.mrb[0].mxu0
    %v4585 = vadd.f32 0.0, %v4584
    %v4586 = vpop.f32.mrb[0].mxu0
    %v4587 = vpop.f32.mrb[0].mxu0
    %v4588 = vadd.f32 0.0, %v4587
    %v4589 = vpop.f32.mrb[0].mxu0
    %4590 = vmatprep.mubr.bf16.mxu0 0
    %4591 = vmatmul.mubr.bf16.gmra.mrb[0].mxu0 %v4403
    %v4592 = vpop.f32.mrb[0].mxu0
    %v4593 = vadd.f32 0.0, %v4592
    %v4594 = vpop.f32.mrb[0].mxu0
    %v4595 = vpop.f32.mrb[0].mxu0
    %v4596 = vadd.f32 0.0, %v4595
    %v4597 = vpop.f32.mrb[0].mxu0
    %4598 = vmatprep.mubr.bf16.mxu0 0
    %4599 = vmatmul.mubr.bf16.gmra.mrb[0].mxu0 %v4406
    %v4600 = vpop.f32.mrb[0].mxu0
    %v4601 = vadd.f32 0.0, %v4600
    %v4602 = vpop.f32.mrb[0].mxu0
    %v4603 = vpop.f32.mrb[0].mxu0
    %v4604 = vadd.f32 0.0, %v4603
    %v4605 = vpop.f32.mrb[0].mxu0
    %4606 = vmatprep.mubr.bf16.mxu0 0
    %4607 = vmatmul.mubr.bf16.gmra.mrb[0].mxu0 %v4409
    %v4608 = vpop.f32.mrb[0].mxu0
    %v4609 = vadd.f32 0.0, %v4608
    %v4610 = vpop.f32.mrb[0].mxu0
    %v4611 = vpop.f32.mrb[0].mxu0
    %v4612 = vadd.f32 0.0, %v4611
    %v4613 = vpop.f32.mrb[0].mxu0
    %4614 = vmatprep.mubr.bf16.mxu0 0
    %4615 = vmatmul.mubr.bf16.gmra.mrb[0].mxu0 %v4412
    %v4616 = vpop.f32.mrb[0].mxu0
    %v4617 = vadd.f32 0.0, %v4616
    %v4618 = vpop.f32.mrb[0].mxu0
    %v4619 = vpop.f32.mrb[0].mxu0
    %v4620 = vadd.f32 0.0, %v4619
    %v4621 = vpop.f32.mrb[0].mxu0
    %4622 = vmatprep.mubr.bf16.mxu0 0
    %4623 = vmatmul.mubr.bf16.gmra.mrb[0].mxu0 %v4415
    %v4624 = vpop.f32.mrb[0].mxu0
    %v4625 = vadd.f32 0.0, %v4624
    %v4626 = vpop.f32.mrb[0].mxu0
    %v4627 = vpop.f32.mrb[0].mxu0
    %v4628 = vadd.f32 0.0, %v4627
    %v4629 = vpop.f32.mrb[0].mxu0
    %4630 = vmatprep.mubr.bf16.mxu0 0
    %4631 = vmatmul.mubr.bf16.gmra.mrb[0].mxu0 %v4418
    %v4632 = vpop.f32.mrb[0].mxu0
    %v4633 = vadd.f32 0.0, %v4632
    %v4634 = vpop.f32.mrb[0].mxu0
    %v4635 = vpop.f32.mrb[0].mxu0
    %v4636 = vadd.f32 0.0, %v4635
    %v4637 = vpop.f32.mrb[0].mxu0
    %4638 = vmatprep.mubr.bf16.mxu0 0
    %4639 = vmatmul.mubr.bf16.gmra.mrb[0].mxu0 %v4421
    %v4640 = vpop.f32.mrb[0].mxu0
    %v4641 = vadd.f32 0.0, %v4640
    %v4642 = vpop.f32.mrb[0].mxu0
    %v4643 = vpop.f32.mrb[0].mxu0
    %v4644 = vadd.f32 0.0, %v4643
    %v4645 = vpop.f32.mrb[0].mxu0
    %4646 = vmatprep.mubr.bf16.mxu0 0
    %4647 = vmatmul.mubr.bf16.gmra.mrb[0].mxu0 %v4424
    %v4648 = vpop.f32.mrb[0].mxu0
    %v4649 = vadd.f32 0.0, %v4648
    %v4650 = vpop.f32.mrb[0].mxu0
    %v4651 = vpop.f32.mrb[0].mxu0
    %v4652 = vadd.f32 0.0, %v4651
    %v4653 = vpop.f32.mrb[0].mxu0
    %4654 = vmatprep.mubr.bf16.mxu0 0
    %4655 = vmatmul.mubr.bf16.gmra.mrb[0].mxu0 %v4427
    %v4656 = vpop.f32.mrb[0].mxu0
    %v4657 = vadd.f32 0.0, %v4656
    %v4658 = vpop.f32.mrb[0].mxu0
    %v4659 = vpop.f32.mrb[0].mxu0
    %v4660 = vadd.f32 0.0, %v4659
    %v4661 = vpop.f32.mrb[0].mxu0
    %4662 = vmatprep.mubr.bf16.mxu0 0
    %4663 = vmatmul.mubr.bf16.gmra.mrb[0].mxu0 %v4430
    %v4664 = vpop.f32.mrb[0].mxu0
    %v4665 = vadd.f32 0.0, %v4664
    %v4666 = vpop.f32.mrb[0].mxu0
    %v4667 = vpop.f32.mrb[0].mxu0
    %v4668 = vadd.f32 0.0, %v4667
    %v4669 = vpop.f32.mrb[0].mxu0
    %4670 = vmatprep.mubr.bf16.mxu0 0
    %4671 = vmatmul.mubr.bf16.gmra.mrb[0].mxu0 %v4433
    %v4672 = vpop.f32.mrb[0].mxu0
    %v4673 = vadd.f32 0.0, %v4672
    %v4674 = vpop.f32.mrb[0].mxu0
    %v4675 = vpop.f32.mrb[0].mxu0
    %v4676 = vadd.f32 0.0, %v4675
    %v4677 = vpop.f32.mrb[0].mxu0
    %4678 = vmatprep.mubr.bf16.mxu0 0
    %4679 = vmatmul.mubr.bf16.gmra.mrb[0].mxu0 %v4436
    %v4680 = vpop.f32.mrb[0].mxu0
    %v4681 = vadd.f32 0.0, %v4680
    %v4682 = vpop.f32.mrb[0].mxu0
    %v4683 = vpop.f32.mrb[0].mxu0
    %v4684 = vadd.f32 0.0, %v4683
    %v4685 = vpop.f32.mrb[0].mxu0
    %4686 = vmatprep.mubr.bf16.mxu0 0
    %4687 = vmatmul.mubr.bf16.gmra.mrb[0].mxu0 %v4439
    %v4688 = vpop.f32.mrb[0].mxu0
    %v4689 = vadd.f32 0.0, %v4688
    %v4690 = vpop.f32.mrb[0].mxu0
    %v4691 = vpop.f32.mrb[0].mxu0
    %v4692 = vadd.f32 0.0, %v4691
    %v4693 = vpop.f32.mrb[0].mxu0
    %4694 = vmatprep.mubr.bf16.mxu0 0
    %4695 = vmatmul.mubr.bf16.gmra.mrb[0].mxu0 %v4442
    %v4696 = vpop.f32.mrb[0].mxu0
    %v4697 = vadd.f32 0.0, %v4696
    %v4698 = vpop.f32.mrb[0].mxu0
    %v4699 = vpop.f32.mrb[0].mxu0
    %v4700 = vadd.f32 0.0, %v4699
    %v4701 = vpop.f32.mrb[0].mxu0
    %4702 = vmatprep.mubr.bf16.mxu0 0
    %4703 = vmatmul.mubr.bf16.gmra.mrb[0].mxu0 %v4445
    %v4704 = vpop.f32.mrb[0].mxu0
    %v4705 = vadd.f32 0.0, %v4704
    %v4706 = vpop.f32.mrb[0].mxu0
    %v4707 = vpop.f32.mrb[0].mxu0
    %v4708 = vadd.f32 0.0, %v4707
    %v4709 = vpop.f32.mrb[0].mxu0
    %4710 = vmatprep.mubr.bf16.mxu0 0
    %4711 = vmatmul.mubr.bf16.gmra.mrb[0].mxu0 %v4448
    %v4712 = vpop.f32.mrb[0].mxu0
    %v4713 = vadd.f32 0.0, %v4712
    %v4714 = vpop.f32.mrb[0].mxu0
    %v4715 = vpop.f32.mrb[0].mxu0
    %v4716 = vadd.f32 0.0, %v4715
    %v4717 = vpop.f32.mrb[0].mxu0
    %4718 = vmatprep.mubr.bf16.mxu0 0
    %4719 = vmatmul.mubr.bf16.gmra.mrb[0].mxu0 %v4451
    %v4720 = vpop.f32.mrb[0].mxu0
    %v4721 = vadd.f32 0.0, %v4720
    %v4722 = vpop.f32.mrb[0].mxu0
    %v4723 = vpop.f32.mrb[0].mxu0
    %v4724 = vadd.f32 0.0, %v4723
    %v4725 = vpop.f32.mrb[0].mxu0
    %4726 = vmatprep.mubr.bf16.mxu0 0
    %4727 = vmatmul.mubr.bf16.gmra.mrb[0].mxu0 %v4454
    %v4728 = vpop.f32.mrb[0].mxu0
    %v4729 = vadd.f32 0.0, %v4728
    %v4730 = vpop.f32.mrb[0].mxu0
    %v4731 = vpop.f32.mrb[0].mxu0
    %v4732 = vadd.f32 0.0, %v4731
    %v4733 = vpop.f32.mrb[0].mxu0
    %4734 = vmatprep.mubr.bf16.mxu0 0
    %4735 = vmatmul.mubr.bf16.gmra.mrb[0].mxu0 %v4457
    %v4736 = vpop.f32.mrb[0].mxu0
    %v4737 = vadd.f32 0.0, %v4736
    %v4738 = vpop.f32.mrb[0].mxu0
    %v4739 = vpop.f32.mrb[0].mxu0
    %v4740 = vadd.f32 0.0, %v4739
    %v4741 = vpop.f32.mrb[0].mxu0
    %4742 = vmatprep.mubr.bf16.mxu0 0
    %4743 = vmatmul.mubr.bf16.gmra.mrb[0].mxu0 %v4460
    %v4744 = vpop.f32.mrb[0].mxu0
    %v4745 = vadd.f32 0.0, %v4744
    %v4746 = vpop.f32.mrb[0].mxu0
    %v4747 = vpop.f32.mrb[0].mxu0
    %v4748 = vadd.f32 0.0, %v4747
    %v4749 = vpop.f32.mrb[0].mxu0
    %4750 = vdwg.mxu0
    %v4751 = vadd.f32 %v3598, %v4497
    %v4752 = vadd.f32 %v3601, %v4500
    %v4753 = vadd.f32 %v3606, %v4505
    %v4754 = vadd.f32 %v3609, %v4508
    %v4755 = vadd.f32 %v3614, %v4513
    %v4756 = vadd.f32 %v3617, %v4516
    %v4757 = vadd.f32 %v3622, %v4521
    %v4758 = vadd.f32 %v3625, %v4524
    %v4759 = vadd.f32 %v3630, %v4529
    %v4760 = vadd.f32 %v3633, %v4532
    %v4761 = vadd.f32 %v3638, %v4537
    %v4762 = vadd.f32 %v3641, %v4540
    %v4763 = vadd.f32 %v3646, %v4545
    %v4764 = vadd.f32 %v3649, %v4548
    %v4765 = vadd.f32 %v3654, %v4553
    %v4766 = vadd.f32 %v3657, %v4556
    %v4767 = vadd.f32 %v3662, %v4561
    %v4768 = vadd.f32 %v3665, %v4564
    %v4769 = vadd.f32 %v3670, %v4569
    %v4770 = vadd.f32 %v3673, %v4572
    %v4771 = vadd.f32 %v3678, %v4577
    %v4772 = vadd.f32 %v3681, %v4580
    %v4773 = vadd.f32 %v3686, %v4585
    %v4774 = vadd.f32 %v3689, %v4588
    %v4775 = vadd.f32 %v3694, %v4593
    %v4776 = vadd.f32 %v3697, %v4596
    %v4777 = vadd.f32 %v3702, %v4601
    %v4778 = vadd.f32 %v3705, %v4604
    %v4779 = vadd.f32 %v3710, %v4609
    %v4780 = vadd.f32 %v3713, %v4612
    %v4781 = vadd.f32 %v3718, %v4617
    %v4782 = vadd.f32 %v3721, %v4620
    %v4783 = vadd.f32 %v3726, %v4625
    %v4784 = vadd.f32 %v3729, %v4628
    %v4785 = vadd.f32 %v3734, %v4633
    %v4786 = vadd.f32 %v3737, %v4636
    %v4787 = vadd.f32 %v3742, %v4641
    %v4788 = vadd.f32 %v3745, %v4644
    %v4789 = vadd.f32 %v3750, %v4649
    %v4790 = vadd.f32 %v3753, %v4652
    %v4791 = vadd.f32 %v3758, %v4657
    %v4792 = vadd.f32 %v3761, %v4660
    %v4793 = vadd.f32 %v3766, %v4665
    %v4794 = vadd.f32 %v3769, %v4668
    %v4795 = vadd.f32 %v3774, %v4673
    %v4796 = vadd.f32 %v3777, %v4676
    %v4797 = vadd.f32 %v3782, %v4681
    %v4798 = vadd.f32 %v3785, %v4684
    %v4799 = vadd.f32 %v3790, %v4689
    %v4800 = vadd.f32 %v3793, %v4692
    %v4801 = vadd.f32 %v3798, %v4697
    %v4802 = vadd.f32 %v3801, %v4700
    %v4803 = vadd.f32 %v3806, %v4705
    %v4804 = vadd.f32 %v3809, %v4708
    %v4805 = vadd.f32 %v3814, %v4713
    %v4806 = vadd.f32 %v3817, %v4716
    %v4807 = vadd.f32 %v3822, %v4721
    %v4808 = vadd.f32 %v3825, %v4724
    %v4809 = vadd.f32 %v3830, %v4729
    %v4810 = vadd.f32 %v3833, %v4732
    %v4811 = vadd.f32 %v3838, %v4737
    %v4812 = vadd.f32 %v3841, %v4740
    %v4813 = vadd.f32 %v3846, %v4745
    %v4814 = vadd.f32 %v3849, %v4748
    %4815 = vset.pattern.permute.xlu0 3
    %4816 = vperm.xlu0 %4815, %v2185
    %v4817 = vpop.permute.xlu0 %4816
    %4819 = vset.pattern.permute.xlu0 3
    %4820 = vperm.xlu0 %4819, %v2186
    %v4821 = vpop.permute.xlu0 %4820
    %4823 = vset.pattern.permute.xlu0 3
    %4824 = vperm.xlu0 %4823, %v2187
    %v4825 = vpop.permute.xlu0 %4824
    %4827 = vset.pattern.permute.xlu0 3
    %4828 = vperm.xlu0 %4827, %v2188
    %v4829 = vpop.permute.xlu0 %4828
    %4831 = vset.pattern.permute.xlu0 3
    %4832 = vperm.xlu0 %4831, %v2189
    %v4833 = vpop.permute.xlu0 %4832
    %4835 = vset.pattern.permute.xlu0 3
    %4836 = vperm.xlu0 %4835, %v2190
    %v4837 = vpop.permute.xlu0 %4836
    %4839 = vset.pattern.permute.xlu0 3
    %4840 = vperm.xlu0 %4839, %v2191
    %v4841 = vpop.permute.xlu0 %4840
    %4843 = vset.pattern.permute.xlu0 3
    %4844 = vperm.xlu0 %4843, %v2192
    %v4845 = vpop.permute.xlu0 %4844
    %4847 = vset.pattern.permute.xlu0 3
    %4848 = vperm.xlu0 %4847, %v2193
    %v4849 = vpop.permute.xlu0 %4848
    %4851 = vset.pattern.permute.xlu0 3
    %4852 = vperm.xlu0 %4851, %v2194
    %v4853 = vpop.permute.xlu0 %4852
    %4855 = vset.pattern.permute.xlu0 3
    %4856 = vperm.xlu0 %4855, %v2195
    %v4857 = vpop.permute.xlu0 %4856
    %4859 = vset.pattern.permute.xlu0 3
    %4860 = vperm.xlu0 %4859, %v2196
    %v4861 = vpop.permute.xlu0 %4860
    %4863 = vset.pattern.permute.xlu0 3
    %4864 = vperm.xlu0 %4863, %v2197
    %v4865 = vpop.permute.xlu0 %4864
    %4867 = vset.pattern.permute.xlu0 3
    %4868 = vperm.xlu0 %4867, %v2198
    %v4869 = vpop.permute.xlu0 %4868
    %4871 = vset.pattern.permute.xlu0 3
    %4872 = vperm.xlu0 %4871, %v2199
    %v4873 = vpop.permute.xlu0 %4872
    %4875 = vset.pattern.permute.xlu0 3
    %4876 = vperm.xlu0 %4875, %v2200
    %v4877 = vpop.permute.xlu0 %4876
    %4879 = vset.pattern.permute.xlu0 3
    %4880 = vperm.xlu0 %4879, %v2201
    %v4881 = vpop.permute.xlu0 %4880
    %4883 = vset.pattern.permute.xlu0 3
    %4884 = vperm.xlu0 %4883, %v2202
    %v4885 = vpop.permute.xlu0 %4884
    %4887 = vset.pattern.permute.xlu0 3
    %4888 = vperm.xlu0 %4887, %v2203
    %v4889 = vpop.permute.xlu0 %4888
    %4891 = vset.pattern.permute.xlu0 3
    %4892 = vperm.xlu0 %4891, %v2204
    %v4893 = vpop.permute.xlu0 %4892
    %4895 = vset.pattern.permute.xlu0 3
    %4896 = vperm.xlu0 %4895, %v2205
    %v4897 = vpop.permute.xlu0 %4896
    %4899 = vset.pattern.permute.xlu0 3
    %4900 = vperm.xlu0 %4899, %v2206
    %v4901 = vpop.permute.xlu0 %4900
    %4903 = vset.pattern.permute.xlu0 3
    %4904 = vperm.xlu0 %4903, %v2207
    %v4905 = vpop.permute.xlu0 %4904
    %4907 = vset.pattern.permute.xlu0 3
    %4908 = vperm.xlu0 %4907, %v2208
    %v4909 = vpop.permute.xlu0 %4908
    %4911 = vset.pattern.permute.xlu0 3
    %4912 = vperm.xlu0 %4911, %v2209
    %v4913 = vpop.permute.xlu0 %4912
    %4915 = vset.pattern.permute.xlu0 3
    %4916 = vperm.xlu0 %4915, %v2210
    %v4917 = vpop.permute.xlu0 %4916
    %4919 = vset.pattern.permute.xlu0 3
    %4920 = vperm.xlu0 %4919, %v2211
    %v4921 = vpop.permute.xlu0 %4920
    %4923 = vset.pattern.permute.xlu0 3
    %4924 = vperm.xlu0 %4923, %v2212
    %v4925 = vpop.permute.xlu0 %4924
    %4927 = vset.pattern.permute.xlu0 3
    %4928 = vperm.xlu0 %4927, %v2213
    %v4929 = vpop.permute.xlu0 %4928
    %4931 = vset.pattern.permute.xlu0 3
    %4932 = vperm.xlu0 %4931, %v2214
    %v4933 = vpop.permute.xlu0 %4932
    %4935 = vset.pattern.permute.xlu0 3
    %4936 = vperm.xlu0 %4935, %v2215
    %v4937 = vpop.permute.xlu0 %4936
    %4939 = vset.pattern.permute.xlu0 3
    %4940 = vperm.xlu0 %4939, %v2216
    %v4941 = vpop.permute.xlu0 %4940
    %4943 = vset.pattern.permute.xlu0 3
    %4944 = vperm.xlu0 %4943, %v2217
    %v4945 = vpop.permute.xlu0 %4944
    %4947 = vset.pattern.permute.xlu0 3
    %4948 = vperm.xlu0 %4947, %v2218
    %v4949 = vpop.permute.xlu0 %4948
    %4951 = vset.pattern.permute.xlu0 3
    %4952 = vperm.xlu0 %4951, %v2219
    %v4953 = vpop.permute.xlu0 %4952
    %4955 = vset.pattern.permute.xlu0 3
    %4956 = vperm.xlu0 %4955, %v2220
    %v4957 = vpop.permute.xlu0 %4956
    %4959 = vset.pattern.permute.xlu0 3
    %4960 = vperm.xlu0 %4959, %v2221
    %v4961 = vpop.permute.xlu0 %4960
    %4963 = vset.pattern.permute.xlu0 3
    %4964 = vperm.xlu0 %4963, %v2222
    %v4965 = vpop.permute.xlu0 %4964
    %4967 = vset.pattern.permute.xlu0 3
    %4968 = vperm.xlu0 %4967, %v2223
    %v4969 = vpop.permute.xlu0 %4968
    %4971 = vset.pattern.permute.xlu0 3
    %4972 = vperm.xlu0 %4971, %v2224
    %v4973 = vpop.permute.xlu0 %4972
    %4975 = vset.pattern.permute.xlu0 3
    %4976 = vperm.xlu0 %4975, %v2225
    %v4977 = vpop.permute.xlu0 %4976
    %4979 = vset.pattern.permute.xlu0 3
    %4980 = vperm.xlu0 %4979, %v2226
    %v4981 = vpop.permute.xlu0 %4980
    %4983 = vset.pattern.permute.xlu0 3
    %4984 = vperm.xlu0 %4983, %v2227
    %v4985 = vpop.permute.xlu0 %4984
    %4987 = vset.pattern.permute.xlu0 3
    %4988 = vperm.xlu0 %4987, %v2228
    %v4989 = vpop.permute.xlu0 %4988
    %4991 = vset.pattern.permute.xlu0 3
    %4992 = vperm.xlu0 %4991, %v2229
    %v4993 = vpop.permute.xlu0 %4992
    %4995 = vset.pattern.permute.xlu0 3
    %4996 = vperm.xlu0 %4995, %v2230
    %v4997 = vpop.permute.xlu0 %4996
    %4999 = vset.pattern.permute.xlu0 3
    %5000 = vperm.xlu0 %4999, %v2231
    %v5001 = vpop.permute.xlu0 %5000
    %5003 = vset.pattern.permute.xlu0 3
    %5004 = vperm.xlu0 %5003, %v2232
    %v5005 = vpop.permute.xlu0 %5004
    %5007 = vset.pattern.permute.xlu0 3
    %5008 = vperm.xlu0 %5007, %v2233
    %v5009 = vpop.permute.xlu0 %5008
    %5011 = vset.pattern.permute.xlu0 3
    %5012 = vperm.xlu0 %5011, %v2234
    %v5013 = vpop.permute.xlu0 %5012
    %5015 = vset.pattern.permute.xlu0 3
    %5016 = vperm.xlu0 %5015, %v2235
    %v5017 = vpop.permute.xlu0 %5016
    %5019 = vset.pattern.permute.xlu0 3
    %5020 = vperm.xlu0 %5019, %v2236
    %v5021 = vpop.permute.xlu0 %5020
    %5023 = vset.pattern.permute.xlu0 3
    %5024 = vperm.xlu0 %5023, %v2237
    %v5025 = vpop.permute.xlu0 %5024
    %5027 = vset.pattern.permute.xlu0 3
    %5028 = vperm.xlu0 %5027, %v2238
    %v5029 = vpop.permute.xlu0 %5028
    %5031 = vset.pattern.permute.xlu0 3
    %5032 = vperm.xlu0 %5031, %v2239
    %v5033 = vpop.permute.xlu0 %5032
    %5035 = vset.pattern.permute.xlu0 3
    %5036 = vperm.xlu0 %5035, %v2240
    %v5037 = vpop.permute.xlu0 %5036
    %5039 = vset.pattern.permute.xlu0 3
    %5040 = vperm.xlu0 %5039, %v2241
    %v5041 = vpop.permute.xlu0 %5040
    %5043 = vset.pattern.permute.xlu0 3
    %5044 = vperm.xlu0 %5043, %v2242
    %v5045 = vpop.permute.xlu0 %5044
    %5047 = vset.pattern.permute.xlu0 3
    %5048 = vperm.xlu0 %5047, %v2243
    %v5049 = vpop.permute.xlu0 %5048
    %5051 = vset.pattern.permute.xlu0 3
    %5052 = vperm.xlu0 %5051, %v2244
    %v5053 = vpop.permute.xlu0 %5052
    %5055 = vset.pattern.permute.xlu0 3
    %5056 = vperm.xlu0 %5055, %v2245
    %v5057 = vpop.permute.xlu0 %5056
    %5059 = vset.pattern.permute.xlu0 3
    %5060 = vperm.xlu0 %5059, %v2246
    %v5061 = vpop.permute.xlu0 %5060
    %5063 = vset.pattern.permute.xlu0 3
    %5064 = vperm.xlu0 %5063, %v2247
    %v5065 = vpop.permute.xlu0 %5064
    %5067 = vset.pattern.permute.xlu0 3
    %5068 = vperm.xlu0 %5067, %v2248
    %v5069 = vpop.permute.xlu0 %5068
    %v5071 = vmul.f32 %v2184, %v4817
    %v5072 = vmul.f32 %v2183, %v4821
    %v5073 = vmul.f32 %v2182, %v4825
    %v5074 = vmul.f32 %v2181, %v4829
    %v5075 = vmul.f32 %v2180, %v4833
    %v5076 = vmul.f32 %v2179, %v4837
    %v5077 = vmul.f32 %v2178, %v4841
    %v5078 = vmul.f32 %v2177, %v4845
    %v5079 = vmul.f32 %v2176, %v4849
    %v5080 = vmul.f32 %v2175, %v4853
    %v5081 = vmul.f32 %v2174, %v4857
    %v5082 = vmul.f32 %v2173, %v4861
    %v5083 = vmul.f32 %v2172, %v4865
    %v5084 = vmul.f32 %v2171, %v4869
    %v5085 = vmul.f32 %v2170, %v4873
    %v5086 = vmul.f32 %v2169, %v4877
    %v5087 = vmul.f32 %v2168, %v4881
    %v5088 = vmul.f32 %v2167, %v4885
    %v5089 = vmul.f32 %v2166, %v4889
    %v5090 = vmul.f32 %v2165, %v4893
    %v5091 = vmul.f32 %v2164, %v4897
    %v5092 = vmul.f32 %v2163, %v4901
    %v5093 = vmul.f32 %v2162, %v4905
    %v5094 = vmul.f32 %v2161, %v4909
    %v5095 = vmul.f32 %v2160, %v4913
    %v5096 = vmul.f32 %v2159, %v4917
    %v5097 = vmul.f32 %v2158, %v4921
    %v5098 = vmul.f32 %v2157, %v4925
    %v5099 = vmul.f32 %v2156, %v4929
    %v5100 = vmul.f32 %v2155, %v4933
    %v5101 = vmul.f32 %v2154, %v4937
    %v5102 = vmul.f32 %v2153, %v4941
    %v5103 = vmul.f32 %v2152, %v4945
    %v5104 = vmul.f32 %v2151, %v4949
    %v5105 = vmul.f32 %v2150, %v4953
    %v5106 = vmul.f32 %v2149, %v4957
    %v5107 = vmul.f32 %v2148, %v4961
    %v5108 = vmul.f32 %v2147, %v4965
    %v5109 = vmul.f32 %v2146, %v4969
    %v5110 = vmul.f32 %v2145, %v4973
    %v5111 = vmul.f32 %v2144, %v4977
    %v5112 = vmul.f32 %v2143, %v4981
    %v5113 = vmul.f32 %v2142, %v4985
    %v5114 = vmul.f32 %v2141, %v4989
    %v5115 = vmul.f32 %v2140, %v4993
    %v5116 = vmul.f32 %v2139, %v4997
    %v5117 = vmul.f32 %v2138, %v5001
    %v5118 = vmul.f32 %v2137, %v5005
    %v5119 = vmul.f32 %v2136, %v5009
    %v5120 = vmul.f32 %v2135, %v5013
    %v5121 = vmul.f32 %v2134, %v5017
    %v5122 = vmul.f32 %v2133, %v5021
    %v5123 = vmul.f32 %v2132, %v5025
    %v5124 = vmul.f32 %v2131, %v5029
    %v5125 = vmul.f32 %v2130, %v5033
    %v5126 = vmul.f32 %v2129, %v5037
    %v5127 = vmul.f32 %v2128, %v5041
    %v5128 = vmul.f32 %v2127, %v5045
    %v5129 = vmul.f32 %v2126, %v5049
    %v5130 = vmul.f32 %v2125, %v5053
    %v5131 = vmul.f32 %v2124, %v5057
    %v5132 = vmul.f32 %v2123, %v5061
    %v5133 = vmul.f32 %v2122, %v5065
    %v5134 = vmul.f32 %v2121, %v5069
    %v5135 = vpack.c.bf16 %v5072, %v5071
    %v5136 = vpack.c.bf16 %v5074, %v5073
    %v5137 = vpack.c.bf16 %v5076, %v5075
    %v5138 = vpack.c.bf16 %v5078, %v5077
    %v5139 = vpack.c.bf16 %v5080, %v5079
    %v5140 = vpack.c.bf16 %v5082, %v5081
    %v5141 = vpack.c.bf16 %v5084, %v5083
    %v5142 = vpack.c.bf16 %v5086, %v5085
    %v5143 = vpack.c.bf16 %v5088, %v5087
    %v5144 = vpack.c.bf16 %v5090, %v5089
    %v5145 = vpack.c.bf16 %v5092, %v5091
    %v5146 = vpack.c.bf16 %v5094, %v5093
    %v5147 = vpack.c.bf16 %v5096, %v5095
    %v5148 = vpack.c.bf16 %v5098, %v5097
    %v5149 = vpack.c.bf16 %v5100, %v5099
    %v5150 = vpack.c.bf16 %v5102, %v5101
    %v5151 = vpack.c.bf16 %v5104, %v5103
    %v5152 = vpack.c.bf16 %v5106, %v5105
    %v5153 = vpack.c.bf16 %v5108, %v5107
    %v5154 = vpack.c.bf16 %v5110, %v5109
    %v5155 = vpack.c.bf16 %v5112, %v5111
    %v5156 = vpack.c.bf16 %v5114, %v5113
    %v5157 = vpack.c.bf16 %v5116, %v5115
    %v5158 = vpack.c.bf16 %v5118, %v5117
    %v5159 = vpack.c.bf16 %v5120, %v5119
    %v5160 = vpack.c.bf16 %v5122, %v5121
    %v5161 = vpack.c.bf16 %v5124, %v5123
    %v5162 = vpack.c.bf16 %v5126, %v5125
    %v5163 = vpack.c.bf16 %v5128, %v5127
    %v5164 = vpack.c.bf16 %v5130, %v5129
    %v5165 = vpack.c.bf16 %v5132, %v5131
    %v5166 = vpack.c.bf16 %v5134, %v5133
    %s5167 = scalar_lea.vmem %s8, 96
    %v5168 = vld [vmem:[%s5167] sm:$0xf]
    %v5169 = vld [vmem:[%s5167 + $0x4] sm:$0xf]
    %v5170 = vld [vmem:[%s5167 + $0x8] sm:$0xf]
    %v5171 = vld [vmem:[%s5167 + $0xc] sm:$0xf]
    %v5172 = vld [vmem:[%s5167 + $0x10] sm:$0xf]
    %v5173 = vld [vmem:[%s5167 + $0x14] sm:$0xf]
    %v5174 = vld [vmem:[%s5167 + $0x18] sm:$0xf]
    %v5175 = vld [vmem:[%s5167 + $0x1c] sm:$0xf]
    %v5184 = vunpack.c.l.b16 %v5168
    %v5185 = vunpack.c.l.b16 %v5169
    %v5186 = vunpack.c.l.b16 %v5170
    %v5187 = vunpack.c.l.b16 %v5171
    %v5188 = vunpack.c.l.b16 %v5172
    %v5189 = vunpack.c.l.b16 %v5173
    %v5190 = vunpack.c.l.b16 %v5174
    %v5191 = vunpack.c.l.b16 %v5175
    %v5192 = vpack.c.b16 %v5185, %v5184
    %v5193 = vpack.c.b16 %v5187, %v5186
    %v5194 = vpack.c.b16 %v5189, %v5188
    %v5195 = vpack.c.b16 %v5191, %v5190
    %v5201 = vsel %vm368, %v5135, 0
    %v5204 = vsel %vm368, %v5136, 0
    %v5207 = vsel %vm368, %v5137, 0
    %v5210 = vsel %vm368, %v5138, 0
    %v5213 = vsel %vm368, %v5139, 0
    %v5216 = vsel %vm368, %v5140, 0
    %v5219 = vsel %vm368, %v5141, 0
    %v5222 = vsel %vm368, %v5142, 0
    %v5225 = vsel %vm368, %v5143, 0
    %v5228 = vsel %vm368, %v5144, 0
    %v5231 = vsel %vm368, %v5145, 0
    %v5234 = vsel %vm368, %v5146, 0
    %v5237 = vsel %vm368, %v5147, 0
    %v5240 = vsel %vm368, %v5148, 0
    %v5243 = vsel %vm368, %v5149, 0
    %v5246 = vsel %vm368, %v5150, 0
    %v5249 = vsel %vm368, %v5151, 0
    %v5252 = vsel %vm368, %v5152, 0
    %v5255 = vsel %vm368, %v5153, 0
    %v5258 = vsel %vm368, %v5154, 0
    %v5261 = vsel %vm368, %v5155, 0
    %v5264 = vsel %vm368, %v5156, 0
    %v5267 = vsel %vm368, %v5157, 0
    %v5270 = vsel %vm368, %v5158, 0
    %v5273 = vsel %vm368, %v5159, 0
    %v5276 = vsel %vm368, %v5160, 0
    %v5279 = vsel %vm368, %v5161, 0
    %v5282 = vsel %vm368, %v5162, 0
    %v5285 = vsel %vm368, %v5163, 0
    %v5288 = vsel %vm368, %v5164, 0
    %v5291 = vsel %vm368, %v5165, 0
    %v5294 = vsel %vm368, %v5166, 0
    %5296 = vmatprep.subr.bf16.mxu0 0
    %5297 = vmatpush1.bf16.msra.mxu0 %v5192
    %5298 = vmatprep.subr.bf16.mxu0 0
    %5299 = vmatpush1.bf16.msra.mxu0 %v5193
    %5300 = vmatprep.subr.bf16.mxu0 0
    %5301 = vmatpush1.bf16.msra.mxu0 %v5194
    %5302 = vmatprep.subr.bf16.mxu0 0
    %5303 = vmatpush1.bf16.msra.mxu0 %v5195
    %5304 = vmatprep.subr.bf16.mxu0 0
    %5305 = vmatpush1.bf16.msra.mxu0 0
    %5306 = vmatprep.subr.bf16.mxu0 0
    %5307 = vmatpush1.bf16.msra.mxu0 0
    %5308 = vmatprep.subr.bf16.mxu0 0
    %5309 = vmatpush1.bf16.msra.mxu0 0
    %5310 = vmatprep.subr.bf16.mxu0 0
    %5311 = vmatpush1.bf16.msra.mxu0 0
    %5312 = vmatprep.subr.bf16.mxu0 0
    %5313 = vmatpush1.bf16.msra.mxu0 0
    %5314 = vmatprep.subr.bf16.mxu0 0
    %5315 = vmatpush1.bf16.msra.mxu0 0
    %5316 = vmatprep.subr.bf16.mxu0 0
    %5317 = vmatpush1.bf16.msra.mxu0 0
    %5318 = vmatprep.subr.bf16.mxu0 0
    %5319 = vmatpush1.bf16.msra.mxu0 0
    %5320 = vmatprep.subr.bf16.mxu0 0
    %5321 = vmatpush1.bf16.msra.mxu0 0
    %5322 = vmatprep.subr.bf16.mxu0 0
    %5323 = vmatpush1.bf16.msra.mxu0 0
    %5324 = vmatprep.subr.bf16.mxu0 0
    %5325 = vmatpush1.bf16.msra.mxu0 0
    %5326 = vmatprep.subr.bf16.mxu0 0
    %5327 = vmatpush1.bf16.msra.mxu0 0
    %5328 = vmatprep.mubr.bf16.mxu0 0
    %5329 = vmatmul.mubr.bf16.gmra.mrb[0].mxu0 %v5201
    %v5330 = vpop.f32.mrb[0].mxu0
    %v5331 = vadd.f32 0.0, %v5330
    %v5332 = vpop.f32.mrb[0].mxu0
    %v5333 = vpop.f32.mrb[0].mxu0
    %v5334 = vadd.f32 0.0, %v5333
    %v5335 = vpop.f32.mrb[0].mxu0
    %5336 = vmatprep.mubr.bf16.mxu0 0
    %5337 = vmatmul.mubr.bf16.gmra.mrb[0].mxu0 %v5204
    %v5338 = vpop.f32.mrb[0].mxu0
    %v5339 = vadd.f32 0.0, %v5338
    %v5340 = vpop.f32.mrb[0].mxu0
    %v5341 = vpop.f32.mrb[0].mxu0
    %v5342 = vadd.f32 0.0, %v5341
    %v5343 = vpop.f32.mrb[0].mxu0
    %5344 = vmatprep.mubr.bf16.mxu0 0
    %5345 = vmatmul.mubr.bf16.gmra.mrb[0].mxu0 %v5207
    %v5346 = vpop.f32.mrb[0].mxu0
    %v5347 = vadd.f32 0.0, %v5346
    %v5348 = vpop.f32.mrb[0].mxu0
    %v5349 = vpop.f32.mrb[0].mxu0
    %v5350 = vadd.f32 0.0, %v5349
    %v5351 = vpop.f32.mrb[0].mxu0
    %5352 = vmatprep.mubr.bf16.mxu0 0
    %5353 = vmatmul.mubr.bf16.gmra.mrb[0].mxu0 %v5210
    %v5354 = vpop.f32.mrb[0].mxu0
    %v5355 = vadd.f32 0.0, %v5354
    %v5356 = vpop.f32.mrb[0].mxu0
    %v5357 = vpop.f32.mrb[0].mxu0
    %v5358 = vadd.f32 0.0, %v5357
    %v5359 = vpop.f32.mrb[0].mxu0
    %5360 = vmatprep.mubr.bf16.mxu0 0
    %5361 = vmatmul.mubr.bf16.gmra.mrb[0].mxu0 %v5213
    %v5362 = vpop.f32.mrb[0].mxu0
    %v5363 = vadd.f32 0.0, %v5362
    %v5364 = vpop.f32.mrb[0].mxu0
    %v5365 = vpop.f32.mrb[0].mxu0
    %v5366 = vadd.f32 0.0, %v5365
    %v5367 = vpop.f32.mrb[0].mxu0
    %5368 = vmatprep.mubr.bf16.mxu0 0
    %5369 = vmatmul.mubr.bf16.gmra.mrb[0].mxu0 %v5216
    %v5370 = vpop.f32.mrb[0].mxu0
    %v5371 = vadd.f32 0.0, %v5370
    %v5372 = vpop.f32.mrb[0].mxu0
    %v5373 = vpop.f32.mrb[0].mxu0
    %v5374 = vadd.f32 0.0, %v5373
    %v5375 = vpop.f32.mrb[0].mxu0
    %5376 = vmatprep.mubr.bf16.mxu0 0
    %5377 = vmatmul.mubr.bf16.gmra.mrb[0].mxu0 %v5219
    %v5378 = vpop.f32.mrb[0].mxu0
    %v5379 = vadd.f32 0.0, %v5378
    %v5380 = vpop.f32.mrb[0].mxu0
    %v5381 = vpop.f32.mrb[0].mxu0
    %v5382 = vadd.f32 0.0, %v5381
    %v5383 = vpop.f32.mrb[0].mxu0
    %5384 = vmatprep.mubr.bf16.mxu0 0
    %5385 = vmatmul.mubr.bf16.gmra.mrb[0].mxu0 %v5222
    %v5386 = vpop.f32.mrb[0].mxu0
    %v5387 = vadd.f32 0.0, %v5386
    %v5388 = vpop.f32.mrb[0].mxu0
    %v5389 = vpop.f32.mrb[0].mxu0
    %v5390 = vadd.f32 0.0, %v5389
    %v5391 = vpop.f32.mrb[0].mxu0
    %5392 = vmatprep.mubr.bf16.mxu0 0
    %5393 = vmatmul.mubr.bf16.gmra.mrb[0].mxu0 %v5225
    %v5394 = vpop.f32.mrb[0].mxu0
    %v5395 = vadd.f32 0.0, %v5394
    %v5396 = vpop.f32.mrb[0].mxu0
    %v5397 = vpop.f32.mrb[0].mxu0
    %v5398 = vadd.f32 0.0, %v5397
    %v5399 = vpop.f32.mrb[0].mxu0
    %5400 = vmatprep.mubr.bf16.mxu0 0
    %5401 = vmatmul.mubr.bf16.gmra.mrb[0].mxu0 %v5228
    %v5402 = vpop.f32.mrb[0].mxu0
    %v5403 = vadd.f32 0.0, %v5402
    %v5404 = vpop.f32.mrb[0].mxu0
    %v5405 = vpop.f32.mrb[0].mxu0
    %v5406 = vadd.f32 0.0, %v5405
    %v5407 = vpop.f32.mrb[0].mxu0
    %5408 = vmatprep.mubr.bf16.mxu0 0
    %5409 = vmatmul.mubr.bf16.gmra.mrb[0].mxu0 %v5231
    %v5410 = vpop.f32.mrb[0].mxu0
    %v5411 = vadd.f32 0.0, %v5410
    %v5412 = vpop.f32.mrb[0].mxu0
    %v5413 = vpop.f32.mrb[0].mxu0
    %v5414 = vadd.f32 0.0, %v5413
    %v5415 = vpop.f32.mrb[0].mxu0
    %5416 = vmatprep.mubr.bf16.mxu0 0
    %5417 = vmatmul.mubr.bf16.gmra.mrb[0].mxu0 %v5234
    %v5418 = vpop.f32.mrb[0].mxu0
    %v5419 = vadd.f32 0.0, %v5418
    %v5420 = vpop.f32.mrb[0].mxu0
    %v5421 = vpop.f32.mrb[0].mxu0
    %v5422 = vadd.f32 0.0, %v5421
    %v5423 = vpop.f32.mrb[0].mxu0
    %5424 = vmatprep.mubr.bf16.mxu0 0
    %5425 = vmatmul.mubr.bf16.gmra.mrb[0].mxu0 %v5237
    %v5426 = vpop.f32.mrb[0].mxu0
    %v5427 = vadd.f32 0.0, %v5426
    %v5428 = vpop.f32.mrb[0].mxu0
    %v5429 = vpop.f32.mrb[0].mxu0
    %v5430 = vadd.f32 0.0, %v5429
    %v5431 = vpop.f32.mrb[0].mxu0
    %5432 = vmatprep.mubr.bf16.mxu0 0
    %5433 = vmatmul.mubr.bf16.gmra.mrb[0].mxu0 %v5240
    %v5434 = vpop.f32.mrb[0].mxu0
    %v5435 = vadd.f32 0.0, %v5434
    %v5436 = vpop.f32.mrb[0].mxu0
    %v5437 = vpop.f32.mrb[0].mxu0
    %v5438 = vadd.f32 0.0, %v5437
    %v5439 = vpop.f32.mrb[0].mxu0
    %5440 = vmatprep.mubr.bf16.mxu0 0
    %5441 = vmatmul.mubr.bf16.gmra.mrb[0].mxu0 %v5243
    %v5442 = vpop.f32.mrb[0].mxu0
    %v5443 = vadd.f32 0.0, %v5442
    %v5444 = vpop.f32.mrb[0].mxu0
    %v5445 = vpop.f32.mrb[0].mxu0
    %v5446 = vadd.f32 0.0, %v5445
    %v5447 = vpop.f32.mrb[0].mxu0
    %5448 = vmatprep.mubr.bf16.mxu0 0
    %5449 = vmatmul.mubr.bf16.gmra.mrb[0].mxu0 %v5246
    %v5450 = vpop.f32.mrb[0].mxu0
    %v5451 = vadd.f32 0.0, %v5450
    %v5452 = vpop.f32.mrb[0].mxu0
    %v5453 = vpop.f32.mrb[0].mxu0
    %v5454 = vadd.f32 0.0, %v5453
    %v5455 = vpop.f32.mrb[0].mxu0
    %5456 = vmatprep.mubr.bf16.mxu0 0
    %5457 = vmatmul.mubr.bf16.gmra.mrb[0].mxu0 %v5249
    %v5458 = vpop.f32.mrb[0].mxu0
    %v5459 = vadd.f32 0.0, %v5458
    %v5460 = vpop.f32.mrb[0].mxu0
    %v5461 = vpop.f32.mrb[0].mxu0
    %v5462 = vadd.f32 0.0, %v5461
    %v5463 = vpop.f32.mrb[0].mxu0
    %5464 = vmatprep.mubr.bf16.mxu0 0
    %5465 = vmatmul.mubr.bf16.gmra.mrb[0].mxu0 %v5252
    %v5466 = vpop.f32.mrb[0].mxu0
    %v5467 = vadd.f32 0.0, %v5466
    %v5468 = vpop.f32.mrb[0].mxu0
    %v5469 = vpop.f32.mrb[0].mxu0
    %v5470 = vadd.f32 0.0, %v5469
    %v5471 = vpop.f32.mrb[0].mxu0
    %5472 = vmatprep.mubr.bf16.mxu0 0
    %5473 = vmatmul.mubr.bf16.gmra.mrb[0].mxu0 %v5255
    %v5474 = vpop.f32.mrb[0].mxu0
    %v5475 = vadd.f32 0.0, %v5474
    %v5476 = vpop.f32.mrb[0].mxu0
    %v5477 = vpop.f32.mrb[0].mxu0
    %v5478 = vadd.f32 0.0, %v5477
    %v5479 = vpop.f32.mrb[0].mxu0
    %5480 = vmatprep.mubr.bf16.mxu0 0
    %5481 = vmatmul.mubr.bf16.gmra.mrb[0].mxu0 %v5258
    %v5482 = vpop.f32.mrb[0].mxu0
    %v5483 = vadd.f32 0.0, %v5482
    %v5484 = vpop.f32.mrb[0].mxu0
    %v5485 = vpop.f32.mrb[0].mxu0
    %v5486 = vadd.f32 0.0, %v5485
    %v5487 = vpop.f32.mrb[0].mxu0
    %5488 = vmatprep.mubr.bf16.mxu0 0
    %5489 = vmatmul.mubr.bf16.gmra.mrb[0].mxu0 %v5261
    %v5490 = vpop.f32.mrb[0].mxu0
    %v5491 = vadd.f32 0.0, %v5490
    %v5492 = vpop.f32.mrb[0].mxu0
    %v5493 = vpop.f32.mrb[0].mxu0
    %v5494 = vadd.f32 0.0, %v5493
    %v5495 = vpop.f32.mrb[0].mxu0
    %5496 = vmatprep.mubr.bf16.mxu0 0
    %5497 = vmatmul.mubr.bf16.gmra.mrb[0].mxu0 %v5264
    %v5498 = vpop.f32.mrb[0].mxu0
    %v5499 = vadd.f32 0.0, %v5498
    %v5500 = vpop.f32.mrb[0].mxu0
    %v5501 = vpop.f32.mrb[0].mxu0
    %v5502 = vadd.f32 0.0, %v5501
    %v5503 = vpop.f32.mrb[0].mxu0
    %5504 = vmatprep.mubr.bf16.mxu0 0
    %5505 = vmatmul.mubr.bf16.gmra.mrb[0].mxu0 %v5267
    %v5506 = vpop.f32.mrb[0].mxu0
    %v5507 = vadd.f32 0.0, %v5506
    %v5508 = vpop.f32.mrb[0].mxu0
    %v5509 = vpop.f32.mrb[0].mxu0
    %v5510 = vadd.f32 0.0, %v5509
    %v5511 = vpop.f32.mrb[0].mxu0
    %5512 = vmatprep.mubr.bf16.mxu0 0
    %5513 = vmatmul.mubr.bf16.gmra.mrb[0].mxu0 %v5270
    %v5514 = vpop.f32.mrb[0].mxu0
    %v5515 = vadd.f32 0.0, %v5514
    %v5516 = vpop.f32.mrb[0].mxu0
    %v5517 = vpop.f32.mrb[0].mxu0
    %v5518 = vadd.f32 0.0, %v5517
    %v5519 = vpop.f32.mrb[0].mxu0
    %5520 = vmatprep.mubr.bf16.mxu0 0
    %5521 = vmatmul.mubr.bf16.gmra.mrb[0].mxu0 %v5273
    %v5522 = vpop.f32.mrb[0].mxu0
    %v5523 = vadd.f32 0.0, %v5522
    %v5524 = vpop.f32.mrb[0].mxu0
    %v5525 = vpop.f32.mrb[0].mxu0
    %v5526 = vadd.f32 0.0, %v5525
    %v5527 = vpop.f32.mrb[0].mxu0
    %5528 = vmatprep.mubr.bf16.mxu0 0
    %5529 = vmatmul.mubr.bf16.gmra.mrb[0].mxu0 %v5276
    %v5530 = vpop.f32.mrb[0].mxu0
    %v5531 = vadd.f32 0.0, %v5530
    %v5532 = vpop.f32.mrb[0].mxu0
    %v5533 = vpop.f32.mrb[0].mxu0
    %v5534 = vadd.f32 0.0, %v5533
    %v5535 = vpop.f32.mrb[0].mxu0
    %5536 = vmatprep.mubr.bf16.mxu0 0
    %5537 = vmatmul.mubr.bf16.gmra.mrb[0].mxu0 %v5279
    %v5538 = vpop.f32.mrb[0].mxu0
    %v5539 = vadd.f32 0.0, %v5538
    %v5540 = vpop.f32.mrb[0].mxu0
    %v5541 = vpop.f32.mrb[0].mxu0
    %v5542 = vadd.f32 0.0, %v5541
    %v5543 = vpop.f32.mrb[0].mxu0
    %5544 = vmatprep.mubr.bf16.mxu0 0
    %5545 = vmatmul.mubr.bf16.gmra.mrb[0].mxu0 %v5282
    %v5546 = vpop.f32.mrb[0].mxu0
    %v5547 = vadd.f32 0.0, %v5546
    %v5548 = vpop.f32.mrb[0].mxu0
    %v5549 = vpop.f32.mrb[0].mxu0
    %v5550 = vadd.f32 0.0, %v5549
    %v5551 = vpop.f32.mrb[0].mxu0
    %5552 = vmatprep.mubr.bf16.mxu0 0
    %5553 = vmatmul.mubr.bf16.gmra.mrb[0].mxu0 %v5285
    %v5554 = vpop.f32.mrb[0].mxu0
    %v5555 = vadd.f32 0.0, %v5554
    %v5556 = vpop.f32.mrb[0].mxu0
    %v5557 = vpop.f32.mrb[0].mxu0
    %v5558 = vadd.f32 0.0, %v5557
    %v5559 = vpop.f32.mrb[0].mxu0
    %5560 = vmatprep.mubr.bf16.mxu0 0
    %5561 = vmatmul.mubr.bf16.gmra.mrb[0].mxu0 %v5288
    %v5562 = vpop.f32.mrb[0].mxu0
    %v5563 = vadd.f32 0.0, %v5562
    %v5564 = vpop.f32.mrb[0].mxu0
    %v5565 = vpop.f32.mrb[0].mxu0
    %v5566 = vadd.f32 0.0, %v5565
    %v5567 = vpop.f32.mrb[0].mxu0
    %5568 = vmatprep.mubr.bf16.mxu0 0
    %5569 = vmatmul.mubr.bf16.gmra.mrb[0].mxu0 %v5291
    %v5570 = vpop.f32.mrb[0].mxu0
    %v5571 = vadd.f32 0.0, %v5570
    %v5572 = vpop.f32.mrb[0].mxu0
    %v5573 = vpop.f32.mrb[0].mxu0
    %v5574 = vadd.f32 0.0, %v5573
    %v5575 = vpop.f32.mrb[0].mxu0
    %5576 = vmatprep.mubr.bf16.mxu0 0
    %5577 = vmatmul.mubr.bf16.gmra.mrb[0].mxu0 %v5294
    %v5578 = vpop.f32.mrb[0].mxu0
    %v5579 = vadd.f32 0.0, %v5578
    %v5580 = vpop.f32.mrb[0].mxu0
    %v5581 = vpop.f32.mrb[0].mxu0
    %v5582 = vadd.f32 0.0, %v5581
    %v5583 = vpop.f32.mrb[0].mxu0
    %5584 = vdwg.mxu0
    %v5585 = vadd.f32 %v4751, %v5331
    %v5586 = vadd.f32 %v4752, %v5334
    %v5587 = vadd.f32 %v4753, %v5339
    %v5588 = vadd.f32 %v4754, %v5342
    %v5589 = vadd.f32 %v4755, %v5347
    %v5590 = vadd.f32 %v4756, %v5350
    %v5591 = vadd.f32 %v4757, %v5355
    %v5592 = vadd.f32 %v4758, %v5358
    %v5593 = vadd.f32 %v4759, %v5363
    %v5594 = vadd.f32 %v4760, %v5366
    %v5595 = vadd.f32 %v4761, %v5371
    %v5596 = vadd.f32 %v4762, %v5374
    %v5597 = vadd.f32 %v4763, %v5379
    %v5598 = vadd.f32 %v4764, %v5382
    %v5599 = vadd.f32 %v4765, %v5387
    %v5600 = vadd.f32 %v4766, %v5390
    %v5601 = vadd.f32 %v4767, %v5395
    %v5602 = vadd.f32 %v4768, %v5398
    %v5603 = vadd.f32 %v4769, %v5403
    %v5604 = vadd.f32 %v4770, %v5406
    %v5605 = vadd.f32 %v4771, %v5411
    %v5606 = vadd.f32 %v4772, %v5414
    %v5607 = vadd.f32 %v4773, %v5419
    %v5608 = vadd.f32 %v4774, %v5422
    %v5609 = vadd.f32 %v4775, %v5427
    %v5610 = vadd.f32 %v4776, %v5430
    %v5611 = vadd.f32 %v4777, %v5435
    %v5612 = vadd.f32 %v4778, %v5438
    %v5613 = vadd.f32 %v4779, %v5443
    %v5614 = vadd.f32 %v4780, %v5446
    %v5615 = vadd.f32 %v4781, %v5451
    %v5616 = vadd.f32 %v4782, %v5454
    %v5617 = vadd.f32 %v4783, %v5459
    %v5618 = vadd.f32 %v4784, %v5462
    %v5619 = vadd.f32 %v4785, %v5467
    %v5620 = vadd.f32 %v4786, %v5470
    %v5621 = vadd.f32 %v4787, %v5475
    %v5622 = vadd.f32 %v4788, %v5478
    %v5623 = vadd.f32 %v4789, %v5483
    %v5624 = vadd.f32 %v4790, %v5486
    %v5625 = vadd.f32 %v4791, %v5491
    %v5626 = vadd.f32 %v4792, %v5494
    %v5627 = vadd.f32 %v4793, %v5499
    %v5628 = vadd.f32 %v4794, %v5502
    %v5629 = vadd.f32 %v4795, %v5507
    %v5630 = vadd.f32 %v4796, %v5510
    %v5631 = vadd.f32 %v4797, %v5515
    %v5632 = vadd.f32 %v4798, %v5518
    %v5633 = vadd.f32 %v4799, %v5523
    %v5634 = vadd.f32 %v4800, %v5526
    %v5635 = vadd.f32 %v4801, %v5531
    %v5636 = vadd.f32 %v4802, %v5534
    %v5637 = vadd.f32 %v4803, %v5539
    %v5638 = vadd.f32 %v4804, %v5542
    %v5639 = vadd.f32 %v4805, %v5547
    %v5640 = vadd.f32 %v4806, %v5550
    %v5641 = vadd.f32 %v4807, %v5555
    %v5642 = vadd.f32 %v4808, %v5558
    %v5643 = vadd.f32 %v4809, %v5563
    %v5644 = vadd.f32 %v4810, %v5566
    %v5645 = vadd.f32 %v4811, %v5571
    %v5646 = vadd.f32 %v4812, %v5574
    %v5647 = vadd.f32 %v4813, %v5579
    %v5648 = vadd.f32 %v4814, %v5582
    %5649 = vset.pattern.permute.xlu0 4
    %5650 = vperm.xlu0 %5649, %v2185
    %v5651 = vpop.permute.xlu0 %5650
    %5653 = vset.pattern.permute.xlu0 4
    %5654 = vperm.xlu0 %5653, %v2186
    %v5655 = vpop.permute.xlu0 %5654
    %5657 = vset.pattern.permute.xlu0 4
    %5658 = vperm.xlu0 %5657, %v2187
    %v5659 = vpop.permute.xlu0 %5658
    %5661 = vset.pattern.permute.xlu0 4
    %5662 = vperm.xlu0 %5661, %v2188
    %v5663 = vpop.permute.xlu0 %5662
    %5665 = vset.pattern.permute.xlu0 4
    %5666 = vperm.xlu0 %5665, %v2189
    %v5667 = vpop.permute.xlu0 %5666
    %5669 = vset.pattern.permute.xlu0 4
    %5670 = vperm.xlu0 %5669, %v2190
    %v5671 = vpop.permute.xlu0 %5670
    %5673 = vset.pattern.permute.xlu0 4
    %5674 = vperm.xlu0 %5673, %v2191
    %v5675 = vpop.permute.xlu0 %5674
    %5677 = vset.pattern.permute.xlu0 4
    %5678 = vperm.xlu0 %5677, %v2192
    %v5679 = vpop.permute.xlu0 %5678
    %5681 = vset.pattern.permute.xlu0 4
    %5682 = vperm.xlu0 %5681, %v2193
    %v5683 = vpop.permute.xlu0 %5682
    %5685 = vset.pattern.permute.xlu0 4
    %5686 = vperm.xlu0 %5685, %v2194
    %v5687 = vpop.permute.xlu0 %5686
    %5689 = vset.pattern.permute.xlu0 4
    %5690 = vperm.xlu0 %5689, %v2195
    %v5691 = vpop.permute.xlu0 %5690
    %5693 = vset.pattern.permute.xlu0 4
    %5694 = vperm.xlu0 %5693, %v2196
    %v5695 = vpop.permute.xlu0 %5694
    %5697 = vset.pattern.permute.xlu0 4
    %5698 = vperm.xlu0 %5697, %v2197
    %v5699 = vpop.permute.xlu0 %5698
    %5701 = vset.pattern.permute.xlu0 4
    %5702 = vperm.xlu0 %5701, %v2198
    %v5703 = vpop.permute.xlu0 %5702
    %5705 = vset.pattern.permute.xlu0 4
    %5706 = vperm.xlu0 %5705, %v2199
    %v5707 = vpop.permute.xlu0 %5706
    %5709 = vset.pattern.permute.xlu0 4
    %5710 = vperm.xlu0 %5709, %v2200
    %v5711 = vpop.permute.xlu0 %5710
    %5713 = vset.pattern.permute.xlu0 4
    %5714 = vperm.xlu0 %5713, %v2201
    %v5715 = vpop.permute.xlu0 %5714
    %5717 = vset.pattern.permute.xlu0 4
    %5718 = vperm.xlu0 %5717, %v2202
    %v5719 = vpop.permute.xlu0 %5718
    %5721 = vset.pattern.permute.xlu0 4
    %5722 = vperm.xlu0 %5721, %v2203
    %v5723 = vpop.permute.xlu0 %5722
    %5725 = vset.pattern.permute.xlu0 4
    %5726 = vperm.xlu0 %5725, %v2204
    %v5727 = vpop.permute.xlu0 %5726
    %5729 = vset.pattern.permute.xlu0 4
    %5730 = vperm.xlu0 %5729, %v2205
    %v5731 = vpop.permute.xlu0 %5730
    %5733 = vset.pattern.permute.xlu0 4
    %5734 = vperm.xlu0 %5733, %v2206
    %v5735 = vpop.permute.xlu0 %5734
    %5737 = vset.pattern.permute.xlu0 4
    %5738 = vperm.xlu0 %5737, %v2207
    %v5739 = vpop.permute.xlu0 %5738
    %5741 = vset.pattern.permute.xlu0 4
    %5742 = vperm.xlu0 %5741, %v2208
    %v5743 = vpop.permute.xlu0 %5742
    %5745 = vset.pattern.permute.xlu0 4
    %5746 = vperm.xlu0 %5745, %v2209
    %v5747 = vpop.permute.xlu0 %5746
    %5749 = vset.pattern.permute.xlu0 4
    %5750 = vperm.xlu0 %5749, %v2210
    %v5751 = vpop.permute.xlu0 %5750
    %5753 = vset.pattern.permute.xlu0 4
    %5754 = vperm.xlu0 %5753, %v2211
    %v5755 = vpop.permute.xlu0 %5754
    %5757 = vset.pattern.permute.xlu0 4
    %5758 = vperm.xlu0 %5757, %v2212
    %v5759 = vpop.permute.xlu0 %5758
    %5761 = vset.pattern.permute.xlu0 4
    %5762 = vperm.xlu0 %5761, %v2213
    %v5763 = vpop.permute.xlu0 %5762
    %5765 = vset.pattern.permute.xlu0 4
    %5766 = vperm.xlu0 %5765, %v2214
    %v5767 = vpop.permute.xlu0 %5766
    %5769 = vset.pattern.permute.xlu0 4
    %5770 = vperm.xlu0 %5769, %v2215
    %v5771 = vpop.permute.xlu0 %5770
    %5773 = vset.pattern.permute.xlu0 4
    %5774 = vperm.xlu0 %5773, %v2216
    %v5775 = vpop.permute.xlu0 %5774
    %5777 = vset.pattern.permute.xlu0 4
    %5778 = vperm.xlu0 %5777, %v2217
    %v5779 = vpop.permute.xlu0 %5778
    %5781 = vset.pattern.permute.xlu0 4
    %5782 = vperm.xlu0 %5781, %v2218
    %v5783 = vpop.permute.xlu0 %5782
    %5785 = vset.pattern.permute.xlu0 4
    %5786 = vperm.xlu0 %5785, %v2219
    %v5787 = vpop.permute.xlu0 %5786
    %5789 = vset.pattern.permute.xlu0 4
    %5790 = vperm.xlu0 %5789, %v2220
    %v5791 = vpop.permute.xlu0 %5790
    %5793 = vset.pattern.permute.xlu0 4
    %5794 = vperm.xlu0 %5793, %v2221
    %v5795 = vpop.permute.xlu0 %5794
    %5797 = vset.pattern.permute.xlu0 4
    %5798 = vperm.xlu0 %5797, %v2222
    %v5799 = vpop.permute.xlu0 %5798
    %5801 = vset.pattern.permute.xlu0 4
    %5802 = vperm.xlu0 %5801, %v2223
    %v5803 = vpop.permute.xlu0 %5802
    %5805 = vset.pattern.permute.xlu0 4
    %5806 = vperm.xlu0 %5805, %v2224
    %v5807 = vpop.permute.xlu0 %5806
    %5809 = vset.pattern.permute.xlu0 4
    %5810 = vperm.xlu0 %5809, %v2225
    %v5811 = vpop.permute.xlu0 %5810
    %5813 = vset.pattern.permute.xlu0 4
    %5814 = vperm.xlu0 %5813, %v2226
    %v5815 = vpop.permute.xlu0 %5814
    %5817 = vset.pattern.permute.xlu0 4
    %5818 = vperm.xlu0 %5817, %v2227
    %v5819 = vpop.permute.xlu0 %5818
    %5821 = vset.pattern.permute.xlu0 4
    %5822 = vperm.xlu0 %5821, %v2228
    %v5823 = vpop.permute.xlu0 %5822
    %5825 = vset.pattern.permute.xlu0 4
    %5826 = vperm.xlu0 %5825, %v2229
    %v5827 = vpop.permute.xlu0 %5826
    %5829 = vset.pattern.permute.xlu0 4
    %5830 = vperm.xlu0 %5829, %v2230
    %v5831 = vpop.permute.xlu0 %5830
    %5833 = vset.pattern.permute.xlu0 4
    %5834 = vperm.xlu0 %5833, %v2231
    %v5835 = vpop.permute.xlu0 %5834
    %5837 = vset.pattern.permute.xlu0 4
    %5838 = vperm.xlu0 %5837, %v2232
    %v5839 = vpop.permute.xlu0 %5838
    %5841 = vset.pattern.permute.xlu0 4
    %5842 = vperm.xlu0 %5841, %v2233
    %v5843 = vpop.permute.xlu0 %5842
    %5845 = vset.pattern.permute.xlu0 4
    %5846 = vperm.xlu0 %5845, %v2234
    %v5847 = vpop.permute.xlu0 %5846
    %5849 = vset.pattern.permute.xlu0 4
    %5850 = vperm.xlu0 %5849, %v2235
    %v5851 = vpop.permute.xlu0 %5850
    %5853 = vset.pattern.permute.xlu0 4
    %5854 = vperm.xlu0 %5853, %v2236
    %v5855 = vpop.permute.xlu0 %5854
    %5857 = vset.pattern.permute.xlu0 4
    %5858 = vperm.xlu0 %5857, %v2237
    %v5859 = vpop.permute.xlu0 %5858
    %5861 = vset.pattern.permute.xlu0 4
    %5862 = vperm.xlu0 %5861, %v2238
    %v5863 = vpop.permute.xlu0 %5862
    %5865 = vset.pattern.permute.xlu0 4
    %5866 = vperm.xlu0 %5865, %v2239
    %v5867 = vpop.permute.xlu0 %5866
    %5869 = vset.pattern.permute.xlu0 4
    %5870 = vperm.xlu0 %5869, %v2240
    %v5871 = vpop.permute.xlu0 %5870
    %5873 = vset.pattern.permute.xlu0 4
    %5874 = vperm.xlu0 %5873, %v2241
    %v5875 = vpop.permute.xlu0 %5874
    %5877 = vset.pattern.permute.xlu0 4
    %5878 = vperm.xlu0 %5877, %v2242
    %v5879 = vpop.permute.xlu0 %5878
    %5881 = vset.pattern.permute.xlu0 4
    %5882 = vperm.xlu0 %5881, %v2243
    %v5883 = vpop.permute.xlu0 %5882
    %5885 = vset.pattern.permute.xlu0 4
    %5886 = vperm.xlu0 %5885, %v2244
    %v5887 = vpop.permute.xlu0 %5886
    %5889 = vset.pattern.permute.xlu0 4
    %5890 = vperm.xlu0 %5889, %v2245
    %v5891 = vpop.permute.xlu0 %5890
    %5893 = vset.pattern.permute.xlu0 4
    %5894 = vperm.xlu0 %5893, %v2246
    %v5895 = vpop.permute.xlu0 %5894
    %5897 = vset.pattern.permute.xlu0 4
    %5898 = vperm.xlu0 %5897, %v2247
    %v5899 = vpop.permute.xlu0 %5898
    %5901 = vset.pattern.permute.xlu0 4
    %5902 = vperm.xlu0 %5901, %v2248
    %v5903 = vpop.permute.xlu0 %5902
    %v5905 = vmul.f32 %v1990, %v5651
    %v5906 = vmul.f32 %v1991, %v5655
    %v5907 = vmul.f32 %v1992, %v5659
    %v5908 = vmul.f32 %v1993, %v5663
    %v5909 = vmul.f32 %v1994, %v5667
    %v5910 = vmul.f32 %v1995, %v5671
    %v5911 = vmul.f32 %v1996, %v5675
    %v5912 = vmul.f32 %v1997, %v5679
    %v5913 = vmul.f32 %v1998, %v5683
    %v5914 = vmul.f32 %v1999, %v5687
    %v5915 = vmul.f32 %v2000, %v5691
    %v5916 = vmul.f32 %v2001, %v5695
    %v5917 = vmul.f32 %v2002, %v5699
    %v5918 = vmul.f32 %v2003, %v5703
    %v5919 = vmul.f32 %v2004, %v5707
    %v5920 = vmul.f32 %v2005, %v5711
    %v5921 = vmul.f32 %v2006, %v5715
    %v5922 = vmul.f32 %v2007, %v5719
    %v5923 = vmul.f32 %v2008, %v5723
    %v5924 = vmul.f32 %v2009, %v5727
    %v5925 = vmul.f32 %v2010, %v5731
    %v5926 = vmul.f32 %v2011, %v5735
    %v5927 = vmul.f32 %v2012, %v5739
    %v5928 = vmul.f32 %v2013, %v5743
    %v5929 = vmul.f32 %v2014, %v5747
    %v5930 = vmul.f32 %v2015, %v5751
    %v5931 = vmul.f32 %v2016, %v5755
    %v5932 = vmul.f32 %v2017, %v5759
    %v5933 = vmul.f32 %v2018, %v5763
    %v5934 = vmul.f32 %v2019, %v5767
    %v5935 = vmul.f32 %v2020, %v5771
    %v5936 = vmul.f32 %v2021, %v5775
    %v5937 = vmul.f32 %v2022, %v5779
    %v5938 = vmul.f32 %v2023, %v5783
    %v5939 = vmul.f32 %v2024, %v5787
    %v5940 = vmul.f32 %v2025, %v5791
    %v5941 = vmul.f32 %v2026, %v5795
    %v5942 = vmul.f32 %v2027, %v5799
    %v5943 = vmul.f32 %v2028, %v5803
    %v5944 = vmul.f32 %v2029, %v5807
    %v5945 = vmul.f32 %v2030, %v5811
    %v5946 = vmul.f32 %v2031, %v5815
    %v5947 = vmul.f32 %v2032, %v5819
    %v5948 = vmul.f32 %v2033, %v5823
    %v5949 = vmul.f32 %v2034, %v5827
    %v5950 = vmul.f32 %v2035, %v5831
    %v5951 = vmul.f32 %v2036, %v5835
    %v5952 = vmul.f32 %v2037, %v5839
    %v5953 = vmul.f32 %v2038, %v5843
    %v5954 = vmul.f32 %v2039, %v5847
    %v5955 = vmul.f32 %v2040, %v5851
    %v5956 = vmul.f32 %v2041, %v5855
    %v5957 = vmul.f32 %v2042, %v5859
    %v5958 = vmul.f32 %v2043, %v5863
    %v5959 = vmul.f32 %v2044, %v5867
    %v5960 = vmul.f32 %v2045, %v5871
    %v5961 = vmul.f32 %v2046, %v5875
    %v5962 = vmul.f32 %v2047, %v5879
    %v5963 = vmul.f32 %v2048, %v5883
    %v5964 = vmul.f32 %v2049, %v5887
    %v5965 = vmul.f32 %v2050, %v5891
    %v5966 = vmul.f32 %v2051, %v5895
    %v5967 = vmul.f32 %v2052, %v5899
    %v5968 = vmul.f32 %v2053, %v5903
    %v5969 = vpack.c.bf16 %v5906, %v5905
    %v5970 = vpack.c.bf16 %v5908, %v5907
    %v5971 = vpack.c.bf16 %v5910, %v5909
    %v5972 = vpack.c.bf16 %v5912, %v5911
    %v5973 = vpack.c.bf16 %v5914, %v5913
    %v5974 = vpack.c.bf16 %v5916, %v5915
    %v5975 = vpack.c.bf16 %v5918, %v5917
    %v5976 = vpack.c.bf16 %v5920, %v5919
    %v5977 = vpack.c.bf16 %v5922, %v5921
    %v5978 = vpack.c.bf16 %v5924, %v5923
    %v5979 = vpack.c.bf16 %v5926, %v5925
    %v5980 = vpack.c.bf16 %v5928, %v5927
    %v5981 = vpack.c.bf16 %v5930, %v5929
    %v5982 = vpack.c.bf16 %v5932, %v5931
    %v5983 = vpack.c.bf16 %v5934, %v5933
    %v5984 = vpack.c.bf16 %v5936, %v5935
    %v5985 = vpack.c.bf16 %v5938, %v5937
    %v5986 = vpack.c.bf16 %v5940, %v5939
    %v5987 = vpack.c.bf16 %v5942, %v5941
    %v5988 = vpack.c.bf16 %v5944, %v5943
    %v5989 = vpack.c.bf16 %v5946, %v5945
    %v5990 = vpack.c.bf16 %v5948, %v5947
    %v5991 = vpack.c.bf16 %v5950, %v5949
    %v5992 = vpack.c.bf16 %v5952, %v5951
    %v5993 = vpack.c.bf16 %v5954, %v5953
    %v5994 = vpack.c.bf16 %v5956, %v5955
    %v5995 = vpack.c.bf16 %v5958, %v5957
    %v5996 = vpack.c.bf16 %v5960, %v5959
    %v5997 = vpack.c.bf16 %v5962, %v5961
    %v5998 = vpack.c.bf16 %v5964, %v5963
    %v5999 = vpack.c.bf16 %v5966, %v5965
    %v6000 = vpack.c.bf16 %v5968, %v5967
    %s6001 = scalar_lea.vmem %s8, 128
    %v6002 = vld [vmem:[%s6001] sm:$0xf]
    %v6003 = vld [vmem:[%s6001 + $0x4] sm:$0xf]
    %v6004 = vld [vmem:[%s6001 + $0x8] sm:$0xf]
    %v6005 = vld [vmem:[%s6001 + $0xc] sm:$0xf]
    %v6006 = vld [vmem:[%s6001 + $0x10] sm:$0xf]
    %v6007 = vld [vmem:[%s6001 + $0x14] sm:$0xf]
    %v6008 = vld [vmem:[%s6001 + $0x18] sm:$0xf]
    %v6009 = vld [vmem:[%s6001 + $0x1c] sm:$0xf]
    %v6018 = vunpack.c.l.b16 %v6002
    %v6019 = vunpack.c.l.b16 %v6003
    %v6020 = vunpack.c.l.b16 %v6004
    %v6021 = vunpack.c.l.b16 %v6005
    %v6022 = vunpack.c.l.b16 %v6006
    %v6023 = vunpack.c.l.b16 %v6007
    %v6024 = vunpack.c.l.b16 %v6008
    %v6025 = vunpack.c.l.b16 %v6009
    %v6026 = vpack.c.b16 %v6019, %v6018
    %v6027 = vpack.c.b16 %v6021, %v6020
    %v6028 = vpack.c.b16 %v6023, %v6022
    %v6029 = vpack.c.b16 %v6025, %v6024
    %v6035 = vsel %vm368, %v5969, 0
    %v6038 = vsel %vm368, %v5970, 0
    %v6041 = vsel %vm368, %v5971, 0
    %v6044 = vsel %vm368, %v5972, 0
    %v6047 = vsel %vm368, %v5973, 0
    %v6050 = vsel %vm368, %v5974, 0
    %v6053 = vsel %vm368, %v5975, 0
    %v6056 = vsel %vm368, %v5976, 0
    %v6059 = vsel %vm368, %v5977, 0
    %v6062 = vsel %vm368, %v5978, 0
    %v6065 = vsel %vm368, %v5979, 0
    %v6068 = vsel %vm368, %v5980, 0
    %v6071 = vsel %vm368, %v5981, 0
    %v6074 = vsel %vm368, %v5982, 0
    %v6077 = vsel %vm368, %v5983, 0
    %v6080 = vsel %vm368, %v5984, 0
    %v6083 = vsel %vm368, %v5985, 0
    %v6086 = vsel %vm368, %v5986, 0
    %v6089 = vsel %vm368, %v5987, 0
    %v6092 = vsel %vm368, %v5988, 0
    %v6095 = vsel %vm368, %v5989, 0
    %v6098 = vsel %vm368, %v5990, 0
    %v6101 = vsel %vm368, %v5991, 0
    %v6104 = vsel %vm368, %v5992, 0
    %v6107 = vsel %vm368, %v5993, 0
    %v6110 = vsel %vm368, %v5994, 0
    %v6113 = vsel %vm368, %v5995, 0
    %v6116 = vsel %vm368, %v5996, 0
    %v6119 = vsel %vm368, %v5997, 0
    %v6122 = vsel %vm368, %v5998, 0
    %v6125 = vsel %vm368, %v5999, 0
    %v6128 = vsel %vm368, %v6000, 0
    %6130 = vmatprep.subr.bf16.mxu0 0
    %6131 = vmatpush1.bf16.msra.mxu0 %v6026
    %6132 = vmatprep.subr.bf16.mxu0 0
    %6133 = vmatpush1.bf16.msra.mxu0 %v6027
    %6134 = vmatprep.subr.bf16.mxu0 0
    %6135 = vmatpush1.bf16.msra.mxu0 %v6028
    %6136 = vmatprep.subr.bf16.mxu0 0
    %6137 = vmatpush1.bf16.msra.mxu0 %v6029
    %6138 = vmatprep.subr.bf16.mxu0 0
    %6139 = vmatpush1.bf16.msra.mxu0 0
    %6140 = vmatprep.subr.bf16.mxu0 0
    %6141 = vmatpush1.bf16.msra.mxu0 0
    %6142 = vmatprep.subr.bf16.mxu0 0
    %6143 = vmatpush1.bf16.msra.mxu0 0
    %6144 = vmatprep.subr.bf16.mxu0 0
    %6145 = vmatpush1.bf16.msra.mxu0 0
    %6146 = vmatprep.subr.bf16.mxu0 0
    %6147 = vmatpush1.bf16.msra.mxu0 0
    %6148 = vmatprep.subr.bf16.mxu0 0
    %6149 = vmatpush1.bf16.msra.mxu0 0
    %6150 = vmatprep.subr.bf16.mxu0 0
    %6151 = vmatpush1.bf16.msra.mxu0 0
    %6152 = vmatprep.subr.bf16.mxu0 0
    %6153 = vmatpush1.bf16.msra.mxu0 0
    %6154 = vmatprep.subr.bf16.mxu0 0
    %6155 = vmatpush1.bf16.msra.mxu0 0
    %6156 = vmatprep.subr.bf16.mxu0 0
    %6157 = vmatpush1.bf16.msra.mxu0 0
    %6158 = vmatprep.subr.bf16.mxu0 0
    %6159 = vmatpush1.bf16.msra.mxu0 0
    %6160 = vmatprep.subr.bf16.mxu0 0
    %6161 = vmatpush1.bf16.msra.mxu0 0
    %6162 = vmatprep.mubr.bf16.mxu0 0
    %6163 = vmatmul.mubr.bf16.gmra.mrb[0].mxu0 %v6035
    %v6164 = vpop.f32.mrb[0].mxu0
    %v6165 = vadd.f32 0.0, %v6164
    %v6166 = vpop.f32.mrb[0].mxu0
    %v6167 = vpop.f32.mrb[0].mxu0
    %v6168 = vadd.f32 0.0, %v6167
    %v6169 = vpop.f32.mrb[0].mxu0
    %6170 = vmatprep.mubr.bf16.mxu0 0
    %6171 = vmatmul.mubr.bf16.gmra.mrb[0].mxu0 %v6038
    %v6172 = vpop.f32.mrb[0].mxu0
    %v6173 = vadd.f32 0.0, %v6172
    %v6174 = vpop.f32.mrb[0].mxu0
    %v6175 = vpop.f32.mrb[0].mxu0
    %v6176 = vadd.f32 0.0, %v6175
    %v6177 = vpop.f32.mrb[0].mxu0
    %6178 = vmatprep.mubr.bf16.mxu0 0
    %6179 = vmatmul.mubr.bf16.gmra.mrb[0].mxu0 %v6041
    %v6180 = vpop.f32.mrb[0].mxu0
    %v6181 = vadd.f32 0.0, %v6180
    %v6182 = vpop.f32.mrb[0].mxu0
    %v6183 = vpop.f32.mrb[0].mxu0
    %v6184 = vadd.f32 0.0, %v6183
    %v6185 = vpop.f32.mrb[0].mxu0
    %6186 = vmatprep.mubr.bf16.mxu0 0
    %6187 = vmatmul.mubr.bf16.gmra.mrb[0].mxu0 %v6044
    %v6188 = vpop.f32.mrb[0].mxu0
    %v6189 = vadd.f32 0.0, %v6188
    %v6190 = vpop.f32.mrb[0].mxu0
    %v6191 = vpop.f32.mrb[0].mxu0
    %v6192 = vadd.f32 0.0, %v6191
    %v6193 = vpop.f32.mrb[0].mxu0
    %6194 = vmatprep.mubr.bf16.mxu0 0
    %6195 = vmatmul.mubr.bf16.gmra.mrb[0].mxu0 %v6047
    %v6196 = vpop.f32.mrb[0].mxu0
    %v6197 = vadd.f32 0.0, %v6196
    %v6198 = vpop.f32.mrb[0].mxu0
    %v6199 = vpop.f32.mrb[0].mxu0
    %v6200 = vadd.f32 0.0, %v6199
    %v6201 = vpop.f32.mrb[0].mxu0
    %6202 = vmatprep.mubr.bf16.mxu0 0
    %6203 = vmatmul.mubr.bf16.gmra.mrb[0].mxu0 %v6050
    %v6204 = vpop.f32.mrb[0].mxu0
    %v6205 = vadd.f32 0.0, %v6204
    %v6206 = vpop.f32.mrb[0].mxu0
    %v6207 = vpop.f32.mrb[0].mxu0
    %v6208 = vadd.f32 0.0, %v6207
    %v6209 = vpop.f32.mrb[0].mxu0
    %6210 = vmatprep.mubr.bf16.mxu0 0
    %6211 = vmatmul.mubr.bf16.gmra.mrb[0].mxu0 %v6053
    %v6212 = vpop.f32.mrb[0].mxu0
    %v6213 = vadd.f32 0.0, %v6212
    %v6214 = vpop.f32.mrb[0].mxu0
    %v6215 = vpop.f32.mrb[0].mxu0
    %v6216 = vadd.f32 0.0, %v6215
    %v6217 = vpop.f32.mrb[0].mxu0
    %6218 = vmatprep.mubr.bf16.mxu0 0
    %6219 = vmatmul.mubr.bf16.gmra.mrb[0].mxu0 %v6056
    %v6220 = vpop.f32.mrb[0].mxu0
    %v6221 = vadd.f32 0.0, %v6220
    %v6222 = vpop.f32.mrb[0].mxu0
    %v6223 = vpop.f32.mrb[0].mxu0
    %v6224 = vadd.f32 0.0, %v6223
    %v6225 = vpop.f32.mrb[0].mxu0
    %6226 = vmatprep.mubr.bf16.mxu0 0
    %6227 = vmatmul.mubr.bf16.gmra.mrb[0].mxu0 %v6059
    %v6228 = vpop.f32.mrb[0].mxu0
    %v6229 = vadd.f32 0.0, %v6228
    %v6230 = vpop.f32.mrb[0].mxu0
    %v6231 = vpop.f32.mrb[0].mxu0
    %v6232 = vadd.f32 0.0, %v6231
    %v6233 = vpop.f32.mrb[0].mxu0
    %6234 = vmatprep.mubr.bf16.mxu0 0
    %6235 = vmatmul.mubr.bf16.gmra.mrb[0].mxu0 %v6062
    %v6236 = vpop.f32.mrb[0].mxu0
    %v6237 = vadd.f32 0.0, %v6236
    %v6238 = vpop.f32.mrb[0].mxu0
    %v6239 = vpop.f32.mrb[0].mxu0
    %v6240 = vadd.f32 0.0, %v6239
    %v6241 = vpop.f32.mrb[0].mxu0
    %6242 = vmatprep.mubr.bf16.mxu0 0
    %6243 = vmatmul.mubr.bf16.gmra.mrb[0].mxu0 %v6065
    %v6244 = vpop.f32.mrb[0].mxu0
    %v6245 = vadd.f32 0.0, %v6244
    %v6246 = vpop.f32.mrb[0].mxu0
    %v6247 = vpop.f32.mrb[0].mxu0
    %v6248 = vadd.f32 0.0, %v6247
    %v6249 = vpop.f32.mrb[0].mxu0
    %6250 = vmatprep.mubr.bf16.mxu0 0
    %6251 = vmatmul.mubr.bf16.gmra.mrb[0].mxu0 %v6068
    %v6252 = vpop.f32.mrb[0].mxu0
    %v6253 = vadd.f32 0.0, %v6252
    %v6254 = vpop.f32.mrb[0].mxu0
    %v6255 = vpop.f32.mrb[0].mxu0
    %v6256 = vadd.f32 0.0, %v6255
    %v6257 = vpop.f32.mrb[0].mxu0
    %6258 = vmatprep.mubr.bf16.mxu0 0
    %6259 = vmatmul.mubr.bf16.gmra.mrb[0].mxu0 %v6071
    %v6260 = vpop.f32.mrb[0].mxu0
    %v6261 = vadd.f32 0.0, %v6260
    %v6262 = vpop.f32.mrb[0].mxu0
    %v6263 = vpop.f32.mrb[0].mxu0
    %v6264 = vadd.f32 0.0, %v6263
    %v6265 = vpop.f32.mrb[0].mxu0
    %6266 = vmatprep.mubr.bf16.mxu0 0
    %6267 = vmatmul.mubr.bf16.gmra.mrb[0].mxu0 %v6074
    %v6268 = vpop.f32.mrb[0].mxu0
    %v6269 = vadd.f32 0.0, %v6268
    %v6270 = vpop.f32.mrb[0].mxu0
    %v6271 = vpop.f32.mrb[0].mxu0
    %v6272 = vadd.f32 0.0, %v6271
    %v6273 = vpop.f32.mrb[0].mxu0
    %6274 = vmatprep.mubr.bf16.mxu0 0
    %6275 = vmatmul.mubr.bf16.gmra.mrb[0].mxu0 %v6077
    %v6276 = vpop.f32.mrb[0].mxu0
    %v6277 = vadd.f32 0.0, %v6276
    %v6278 = vpop.f32.mrb[0].mxu0
    %v6279 = vpop.f32.mrb[0].mxu0
    %v6280 = vadd.f32 0.0, %v6279
    %v6281 = vpop.f32.mrb[0].mxu0
    %6282 = vmatprep.mubr.bf16.mxu0 0
    %6283 = vmatmul.mubr.bf16.gmra.mrb[0].mxu0 %v6080
    %v6284 = vpop.f32.mrb[0].mxu0
    %v6285 = vadd.f32 0.0, %v6284
    %v6286 = vpop.f32.mrb[0].mxu0
    %v6287 = vpop.f32.mrb[0].mxu0
    %v6288 = vadd.f32 0.0, %v6287
    %v6289 = vpop.f32.mrb[0].mxu0
    %6290 = vmatprep.mubr.bf16.mxu0 0
    %6291 = vmatmul.mubr.bf16.gmra.mrb[0].mxu0 %v6083
    %v6292 = vpop.f32.mrb[0].mxu0
    %v6293 = vadd.f32 0.0, %v6292
    %v6294 = vpop.f32.mrb[0].mxu0
    %v6295 = vpop.f32.mrb[0].mxu0
    %v6296 = vadd.f32 0.0, %v6295
    %v6297 = vpop.f32.mrb[0].mxu0
    %6298 = vmatprep.mubr.bf16.mxu0 0
    %6299 = vmatmul.mubr.bf16.gmra.mrb[0].mxu0 %v6086
    %v6300 = vpop.f32.mrb[0].mxu0
    %v6301 = vadd.f32 0.0, %v6300
    %v6302 = vpop.f32.mrb[0].mxu0
    %v6303 = vpop.f32.mrb[0].mxu0
    %v6304 = vadd.f32 0.0, %v6303
    %v6305 = vpop.f32.mrb[0].mxu0
    %6306 = vmatprep.mubr.bf16.mxu0 0
    %6307 = vmatmul.mubr.bf16.gmra.mrb[0].mxu0 %v6089
    %v6308 = vpop.f32.mrb[0].mxu0
    %v6309 = vadd.f32 0.0, %v6308
    %v6310 = vpop.f32.mrb[0].mxu0
    %v6311 = vpop.f32.mrb[0].mxu0
    %v6312 = vadd.f32 0.0, %v6311
    %v6313 = vpop.f32.mrb[0].mxu0
    %6314 = vmatprep.mubr.bf16.mxu0 0
    %6315 = vmatmul.mubr.bf16.gmra.mrb[0].mxu0 %v6092
    %v6316 = vpop.f32.mrb[0].mxu0
    %v6317 = vadd.f32 0.0, %v6316
    %v6318 = vpop.f32.mrb[0].mxu0
    %v6319 = vpop.f32.mrb[0].mxu0
    %v6320 = vadd.f32 0.0, %v6319
    %v6321 = vpop.f32.mrb[0].mxu0
    %6322 = vmatprep.mubr.bf16.mxu0 0
    %6323 = vmatmul.mubr.bf16.gmra.mrb[0].mxu0 %v6095
    %v6324 = vpop.f32.mrb[0].mxu0
    %v6325 = vadd.f32 0.0, %v6324
    %v6326 = vpop.f32.mrb[0].mxu0
    %v6327 = vpop.f32.mrb[0].mxu0
    %v6328 = vadd.f32 0.0, %v6327
    %v6329 = vpop.f32.mrb[0].mxu0
    %6330 = vmatprep.mubr.bf16.mxu0 0
    %6331 = vmatmul.mubr.bf16.gmra.mrb[0].mxu0 %v6098
    %v6332 = vpop.f32.mrb[0].mxu0
    %v6333 = vadd.f32 0.0, %v6332
    %v6334 = vpop.f32.mrb[0].mxu0
    %v6335 = vpop.f32.mrb[0].mxu0
    %v6336 = vadd.f32 0.0, %v6335
    %v6337 = vpop.f32.mrb[0].mxu0
    %6338 = vmatprep.mubr.bf16.mxu0 0
    %6339 = vmatmul.mubr.bf16.gmra.mrb[0].mxu0 %v6101
    %v6340 = vpop.f32.mrb[0].mxu0
    %v6341 = vadd.f32 0.0, %v6340
    %v6342 = vpop.f32.mrb[0].mxu0
    %v6343 = vpop.f32.mrb[0].mxu0
    %v6344 = vadd.f32 0.0, %v6343
    %v6345 = vpop.f32.mrb[0].mxu0
    %6346 = vmatprep.mubr.bf16.mxu0 0
    %6347 = vmatmul.mubr.bf16.gmra.mrb[0].mxu0 %v6104
    %v6348 = vpop.f32.mrb[0].mxu0
    %v6349 = vadd.f32 0.0, %v6348
    %v6350 = vpop.f32.mrb[0].mxu0
    %v6351 = vpop.f32.mrb[0].mxu0
    %v6352 = vadd.f32 0.0, %v6351
    %v6353 = vpop.f32.mrb[0].mxu0
    %6354 = vmatprep.mubr.bf16.mxu0 0
    %6355 = vmatmul.mubr.bf16.gmra.mrb[0].mxu0 %v6107
    %v6356 = vpop.f32.mrb[0].mxu0
    %v6357 = vadd.f32 0.0, %v6356
    %v6358 = vpop.f32.mrb[0].mxu0
    %v6359 = vpop.f32.mrb[0].mxu0
    %v6360 = vadd.f32 0.0, %v6359
    %v6361 = vpop.f32.mrb[0].mxu0
    %6362 = vmatprep.mubr.bf16.mxu0 0
    %6363 = vmatmul.mubr.bf16.gmra.mrb[0].mxu0 %v6110
    %v6364 = vpop.f32.mrb[0].mxu0
    %v6365 = vadd.f32 0.0, %v6364
    %v6366 = vpop.f32.mrb[0].mxu0
    %v6367 = vpop.f32.mrb[0].mxu0
    %v6368 = vadd.f32 0.0, %v6367
    %v6369 = vpop.f32.mrb[0].mxu0
    %6370 = vmatprep.mubr.bf16.mxu0 0
    %6371 = vmatmul.mubr.bf16.gmra.mrb[0].mxu0 %v6113
    %v6372 = vpop.f32.mrb[0].mxu0
    %v6373 = vadd.f32 0.0, %v6372
    %v6374 = vpop.f32.mrb[0].mxu0
    %v6375 = vpop.f32.mrb[0].mxu0
    %v6376 = vadd.f32 0.0, %v6375
    %v6377 = vpop.f32.mrb[0].mxu0
    %6378 = vmatprep.mubr.bf16.mxu0 0
    %6379 = vmatmul.mubr.bf16.gmra.mrb[0].mxu0 %v6116
    %v6380 = vpop.f32.mrb[0].mxu0
    %v6381 = vadd.f32 0.0, %v6380
    %v6382 = vpop.f32.mrb[0].mxu0
    %v6383 = vpop.f32.mrb[0].mxu0
    %v6384 = vadd.f32 0.0, %v6383
    %v6385 = vpop.f32.mrb[0].mxu0
    %6386 = vmatprep.mubr.bf16.mxu0 0
    %6387 = vmatmul.mubr.bf16.gmra.mrb[0].mxu0 %v6119
    %v6388 = vpop.f32.mrb[0].mxu0
    %v6389 = vadd.f32 0.0, %v6388
    %v6390 = vpop.f32.mrb[0].mxu0
    %v6391 = vpop.f32.mrb[0].mxu0
    %v6392 = vadd.f32 0.0, %v6391
    %v6393 = vpop.f32.mrb[0].mxu0
    %6394 = vmatprep.mubr.bf16.mxu0 0
    %6395 = vmatmul.mubr.bf16.gmra.mrb[0].mxu0 %v6122
    %v6396 = vpop.f32.mrb[0].mxu0
    %v6397 = vadd.f32 0.0, %v6396
    %v6398 = vpop.f32.mrb[0].mxu0
    %v6399 = vpop.f32.mrb[0].mxu0
    %v6400 = vadd.f32 0.0, %v6399
    %v6401 = vpop.f32.mrb[0].mxu0
    %6402 = vmatprep.mubr.bf16.mxu0 0
    %6403 = vmatmul.mubr.bf16.gmra.mrb[0].mxu0 %v6125
    %v6404 = vpop.f32.mrb[0].mxu0
    %v6405 = vadd.f32 0.0, %v6404
    %v6406 = vpop.f32.mrb[0].mxu0
    %v6407 = vpop.f32.mrb[0].mxu0
    %v6408 = vadd.f32 0.0, %v6407
    %v6409 = vpop.f32.mrb[0].mxu0
    %6410 = vmatprep.mubr.bf16.mxu0 0
    %6411 = vmatmul.mubr.bf16.gmra.mrb[0].mxu0 %v6128
    %v6412 = vpop.f32.mrb[0].mxu0
    %v6413 = vadd.f32 0.0, %v6412
    %v6414 = vpop.f32.mrb[0].mxu0
    %v6415 = vpop.f32.mrb[0].mxu0
    %v6416 = vadd.f32 0.0, %v6415
    %v6417 = vpop.f32.mrb[0].mxu0
    %6418 = vdwg.mxu0
    %v6419 = vadd.f32 %v5585, %v6165
    %v6420 = vadd.f32 %v5586, %v6168
    %v6421 = vadd.f32 %v5587, %v6173
    %v6422 = vadd.f32 %v5588, %v6176
    %v6423 = vadd.f32 %v5589, %v6181
    %v6424 = vadd.f32 %v5590, %v6184
    %v6425 = vadd.f32 %v5591, %v6189
    %v6426 = vadd.f32 %v5592, %v6192
    %v6427 = vadd.f32 %v5593, %v6197
    %v6428 = vadd.f32 %v5594, %v6200
    %v6429 = vadd.f32 %v5595, %v6205
    %v6430 = vadd.f32 %v5596, %v6208
    %v6431 = vadd.f32 %v5597, %v6213
    %v6432 = vadd.f32 %v5598, %v6216
    %v6433 = vadd.f32 %v5599, %v6221
    %v6434 = vadd.f32 %v5600, %v6224
    %v6435 = vadd.f32 %v5601, %v6229
    %v6436 = vadd.f32 %v5602, %v6232
    %v6437 = vadd.f32 %v5603, %v6237
    %v6438 = vadd.f32 %v5604, %v6240
    %v6439 = vadd.f32 %v5605, %v6245
    %v6440 = vadd.f32 %v5606, %v6248
    %v6441 = vadd.f32 %v5607, %v6253
    %v6442 = vadd.f32 %v5608, %v6256
    %v6443 = vadd.f32 %v5609, %v6261
    %v6444 = vadd.f32 %v5610, %v6264
    %v6445 = vadd.f32 %v5611, %v6269
    %v6446 = vadd.f32 %v5612, %v6272
    %v6447 = vadd.f32 %v5613, %v6277
    %v6448 = vadd.f32 %v5614, %v6280
    %v6449 = vadd.f32 %v5615, %v6285
    %v6450 = vadd.f32 %v5616, %v6288
    %v6451 = vadd.f32 %v5617, %v6293
    %v6452 = vadd.f32 %v5618, %v6296
    %v6453 = vadd.f32 %v5619, %v6301
    %v6454 = vadd.f32 %v5620, %v6304
    %v6455 = vadd.f32 %v5621, %v6309
    %v6456 = vadd.f32 %v5622, %v6312
    %v6457 = vadd.f32 %v5623, %v6317
    %v6458 = vadd.f32 %v5624, %v6320
    %v6459 = vadd.f32 %v5625, %v6325
    %v6460 = vadd.f32 %v5626, %v6328
    %v6461 = vadd.f32 %v5627, %v6333
    %v6462 = vadd.f32 %v5628, %v6336
    %v6463 = vadd.f32 %v5629, %v6341
    %v6464 = vadd.f32 %v5630, %v6344
    %v6465 = vadd.f32 %v5631, %v6349
    %v6466 = vadd.f32 %v5632, %v6352
    %v6467 = vadd.f32 %v5633, %v6357
    %v6468 = vadd.f32 %v5634, %v6360
    %v6469 = vadd.f32 %v5635, %v6365
    %v6470 = vadd.f32 %v5636, %v6368
    %v6471 = vadd.f32 %v5637, %v6373
    %v6472 = vadd.f32 %v5638, %v6376
    %v6473 = vadd.f32 %v5639, %v6381
    %v6474 = vadd.f32 %v5640, %v6384
    %v6475 = vadd.f32 %v5641, %v6389
    %v6476 = vadd.f32 %v5642, %v6392
    %v6477 = vadd.f32 %v5643, %v6397
    %v6478 = vadd.f32 %v5644, %v6400
    %v6479 = vadd.f32 %v5645, %v6405
    %v6480 = vadd.f32 %v5646, %v6408
    %v6481 = vadd.f32 %v5647, %v6413
    %v6482 = vadd.f32 %v5648, %v6416
    %6483 = vset.pattern.permute.xlu0 5
    %6484 = vperm.xlu0 %6483, %v2185
    %v6485 = vpop.permute.xlu0 %6484
    %6487 = vset.pattern.permute.xlu0 5
    %6488 = vperm.xlu0 %6487, %v2186
    %v6489 = vpop.permute.xlu0 %6488
    %6491 = vset.pattern.permute.xlu0 5
    %6492 = vperm.xlu0 %6491, %v2187
    %v6493 = vpop.permute.xlu0 %6492
    %6495 = vset.pattern.permute.xlu0 5
    %6496 = vperm.xlu0 %6495, %v2188
    %v6497 = vpop.permute.xlu0 %6496
    %6499 = vset.pattern.permute.xlu0 5
    %6500 = vperm.xlu0 %6499, %v2189
    %v6501 = vpop.permute.xlu0 %6500
    %6503 = vset.pattern.permute.xlu0 5
    %6504 = vperm.xlu0 %6503, %v2190
    %v6505 = vpop.permute.xlu0 %6504
    %6507 = vset.pattern.permute.xlu0 5
    %6508 = vperm.xlu0 %6507, %v2191
    %v6509 = vpop.permute.xlu0 %6508
    %6511 = vset.pattern.permute.xlu0 5
    %6512 = vperm.xlu0 %6511, %v2192
    %v6513 = vpop.permute.xlu0 %6512
    %6515 = vset.pattern.permute.xlu0 5
    %6516 = vperm.xlu0 %6515, %v2193
    %v6517 = vpop.permute.xlu0 %6516
    %6519 = vset.pattern.permute.xlu0 5
    %6520 = vperm.xlu0 %6519, %v2194
    %v6521 = vpop.permute.xlu0 %6520
    %6523 = vset.pattern.permute.xlu0 5
    %6524 = vperm.xlu0 %6523, %v2195
    %v6525 = vpop.permute.xlu0 %6524
    %6527 = vset.pattern.permute.xlu0 5
    %6528 = vperm.xlu0 %6527, %v2196
    %v6529 = vpop.permute.xlu0 %6528
    %6531 = vset.pattern.permute.xlu0 5
    %6532 = vperm.xlu0 %6531, %v2197
    %v6533 = vpop.permute.xlu0 %6532
    %6535 = vset.pattern.permute.xlu0 5
    %6536 = vperm.xlu0 %6535, %v2198
    %v6537 = vpop.permute.xlu0 %6536
    %6539 = vset.pattern.permute.xlu0 5
    %6540 = vperm.xlu0 %6539, %v2199
    %v6541 = vpop.permute.xlu0 %6540
    %6543 = vset.pattern.permute.xlu0 5
    %6544 = vperm.xlu0 %6543, %v2200
    %v6545 = vpop.permute.xlu0 %6544
    %6547 = vset.pattern.permute.xlu0 5
    %6548 = vperm.xlu0 %6547, %v2201
    %v6549 = vpop.permute.xlu0 %6548
    %6551 = vset.pattern.permute.xlu0 5
    %6552 = vperm.xlu0 %6551, %v2202
    %v6553 = vpop.permute.xlu0 %6552
    %6555 = vset.pattern.permute.xlu0 5
    %6556 = vperm.xlu0 %6555, %v2203
    %v6557 = vpop.permute.xlu0 %6556
    %6559 = vset.pattern.permute.xlu0 5
    %6560 = vperm.xlu0 %6559, %v2204
    %v6561 = vpop.permute.xlu0 %6560
    %6563 = vset.pattern.permute.xlu0 5
    %6564 = vperm.xlu0 %6563, %v2205
    %v6565 = vpop.permute.xlu0 %6564
    %6567 = vset.pattern.permute.xlu0 5
    %6568 = vperm.xlu0 %6567, %v2206
    %v6569 = vpop.permute.xlu0 %6568
    %6571 = vset.pattern.permute.xlu0 5
    %6572 = vperm.xlu0 %6571, %v2207
    %v6573 = vpop.permute.xlu0 %6572
    %6575 = vset.pattern.permute.xlu0 5
    %6576 = vperm.xlu0 %6575, %v2208
    %v6577 = vpop.permute.xlu0 %6576
    %6579 = vset.pattern.permute.xlu0 5
    %6580 = vperm.xlu0 %6579, %v2209
    %v6581 = vpop.permute.xlu0 %6580
    %6583 = vset.pattern.permute.xlu0 5
    %6584 = vperm.xlu0 %6583, %v2210
    %v6585 = vpop.permute.xlu0 %6584
    %6587 = vset.pattern.permute.xlu0 5
    %6588 = vperm.xlu0 %6587, %v2211
    %v6589 = vpop.permute.xlu0 %6588
    %6591 = vset.pattern.permute.xlu0 5
    %6592 = vperm.xlu0 %6591, %v2212
    %v6593 = vpop.permute.xlu0 %6592
    %6595 = vset.pattern.permute.xlu0 5
    %6596 = vperm.xlu0 %6595, %v2213
    %v6597 = vpop.permute.xlu0 %6596
    %6599 = vset.pattern.permute.xlu0 5
    %6600 = vperm.xlu0 %6599, %v2214
    %v6601 = vpop.permute.xlu0 %6600
    %6603 = vset.pattern.permute.xlu0 5
    %6604 = vperm.xlu0 %6603, %v2215
    %v6605 = vpop.permute.xlu0 %6604
    %6607 = vset.pattern.permute.xlu0 5
    %6608 = vperm.xlu0 %6607, %v2216
    %v6609 = vpop.permute.xlu0 %6608
    %6611 = vset.pattern.permute.xlu0 5
    %6612 = vperm.xlu0 %6611, %v2217
    %v6613 = vpop.permute.xlu0 %6612
    %6615 = vset.pattern.permute.xlu0 5
    %6616 = vperm.xlu0 %6615, %v2218
    %v6617 = vpop.permute.xlu0 %6616
    %6619 = vset.pattern.permute.xlu0 5
    %6620 = vperm.xlu0 %6619, %v2219
    %v6621 = vpop.permute.xlu0 %6620
    %6623 = vset.pattern.permute.xlu0 5
    %6624 = vperm.xlu0 %6623, %v2220
    %v6625 = vpop.permute.xlu0 %6624
    %6627 = vset.pattern.permute.xlu0 5
    %6628 = vperm.xlu0 %6627, %v2221
    %v6629 = vpop.permute.xlu0 %6628
    %6631 = vset.pattern.permute.xlu0 5
    %6632 = vperm.xlu0 %6631, %v2222
    %v6633 = vpop.permute.xlu0 %6632
    %6635 = vset.pattern.permute.xlu0 5
    %6636 = vperm.xlu0 %6635, %v2223
    %v6637 = vpop.permute.xlu0 %6636
    %6639 = vset.pattern.permute.xlu0 5
    %6640 = vperm.xlu0 %6639, %v2224
    %v6641 = vpop.permute.xlu0 %6640
    %6643 = vset.pattern.permute.xlu0 5
    %6644 = vperm.xlu0 %6643, %v2225
    %v6645 = vpop.permute.xlu0 %6644
    %6647 = vset.pattern.permute.xlu0 5
    %6648 = vperm.xlu0 %6647, %v2226
    %v6649 = vpop.permute.xlu0 %6648
    %6651 = vset.pattern.permute.xlu0 5
    %6652 = vperm.xlu0 %6651, %v2227
    %v6653 = vpop.permute.xlu0 %6652
    %6655 = vset.pattern.permute.xlu0 5
    %6656 = vperm.xlu0 %6655, %v2228
    %v6657 = vpop.permute.xlu0 %6656
    %6659 = vset.pattern.permute.xlu0 5
    %6660 = vperm.xlu0 %6659, %v2229
    %v6661 = vpop.permute.xlu0 %6660
    %6663 = vset.pattern.permute.xlu0 5
    %6664 = vperm.xlu0 %6663, %v2230
    %v6665 = vpop.permute.xlu0 %6664
    %6667 = vset.pattern.permute.xlu0 5
    %6668 = vperm.xlu0 %6667, %v2231
    %v6669 = vpop.permute.xlu0 %6668
    %6671 = vset.pattern.permute.xlu0 5
    %6672 = vperm.xlu0 %6671, %v2232
    %v6673 = vpop.permute.xlu0 %6672
    %6675 = vset.pattern.permute.xlu0 5
    %6676 = vperm.xlu0 %6675, %v2233
    %v6677 = vpop.permute.xlu0 %6676
    %6679 = vset.pattern.permute.xlu0 5
    %6680 = vperm.xlu0 %6679, %v2234
    %v6681 = vpop.permute.xlu0 %6680
    %6683 = vset.pattern.permute.xlu0 5
    %6684 = vperm.xlu0 %6683, %v2235
    %v6685 = vpop.permute.xlu0 %6684
    %6687 = vset.pattern.permute.xlu0 5
    %6688 = vperm.xlu0 %6687, %v2236
    %v6689 = vpop.permute.xlu0 %6688
    %6691 = vset.pattern.permute.xlu0 5
    %6692 = vperm.xlu0 %6691, %v2237
    %v6693 = vpop.permute.xlu0 %6692
    %6695 = vset.pattern.permute.xlu0 5
    %6696 = vperm.xlu0 %6695, %v2238
    %v6697 = vpop.permute.xlu0 %6696
    %6699 = vset.pattern.permute.xlu0 5
    %6700 = vperm.xlu0 %6699, %v2239
    %v6701 = vpop.permute.xlu0 %6700
    %6703 = vset.pattern.permute.xlu0 5
    %6704 = vperm.xlu0 %6703, %v2240
    %v6705 = vpop.permute.xlu0 %6704
    %6707 = vset.pattern.permute.xlu0 5
    %6708 = vperm.xlu0 %6707, %v2241
    %v6709 = vpop.permute.xlu0 %6708
    %6711 = vset.pattern.permute.xlu0 5
    %6712 = vperm.xlu0 %6711, %v2242
    %v6713 = vpop.permute.xlu0 %6712
    %6715 = vset.pattern.permute.xlu0 5
    %6716 = vperm.xlu0 %6715, %v2243
    %v6717 = vpop.permute.xlu0 %6716
    %6719 = vset.pattern.permute.xlu0 5
    %6720 = vperm.xlu0 %6719, %v2244
    %v6721 = vpop.permute.xlu0 %6720
    %6723 = vset.pattern.permute.xlu0 5
    %6724 = vperm.xlu0 %6723, %v2245
    %v6725 = vpop.permute.xlu0 %6724
    %6727 = vset.pattern.permute.xlu0 5
    %6728 = vperm.xlu0 %6727, %v2246
    %v6729 = vpop.permute.xlu0 %6728
    %6731 = vset.pattern.permute.xlu0 5
    %6732 = vperm.xlu0 %6731, %v2247
    %v6733 = vpop.permute.xlu0 %6732
    %6735 = vset.pattern.permute.xlu0 5
    %6736 = vperm.xlu0 %6735, %v2248
    %v6737 = vpop.permute.xlu0 %6736
    %v6739 = vmul.f32 %v3979, %v6485
    %v6740 = vmul.f32 %v3978, %v6489
    %v6741 = vmul.f32 %v3977, %v6493
    %v6742 = vmul.f32 %v3976, %v6497
    %v6743 = vmul.f32 %v3975, %v6501
    %v6744 = vmul.f32 %v3974, %v6505
    %v6745 = vmul.f32 %v3973, %v6509
    %v6746 = vmul.f32 %v3972, %v6513
    %v6747 = vmul.f32 %v3971, %v6517
    %v6748 = vmul.f32 %v3970, %v6521
    %v6749 = vmul.f32 %v3969, %v6525
    %v6750 = vmul.f32 %v3968, %v6529
    %v6751 = vmul.f32 %v3967, %v6533
    %v6752 = vmul.f32 %v3966, %v6537
    %v6753 = vmul.f32 %v3965, %v6541
    %v6754 = vmul.f32 %v3964, %v6545
    %v6755 = vmul.f32 %v3963, %v6549
    %v6756 = vmul.f32 %v3962, %v6553
    %v6757 = vmul.f32 %v3961, %v6557
    %v6758 = vmul.f32 %v3960, %v6561
    %v6759 = vmul.f32 %v3959, %v6565
    %v6760 = vmul.f32 %v3958, %v6569
    %v6761 = vmul.f32 %v3957, %v6573
    %v6762 = vmul.f32 %v3956, %v6577
    %v6763 = vmul.f32 %v3955, %v6581
    %v6764 = vmul.f32 %v3954, %v6585
    %v6765 = vmul.f32 %v3953, %v6589
    %v6766 = vmul.f32 %v3952, %v6593
    %v6767 = vmul.f32 %v3951, %v6597
    %v6768 = vmul.f32 %v3950, %v6601
    %v6769 = vmul.f32 %v3949, %v6605
    %v6770 = vmul.f32 %v3948, %v6609
    %v6771 = vmul.f32 %v3947, %v6613
    %v6772 = vmul.f32 %v3946, %v6617
    %v6773 = vmul.f32 %v3945, %v6621
    %v6774 = vmul.f32 %v3944, %v6625
    %v6775 = vmul.f32 %v3943, %v6629
    %v6776 = vmul.f32 %v3942, %v6633
    %v6777 = vmul.f32 %v3941, %v6637
    %v6778 = vmul.f32 %v3940, %v6641
    %v6779 = vmul.f32 %v3939, %v6645
    %v6780 = vmul.f32 %v3938, %v6649
    %v6781 = vmul.f32 %v3937, %v6653
    %v6782 = vmul.f32 %v3936, %v6657
    %v6783 = vmul.f32 %v3935, %v6661
    %v6784 = vmul.f32 %v3934, %v6665
    %v6785 = vmul.f32 %v3933, %v6669
    %v6786 = vmul.f32 %v3932, %v6673
    %v6787 = vmul.f32 %v3931, %v6677
    %v6788 = vmul.f32 %v3930, %v6681
    %v6789 = vmul.f32 %v3929, %v6685
    %v6790 = vmul.f32 %v3928, %v6689
    %v6791 = vmul.f32 %v3927, %v6693
    %v6792 = vmul.f32 %v3926, %v6697
    %v6793 = vmul.f32 %v3925, %v6701
    %v6794 = vmul.f32 %v3924, %v6705
    %v6795 = vmul.f32 %v3923, %v6709
    %v6796 = vmul.f32 %v3922, %v6713
    %v6797 = vmul.f32 %v3921, %v6717
    %v6798 = vmul.f32 %v3920, %v6721
    %v6799 = vmul.f32 %v3919, %v6725
    %v6800 = vmul.f32 %v3918, %v6729
    %v6801 = vmul.f32 %v3917, %v6733
    %v6802 = vmul.f32 %v3980, %v6737
    %v6803 = vpack.c.bf16 %v6740, %v6739
    %v6804 = vpack.c.bf16 %v6742, %v6741
    %v6805 = vpack.c.bf16 %v6744, %v6743
    %v6806 = vpack.c.bf16 %v6746, %v6745
    %v6807 = vpack.c.bf16 %v6748, %v6747
    %v6808 = vpack.c.bf16 %v6750, %v6749
    %v6809 = vpack.c.bf16 %v6752, %v6751
    %v6810 = vpack.c.bf16 %v6754, %v6753
    %v6811 = vpack.c.bf16 %v6756, %v6755
    %v6812 = vpack.c.bf16 %v6758, %v6757
    %v6813 = vpack.c.bf16 %v6760, %v6759
    %v6814 = vpack.c.bf16 %v6762, %v6761
    %v6815 = vpack.c.bf16 %v6764, %v6763
    %v6816 = vpack.c.bf16 %v6766, %v6765
    %v6817 = vpack.c.bf16 %v6768, %v6767
    %v6818 = vpack.c.bf16 %v6770, %v6769
    %v6819 = vpack.c.bf16 %v6772, %v6771
    %v6820 = vpack.c.bf16 %v6774, %v6773
    %v6821 = vpack.c.bf16 %v6776, %v6775
    %v6822 = vpack.c.bf16 %v6778, %v6777
    %v6823 = vpack.c.bf16 %v6780, %v6779
    %v6824 = vpack.c.bf16 %v6782, %v6781
    %v6825 = vpack.c.bf16 %v6784, %v6783
    %v6826 = vpack.c.bf16 %v6786, %v6785
    %v6827 = vpack.c.bf16 %v6788, %v6787
    %v6828 = vpack.c.bf16 %v6790, %v6789
    %v6829 = vpack.c.bf16 %v6792, %v6791
    %v6830 = vpack.c.bf16 %v6794, %v6793
    %v6831 = vpack.c.bf16 %v6796, %v6795
    %v6832 = vpack.c.bf16 %v6798, %v6797
    %v6833 = vpack.c.bf16 %v6800, %v6799
    %v6834 = vpack.c.bf16 %v6802, %v6801
    %s6835 = scalar_lea.vmem %s8, 160
    %v6836 = vld [vmem:[%s6835] sm:$0xf]
    %v6837 = vld [vmem:[%s6835 + $0x4] sm:$0xf]
    %v6838 = vld [vmem:[%s6835 + $0x8] sm:$0xf]
    %v6839 = vld [vmem:[%s6835 + $0xc] sm:$0xf]
    %v6840 = vld [vmem:[%s6835 + $0x10] sm:$0xf]
    %v6841 = vld [vmem:[%s6835 + $0x14] sm:$0xf]
    %v6842 = vld [vmem:[%s6835 + $0x18] sm:$0xf]
    %v6843 = vld [vmem:[%s6835 + $0x1c] sm:$0xf]
    %v6852 = vunpack.c.l.b16 %v6836
    %v6853 = vunpack.c.l.b16 %v6837
    %v6854 = vunpack.c.l.b16 %v6838
    %v6855 = vunpack.c.l.b16 %v6839
    %v6856 = vunpack.c.l.b16 %v6840
    %v6857 = vunpack.c.l.b16 %v6841
    %v6858 = vunpack.c.l.b16 %v6842
    %v6859 = vunpack.c.l.b16 %v6843
    %v6860 = vpack.c.b16 %v6853, %v6852
    %v6861 = vpack.c.b16 %v6855, %v6854
    %v6862 = vpack.c.b16 %v6857, %v6856
    %v6863 = vpack.c.b16 %v6859, %v6858
    %v6869 = vsel %vm368, %v6803, 0
    %v6872 = vsel %vm368, %v6804, 0
    %v6875 = vsel %vm368, %v6805, 0
    %v6878 = vsel %vm368, %v6806, 0
    %v6881 = vsel %vm368, %v6807, 0
    %v6884 = vsel %vm368, %v6808, 0
    %v6887 = vsel %vm368, %v6809, 0
    %v6890 = vsel %vm368, %v6810, 0
    %v6893 = vsel %vm368, %v6811, 0
    %v6896 = vsel %vm368, %v6812, 0
    %v6899 = vsel %vm368, %v6813, 0
    %v6902 = vsel %vm368, %v6814, 0
    %v6905 = vsel %vm368, %v6815, 0
    %v6908 = vsel %vm368, %v6816, 0
    %v6911 = vsel %vm368, %v6817, 0
    %v6914 = vsel %vm368, %v6818, 0
    %v6917 = vsel %vm368, %v6819, 0
    %v6920 = vsel %vm368, %v6820, 0
    %v6923 = vsel %vm368, %v6821, 0
    %v6926 = vsel %vm368, %v6822, 0
    %v6929 = vsel %vm368, %v6823, 0
    %v6932 = vsel %vm368, %v6824, 0
    %v6935 = vsel %vm368, %v6825, 0
    %v6938 = vsel %vm368, %v6826, 0
    %v6941 = vsel %vm368, %v6827, 0
    %v6944 = vsel %vm368, %v6828, 0
    %v6947 = vsel %vm368, %v6829, 0
    %v6950 = vsel %vm368, %v6830, 0
    %v6953 = vsel %vm368, %v6831, 0
    %v6956 = vsel %vm368, %v6832, 0
    %v6959 = vsel %vm368, %v6833, 0
    %v6962 = vsel %vm368, %v6834, 0
    %6964 = vmatprep.subr.bf16.mxu0 0
    %6965 = vmatpush1.bf16.msra.mxu0 %v6860
    %6966 = vmatprep.subr.bf16.mxu0 0
    %6967 = vmatpush1.bf16.msra.mxu0 %v6861
    %6968 = vmatprep.subr.bf16.mxu0 0
    %6969 = vmatpush1.bf16.msra.mxu0 %v6862
    %6970 = vmatprep.subr.bf16.mxu0 0
    %6971 = vmatpush1.bf16.msra.mxu0 %v6863
    %6972 = vmatprep.subr.bf16.mxu0 0
    %6973 = vmatpush1.bf16.msra.mxu0 0
    %6974 = vmatprep.subr.bf16.mxu0 0
    %6975 = vmatpush1.bf16.msra.mxu0 0
    %6976 = vmatprep.subr.bf16.mxu0 0
    %6977 = vmatpush1.bf16.msra.mxu0 0
    %6978 = vmatprep.subr.bf16.mxu0 0
    %6979 = vmatpush1.bf16.msra.mxu0 0
    %6980 = vmatprep.subr.bf16.mxu0 0
    %6981 = vmatpush1.bf16.msra.mxu0 0
    %6982 = vmatprep.subr.bf16.mxu0 0
    %6983 = vmatpush1.bf16.msra.mxu0 0
    %6984 = vmatprep.subr.bf16.mxu0 0
    %6985 = vmatpush1.bf16.msra.mxu0 0
    %6986 = vmatprep.subr.bf16.mxu0 0
    %6987 = vmatpush1.bf16.msra.mxu0 0
    %6988 = vmatprep.subr.bf16.mxu0 0
    %6989 = vmatpush1.bf16.msra.mxu0 0
    %6990 = vmatprep.subr.bf16.mxu0 0
    %6991 = vmatpush1.bf16.msra.mxu0 0
    %6992 = vmatprep.subr.bf16.mxu0 0
    %6993 = vmatpush1.bf16.msra.mxu0 0
    %6994 = vmatprep.subr.bf16.mxu0 0
    %6995 = vmatpush1.bf16.msra.mxu0 0
    %6996 = vmatprep.mubr.bf16.mxu0 0
    %6997 = vmatmul.mubr.bf16.gmra.mrb[0].mxu0 %v6869
    %v6998 = vpop.f32.mrb[0].mxu0
    %v6999 = vadd.f32 0.0, %v6998
    %v7000 = vpop.f32.mrb[0].mxu0
    %v7001 = vpop.f32.mrb[0].mxu0
    %v7002 = vadd.f32 0.0, %v7001
    %v7003 = vpop.f32.mrb[0].mxu0
    %7004 = vmatprep.mubr.bf16.mxu0 0
    %7005 = vmatmul.mubr.bf16.gmra.mrb[0].mxu0 %v6872
    %v7006 = vpop.f32.mrb[0].mxu0
    %v7007 = vadd.f32 0.0, %v7006
    %v7008 = vpop.f32.mrb[0].mxu0
    %v7009 = vpop.f32.mrb[0].mxu0
    %v7010 = vadd.f32 0.0, %v7009
    %v7011 = vpop.f32.mrb[0].mxu0
    %7012 = vmatprep.mubr.bf16.mxu0 0
    %7013 = vmatmul.mubr.bf16.gmra.mrb[0].mxu0 %v6875
    %v7014 = vpop.f32.mrb[0].mxu0
    %v7015 = vadd.f32 0.0, %v7014
    %v7016 = vpop.f32.mrb[0].mxu0
    %v7017 = vpop.f32.mrb[0].mxu0
    %v7018 = vadd.f32 0.0, %v7017
    %v7019 = vpop.f32.mrb[0].mxu0
    %7020 = vmatprep.mubr.bf16.mxu0 0
    %7021 = vmatmul.mubr.bf16.gmra.mrb[0].mxu0 %v6878
    %v7022 = vpop.f32.mrb[0].mxu0
    %v7023 = vadd.f32 0.0, %v7022
    %v7024 = vpop.f32.mrb[0].mxu0
    %v7025 = vpop.f32.mrb[0].mxu0
    %v7026 = vadd.f32 0.0, %v7025
    %v7027 = vpop.f32.mrb[0].mxu0
    %7028 = vmatprep.mubr.bf16.mxu0 0
    %7029 = vmatmul.mubr.bf16.gmra.mrb[0].mxu0 %v6881
    %v7030 = vpop.f32.mrb[0].mxu0
    %v7031 = vadd.f32 0.0, %v7030
    %v7032 = vpop.f32.mrb[0].mxu0
    %v7033 = vpop.f32.mrb[0].mxu0
    %v7034 = vadd.f32 0.0, %v7033
    %v7035 = vpop.f32.mrb[0].mxu0
    %7036 = vmatprep.mubr.bf16.mxu0 0
    %7037 = vmatmul.mubr.bf16.gmra.mrb[0].mxu0 %v6884
    %v7038 = vpop.f32.mrb[0].mxu0
    %v7039 = vadd.f32 0.0, %v7038
    %v7040 = vpop.f32.mrb[0].mxu0
    %v7041 = vpop.f32.mrb[0].mxu0
    %v7042 = vadd.f32 0.0, %v7041
    %v7043 = vpop.f32.mrb[0].mxu0
    %7044 = vmatprep.mubr.bf16.mxu0 0
    %7045 = vmatmul.mubr.bf16.gmra.mrb[0].mxu0 %v6887
    %v7046 = vpop.f32.mrb[0].mxu0
    %v7047 = vadd.f32 0.0, %v7046
    %v7048 = vpop.f32.mrb[0].mxu0
    %v7049 = vpop.f32.mrb[0].mxu0
    %v7050 = vadd.f32 0.0, %v7049
    %v7051 = vpop.f32.mrb[0].mxu0
    %7052 = vmatprep.mubr.bf16.mxu0 0
    %7053 = vmatmul.mubr.bf16.gmra.mrb[0].mxu0 %v6890
    %v7054 = vpop.f32.mrb[0].mxu0
    %v7055 = vadd.f32 0.0, %v7054
    %v7056 = vpop.f32.mrb[0].mxu0
    %v7057 = vpop.f32.mrb[0].mxu0
    %v7058 = vadd.f32 0.0, %v7057
    %v7059 = vpop.f32.mrb[0].mxu0
    %7060 = vmatprep.mubr.bf16.mxu0 0
    %7061 = vmatmul.mubr.bf16.gmra.mrb[0].mxu0 %v6893
    %v7062 = vpop.f32.mrb[0].mxu0
    %v7063 = vadd.f32 0.0, %v7062
    %v7064 = vpop.f32.mrb[0].mxu0
    %v7065 = vpop.f32.mrb[0].mxu0
    %v7066 = vadd.f32 0.0, %v7065
    %v7067 = vpop.f32.mrb[0].mxu0
    %7068 = vmatprep.mubr.bf16.mxu0 0
    %7069 = vmatmul.mubr.bf16.gmra.mrb[0].mxu0 %v6896
    %v7070 = vpop.f32.mrb[0].mxu0
    %v7071 = vadd.f32 0.0, %v7070
    %v7072 = vpop.f32.mrb[0].mxu0
    %v7073 = vpop.f32.mrb[0].mxu0
    %v7074 = vadd.f32 0.0, %v7073
    %v7075 = vpop.f32.mrb[0].mxu0
    %7076 = vmatprep.mubr.bf16.mxu0 0
    %7077 = vmatmul.mubr.bf16.gmra.mrb[0].mxu0 %v6899
    %v7078 = vpop.f32.mrb[0].mxu0
    %v7079 = vadd.f32 0.0, %v7078
    %v7080 = vpop.f32.mrb[0].mxu0
    %v7081 = vpop.f32.mrb[0].mxu0
    %v7082 = vadd.f32 0.0, %v7081
    %v7083 = vpop.f32.mrb[0].mxu0
    %7084 = vmatprep.mubr.bf16.mxu0 0
    %7085 = vmatmul.mubr.bf16.gmra.mrb[0].mxu0 %v6902
    %v7086 = vpop.f32.mrb[0].mxu0
    %v7087 = vadd.f32 0.0, %v7086
    %v7088 = vpop.f32.mrb[0].mxu0
    %v7089 = vpop.f32.mrb[0].mxu0
    %v7090 = vadd.f32 0.0, %v7089
    %v7091 = vpop.f32.mrb[0].mxu0
    %7092 = vmatprep.mubr.bf16.mxu0 0
    %7093 = vmatmul.mubr.bf16.gmra.mrb[0].mxu0 %v6905
    %v7094 = vpop.f32.mrb[0].mxu0
    %v7095 = vadd.f32 0.0, %v7094
    %v7096 = vpop.f32.mrb[0].mxu0
    %v7097 = vpop.f32.mrb[0].mxu0
    %v7098 = vadd.f32 0.0, %v7097
    %v7099 = vpop.f32.mrb[0].mxu0
    %7100 = vmatprep.mubr.bf16.mxu0 0
    %7101 = vmatmul.mubr.bf16.gmra.mrb[0].mxu0 %v6908
    %v7102 = vpop.f32.mrb[0].mxu0
    %v7103 = vadd.f32 0.0, %v7102
    %v7104 = vpop.f32.mrb[0].mxu0
    %v7105 = vpop.f32.mrb[0].mxu0
    %v7106 = vadd.f32 0.0, %v7105
    %v7107 = vpop.f32.mrb[0].mxu0
    %7108 = vmatprep.mubr.bf16.mxu0 0
    %7109 = vmatmul.mubr.bf16.gmra.mrb[0].mxu0 %v6911
    %v7110 = vpop.f32.mrb[0].mxu0
    %v7111 = vadd.f32 0.0, %v7110
    %v7112 = vpop.f32.mrb[0].mxu0
    %v7113 = vpop.f32.mrb[0].mxu0
    %v7114 = vadd.f32 0.0, %v7113
    %v7115 = vpop.f32.mrb[0].mxu0
    %7116 = vmatprep.mubr.bf16.mxu0 0
    %7117 = vmatmul.mubr.bf16.gmra.mrb[0].mxu0 %v6914
    %v7118 = vpop.f32.mrb[0].mxu0
    %v7119 = vadd.f32 0.0, %v7118
    %v7120 = vpop.f32.mrb[0].mxu0
    %v7121 = vpop.f32.mrb[0].mxu0
    %v7122 = vadd.f32 0.0, %v7121
    %v7123 = vpop.f32.mrb[0].mxu0
    %7124 = vmatprep.mubr.bf16.mxu0 0
    %7125 = vmatmul.mubr.bf16.gmra.mrb[0].mxu0 %v6917
    %v7126 = vpop.f32.mrb[0].mxu0
    %v7127 = vadd.f32 0.0, %v7126
    %v7128 = vpop.f32.mrb[0].mxu0
    %v7129 = vpop.f32.mrb[0].mxu0
    %v7130 = vadd.f32 0.0, %v7129
    %v7131 = vpop.f32.mrb[0].mxu0
    %7132 = vmatprep.mubr.bf16.mxu0 0
    %7133 = vmatmul.mubr.bf16.gmra.mrb[0].mxu0 %v6920
    %v7134 = vpop.f32.mrb[0].mxu0
    %v7135 = vadd.f32 0.0, %v7134
    %v7136 = vpop.f32.mrb[0].mxu0
    %v7137 = vpop.f32.mrb[0].mxu0
    %v7138 = vadd.f32 0.0, %v7137
    %v7139 = vpop.f32.mrb[0].mxu0
    %7140 = vmatprep.mubr.bf16.mxu0 0
    %7141 = vmatmul.mubr.bf16.gmra.mrb[0].mxu0 %v6923
    %v7142 = vpop.f32.mrb[0].mxu0
    %v7143 = vadd.f32 0.0, %v7142
    %v7144 = vpop.f32.mrb[0].mxu0
    %v7145 = vpop.f32.mrb[0].mxu0
    %v7146 = vadd.f32 0.0, %v7145
    %v7147 = vpop.f32.mrb[0].mxu0
    %7148 = vmatprep.mubr.bf16.mxu0 0
    %7149 = vmatmul.mubr.bf16.gmra.mrb[0].mxu0 %v6926
    %v7150 = vpop.f32.mrb[0].mxu0
    %v7151 = vadd.f32 0.0, %v7150
    %v7152 = vpop.f32.mrb[0].mxu0
    %v7153 = vpop.f32.mrb[0].mxu0
    %v7154 = vadd.f32 0.0, %v7153
    %v7155 = vpop.f32.mrb[0].mxu0
    %7156 = vmatprep.mubr.bf16.mxu0 0
    %7157 = vmatmul.mubr.bf16.gmra.mrb[0].mxu0 %v6929
    %v7158 = vpop.f32.mrb[0].mxu0
    %v7159 = vadd.f32 0.0, %v7158
    %v7160 = vpop.f32.mrb[0].mxu0
    %v7161 = vpop.f32.mrb[0].mxu0
    %v7162 = vadd.f32 0.0, %v7161
    %v7163 = vpop.f32.mrb[0].mxu0
    %7164 = vmatprep.mubr.bf16.mxu0 0
    %7165 = vmatmul.mubr.bf16.gmra.mrb[0].mxu0 %v6932
    %v7166 = vpop.f32.mrb[0].mxu0
    %v7167 = vadd.f32 0.0, %v7166
    %v7168 = vpop.f32.mrb[0].mxu0
    %v7169 = vpop.f32.mrb[0].mxu0
    %v7170 = vadd.f32 0.0, %v7169
    %v7171 = vpop.f32.mrb[0].mxu0
    %7172 = vmatprep.mubr.bf16.mxu0 0
    %7173 = vmatmul.mubr.bf16.gmra.mrb[0].mxu0 %v6935
    %v7174 = vpop.f32.mrb[0].mxu0
    %v7175 = vadd.f32 0.0, %v7174
    %v7176 = vpop.f32.mrb[0].mxu0
    %v7177 = vpop.f32.mrb[0].mxu0
    %v7178 = vadd.f32 0.0, %v7177
    %v7179 = vpop.f32.mrb[0].mxu0
    %7180 = vmatprep.mubr.bf16.mxu0 0
    %7181 = vmatmul.mubr.bf16.gmra.mrb[0].mxu0 %v6938
    %v7182 = vpop.f32.mrb[0].mxu0
    %v7183 = vadd.f32 0.0, %v7182
    %v7184 = vpop.f32.mrb[0].mxu0
    %v7185 = vpop.f32.mrb[0].mxu0
    %v7186 = vadd.f32 0.0, %v7185
    %v7187 = vpop.f32.mrb[0].mxu0
    %7188 = vmatprep.mubr.bf16.mxu0 0
    %7189 = vmatmul.mubr.bf16.gmra.mrb[0].mxu0 %v6941
    %v7190 = vpop.f32.mrb[0].mxu0
    %v7191 = vadd.f32 0.0, %v7190
    %v7192 = vpop.f32.mrb[0].mxu0
    %v7193 = vpop.f32.mrb[0].mxu0
    %v7194 = vadd.f32 0.0, %v7193
    %v7195 = vpop.f32.mrb[0].mxu0
    %7196 = vmatprep.mubr.bf16.mxu0 0
    %7197 = vmatmul.mubr.bf16.gmra.mrb[0].mxu0 %v6944
    %v7198 = vpop.f32.mrb[0].mxu0
    %v7199 = vadd.f32 0.0, %v7198
    %v7200 = vpop.f32.mrb[0].mxu0
    %v7201 = vpop.f32.mrb[0].mxu0
    %v7202 = vadd.f32 0.0, %v7201
    %v7203 = vpop.f32.mrb[0].mxu0
    %7204 = vmatprep.mubr.bf16.mxu0 0
    %7205 = vmatmul.mubr.bf16.gmra.mrb[0].mxu0 %v6947
    %v7206 = vpop.f32.mrb[0].mxu0
    %v7207 = vadd.f32 0.0, %v7206
    %v7208 = vpop.f32.mrb[0].mxu0
    %v7209 = vpop.f32.mrb[0].mxu0
    %v7210 = vadd.f32 0.0, %v7209
    %v7211 = vpop.f32.mrb[0].mxu0
    %7212 = vmatprep.mubr.bf16.mxu0 0
    %7213 = vmatmul.mubr.bf16.gmra.mrb[0].mxu0 %v6950
    %v7214 = vpop.f32.mrb[0].mxu0
    %v7215 = vadd.f32 0.0, %v7214
    %v7216 = vpop.f32.mrb[0].mxu0
    %v7217 = vpop.f32.mrb[0].mxu0
    %v7218 = vadd.f32 0.0, %v7217
    %v7219 = vpop.f32.mrb[0].mxu0
    %7220 = vmatprep.mubr.bf16.mxu0 0
    %7221 = vmatmul.mubr.bf16.gmra.mrb[0].mxu0 %v6953
    %v7222 = vpop.f32.mrb[0].mxu0
    %v7223 = vadd.f32 0.0, %v7222
    %v7224 = vpop.f32.mrb[0].mxu0
    %v7225 = vpop.f32.mrb[0].mxu0
    %v7226 = vadd.f32 0.0, %v7225
    %v7227 = vpop.f32.mrb[0].mxu0
    %7228 = vmatprep.mubr.bf16.mxu0 0
    %7229 = vmatmul.mubr.bf16.gmra.mrb[0].mxu0 %v6956
    %v7230 = vpop.f32.mrb[0].mxu0
    %v7231 = vadd.f32 0.0, %v7230
    %v7232 = vpop.f32.mrb[0].mxu0
    %v7233 = vpop.f32.mrb[0].mxu0
    %v7234 = vadd.f32 0.0, %v7233
    %v7235 = vpop.f32.mrb[0].mxu0
    %7236 = vmatprep.mubr.bf16.mxu0 0
    %7237 = vmatmul.mubr.bf16.gmra.mrb[0].mxu0 %v6959
    %v7238 = vpop.f32.mrb[0].mxu0
    %v7239 = vadd.f32 0.0, %v7238
    %v7240 = vpop.f32.mrb[0].mxu0
    %v7241 = vpop.f32.mrb[0].mxu0
    %v7242 = vadd.f32 0.0, %v7241
    %v7243 = vpop.f32.mrb[0].mxu0
    %7244 = vmatprep.mubr.bf16.mxu0 0
    %7245 = vmatmul.mubr.bf16.gmra.mrb[0].mxu0 %v6962
    %v7246 = vpop.f32.mrb[0].mxu0
    %v7247 = vadd.f32 0.0, %v7246
    %v7248 = vpop.f32.mrb[0].mxu0
    %v7249 = vpop.f32.mrb[0].mxu0
    %v7250 = vadd.f32 0.0, %v7249
    %v7251 = vpop.f32.mrb[0].mxu0
    %7252 = vdwg.mxu0
    %v7253 = vadd.f32 %v6419, %v6999
    %v7254 = vadd.f32 %v6420, %v7002
    %v7255 = vadd.f32 %v6421, %v7007
    %v7256 = vadd.f32 %v6422, %v7010
    %v7257 = vadd.f32 %v6423, %v7015
    %v7258 = vadd.f32 %v6424, %v7018
    %v7259 = vadd.f32 %v6425, %v7023
    %v7260 = vadd.f32 %v6426, %v7026
    %v7261 = vadd.f32 %v6427, %v7031
    %v7262 = vadd.f32 %v6428, %v7034
    %v7263 = vadd.f32 %v6429, %v7039
    %v7264 = vadd.f32 %v6430, %v7042
    %v7265 = vadd.f32 %v6431, %v7047
    %v7266 = vadd.f32 %v6432, %v7050
    %v7267 = vadd.f32 %v6433, %v7055
    %v7268 = vadd.f32 %v6434, %v7058
    %v7269 = vadd.f32 %v6435, %v7063
    %v7270 = vadd.f32 %v6436, %v7066
    %v7271 = vadd.f32 %v6437, %v7071
    %v7272 = vadd.f32 %v6438, %v7074
    %v7273 = vadd.f32 %v6439, %v7079
    %v7274 = vadd.f32 %v6440, %v7082
    %v7275 = vadd.f32 %v6441, %v7087
    %v7276 = vadd.f32 %v6442, %v7090
    %v7277 = vadd.f32 %v6443, %v7095
    %v7278 = vadd.f32 %v6444, %v7098
    %v7279 = vadd.f32 %v6445, %v7103
    %v7280 = vadd.f32 %v6446, %v7106
    %v7281 = vadd.f32 %v6447, %v7111
    %v7282 = vadd.f32 %v6448, %v7114
    %v7283 = vadd.f32 %v6449, %v7119
    %v7284 = vadd.f32 %v6450, %v7122
    %v7285 = vadd.f32 %v6451, %v7127
    %v7286 = vadd.f32 %v6452, %v7130
    %v7287 = vadd.f32 %v6453, %v7135
    %v7288 = vadd.f32 %v6454, %v7138
    %v7289 = vadd.f32 %v6455, %v7143
    %v7290 = vadd.f32 %v6456, %v7146
    %v7291 = vadd.f32 %v6457, %v7151
    %v7292 = vadd.f32 %v6458, %v7154
    %v7293 = vadd.f32 %v6459, %v7159
    %v7294 = vadd.f32 %v6460, %v7162
    %v7295 = vadd.f32 %v6461, %v7167
    %v7296 = vadd.f32 %v6462, %v7170
    %v7297 = vadd.f32 %v6463, %v7175
    %v7298 = vadd.f32 %v6464, %v7178
    %v7299 = vadd.f32 %v6465, %v7183
    %v7300 = vadd.f32 %v6466, %v7186
    %v7301 = vadd.f32 %v6467, %v7191
    %v7302 = vadd.f32 %v6468, %v7194
    %v7303 = vadd.f32 %v6469, %v7199
    %v7304 = vadd.f32 %v6470, %v7202
    %v7305 = vadd.f32 %v6471, %v7207
    %v7306 = vadd.f32 %v6472, %v7210
    %v7307 = vadd.f32 %v6473, %v7215
    %v7308 = vadd.f32 %v6474, %v7218
    %v7309 = vadd.f32 %v6475, %v7223
    %v7310 = vadd.f32 %v6476, %v7226
    %v7311 = vadd.f32 %v6477, %v7231
    %v7312 = vadd.f32 %v6478, %v7234
    %v7313 = vadd.f32 %v6479, %v7239
    %v7314 = vadd.f32 %v6480, %v7242
    %v7315 = vadd.f32 %v6481, %v7247
    %v7316 = vadd.f32 %v6482, %v7250
    %7317 = vset.pattern.permute.xlu0 6
    %7318 = vperm.xlu0 %7317, %v2185
    %v7319 = vpop.permute.xlu0 %7318
    %7321 = vset.pattern.permute.xlu0 6
    %7322 = vperm.xlu0 %7321, %v2186
    %v7323 = vpop.permute.xlu0 %7322
    %7325 = vset.pattern.permute.xlu0 6
    %7326 = vperm.xlu0 %7325, %v2187
    %v7327 = vpop.permute.xlu0 %7326
    %7329 = vset.pattern.permute.xlu0 6
    %7330 = vperm.xlu0 %7329, %v2188
    %v7331 = vpop.permute.xlu0 %7330
    %7333 = vset.pattern.permute.xlu0 6
    %7334 = vperm.xlu0 %7333, %v2189
    %v7335 = vpop.permute.xlu0 %7334
    %7337 = vset.pattern.permute.xlu0 6
    %7338 = vperm.xlu0 %7337, %v2190
    %v7339 = vpop.permute.xlu0 %7338
    %7341 = vset.pattern.permute.xlu0 6
    %7342 = vperm.xlu0 %7341, %v2191
    %v7343 = vpop.permute.xlu0 %7342
    %7345 = vset.pattern.permute.xlu0 6
    %7346 = vperm.xlu0 %7345, %v2192
    %v7347 = vpop.permute.xlu0 %7346
    %7349 = vset.pattern.permute.xlu0 6
    %7350 = vperm.xlu0 %7349, %v2193
    %v7351 = vpop.permute.xlu0 %7350
    %7353 = vset.pattern.permute.xlu0 6
    %7354 = vperm.xlu0 %7353, %v2194
    %v7355 = vpop.permute.xlu0 %7354
    %7357 = vset.pattern.permute.xlu0 6
    %7358 = vperm.xlu0 %7357, %v2195
    %v7359 = vpop.permute.xlu0 %7358
    %7361 = vset.pattern.permute.xlu0 6
    %7362 = vperm.xlu0 %7361, %v2196
    %v7363 = vpop.permute.xlu0 %7362
    %7365 = vset.pattern.permute.xlu0 6
    %7366 = vperm.xlu0 %7365, %v2197
    %v7367 = vpop.permute.xlu0 %7366
    %7369 = vset.pattern.permute.xlu0 6
    %7370 = vperm.xlu0 %7369, %v2198
    %v7371 = vpop.permute.xlu0 %7370
    %7373 = vset.pattern.permute.xlu0 6
    %7374 = vperm.xlu0 %7373, %v2199
    %v7375 = vpop.permute.xlu0 %7374
    %7377 = vset.pattern.permute.xlu0 6
    %7378 = vperm.xlu0 %7377, %v2200
    %v7379 = vpop.permute.xlu0 %7378
    %7381 = vset.pattern.permute.xlu0 6
    %7382 = vperm.xlu0 %7381, %v2201
    %v7383 = vpop.permute.xlu0 %7382
    %7385 = vset.pattern.permute.xlu0 6
    %7386 = vperm.xlu0 %7385, %v2202
    %v7387 = vpop.permute.xlu0 %7386
    %7389 = vset.pattern.permute.xlu0 6
    %7390 = vperm.xlu0 %7389, %v2203
    %v7391 = vpop.permute.xlu0 %7390
    %7393 = vset.pattern.permute.xlu0 6
    %7394 = vperm.xlu0 %7393, %v2204
    %v7395 = vpop.permute.xlu0 %7394
    %7397 = vset.pattern.permute.xlu0 6
    %7398 = vperm.xlu0 %7397, %v2205
    %v7399 = vpop.permute.xlu0 %7398
    %7401 = vset.pattern.permute.xlu0 6
    %7402 = vperm.xlu0 %7401, %v2206
    %v7403 = vpop.permute.xlu0 %7402
    %7405 = vset.pattern.permute.xlu0 6
    %7406 = vperm.xlu0 %7405, %v2207
    %v7407 = vpop.permute.xlu0 %7406
    %7409 = vset.pattern.permute.xlu0 6
    %7410 = vperm.xlu0 %7409, %v2208
    %v7411 = vpop.permute.xlu0 %7410
    %7413 = vset.pattern.permute.xlu0 6
    %7414 = vperm.xlu0 %7413, %v2209
    %v7415 = vpop.permute.xlu0 %7414
    %7417 = vset.pattern.permute.xlu0 6
    %7418 = vperm.xlu0 %7417, %v2210
    %v7419 = vpop.permute.xlu0 %7418
    %7421 = vset.pattern.permute.xlu0 6
    %7422 = vperm.xlu0 %7421, %v2211
    %v7423 = vpop.permute.xlu0 %7422
    %7425 = vset.pattern.permute.xlu0 6
    %7426 = vperm.xlu0 %7425, %v2212
    %v7427 = vpop.permute.xlu0 %7426
    %7429 = vset.pattern.permute.xlu0 6
    %7430 = vperm.xlu0 %7429, %v2213
    %v7431 = vpop.permute.xlu0 %7430
    %7433 = vset.pattern.permute.xlu0 6
    %7434 = vperm.xlu0 %7433, %v2214
    %v7435 = vpop.permute.xlu0 %7434
    %7437 = vset.pattern.permute.xlu0 6
    %7438 = vperm.xlu0 %7437, %v2215
    %v7439 = vpop.permute.xlu0 %7438
    %7441 = vset.pattern.permute.xlu0 6
    %7442 = vperm.xlu0 %7441, %v2216
    %v7443 = vpop.permute.xlu0 %7442
    %7445 = vset.pattern.permute.xlu0 6
    %7446 = vperm.xlu0 %7445, %v2217
    %v7447 = vpop.permute.xlu0 %7446
    %7449 = vset.pattern.permute.xlu0 6
    %7450 = vperm.xlu0 %7449, %v2218
    %v7451 = vpop.permute.xlu0 %7450
    %7453 = vset.pattern.permute.xlu0 6
    %7454 = vperm.xlu0 %7453, %v2219
    %v7455 = vpop.permute.xlu0 %7454
    %7457 = vset.pattern.permute.xlu0 6
    %7458 = vperm.xlu0 %7457, %v2220
    %v7459 = vpop.permute.xlu0 %7458
    %7461 = vset.pattern.permute.xlu0 6
    %7462 = vperm.xlu0 %7461, %v2221
    %v7463 = vpop.permute.xlu0 %7462
    %7465 = vset.pattern.permute.xlu0 6
    %7466 = vperm.xlu0 %7465, %v2222
    %v7467 = vpop.permute.xlu0 %7466
    %7469 = vset.pattern.permute.xlu0 6
    %7470 = vperm.xlu0 %7469, %v2223
    %v7471 = vpop.permute.xlu0 %7470
    %7473 = vset.pattern.permute.xlu0 6
    %7474 = vperm.xlu0 %7473, %v2224
    %v7475 = vpop.permute.xlu0 %7474
    %7477 = vset.pattern.permute.xlu0 6
    %7478 = vperm.xlu0 %7477, %v2225
    %v7479 = vpop.permute.xlu0 %7478
    %7481 = vset.pattern.permute.xlu0 6
    %7482 = vperm.xlu0 %7481, %v2226
    %v7483 = vpop.permute.xlu0 %7482
    %7485 = vset.pattern.permute.xlu0 6
    %7486 = vperm.xlu0 %7485, %v2227
    %v7487 = vpop.permute.xlu0 %7486
    %7489 = vset.pattern.permute.xlu0 6
    %7490 = vperm.xlu0 %7489, %v2228
    %v7491 = vpop.permute.xlu0 %7490
    %7493 = vset.pattern.permute.xlu0 6
    %7494 = vperm.xlu0 %7493, %v2229
    %v7495 = vpop.permute.xlu0 %7494
    %7497 = vset.pattern.permute.xlu0 6
    %7498 = vperm.xlu0 %7497, %v2230
    %v7499 = vpop.permute.xlu0 %7498
    %7501 = vset.pattern.permute.xlu0 6
    %7502 = vperm.xlu0 %7501, %v2231
    %v7503 = vpop.permute.xlu0 %7502
    %7505 = vset.pattern.permute.xlu0 6
    %7506 = vperm.xlu0 %7505, %v2232
    %v7507 = vpop.permute.xlu0 %7506
    %7509 = vset.pattern.permute.xlu0 6
    %7510 = vperm.xlu0 %7509, %v2233
    %v7511 = vpop.permute.xlu0 %7510
    %7513 = vset.pattern.permute.xlu0 6
    %7514 = vperm.xlu0 %7513, %v2234
    %v7515 = vpop.permute.xlu0 %7514
    %7517 = vset.pattern.permute.xlu0 6
    %7518 = vperm.xlu0 %7517, %v2235
    %v7519 = vpop.permute.xlu0 %7518
    %7521 = vset.pattern.permute.xlu0 6
    %7522 = vperm.xlu0 %7521, %v2236
    %v7523 = vpop.permute.xlu0 %7522
    %7525 = vset.pattern.permute.xlu0 6
    %7526 = vperm.xlu0 %7525, %v2237
    %v7527 = vpop.permute.xlu0 %7526
    %7529 = vset.pattern.permute.xlu0 6
    %7530 = vperm.xlu0 %7529, %v2238
    %v7531 = vpop.permute.xlu0 %7530
    %7533 = vset.pattern.permute.xlu0 6
    %7534 = vperm.xlu0 %7533, %v2239
    %v7535 = vpop.permute.xlu0 %7534
    %7537 = vset.pattern.permute.xlu0 6
    %7538 = vperm.xlu0 %7537, %v2240
    %v7539 = vpop.permute.xlu0 %7538
    %7541 = vset.pattern.permute.xlu0 6
    %7542 = vperm.xlu0 %7541, %v2241
    %v7543 = vpop.permute.xlu0 %7542
    %7545 = vset.pattern.permute.xlu0 6
    %7546 = vperm.xlu0 %7545, %v2242
    %v7547 = vpop.permute.xlu0 %7546
    %7549 = vset.pattern.permute.xlu0 6
    %7550 = vperm.xlu0 %7549, %v2243
    %v7551 = vpop.permute.xlu0 %7550
    %7553 = vset.pattern.permute.xlu0 6
    %7554 = vperm.xlu0 %7553, %v2244
    %v7555 = vpop.permute.xlu0 %7554
    %7557 = vset.pattern.permute.xlu0 6
    %7558 = vperm.xlu0 %7557, %v2245
    %v7559 = vpop.permute.xlu0 %7558
    %7561 = vset.pattern.permute.xlu0 6
    %7562 = vperm.xlu0 %7561, %v2246
    %v7563 = vpop.permute.xlu0 %7562
    %7565 = vset.pattern.permute.xlu0 6
    %7566 = vperm.xlu0 %7565, %v2247
    %v7567 = vpop.permute.xlu0 %7566
    %7569 = vset.pattern.permute.xlu0 6
    %7570 = vperm.xlu0 %7569, %v2248
    %v7571 = vpop.permute.xlu0 %7570
    %v7573 = vmul.f32 %v2182, %v7319
    %v7574 = vmul.f32 %v2181, %v7323
    %v7575 = vmul.f32 %v2180, %v7327
    %v7576 = vmul.f32 %v2179, %v7331
    %v7577 = vmul.f32 %v2178, %v7335
    %v7578 = vmul.f32 %v2177, %v7339
    %v7579 = vmul.f32 %v2176, %v7343
    %v7580 = vmul.f32 %v2175, %v7347
    %v7581 = vmul.f32 %v2174, %v7351
    %v7582 = vmul.f32 %v2173, %v7355
    %v7583 = vmul.f32 %v2172, %v7359
    %v7584 = vmul.f32 %v2171, %v7363
    %v7585 = vmul.f32 %v2170, %v7367
    %v7586 = vmul.f32 %v2169, %v7371
    %v7587 = vmul.f32 %v2168, %v7375
    %v7588 = vmul.f32 %v2167, %v7379
    %v7589 = vmul.f32 %v2166, %v7383
    %v7590 = vmul.f32 %v2165, %v7387
    %v7591 = vmul.f32 %v2164, %v7391
    %v7592 = vmul.f32 %v2163, %v7395
    %v7593 = vmul.f32 %v2162, %v7399
    %v7594 = vmul.f32 %v2161, %v7403
    %v7595 = vmul.f32 %v2160, %v7407
    %v7596 = vmul.f32 %v2159, %v7411
    %v7597 = vmul.f32 %v2158, %v7415
    %v7598 = vmul.f32 %v2157, %v7419
    %v7599 = vmul.f32 %v2156, %v7423
    %v7600 = vmul.f32 %v2155, %v7427
    %v7601 = vmul.f32 %v2154, %v7431
    %v7602 = vmul.f32 %v2153, %v7435
    %v7603 = vmul.f32 %v2152, %v7439
    %v7604 = vmul.f32 %v2151, %v7443
    %v7605 = vmul.f32 %v2150, %v7447
    %v7606 = vmul.f32 %v2149, %v7451
    %v7607 = vmul.f32 %v2148, %v7455
    %v7608 = vmul.f32 %v2147, %v7459
    %v7609 = vmul.f32 %v2146, %v7463
    %v7610 = vmul.f32 %v2145, %v7467
    %v7611 = vmul.f32 %v2144, %v7471
    %v7612 = vmul.f32 %v2143, %v7475
    %v7613 = vmul.f32 %v2142, %v7479
    %v7614 = vmul.f32 %v2141, %v7483
    %v7615 = vmul.f32 %v2140, %v7487
    %v7616 = vmul.f32 %v2139, %v7491
    %v7617 = vmul.f32 %v2138, %v7495
    %v7618 = vmul.f32 %v2137, %v7499
    %v7619 = vmul.f32 %v2136, %v7503
    %v7620 = vmul.f32 %v2135, %v7507
    %v7621 = vmul.f32 %v2134, %v7511
    %v7622 = vmul.f32 %v2133, %v7515
    %v7623 = vmul.f32 %v2132, %v7519
    %v7624 = vmul.f32 %v2131, %v7523
    %v7625 = vmul.f32 %v2130, %v7527
    %v7626 = vmul.f32 %v2129, %v7531
    %v7627 = vmul.f32 %v2128, %v7535
    %v7628 = vmul.f32 %v2127, %v7539
    %v7629 = vmul.f32 %v2126, %v7543
    %v7630 = vmul.f32 %v2125, %v7547
    %v7631 = vmul.f32 %v2124, %v7551
    %v7632 = vmul.f32 %v2123, %v7555
    %v7633 = vmul.f32 %v2122, %v7559
    %v7634 = vmul.f32 %v2121, %v7563
    %v7635 = vmul.f32 %v2184, %v7567
    %v7636 = vmul.f32 %v2183, %v7571
    %v7637 = vpack.c.bf16 %v7574, %v7573
    %v7638 = vpack.c.bf16 %v7576, %v7575
    %v7639 = vpack.c.bf16 %v7578, %v7577
    %v7640 = vpack.c.bf16 %v7580, %v7579
    %v7641 = vpack.c.bf16 %v7582, %v7581
    %v7642 = vpack.c.bf16 %v7584, %v7583
    %v7643 = vpack.c.bf16 %v7586, %v7585
    %v7644 = vpack.c.bf16 %v7588, %v7587
    %v7645 = vpack.c.bf16 %v7590, %v7589
    %v7646 = vpack.c.bf16 %v7592, %v7591
    %v7647 = vpack.c.bf16 %v7594, %v7593
    %v7648 = vpack.c.bf16 %v7596, %v7595
    %v7649 = vpack.c.bf16 %v7598, %v7597
    %v7650 = vpack.c.bf16 %v7600, %v7599
    %v7651 = vpack.c.bf16 %v7602, %v7601
    %v7652 = vpack.c.bf16 %v7604, %v7603
    %v7653 = vpack.c.bf16 %v7606, %v7605
    %v7654 = vpack.c.bf16 %v7608, %v7607
    %v7655 = vpack.c.bf16 %v7610, %v7609
    %v7656 = vpack.c.bf16 %v7612, %v7611
    %v7657 = vpack.c.bf16 %v7614, %v7613
    %v7658 = vpack.c.bf16 %v7616, %v7615
    %v7659 = vpack.c.bf16 %v7618, %v7617
    %v7660 = vpack.c.bf16 %v7620, %v7619
    %v7661 = vpack.c.bf16 %v7622, %v7621
    %v7662 = vpack.c.bf16 %v7624, %v7623
    %v7663 = vpack.c.bf16 %v7626, %v7625
    %v7664 = vpack.c.bf16 %v7628, %v7627
    %v7665 = vpack.c.bf16 %v7630, %v7629
    %v7666 = vpack.c.bf16 %v7632, %v7631
    %v7667 = vpack.c.bf16 %v7634, %v7633
    %v7668 = vpack.c.bf16 %v7636, %v7635
    %s7669 = scalar_lea.vmem %s8, 192
    %v7670 = vld [vmem:[%s7669] sm:$0xf]
    %v7671 = vld [vmem:[%s7669 + $0x4] sm:$0xf]
    %v7672 = vld [vmem:[%s7669 + $0x8] sm:$0xf]
    %v7673 = vld [vmem:[%s7669 + $0xc] sm:$0xf]
    %v7674 = vld [vmem:[%s7669 + $0x10] sm:$0xf]
    %v7675 = vld [vmem:[%s7669 + $0x14] sm:$0xf]
    %v7676 = vld [vmem:[%s7669 + $0x18] sm:$0xf]
    %v7677 = vld [vmem:[%s7669 + $0x1c] sm:$0xf]
    %v7686 = vunpack.c.l.b16 %v7670
    %v7687 = vunpack.c.l.b16 %v7671
    %v7688 = vunpack.c.l.b16 %v7672
    %v7689 = vunpack.c.l.b16 %v7673
    %v7690 = vunpack.c.l.b16 %v7674
    %v7691 = vunpack.c.l.b16 %v7675
    %v7692 = vunpack.c.l.b16 %v7676
    %v7693 = vunpack.c.l.b16 %v7677
    %v7694 = vpack.c.b16 %v7687, %v7686
    %v7695 = vpack.c.b16 %v7689, %v7688
    %v7696 = vpack.c.b16 %v7691, %v7690
    %v7697 = vpack.c.b16 %v7693, %v7692
    %v7703 = vsel %vm368, %v7637, 0
    %v7706 = vsel %vm368, %v7638, 0
    %v7709 = vsel %vm368, %v7639, 0
    %v7712 = vsel %vm368, %v7640, 0
    %v7715 = vsel %vm368, %v7641, 0
    %v7718 = vsel %vm368, %v7642, 0
    %v7721 = vsel %vm368, %v7643, 0
    %v7724 = vsel %vm368, %v7644, 0
    %v7727 = vsel %vm368, %v7645, 0
    %v7730 = vsel %vm368, %v7646, 0
    %v7733 = vsel %vm368, %v7647, 0
    %v7736 = vsel %vm368, %v7648, 0
    %v7739 = vsel %vm368, %v7649, 0
    %v7742 = vsel %vm368, %v7650, 0
    %v7745 = vsel %vm368, %v7651, 0
    %v7748 = vsel %vm368, %v7652, 0
    %v7751 = vsel %vm368, %v7653, 0
    %v7754 = vsel %vm368, %v7654, 0
    %v7757 = vsel %vm368, %v7655, 0
    %v7760 = vsel %vm368, %v7656, 0
    %v7763 = vsel %vm368, %v7657, 0
    %v7766 = vsel %vm368, %v7658, 0
    %v7769 = vsel %vm368, %v7659, 0
    %v7772 = vsel %vm368, %v7660, 0
    %v7775 = vsel %vm368, %v7661, 0
    %v7778 = vsel %vm368, %v7662, 0
    %v7781 = vsel %vm368, %v7663, 0
    %v7784 = vsel %vm368, %v7664, 0
    %v7787 = vsel %vm368, %v7665, 0
    %v7790 = vsel %vm368, %v7666, 0
    %v7793 = vsel %vm368, %v7667, 0
    %v7796 = vsel %vm368, %v7668, 0
    %7798 = vmatprep.subr.bf16.mxu0 0
    %7799 = vmatpush1.bf16.msra.mxu0 %v7694
    %7800 = vmatprep.subr.bf16.mxu0 0
    %7801 = vmatpush1.bf16.msra.mxu0 %v7695
    %7802 = vmatprep.subr.bf16.mxu0 0
    %7803 = vmatpush1.bf16.msra.mxu0 %v7696
    %7804 = vmatprep.subr.bf16.mxu0 0
    %7805 = vmatpush1.bf16.msra.mxu0 %v7697
    %7806 = vmatprep.subr.bf16.mxu0 0
    %7807 = vmatpush1.bf16.msra.mxu0 0
    %7808 = vmatprep.subr.bf16.mxu0 0
    %7809 = vmatpush1.bf16.msra.mxu0 0
    %7810 = vmatprep.subr.bf16.mxu0 0
    %7811 = vmatpush1.bf16.msra.mxu0 0
    %7812 = vmatprep.subr.bf16.mxu0 0
    %7813 = vmatpush1.bf16.msra.mxu0 0
    %7814 = vmatprep.subr.bf16.mxu0 0
    %7815 = vmatpush1.bf16.msra.mxu0 0
    %7816 = vmatprep.subr.bf16.mxu0 0
    %7817 = vmatpush1.bf16.msra.mxu0 0
    %7818 = vmatprep.subr.bf16.mxu0 0
    %7819 = vmatpush1.bf16.msra.mxu0 0
    %7820 = vmatprep.subr.bf16.mxu0 0
    %7821 = vmatpush1.bf16.msra.mxu0 0
    %7822 = vmatprep.subr.bf16.mxu0 0
    %7823 = vmatpush1.bf16.msra.mxu0 0
    %7824 = vmatprep.subr.bf16.mxu0 0
    %7825 = vmatpush1.bf16.msra.mxu0 0
    %7826 = vmatprep.subr.bf16.mxu0 0
    %7827 = vmatpush1.bf16.msra.mxu0 0
    %7828 = vmatprep.subr.bf16.mxu0 0
    %7829 = vmatpush1.bf16.msra.mxu0 0
    %7830 = vmatprep.mubr.bf16.mxu0 0
    %7831 = vmatmul.mubr.bf16.gmra.mrb[0].mxu0 %v7703
    %v7832 = vpop.f32.mrb[0].mxu0
    %v7833 = vadd.f32 0.0, %v7832
    %v7834 = vpop.f32.mrb[0].mxu0
    %v7835 = vpop.f32.mrb[0].mxu0
    %v7836 = vadd.f32 0.0, %v7835
    %v7837 = vpop.f32.mrb[0].mxu0
    %7838 = vmatprep.mubr.bf16.mxu0 0
    %7839 = vmatmul.mubr.bf16.gmra.mrb[0].mxu0 %v7706
    %v7840 = vpop.f32.mrb[0].mxu0
    %v7841 = vadd.f32 0.0, %v7840
    %v7842 = vpop.f32.mrb[0].mxu0
    %v7843 = vpop.f32.mrb[0].mxu0
    %v7844 = vadd.f32 0.0, %v7843
    %v7845 = vpop.f32.mrb[0].mxu0
    %7846 = vmatprep.mubr.bf16.mxu0 0
    %7847 = vmatmul.mubr.bf16.gmra.mrb[0].mxu0 %v7709
    %v7848 = vpop.f32.mrb[0].mxu0
    %v7849 = vadd.f32 0.0, %v7848
    %v7850 = vpop.f32.mrb[0].mxu0
    %v7851 = vpop.f32.mrb[0].mxu0
    %v7852 = vadd.f32 0.0, %v7851
    %v7853 = vpop.f32.mrb[0].mxu0
    %7854 = vmatprep.mubr.bf16.mxu0 0
    %7855 = vmatmul.mubr.bf16.gmra.mrb[0].mxu0 %v7712
    %v7856 = vpop.f32.mrb[0].mxu0
    %v7857 = vadd.f32 0.0, %v7856
    %v7858 = vpop.f32.mrb[0].mxu0
    %v7859 = vpop.f32.mrb[0].mxu0
    %v7860 = vadd.f32 0.0, %v7859
    %v7861 = vpop.f32.mrb[0].mxu0
    %7862 = vmatprep.mubr.bf16.mxu0 0
    %7863 = vmatmul.mubr.bf16.gmra.mrb[0].mxu0 %v7715
    %v7864 = vpop.f32.mrb[0].mxu0
    %v7865 = vadd.f32 0.0, %v7864
    %v7866 = vpop.f32.mrb[0].mxu0
    %v7867 = vpop.f32.mrb[0].mxu0
    %v7868 = vadd.f32 0.0, %v7867
    %v7869 = vpop.f32.mrb[0].mxu0
    %7870 = vmatprep.mubr.bf16.mxu0 0
    %7871 = vmatmul.mubr.bf16.gmra.mrb[0].mxu0 %v7718
    %v7872 = vpop.f32.mrb[0].mxu0
    %v7873 = vadd.f32 0.0, %v7872
    %v7874 = vpop.f32.mrb[0].mxu0
    %v7875 = vpop.f32.mrb[0].mxu0
    %v7876 = vadd.f32 0.0, %v7875
    %v7877 = vpop.f32.mrb[0].mxu0
    %7878 = vmatprep.mubr.bf16.mxu0 0
    %7879 = vmatmul.mubr.bf16.gmra.mrb[0].mxu0 %v7721
    %v7880 = vpop.f32.mrb[0].mxu0
    %v7881 = vadd.f32 0.0, %v7880
    %v7882 = vpop.f32.mrb[0].mxu0
    %v7883 = vpop.f32.mrb[0].mxu0
    %v7884 = vadd.f32 0.0, %v7883
    %v7885 = vpop.f32.mrb[0].mxu0
    %7886 = vmatprep.mubr.bf16.mxu0 0
    %7887 = vmatmul.mubr.bf16.gmra.mrb[0].mxu0 %v7724
    %v7888 = vpop.f32.mrb[0].mxu0
    %v7889 = vadd.f32 0.0, %v7888
    %v7890 = vpop.f32.mrb[0].mxu0
    %v7891 = vpop.f32.mrb[0].mxu0
    %v7892 = vadd.f32 0.0, %v7891
    %v7893 = vpop.f32.mrb[0].mxu0
    %7894 = vmatprep.mubr.bf16.mxu0 0
    %7895 = vmatmul.mubr.bf16.gmra.mrb[0].mxu0 %v7727
    %v7896 = vpop.f32.mrb[0].mxu0
    %v7897 = vadd.f32 0.0, %v7896
    %v7898 = vpop.f32.mrb[0].mxu0
    %v7899 = vpop.f32.mrb[0].mxu0
    %v7900 = vadd.f32 0.0, %v7899
    %v7901 = vpop.f32.mrb[0].mxu0
    %7902 = vmatprep.mubr.bf16.mxu0 0
    %7903 = vmatmul.mubr.bf16.gmra.mrb[0].mxu0 %v7730
    %v7904 = vpop.f32.mrb[0].mxu0
    %v7905 = vadd.f32 0.0, %v7904
    %v7906 = vpop.f32.mrb[0].mxu0
    %v7907 = vpop.f32.mrb[0].mxu0
    %v7908 = vadd.f32 0.0, %v7907
    %v7909 = vpop.f32.mrb[0].mxu0
    %7910 = vmatprep.mubr.bf16.mxu0 0
    %7911 = vmatmul.mubr.bf16.gmra.mrb[0].mxu0 %v7733
    %v7912 = vpop.f32.mrb[0].mxu0
    %v7913 = vadd.f32 0.0, %v7912
    %v7914 = vpop.f32.mrb[0].mxu0
    %v7915 = vpop.f32.mrb[0].mxu0
    %v7916 = vadd.f32 0.0, %v7915
    %v7917 = vpop.f32.mrb[0].mxu0
    %7918 = vmatprep.mubr.bf16.mxu0 0
    %7919 = vmatmul.mubr.bf16.gmra.mrb[0].mxu0 %v7736
    %v7920 = vpop.f32.mrb[0].mxu0
    %v7921 = vadd.f32 0.0, %v7920
    %v7922 = vpop.f32.mrb[0].mxu0
    %v7923 = vpop.f32.mrb[0].mxu0
    %v7924 = vadd.f32 0.0, %v7923
    %v7925 = vpop.f32.mrb[0].mxu0
    %7926 = vmatprep.mubr.bf16.mxu0 0
    %7927 = vmatmul.mubr.bf16.gmra.mrb[0].mxu0 %v7739
    %v7928 = vpop.f32.mrb[0].mxu0
    %v7929 = vadd.f32 0.0, %v7928
    %v7930 = vpop.f32.mrb[0].mxu0
    %v7931 = vpop.f32.mrb[0].mxu0
    %v7932 = vadd.f32 0.0, %v7931
    %v7933 = vpop.f32.mrb[0].mxu0
    %7934 = vmatprep.mubr.bf16.mxu0 0
    %7935 = vmatmul.mubr.bf16.gmra.mrb[0].mxu0 %v7742
    %v7936 = vpop.f32.mrb[0].mxu0
    %v7937 = vadd.f32 0.0, %v7936
    %v7938 = vpop.f32.mrb[0].mxu0
    %v7939 = vpop.f32.mrb[0].mxu0
    %v7940 = vadd.f32 0.0, %v7939
    %v7941 = vpop.f32.mrb[0].mxu0
    %7942 = vmatprep.mubr.bf16.mxu0 0
    %7943 = vmatmul.mubr.bf16.gmra.mrb[0].mxu0 %v7745
    %v7944 = vpop.f32.mrb[0].mxu0
    %v7945 = vadd.f32 0.0, %v7944
    %v7946 = vpop.f32.mrb[0].mxu0
    %v7947 = vpop.f32.mrb[0].mxu0
    %v7948 = vadd.f32 0.0, %v7947
    %v7949 = vpop.f32.mrb[0].mxu0
    %7950 = vmatprep.mubr.bf16.mxu0 0
    %7951 = vmatmul.mubr.bf16.gmra.mrb[0].mxu0 %v7748
    %v7952 = vpop.f32.mrb[0].mxu0
    %v7953 = vadd.f32 0.0, %v7952
    %v7954 = vpop.f32.mrb[0].mxu0
    %v7955 = vpop.f32.mrb[0].mxu0
    %v7956 = vadd.f32 0.0, %v7955
    %v7957 = vpop.f32.mrb[0].mxu0
    %7958 = vmatprep.mubr.bf16.mxu0 0
    %7959 = vmatmul.mubr.bf16.gmra.mrb[0].mxu0 %v7751
    %v7960 = vpop.f32.mrb[0].mxu0
    %v7961 = vadd.f32 0.0, %v7960
    %v7962 = vpop.f32.mrb[0].mxu0
    %v7963 = vpop.f32.mrb[0].mxu0
    %v7964 = vadd.f32 0.0, %v7963
    %v7965 = vpop.f32.mrb[0].mxu0
    %7966 = vmatprep.mubr.bf16.mxu0 0
    %7967 = vmatmul.mubr.bf16.gmra.mrb[0].mxu0 %v7754
    %v7968 = vpop.f32.mrb[0].mxu0
    %v7969 = vadd.f32 0.0, %v7968
    %v7970 = vpop.f32.mrb[0].mxu0
    %v7971 = vpop.f32.mrb[0].mxu0
    %v7972 = vadd.f32 0.0, %v7971
    %v7973 = vpop.f32.mrb[0].mxu0
    %7974 = vmatprep.mubr.bf16.mxu0 0
    %7975 = vmatmul.mubr.bf16.gmra.mrb[0].mxu0 %v7757
    %v7976 = vpop.f32.mrb[0].mxu0
    %v7977 = vadd.f32 0.0, %v7976
    %v7978 = vpop.f32.mrb[0].mxu0
    %v7979 = vpop.f32.mrb[0].mxu0
    %v7980 = vadd.f32 0.0, %v7979
    %v7981 = vpop.f32.mrb[0].mxu0
    %7982 = vmatprep.mubr.bf16.mxu0 0
    %7983 = vmatmul.mubr.bf16.gmra.mrb[0].mxu0 %v7760
    %v7984 = vpop.f32.mrb[0].mxu0
    %v7985 = vadd.f32 0.0, %v7984
    %v7986 = vpop.f32.mrb[0].mxu0
    %v7987 = vpop.f32.mrb[0].mxu0
    %v7988 = vadd.f32 0.0, %v7987
    %v7989 = vpop.f32.mrb[0].mxu0
    %7990 = vmatprep.mubr.bf16.mxu0 0
    %7991 = vmatmul.mubr.bf16.gmra.mrb[0].mxu0 %v7763
    %v7992 = vpop.f32.mrb[0].mxu0
    %v7993 = vadd.f32 0.0, %v7992
    %v7994 = vpop.f32.mrb[0].mxu0
    %v7995 = vpop.f32.mrb[0].mxu0
    %v7996 = vadd.f32 0.0, %v7995
    %v7997 = vpop.f32.mrb[0].mxu0
    %7998 = vmatprep.mubr.bf16.mxu0 0
    %7999 = vmatmul.mubr.bf16.gmra.mrb[0].mxu0 %v7766
    %v8000 = vpop.f32.mrb[0].mxu0
    %v8001 = vadd.f32 0.0, %v8000
    %v8002 = vpop.f32.mrb[0].mxu0
    %v8003 = vpop.f32.mrb[0].mxu0
    %v8004 = vadd.f32 0.0, %v8003
    %v8005 = vpop.f32.mrb[0].mxu0
    %8006 = vmatprep.mubr.bf16.mxu0 0
    %8007 = vmatmul.mubr.bf16.gmra.mrb[0].mxu0 %v7769
    %v8008 = vpop.f32.mrb[0].mxu0
    %v8009 = vadd.f32 0.0, %v8008
    %v8010 = vpop.f32.mrb[0].mxu0
    %v8011 = vpop.f32.mrb[0].mxu0
    %v8012 = vadd.f32 0.0, %v8011
    %v8013 = vpop.f32.mrb[0].mxu0
    %8014 = vmatprep.mubr.bf16.mxu0 0
    %8015 = vmatmul.mubr.bf16.gmra.mrb[0].mxu0 %v7772
    %v8016 = vpop.f32.mrb[0].mxu0
    %v8017 = vadd.f32 0.0, %v8016
    %v8018 = vpop.f32.mrb[0].mxu0
    %v8019 = vpop.f32.mrb[0].mxu0
    %v8020 = vadd.f32 0.0, %v8019
    %v8021 = vpop.f32.mrb[0].mxu0
    %8022 = vmatprep.mubr.bf16.mxu0 0
    %8023 = vmatmul.mubr.bf16.gmra.mrb[0].mxu0 %v7775
    %v8024 = vpop.f32.mrb[0].mxu0
    %v8025 = vadd.f32 0.0, %v8024
    %v8026 = vpop.f32.mrb[0].mxu0
    %v8027 = vpop.f32.mrb[0].mxu0
    %v8028 = vadd.f32 0.0, %v8027
    %v8029 = vpop.f32.mrb[0].mxu0
    %8030 = vmatprep.mubr.bf16.mxu0 0
    %8031 = vmatmul.mubr.bf16.gmra.mrb[0].mxu0 %v7778
    %v8032 = vpop.f32.mrb[0].mxu0
    %v8033 = vadd.f32 0.0, %v8032
    %v8034 = vpop.f32.mrb[0].mxu0
    %v8035 = vpop.f32.mrb[0].mxu0
    %v8036 = vadd.f32 0.0, %v8035
    %v8037 = vpop.f32.mrb[0].mxu0
    %8038 = vmatprep.mubr.bf16.mxu0 0
    %8039 = vmatmul.mubr.bf16.gmra.mrb[0].mxu0 %v7781
    %v8040 = vpop.f32.mrb[0].mxu0
    %v8041 = vadd.f32 0.0, %v8040
    %v8042 = vpop.f32.mrb[0].mxu0
    %v8043 = vpop.f32.mrb[0].mxu0
    %v8044 = vadd.f32 0.0, %v8043
    %v8045 = vpop.f32.mrb[0].mxu0
    %8046 = vmatprep.mubr.bf16.mxu0 0
    %8047 = vmatmul.mubr.bf16.gmra.mrb[0].mxu0 %v7784
    %v8048 = vpop.f32.mrb[0].mxu0
    %v8049 = vadd.f32 0.0, %v8048
    %v8050 = vpop.f32.mrb[0].mxu0
    %v8051 = vpop.f32.mrb[0].mxu0
    %v8052 = vadd.f32 0.0, %v8051
    %v8053 = vpop.f32.mrb[0].mxu0
    %8054 = vmatprep.mubr.bf16.mxu0 0
    %8055 = vmatmul.mubr.bf16.gmra.mrb[0].mxu0 %v7787
    %v8056 = vpop.f32.mrb[0].mxu0
    %v8057 = vadd.f32 0.0, %v8056
    %v8058 = vpop.f32.mrb[0].mxu0
    %v8059 = vpop.f32.mrb[0].mxu0
    %v8060 = vadd.f32 0.0, %v8059
    %v8061 = vpop.f32.mrb[0].mxu0
    %8062 = vmatprep.mubr.bf16.mxu0 0
    %8063 = vmatmul.mubr.bf16.gmra.mrb[0].mxu0 %v7790
    %v8064 = vpop.f32.mrb[0].mxu0
    %v8065 = vadd.f32 0.0, %v8064
    %v8066 = vpop.f32.mrb[0].mxu0
    %v8067 = vpop.f32.mrb[0].mxu0
    %v8068 = vadd.f32 0.0, %v8067
    %v8069 = vpop.f32.mrb[0].mxu0
    %8070 = vmatprep.mubr.bf16.mxu0 0
    %8071 = vmatmul.mubr.bf16.gmra.mrb[0].mxu0 %v7793
    %v8072 = vpop.f32.mrb[0].mxu0
    %v8073 = vadd.f32 0.0, %v8072
    %v8074 = vpop.f32.mrb[0].mxu0
    %v8075 = vpop.f32.mrb[0].mxu0
    %v8076 = vadd.f32 0.0, %v8075
    %v8077 = vpop.f32.mrb[0].mxu0
    %8078 = vmatprep.mubr.bf16.mxu0 0
    %8079 = vmatmul.mubr.bf16.gmra.mrb[0].mxu0 %v7796
    %v8080 = vpop.f32.mrb[0].mxu0
    %v8081 = vadd.f32 0.0, %v8080
    %v8082 = vpop.f32.mrb[0].mxu0
    %v8083 = vpop.f32.mrb[0].mxu0
    %v8084 = vadd.f32 0.0, %v8083
    %v8085 = vpop.f32.mrb[0].mxu0
    %8086 = vdwg.mxu0
    %v8087 = vadd.f32 %v7253, %v7833
    %v8088 = vadd.f32 %v7254, %v7836
    %v8089 = vadd.f32 %v7255, %v7841
    %v8090 = vadd.f32 %v7256, %v7844
    %v8091 = vadd.f32 %v7257, %v7849
    %v8092 = vadd.f32 %v7258, %v7852
    %v8093 = vadd.f32 %v7259, %v7857
    %v8094 = vadd.f32 %v7260, %v7860
    %v8095 = vadd.f32 %v7261, %v7865
    %v8096 = vadd.f32 %v7262, %v7868
    %v8097 = vadd.f32 %v7263, %v7873
    %v8098 = vadd.f32 %v7264, %v7876
    %v8099 = vadd.f32 %v7265, %v7881
    %v8100 = vadd.f32 %v7266, %v7884
    %v8101 = vadd.f32 %v7267, %v7889
    %v8102 = vadd.f32 %v7268, %v7892
    %v8103 = vadd.f32 %v7269, %v7897
    %v8104 = vadd.f32 %v7270, %v7900
    %v8105 = vadd.f32 %v7271, %v7905
    %v8106 = vadd.f32 %v7272, %v7908
    %v8107 = vadd.f32 %v7273, %v7913
    %v8108 = vadd.f32 %v7274, %v7916
    %v8109 = vadd.f32 %v7275, %v7921
    %v8110 = vadd.f32 %v7276, %v7924
    %v8111 = vadd.f32 %v7277, %v7929
    %v8112 = vadd.f32 %v7278, %v7932
    %v8113 = vadd.f32 %v7279, %v7937
    %v8114 = vadd.f32 %v7280, %v7940
    %v8115 = vadd.f32 %v7281, %v7945
    %v8116 = vadd.f32 %v7282, %v7948
    %v8117 = vadd.f32 %v7283, %v7953
    %v8118 = vadd.f32 %v7284, %v7956
    %v8119 = vadd.f32 %v7285, %v7961
    %v8120 = vadd.f32 %v7286, %v7964
    %v8121 = vadd.f32 %v7287, %v7969
    %v8122 = vadd.f32 %v7288, %v7972
    %v8123 = vadd.f32 %v7289, %v7977
    %v8124 = vadd.f32 %v7290, %v7980
    %v8125 = vadd.f32 %v7291, %v7985
    %v8126 = vadd.f32 %v7292, %v7988
    %v8127 = vadd.f32 %v7293, %v7993
    %v8128 = vadd.f32 %v7294, %v7996
    %v8129 = vadd.f32 %v7295, %v8001
    %v8130 = vadd.f32 %v7296, %v8004
    %v8131 = vadd.f32 %v7297, %v8009
    %v8132 = vadd.f32 %v7298, %v8012
    %v8133 = vadd.f32 %v7299, %v8017
    %v8134 = vadd.f32 %v7300, %v8020
    %v8135 = vadd.f32 %v7301, %v8025
    %v8136 = vadd.f32 %v7302, %v8028
    %v8137 = vadd.f32 %v7303, %v8033
    %v8138 = vadd.f32 %v7304, %v8036
    %v8139 = vadd.f32 %v7305, %v8041
    %v8140 = vadd.f32 %v7306, %v8044
    %v8141 = vadd.f32 %v7307, %v8049
    %v8142 = vadd.f32 %v7308, %v8052
    %v8143 = vadd.f32 %v7309, %v8057
    %v8144 = vadd.f32 %v7310, %v8060
    %v8145 = vadd.f32 %v7311, %v8065
    %v8146 = vadd.f32 %v7312, %v8068
    %v8147 = vadd.f32 %v7313, %v8073
    %v8148 = vadd.f32 %v7314, %v8076
    %v8149 = vadd.f32 %v7315, %v8081
    %v8150 = vadd.f32 %v7316, %v8084
    %8151 = vset.pattern.permute.xlu0 7
    %8152 = vperm.xlu0 %8151, %v2185
    %v8153 = vpop.permute.xlu0 %8152
    %8155 = vset.pattern.permute.xlu0 7
    %8156 = vperm.xlu0 %8155, %v2186
    %v8157 = vpop.permute.xlu0 %8156
    %8159 = vset.pattern.permute.xlu0 7
    %8160 = vperm.xlu0 %8159, %v2187
    %v8161 = vpop.permute.xlu0 %8160
    %8163 = vset.pattern.permute.xlu0 7
    %8164 = vperm.xlu0 %8163, %v2188
    %v8165 = vpop.permute.xlu0 %8164
    %8167 = vset.pattern.permute.xlu0 7
    %8168 = vperm.xlu0 %8167, %v2189
    %v8169 = vpop.permute.xlu0 %8168
    %8171 = vset.pattern.permute.xlu0 7
    %8172 = vperm.xlu0 %8171, %v2190
    %v8173 = vpop.permute.xlu0 %8172
    %8175 = vset.pattern.permute.xlu0 7
    %8176 = vperm.xlu0 %8175, %v2191
    %v8177 = vpop.permute.xlu0 %8176
    %8179 = vset.pattern.permute.xlu0 7
    %8180 = vperm.xlu0 %8179, %v2192
    %v8181 = vpop.permute.xlu0 %8180
    %8183 = vset.pattern.permute.xlu0 7
    %8184 = vperm.xlu0 %8183, %v2193
    %v8185 = vpop.permute.xlu0 %8184
    %8187 = vset.pattern.permute.xlu0 7
    %8188 = vperm.xlu0 %8187, %v2194
    %v8189 = vpop.permute.xlu0 %8188
    %8191 = vset.pattern.permute.xlu0 7
    %8192 = vperm.xlu0 %8191, %v2195
    %v8193 = vpop.permute.xlu0 %8192
    %8195 = vset.pattern.permute.xlu0 7
    %8196 = vperm.xlu0 %8195, %v2196
    %v8197 = vpop.permute.xlu0 %8196
    %8199 = vset.pattern.permute.xlu0 7
    %8200 = vperm.xlu0 %8199, %v2197
    %v8201 = vpop.permute.xlu0 %8200
    %8203 = vset.pattern.permute.xlu0 7
    %8204 = vperm.xlu0 %8203, %v2198
    %v8205 = vpop.permute.xlu0 %8204
    %8207 = vset.pattern.permute.xlu0 7
    %8208 = vperm.xlu0 %8207, %v2199
    %v8209 = vpop.permute.xlu0 %8208
    %8211 = vset.pattern.permute.xlu0 7
    %8212 = vperm.xlu0 %8211, %v2200
    %v8213 = vpop.permute.xlu0 %8212
    %8215 = vset.pattern.permute.xlu0 7
    %8216 = vperm.xlu0 %8215, %v2201
    %v8217 = vpop.permute.xlu0 %8216
    %8219 = vset.pattern.permute.xlu0 7
    %8220 = vperm.xlu0 %8219, %v2202
    %v8221 = vpop.permute.xlu0 %8220
    %8223 = vset.pattern.permute.xlu0 7
    %8224 = vperm.xlu0 %8223, %v2203
    %v8225 = vpop.permute.xlu0 %8224
    %8227 = vset.pattern.permute.xlu0 7
    %8228 = vperm.xlu0 %8227, %v2204
    %v8229 = vpop.permute.xlu0 %8228
    %8231 = vset.pattern.permute.xlu0 7
    %8232 = vperm.xlu0 %8231, %v2205
    %v8233 = vpop.permute.xlu0 %8232
    %8235 = vset.pattern.permute.xlu0 7
    %8236 = vperm.xlu0 %8235, %v2206
    %v8237 = vpop.permute.xlu0 %8236
    %8239 = vset.pattern.permute.xlu0 7
    %8240 = vperm.xlu0 %8239, %v2207
    %v8241 = vpop.permute.xlu0 %8240
    %8243 = vset.pattern.permute.xlu0 7
    %8244 = vperm.xlu0 %8243, %v2208
    %v8245 = vpop.permute.xlu0 %8244
    %8247 = vset.pattern.permute.xlu0 7
    %8248 = vperm.xlu0 %8247, %v2209
    %v8249 = vpop.permute.xlu0 %8248
    %8251 = vset.pattern.permute.xlu0 7
    %8252 = vperm.xlu0 %8251, %v2210
    %v8253 = vpop.permute.xlu0 %8252
    %8255 = vset.pattern.permute.xlu0 7
    %8256 = vperm.xlu0 %8255, %v2211
    %v8257 = vpop.permute.xlu0 %8256
    %8259 = vset.pattern.permute.xlu0 7
    %8260 = vperm.xlu0 %8259, %v2212
    %v8261 = vpop.permute.xlu0 %8260
    %8263 = vset.pattern.permute.xlu0 7
    %8264 = vperm.xlu0 %8263, %v2213
    %v8265 = vpop.permute.xlu0 %8264
    %8267 = vset.pattern.permute.xlu0 7
    %8268 = vperm.xlu0 %8267, %v2214
    %v8269 = vpop.permute.xlu0 %8268
    %8271 = vset.pattern.permute.xlu0 7
    %8272 = vperm.xlu0 %8271, %v2215
    %v8273 = vpop.permute.xlu0 %8272
    %8275 = vset.pattern.permute.xlu0 7
    %8276 = vperm.xlu0 %8275, %v2216
    %v8277 = vpop.permute.xlu0 %8276
    %8279 = vset.pattern.permute.xlu0 7
    %8280 = vperm.xlu0 %8279, %v2217
    %v8281 = vpop.permute.xlu0 %8280
    %8283 = vset.pattern.permute.xlu0 7
    %8284 = vperm.xlu0 %8283, %v2218
    %v8285 = vpop.permute.xlu0 %8284
    %8287 = vset.pattern.permute.xlu0 7
    %8288 = vperm.xlu0 %8287, %v2219
    %v8289 = vpop.permute.xlu0 %8288
    %8291 = vset.pattern.permute.xlu0 7
    %8292 = vperm.xlu0 %8291, %v2220
    %v8293 = vpop.permute.xlu0 %8292
    %8295 = vset.pattern.permute.xlu0 7
    %8296 = vperm.xlu0 %8295, %v2221
    %v8297 = vpop.permute.xlu0 %8296
    %8299 = vset.pattern.permute.xlu0 7
    %8300 = vperm.xlu0 %8299, %v2222
    %v8301 = vpop.permute.xlu0 %8300
    %8303 = vset.pattern.permute.xlu0 7
    %8304 = vperm.xlu0 %8303, %v2223
    %v8305 = vpop.permute.xlu0 %8304
    %8307 = vset.pattern.permute.xlu0 7
    %8308 = vperm.xlu0 %8307, %v2224
    %v8309 = vpop.permute.xlu0 %8308
    %8311 = vset.pattern.permute.xlu0 7
    %8312 = vperm.xlu0 %8311, %v2225
    %v8313 = vpop.permute.xlu0 %8312
    %8315 = vset.pattern.permute.xlu0 7
    %8316 = vperm.xlu0 %8315, %v2226
    %v8317 = vpop.permute.xlu0 %8316
    %8319 = vset.pattern.permute.xlu0 7
    %8320 = vperm.xlu0 %8319, %v2227
    %v8321 = vpop.permute.xlu0 %8320
    %8323 = vset.pattern.permute.xlu0 7
    %8324 = vperm.xlu0 %8323, %v2228
    %v8325 = vpop.permute.xlu0 %8324
    %8327 = vset.pattern.permute.xlu0 7
    %8328 = vperm.xlu0 %8327, %v2229
    %v8329 = vpop.permute.xlu0 %8328
    %8331 = vset.pattern.permute.xlu0 7
    %8332 = vperm.xlu0 %8331, %v2230
    %v8333 = vpop.permute.xlu0 %8332
    %8335 = vset.pattern.permute.xlu0 7
    %8336 = vperm.xlu0 %8335, %v2231
    %v8337 = vpop.permute.xlu0 %8336
    %8339 = vset.pattern.permute.xlu0 7
    %8340 = vperm.xlu0 %8339, %v2232
    %v8341 = vpop.permute.xlu0 %8340
    %8343 = vset.pattern.permute.xlu0 7
    %8344 = vperm.xlu0 %8343, %v2233
    %v8345 = vpop.permute.xlu0 %8344
    %8347 = vset.pattern.permute.xlu0 7
    %8348 = vperm.xlu0 %8347, %v2234
    %v8349 = vpop.permute.xlu0 %8348
    %8351 = vset.pattern.permute.xlu0 7
    %8352 = vperm.xlu0 %8351, %v2235
    %v8353 = vpop.permute.xlu0 %8352
    %8355 = vset.pattern.permute.xlu0 7
    %8356 = vperm.xlu0 %8355, %v2236
    %v8357 = vpop.permute.xlu0 %8356
    %8359 = vset.pattern.permute.xlu0 7
    %8360 = vperm.xlu0 %8359, %v2237
    %v8361 = vpop.permute.xlu0 %8360
    %8363 = vset.pattern.permute.xlu0 7
    %8364 = vperm.xlu0 %8363, %v2238
    %v8365 = vpop.permute.xlu0 %8364
    %8367 = vset.pattern.permute.xlu0 7
    %8368 = vperm.xlu0 %8367, %v2239
    %v8369 = vpop.permute.xlu0 %8368
    %8371 = vset.pattern.permute.xlu0 7
    %8372 = vperm.xlu0 %8371, %v2240
    %v8373 = vpop.permute.xlu0 %8372
    %8375 = vset.pattern.permute.xlu0 7
    %8376 = vperm.xlu0 %8375, %v2241
    %v8377 = vpop.permute.xlu0 %8376
    %8379 = vset.pattern.permute.xlu0 7
    %8380 = vperm.xlu0 %8379, %v2242
    %v8381 = vpop.permute.xlu0 %8380
    %8383 = vset.pattern.permute.xlu0 7
    %8384 = vperm.xlu0 %8383, %v2243
    %v8385 = vpop.permute.xlu0 %8384
    %8387 = vset.pattern.permute.xlu0 7
    %8388 = vperm.xlu0 %8387, %v2244
    %v8389 = vpop.permute.xlu0 %8388
    %8391 = vset.pattern.permute.xlu0 7
    %8392 = vperm.xlu0 %8391, %v2245
    %v8393 = vpop.permute.xlu0 %8392
    %8395 = vset.pattern.permute.xlu0 7
    %8396 = vperm.xlu0 %8395, %v2246
    %v8397 = vpop.permute.xlu0 %8396
    %8399 = vset.pattern.permute.xlu0 7
    %8400 = vperm.xlu0 %8399, %v2247
    %v8401 = vpop.permute.xlu0 %8400
    %8403 = vset.pattern.permute.xlu0 7
    %8404 = vperm.xlu0 %8403, %v2248
    %v8405 = vpop.permute.xlu0 %8404
    %v8407 = vmul.f32 %v1992, %v8153
    %v8408 = vmul.f32 %v1993, %v8157
    %v8409 = vmul.f32 %v1994, %v8161
    %v8410 = vmul.f32 %v1995, %v8165
    %v8411 = vmul.f32 %v1996, %v8169
    %v8412 = vmul.f32 %v1997, %v8173
    %v8413 = vmul.f32 %v1998, %v8177
    %v8414 = vmul.f32 %v1999, %v8181
    %v8415 = vmul.f32 %v2000, %v8185
    %v8416 = vmul.f32 %v2001, %v8189
    %v8417 = vmul.f32 %v2002, %v8193
    %v8418 = vmul.f32 %v2003, %v8197
    %v8419 = vmul.f32 %v2004, %v8201
    %v8420 = vmul.f32 %v2005, %v8205
    %v8421 = vmul.f32 %v2006, %v8209
    %v8422 = vmul.f32 %v2007, %v8213
    %v8423 = vmul.f32 %v2008, %v8217
    %v8424 = vmul.f32 %v2009, %v8221
    %v8425 = vmul.f32 %v2010, %v8225
    %v8426 = vmul.f32 %v2011, %v8229
    %v8427 = vmul.f32 %v2012, %v8233
    %v8428 = vmul.f32 %v2013, %v8237
    %v8429 = vmul.f32 %v2014, %v8241
    %v8430 = vmul.f32 %v2015, %v8245
    %v8431 = vmul.f32 %v2016, %v8249
    %v8432 = vmul.f32 %v2017, %v8253
    %v8433 = vmul.f32 %v2018, %v8257
    %v8434 = vmul.f32 %v2019, %v8261
    %v8435 = vmul.f32 %v2020, %v8265
    %v8436 = vmul.f32 %v2021, %v8269
    %v8437 = vmul.f32 %v2022, %v8273
    %v8438 = vmul.f32 %v2023, %v8277
    %v8439 = vmul.f32 %v2024, %v8281
    %v8440 = vmul.f32 %v2025, %v8285
    %v8441 = vmul.f32 %v2026, %v8289
    %v8442 = vmul.f32 %v2027, %v8293
    %v8443 = vmul.f32 %v2028, %v8297
    %v8444 = vmul.f32 %v2029, %v8301
    %v8445 = vmul.f32 %v2030, %v8305
    %v8446 = vmul.f32 %v2031, %v8309
    %v8447 = vmul.f32 %v2032, %v8313
    %v8448 = vmul.f32 %v2033, %v8317
    %v8449 = vmul.f32 %v2034, %v8321
    %v8450 = vmul.f32 %v2035, %v8325
    %v8451 = vmul.f32 %v2036, %v8329
    %v8452 = vmul.f32 %v2037, %v8333
    %v8453 = vmul.f32 %v2038, %v8337
    %v8454 = vmul.f32 %v2039, %v8341
    %v8455 = vmul.f32 %v2040, %v8345
    %v8456 = vmul.f32 %v2041, %v8349
    %v8457 = vmul.f32 %v2042, %v8353
    %v8458 = vmul.f32 %v2043, %v8357
    %v8459 = vmul.f32 %v2044, %v8361
    %v8460 = vmul.f32 %v2045, %v8365
    %v8461 = vmul.f32 %v2046, %v8369
    %v8462 = vmul.f32 %v2047, %v8373
    %v8463 = vmul.f32 %v2048, %v8377
    %v8464 = vmul.f32 %v2049, %v8381
    %v8465 = vmul.f32 %v2050, %v8385
    %v8466 = vmul.f32 %v2051, %v8389
    %v8467 = vmul.f32 %v2052, %v8393
    %v8468 = vmul.f32 %v2053, %v8397
    %v8469 = vmul.f32 %v1990, %v8401
    %v8470 = vmul.f32 %v1991, %v8405
    %v8471 = vpack.c.bf16 %v8408, %v8407
    %v8472 = vpack.c.bf16 %v8410, %v8409
    %v8473 = vpack.c.bf16 %v8412, %v8411
    %v8474 = vpack.c.bf16 %v8414, %v8413
    %v8475 = vpack.c.bf16 %v8416, %v8415
    %v8476 = vpack.c.bf16 %v8418, %v8417
    %v8477 = vpack.c.bf16 %v8420, %v8419
    %v8478 = vpack.c.bf16 %v8422, %v8421
    %v8479 = vpack.c.bf16 %v8424, %v8423
    %v8480 = vpack.c.bf16 %v8426, %v8425
    %v8481 = vpack.c.bf16 %v8428, %v8427
    %v8482 = vpack.c.bf16 %v8430, %v8429
    %v8483 = vpack.c.bf16 %v8432, %v8431
    %v8484 = vpack.c.bf16 %v8434, %v8433
    %v8485 = vpack.c.bf16 %v8436, %v8435
    %v8486 = vpack.c.bf16 %v8438, %v8437
    %v8487 = vpack.c.bf16 %v8440, %v8439
    %v8488 = vpack.c.bf16 %v8442, %v8441
    %v8489 = vpack.c.bf16 %v8444, %v8443
    %v8490 = vpack.c.bf16 %v8446, %v8445
    %v8491 = vpack.c.bf16 %v8448, %v8447
    %v8492 = vpack.c.bf16 %v8450, %v8449
    %v8493 = vpack.c.bf16 %v8452, %v8451
    %v8494 = vpack.c.bf16 %v8454, %v8453
    %v8495 = vpack.c.bf16 %v8456, %v8455
    %v8496 = vpack.c.bf16 %v8458, %v8457
    %v8497 = vpack.c.bf16 %v8460, %v8459
    %v8498 = vpack.c.bf16 %v8462, %v8461
    %v8499 = vpack.c.bf16 %v8464, %v8463
    %v8500 = vpack.c.bf16 %v8466, %v8465
    %v8501 = vpack.c.bf16 %v8468, %v8467
    %v8502 = vpack.c.bf16 %v8470, %v8469
    %s8503 = scalar_lea.vmem %s8, 224
    %v8504 = vld [vmem:[%s8503] sm:$0xf]
    %v8505 = vld [vmem:[%s8503 + $0x4] sm:$0xf]
    %v8506 = vld [vmem:[%s8503 + $0x8] sm:$0xf]
    %v8507 = vld [vmem:[%s8503 + $0xc] sm:$0xf]
    %v8508 = vld [vmem:[%s8503 + $0x10] sm:$0xf]
    %v8509 = vld [vmem:[%s8503 + $0x14] sm:$0xf]
    %v8510 = vld [vmem:[%s8503 + $0x18] sm:$0xf]
    %v8511 = vld [vmem:[%s8503 + $0x1c] sm:$0xf]
    %v8520 = vunpack.c.l.b16 %v8504
    %v8521 = vunpack.c.l.b16 %v8505
    %v8522 = vunpack.c.l.b16 %v8506
    %v8523 = vunpack.c.l.b16 %v8507
    %v8524 = vunpack.c.l.b16 %v8508
    %v8525 = vunpack.c.l.b16 %v8509
    %v8526 = vunpack.c.l.b16 %v8510
    %v8527 = vunpack.c.l.b16 %v8511
    %v8528 = vpack.c.b16 %v8521, %v8520
    %v8529 = vpack.c.b16 %v8523, %v8522
    %v8530 = vpack.c.b16 %v8525, %v8524
    %v8531 = vpack.c.b16 %v8527, %v8526
    %v8537 = vsel %vm368, %v8471, 0
    %v8540 = vsel %vm368, %v8472, 0
    %v8543 = vsel %vm368, %v8473, 0
    %v8546 = vsel %vm368, %v8474, 0
    %v8549 = vsel %vm368, %v8475, 0
    %v8552 = vsel %vm368, %v8476, 0
    %v8555 = vsel %vm368, %v8477, 0
    %v8558 = vsel %vm368, %v8478, 0
    %v8561 = vsel %vm368, %v8479, 0
    %v8564 = vsel %vm368, %v8480, 0
    %v8567 = vsel %vm368, %v8481, 0
    %v8570 = vsel %vm368, %v8482, 0
    %v8573 = vsel %vm368, %v8483, 0
    %v8576 = vsel %vm368, %v8484, 0
    %v8579 = vsel %vm368, %v8485, 0
    %v8582 = vsel %vm368, %v8486, 0
    %v8585 = vsel %vm368, %v8487, 0
    %v8588 = vsel %vm368, %v8488, 0
    %v8591 = vsel %vm368, %v8489, 0
    %v8594 = vsel %vm368, %v8490, 0
    %v8597 = vsel %vm368, %v8491, 0
    %v8600 = vsel %vm368, %v8492, 0
    %v8603 = vsel %vm368, %v8493, 0
    %v8606 = vsel %vm368, %v8494, 0
    %v8609 = vsel %vm368, %v8495, 0
    %v8612 = vsel %vm368, %v8496, 0
    %v8615 = vsel %vm368, %v8497, 0
    %v8618 = vsel %vm368, %v8498, 0
    %v8621 = vsel %vm368, %v8499, 0
    %v8624 = vsel %vm368, %v8500, 0
    %v8627 = vsel %vm368, %v8501, 0
    %v8630 = vsel %vm368, %v8502, 0
    %8632 = vmatprep.subr.bf16.mxu0 0
    %8633 = vmatpush1.bf16.msra.mxu0 %v8528
    %8634 = vmatprep.subr.bf16.mxu0 0
    %8635 = vmatpush1.bf16.msra.mxu0 %v8529
    %8636 = vmatprep.subr.bf16.mxu0 0
    %8637 = vmatpush1.bf16.msra.mxu0 %v8530
    %8638 = vmatprep.subr.bf16.mxu0 0
    %8639 = vmatpush1.bf16.msra.mxu0 %v8531
    %8640 = vmatprep.subr.bf16.mxu0 0
    %8641 = vmatpush1.bf16.msra.mxu0 0
    %8642 = vmatprep.subr.bf16.mxu0 0
    %8643 = vmatpush1.bf16.msra.mxu0 0
    %8644 = vmatprep.subr.bf16.mxu0 0
    %8645 = vmatpush1.bf16.msra.mxu0 0
    %8646 = vmatprep.subr.bf16.mxu0 0
    %8647 = vmatpush1.bf16.msra.mxu0 0
    %8648 = vmatprep.subr.bf16.mxu0 0
    %8649 = vmatpush1.bf16.msra.mxu0 0
    %8650 = vmatprep.subr.bf16.mxu0 0
    %8651 = vmatpush1.bf16.msra.mxu0 0
    %8652 = vmatprep.subr.bf16.mxu0 0
    %8653 = vmatpush1.bf16.msra.mxu0 0
    %8654 = vmatprep.subr.bf16.mxu0 0
    %8655 = vmatpush1.bf16.msra.mxu0 0
    %8656 = vmatprep.subr.bf16.mxu0 0
    %8657 = vmatpush1.bf16.msra.mxu0 0
    %8658 = vmatprep.subr.bf16.mxu0 0
    %8659 = vmatpush1.bf16.msra.mxu0 0
    %8660 = vmatprep.subr.bf16.mxu0 0
    %8661 = vmatpush1.bf16.msra.mxu0 0
    %8662 = vmatprep.subr.bf16.mxu0 0
    %8663 = vmatpush1.bf16.msra.mxu0 0
    %8664 = vmatprep.mubr.bf16.mxu0 0
    %8665 = vmatmul.mubr.bf16.gmra.mrb[0].mxu0 %v8537
    %v8666 = vpop.f32.mrb[0].mxu0
    %v8667 = vadd.f32 0.0, %v8666
    %v8668 = vpop.f32.mrb[0].mxu0
    %v8669 = vpop.f32.mrb[0].mxu0
    %v8670 = vadd.f32 0.0, %v8669
    %v8671 = vpop.f32.mrb[0].mxu0
    %8672 = vmatprep.mubr.bf16.mxu0 0
    %8673 = vmatmul.mubr.bf16.gmra.mrb[0].mxu0 %v8540
    %v8674 = vpop.f32.mrb[0].mxu0
    %v8675 = vadd.f32 0.0, %v8674
    %v8676 = vpop.f32.mrb[0].mxu0
    %v8677 = vpop.f32.mrb[0].mxu0
    %v8678 = vadd.f32 0.0, %v8677
    %v8679 = vpop.f32.mrb[0].mxu0
    %8680 = vmatprep.mubr.bf16.mxu0 0
    %8681 = vmatmul.mubr.bf16.gmra.mrb[0].mxu0 %v8543
    %v8682 = vpop.f32.mrb[0].mxu0
    %v8683 = vadd.f32 0.0, %v8682
    %v8684 = vpop.f32.mrb[0].mxu0
    %v8685 = vpop.f32.mrb[0].mxu0
    %v8686 = vadd.f32 0.0, %v8685
    %v8687 = vpop.f32.mrb[0].mxu0
    %8688 = vmatprep.mubr.bf16.mxu0 0
    %8689 = vmatmul.mubr.bf16.gmra.mrb[0].mxu0 %v8546
    %v8690 = vpop.f32.mrb[0].mxu0
    %v8691 = vadd.f32 0.0, %v8690
    %v8692 = vpop.f32.mrb[0].mxu0
    %v8693 = vpop.f32.mrb[0].mxu0
    %v8694 = vadd.f32 0.0, %v8693
    %v8695 = vpop.f32.mrb[0].mxu0
    %8696 = vmatprep.mubr.bf16.mxu0 0
    %8697 = vmatmul.mubr.bf16.gmra.mrb[0].mxu0 %v8549
    %v8698 = vpop.f32.mrb[0].mxu0
    %v8699 = vadd.f32 0.0, %v8698
    %v8700 = vpop.f32.mrb[0].mxu0
    %v8701 = vpop.f32.mrb[0].mxu0
    %v8702 = vadd.f32 0.0, %v8701
    %v8703 = vpop.f32.mrb[0].mxu0
    %8704 = vmatprep.mubr.bf16.mxu0 0
    %8705 = vmatmul.mubr.bf16.gmra.mrb[0].mxu0 %v8552
    %v8706 = vpop.f32.mrb[0].mxu0
    %v8707 = vadd.f32 0.0, %v8706
    %v8708 = vpop.f32.mrb[0].mxu0
    %v8709 = vpop.f32.mrb[0].mxu0
    %v8710 = vadd.f32 0.0, %v8709
    %v8711 = vpop.f32.mrb[0].mxu0
    %8712 = vmatprep.mubr.bf16.mxu0 0
    %8713 = vmatmul.mubr.bf16.gmra.mrb[0].mxu0 %v8555
    %v8714 = vpop.f32.mrb[0].mxu0
    %v8715 = vadd.f32 0.0, %v8714
    %v8716 = vpop.f32.mrb[0].mxu0
    %v8717 = vpop.f32.mrb[0].mxu0
    %v8718 = vadd.f32 0.0, %v8717
    %v8719 = vpop.f32.mrb[0].mxu0
    %8720 = vmatprep.mubr.bf16.mxu0 0
    %8721 = vmatmul.mubr.bf16.gmra.mrb[0].mxu0 %v8558
    %v8722 = vpop.f32.mrb[0].mxu0
    %v8723 = vadd.f32 0.0, %v8722
    %v8724 = vpop.f32.mrb[0].mxu0
    %v8725 = vpop.f32.mrb[0].mxu0
    %v8726 = vadd.f32 0.0, %v8725
    %v8727 = vpop.f32.mrb[0].mxu0
    %8728 = vmatprep.mubr.bf16.mxu0 0
    %8729 = vmatmul.mubr.bf16.gmra.mrb[0].mxu0 %v8561
    %v8730 = vpop.f32.mrb[0].mxu0
    %v8731 = vadd.f32 0.0, %v8730
    %v8732 = vpop.f32.mrb[0].mxu0
    %v8733 = vpop.f32.mrb[0].mxu0
    %v8734 = vadd.f32 0.0, %v8733
    %v8735 = vpop.f32.mrb[0].mxu0
    %8736 = vmatprep.mubr.bf16.mxu0 0
    %8737 = vmatmul.mubr.bf16.gmra.mrb[0].mxu0 %v8564
    %v8738 = vpop.f32.mrb[0].mxu0
    %v8739 = vadd.f32 0.0, %v8738
    %v8740 = vpop.f32.mrb[0].mxu0
    %v8741 = vpop.f32.mrb[0].mxu0
    %v8742 = vadd.f32 0.0, %v8741
    %v8743 = vpop.f32.mrb[0].mxu0
    %8744 = vmatprep.mubr.bf16.mxu0 0
    %8745 = vmatmul.mubr.bf16.gmra.mrb[0].mxu0 %v8567
    %v8746 = vpop.f32.mrb[0].mxu0
    %v8747 = vadd.f32 0.0, %v8746
    %v8748 = vpop.f32.mrb[0].mxu0
    %v8749 = vpop.f32.mrb[0].mxu0
    %v8750 = vadd.f32 0.0, %v8749
    %v8751 = vpop.f32.mrb[0].mxu0
    %8752 = vmatprep.mubr.bf16.mxu0 0
    %8753 = vmatmul.mubr.bf16.gmra.mrb[0].mxu0 %v8570
    %v8754 = vpop.f32.mrb[0].mxu0
    %v8755 = vadd.f32 0.0, %v8754
    %v8756 = vpop.f32.mrb[0].mxu0
    %v8757 = vpop.f32.mrb[0].mxu0
    %v8758 = vadd.f32 0.0, %v8757
    %v8759 = vpop.f32.mrb[0].mxu0
    %8760 = vmatprep.mubr.bf16.mxu0 0
    %8761 = vmatmul.mubr.bf16.gmra.mrb[0].mxu0 %v8573
    %v8762 = vpop.f32.mrb[0].mxu0
    %v8763 = vadd.f32 0.0, %v8762
    %v8764 = vpop.f32.mrb[0].mxu0
    %v8765 = vpop.f32.mrb[0].mxu0
    %v8766 = vadd.f32 0.0, %v8765
    %v8767 = vpop.f32.mrb[0].mxu0
    %8768 = vmatprep.mubr.bf16.mxu0 0
    %8769 = vmatmul.mubr.bf16.gmra.mrb[0].mxu0 %v8576
    %v8770 = vpop.f32.mrb[0].mxu0
    %v8771 = vadd.f32 0.0, %v8770
    %v8772 = vpop.f32.mrb[0].mxu0
    %v8773 = vpop.f32.mrb[0].mxu0
    %v8774 = vadd.f32 0.0, %v8773
    %v8775 = vpop.f32.mrb[0].mxu0
    %8776 = vmatprep.mubr.bf16.mxu0 0
    %8777 = vmatmul.mubr.bf16.gmra.mrb[0].mxu0 %v8579
    %v8778 = vpop.f32.mrb[0].mxu0
    %v8779 = vadd.f32 0.0, %v8778
    %v8780 = vpop.f32.mrb[0].mxu0
    %v8781 = vpop.f32.mrb[0].mxu0
    %v8782 = vadd.f32 0.0, %v8781
    %v8783 = vpop.f32.mrb[0].mxu0
    %8784 = vmatprep.mubr.bf16.mxu0 0
    %8785 = vmatmul.mubr.bf16.gmra.mrb[0].mxu0 %v8582
    %v8786 = vpop.f32.mrb[0].mxu0
    %v8787 = vadd.f32 0.0, %v8786
    %v8788 = vpop.f32.mrb[0].mxu0
    %v8789 = vpop.f32.mrb[0].mxu0
    %v8790 = vadd.f32 0.0, %v8789
    %v8791 = vpop.f32.mrb[0].mxu0
    %8792 = vmatprep.mubr.bf16.mxu0 0
    %8793 = vmatmul.mubr.bf16.gmra.mrb[0].mxu0 %v8585
    %v8794 = vpop.f32.mrb[0].mxu0
    %v8795 = vadd.f32 0.0, %v8794
    %v8796 = vpop.f32.mrb[0].mxu0
    %v8797 = vpop.f32.mrb[0].mxu0
    %v8798 = vadd.f32 0.0, %v8797
    %v8799 = vpop.f32.mrb[0].mxu0
    %8800 = vmatprep.mubr.bf16.mxu0 0
    %8801 = vmatmul.mubr.bf16.gmra.mrb[0].mxu0 %v8588
    %v8802 = vpop.f32.mrb[0].mxu0
    %v8803 = vadd.f32 0.0, %v8802
    %v8804 = vpop.f32.mrb[0].mxu0
    %v8805 = vpop.f32.mrb[0].mxu0
    %v8806 = vadd.f32 0.0, %v8805
    %v8807 = vpop.f32.mrb[0].mxu0
    %8808 = vmatprep.mubr.bf16.mxu0 0
    %8809 = vmatmul.mubr.bf16.gmra.mrb[0].mxu0 %v8591
    %v8810 = vpop.f32.mrb[0].mxu0
    %v8811 = vadd.f32 0.0, %v8810
    %v8812 = vpop.f32.mrb[0].mxu0
    %v8813 = vpop.f32.mrb[0].mxu0
    %v8814 = vadd.f32 0.0, %v8813
    %v8815 = vpop.f32.mrb[0].mxu0
    %8816 = vmatprep.mubr.bf16.mxu0 0
    %8817 = vmatmul.mubr.bf16.gmra.mrb[0].mxu0 %v8594
    %v8818 = vpop.f32.mrb[0].mxu0
    %v8819 = vadd.f32 0.0, %v8818
    %v8820 = vpop.f32.mrb[0].mxu0
    %v8821 = vpop.f32.mrb[0].mxu0
    %v8822 = vadd.f32 0.0, %v8821
    %v8823 = vpop.f32.mrb[0].mxu0
    %8824 = vmatprep.mubr.bf16.mxu0 0
    %8825 = vmatmul.mubr.bf16.gmra.mrb[0].mxu0 %v8597
    %v8826 = vpop.f32.mrb[0].mxu0
    %v8827 = vadd.f32 0.0, %v8826
    %v8828 = vpop.f32.mrb[0].mxu0
    %v8829 = vpop.f32.mrb[0].mxu0
    %v8830 = vadd.f32 0.0, %v8829
    %v8831 = vpop.f32.mrb[0].mxu0
    %8832 = vmatprep.mubr.bf16.mxu0 0
    %8833 = vmatmul.mubr.bf16.gmra.mrb[0].mxu0 %v8600
    %v8834 = vpop.f32.mrb[0].mxu0
    %v8835 = vadd.f32 0.0, %v8834
    %v8836 = vpop.f32.mrb[0].mxu0
    %v8837 = vpop.f32.mrb[0].mxu0
    %v8838 = vadd.f32 0.0, %v8837
    %v8839 = vpop.f32.mrb[0].mxu0
    %8840 = vmatprep.mubr.bf16.mxu0 0
    %8841 = vmatmul.mubr.bf16.gmra.mrb[0].mxu0 %v8603
    %v8842 = vpop.f32.mrb[0].mxu0
    %v8843 = vadd.f32 0.0, %v8842
    %v8844 = vpop.f32.mrb[0].mxu0
    %v8845 = vpop.f32.mrb[0].mxu0
    %v8846 = vadd.f32 0.0, %v8845
    %v8847 = vpop.f32.mrb[0].mxu0
    %8848 = vmatprep.mubr.bf16.mxu0 0
    %8849 = vmatmul.mubr.bf16.gmra.mrb[0].mxu0 %v8606
    %v8850 = vpop.f32.mrb[0].mxu0
    %v8851 = vadd.f32 0.0, %v8850
    %v8852 = vpop.f32.mrb[0].mxu0
    %v8853 = vpop.f32.mrb[0].mxu0
    %v8854 = vadd.f32 0.0, %v8853
    %v8855 = vpop.f32.mrb[0].mxu0
    %8856 = vmatprep.mubr.bf16.mxu0 0
    %8857 = vmatmul.mubr.bf16.gmra.mrb[0].mxu0 %v8609
    %v8858 = vpop.f32.mrb[0].mxu0
    %v8859 = vadd.f32 0.0, %v8858
    %v8860 = vpop.f32.mrb[0].mxu0
    %v8861 = vpop.f32.mrb[0].mxu0
    %v8862 = vadd.f32 0.0, %v8861
    %v8863 = vpop.f32.mrb[0].mxu0
    %8864 = vmatprep.mubr.bf16.mxu0 0
    %8865 = vmatmul.mubr.bf16.gmra.mrb[0].mxu0 %v8612
    %v8866 = vpop.f32.mrb[0].mxu0
    %v8867 = vadd.f32 0.0, %v8866
    %v8868 = vpop.f32.mrb[0].mxu0
    %v8869 = vpop.f32.mrb[0].mxu0
    %v8870 = vadd.f32 0.0, %v8869
    %v8871 = vpop.f32.mrb[0].mxu0
    %8872 = vmatprep.mubr.bf16.mxu0 0
    %8873 = vmatmul.mubr.bf16.gmra.mrb[0].mxu0 %v8615
    %v8874 = vpop.f32.mrb[0].mxu0
    %v8875 = vadd.f32 0.0, %v8874
    %v8876 = vpop.f32.mrb[0].mxu0
    %v8877 = vpop.f32.mrb[0].mxu0
    %v8878 = vadd.f32 0.0, %v8877
    %v8879 = vpop.f32.mrb[0].mxu0
    %8880 = vmatprep.mubr.bf16.mxu0 0
    %8881 = vmatmul.mubr.bf16.gmra.mrb[0].mxu0 %v8618
    %v8882 = vpop.f32.mrb[0].mxu0
    %v8883 = vadd.f32 0.0, %v8882
    %v8884 = vpop.f32.mrb[0].mxu0
    %v8885 = vpop.f32.mrb[0].mxu0
    %v8886 = vadd.f32 0.0, %v8885
    %v8887 = vpop.f32.mrb[0].mxu0
    %8888 = vmatprep.mubr.bf16.mxu0 0
    %8889 = vmatmul.mubr.bf16.gmra.mrb[0].mxu0 %v8621
    %v8890 = vpop.f32.mrb[0].mxu0
    %v8891 = vadd.f32 0.0, %v8890
    %v8892 = vpop.f32.mrb[0].mxu0
    %v8893 = vpop.f32.mrb[0].mxu0
    %v8894 = vadd.f32 0.0, %v8893
    %v8895 = vpop.f32.mrb[0].mxu0
    %8896 = vmatprep.mubr.bf16.mxu0 0
    %8897 = vmatmul.mubr.bf16.gmra.mrb[0].mxu0 %v8624
    %v8898 = vpop.f32.mrb[0].mxu0
    %v8899 = vadd.f32 0.0, %v8898
    %v8900 = vpop.f32.mrb[0].mxu0
    %v8901 = vpop.f32.mrb[0].mxu0
    %v8902 = vadd.f32 0.0, %v8901
    %v8903 = vpop.f32.mrb[0].mxu0
    %8904 = vmatprep.mubr.bf16.mxu0 0
    %8905 = vmatmul.mubr.bf16.gmra.mrb[0].mxu0 %v8627
    %v8906 = vpop.f32.mrb[0].mxu0
    %v8907 = vadd.f32 0.0, %v8906
    %v8908 = vpop.f32.mrb[0].mxu0
    %v8909 = vpop.f32.mrb[0].mxu0
    %v8910 = vadd.f32 0.0, %v8909
    %v8911 = vpop.f32.mrb[0].mxu0
    %8912 = vmatprep.mubr.bf16.mxu0 0
    %8913 = vmatmul.mubr.bf16.gmra.mrb[0].mxu0 %v8630
    %v8914 = vpop.f32.mrb[0].mxu0
    %v8915 = vadd.f32 0.0, %v8914
    %v8916 = vpop.f32.mrb[0].mxu0
    %v8917 = vpop.f32.mrb[0].mxu0
    %v8918 = vadd.f32 0.0, %v8917
    %v8919 = vpop.f32.mrb[0].mxu0
    %8920 = vdwg.mxu0
    %v8921 = vadd.f32 %v8087, %v8667
    %v8922 = vadd.f32 %v8088, %v8670
    %v8923 = vadd.f32 %v8089, %v8675
    %v8924 = vadd.f32 %v8090, %v8678
    %v8925 = vadd.f32 %v8091, %v8683
    %v8926 = vadd.f32 %v8092, %v8686
    %v8927 = vadd.f32 %v8093, %v8691
    %v8928 = vadd.f32 %v8094, %v8694
    %v8929 = vadd.f32 %v8095, %v8699
    %v8930 = vadd.f32 %v8096, %v8702
    %v8931 = vadd.f32 %v8097, %v8707
    %v8932 = vadd.f32 %v8098, %v8710
    %v8933 = vadd.f32 %v8099, %v8715
    %v8934 = vadd.f32 %v8100, %v8718
    %v8935 = vadd.f32 %v8101, %v8723
    %v8936 = vadd.f32 %v8102, %v8726
    %v8937 = vadd.f32 %v8103, %v8731
    %v8938 = vadd.f32 %v8104, %v8734
    %v8939 = vadd.f32 %v8105, %v8739
    %v8940 = vadd.f32 %v8106, %v8742
    %v8941 = vadd.f32 %v8107, %v8747
    %v8942 = vadd.f32 %v8108, %v8750
    %v8943 = vadd.f32 %v8109, %v8755
    %v8944 = vadd.f32 %v8110, %v8758
    %v8945 = vadd.f32 %v8111, %v8763
    %v8946 = vadd.f32 %v8112, %v8766
    %v8947 = vadd.f32 %v8113, %v8771
    %v8948 = vadd.f32 %v8114, %v8774
    %v8949 = vadd.f32 %v8115, %v8779
    %v8950 = vadd.f32 %v8116, %v8782
    %v8951 = vadd.f32 %v8117, %v8787
    %v8952 = vadd.f32 %v8118, %v8790
    %v8953 = vadd.f32 %v8119, %v8795
    %v8954 = vadd.f32 %v8120, %v8798
    %v8955 = vadd.f32 %v8121, %v8803
    %v8956 = vadd.f32 %v8122, %v8806
    %v8957 = vadd.f32 %v8123, %v8811
    %v8958 = vadd.f32 %v8124, %v8814
    %v8959 = vadd.f32 %v8125, %v8819
    %v8960 = vadd.f32 %v8126, %v8822
    %v8961 = vadd.f32 %v8127, %v8827
    %v8962 = vadd.f32 %v8128, %v8830
    %v8963 = vadd.f32 %v8129, %v8835
    %v8964 = vadd.f32 %v8130, %v8838
    %v8965 = vadd.f32 %v8131, %v8843
    %v8966 = vadd.f32 %v8132, %v8846
    %v8967 = vadd.f32 %v8133, %v8851
    %v8968 = vadd.f32 %v8134, %v8854
    %v8969 = vadd.f32 %v8135, %v8859
    %v8970 = vadd.f32 %v8136, %v8862
    %v8971 = vadd.f32 %v8137, %v8867
    %v8972 = vadd.f32 %v8138, %v8870
    %v8973 = vadd.f32 %v8139, %v8875
    %v8974 = vadd.f32 %v8140, %v8878
    %v8975 = vadd.f32 %v8141, %v8883
    %v8976 = vadd.f32 %v8142, %v8886
    %v8977 = vadd.f32 %v8143, %v8891
    %v8978 = vadd.f32 %v8144, %v8894
    %v8979 = vadd.f32 %v8145, %v8899
    %v8980 = vadd.f32 %v8146, %v8902
    %v8981 = vadd.f32 %v8147, %v8907
    %v8982 = vadd.f32 %v8148, %v8910
    %v8983 = vadd.f32 %v8149, %v8915
    %v8984 = vadd.f32 %v8150, %v8918
    %8985 = vset.pattern.permute.xlu0 8
    %8986 = vperm.xlu0 %8985, %v2185
    %v8987 = vpop.permute.xlu0 %8986
    %8989 = vset.pattern.permute.xlu0 8
    %8990 = vperm.xlu0 %8989, %v2186
    %v8991 = vpop.permute.xlu0 %8990
    %8993 = vset.pattern.permute.xlu0 8
    %8994 = vperm.xlu0 %8993, %v2187
    %v8995 = vpop.permute.xlu0 %8994
    %8997 = vset.pattern.permute.xlu0 8
    %8998 = vperm.xlu0 %8997, %v2188
    %v8999 = vpop.permute.xlu0 %8998
    %9001 = vset.pattern.permute.xlu0 8
    %9002 = vperm.xlu0 %9001, %v2189
    %v9003 = vpop.permute.xlu0 %9002
    %9005 = vset.pattern.permute.xlu0 8
    %9006 = vperm.xlu0 %9005, %v2190
    %v9007 = vpop.permute.xlu0 %9006
    %9009 = vset.pattern.permute.xlu0 8
    %9010 = vperm.xlu0 %9009, %v2191
    %v9011 = vpop.permute.xlu0 %9010
    %9013 = vset.pattern.permute.xlu0 8
    %9014 = vperm.xlu0 %9013, %v2192
    %v9015 = vpop.permute.xlu0 %9014
    %9017 = vset.pattern.permute.xlu0 8
    %9018 = vperm.xlu0 %9017, %v2193
    %v9019 = vpop.permute.xlu0 %9018
    %9021 = vset.pattern.permute.xlu0 8
    %9022 = vperm.xlu0 %9021, %v2194
    %v9023 = vpop.permute.xlu0 %9022
    %9025 = vset.pattern.permute.xlu0 8
    %9026 = vperm.xlu0 %9025, %v2195
    %v9027 = vpop.permute.xlu0 %9026
    %9029 = vset.pattern.permute.xlu0 8
    %9030 = vperm.xlu0 %9029, %v2196
    %v9031 = vpop.permute.xlu0 %9030
    %9033 = vset.pattern.permute.xlu0 8
    %9034 = vperm.xlu0 %9033, %v2197
    %v9035 = vpop.permute.xlu0 %9034
    %9037 = vset.pattern.permute.xlu0 8
    %9038 = vperm.xlu0 %9037, %v2198
    %v9039 = vpop.permute.xlu0 %9038
    %9041 = vset.pattern.permute.xlu0 8
    %9042 = vperm.xlu0 %9041, %v2199
    %v9043 = vpop.permute.xlu0 %9042
    %9045 = vset.pattern.permute.xlu0 8
    %9046 = vperm.xlu0 %9045, %v2200
    %v9047 = vpop.permute.xlu0 %9046
    %9049 = vset.pattern.permute.xlu0 8
    %9050 = vperm.xlu0 %9049, %v2201
    %v9051 = vpop.permute.xlu0 %9050
    %9053 = vset.pattern.permute.xlu0 8
    %9054 = vperm.xlu0 %9053, %v2202
    %v9055 = vpop.permute.xlu0 %9054
    %9057 = vset.pattern.permute.xlu0 8
    %9058 = vperm.xlu0 %9057, %v2203
    %v9059 = vpop.permute.xlu0 %9058
    %9061 = vset.pattern.permute.xlu0 8
    %9062 = vperm.xlu0 %9061, %v2204
    %v9063 = vpop.permute.xlu0 %9062
    %9065 = vset.pattern.permute.xlu0 8
    %9066 = vperm.xlu0 %9065, %v2205
    %v9067 = vpop.permute.xlu0 %9066
    %9069 = vset.pattern.permute.xlu0 8
    %9070 = vperm.xlu0 %9069, %v2206
    %v9071 = vpop.permute.xlu0 %9070
    %9073 = vset.pattern.permute.xlu0 8
    %9074 = vperm.xlu0 %9073, %v2207
    %v9075 = vpop.permute.xlu0 %9074
    %9077 = vset.pattern.permute.xlu0 8
    %9078 = vperm.xlu0 %9077, %v2208
    %v9079 = vpop.permute.xlu0 %9078
    %9081 = vset.pattern.permute.xlu0 8
    %9082 = vperm.xlu0 %9081, %v2209
    %v9083 = vpop.permute.xlu0 %9082
    %9085 = vset.pattern.permute.xlu0 8
    %9086 = vperm.xlu0 %9085, %v2210
    %v9087 = vpop.permute.xlu0 %9086
    %9089 = vset.pattern.permute.xlu0 8
    %9090 = vperm.xlu0 %9089, %v2211
    %v9091 = vpop.permute.xlu0 %9090
    %9093 = vset.pattern.permute.xlu0 8
    %9094 = vperm.xlu0 %9093, %v2212
    %v9095 = vpop.permute.xlu0 %9094
    %9097 = vset.pattern.permute.xlu0 8
    %9098 = vperm.xlu0 %9097, %v2213
    %v9099 = vpop.permute.xlu0 %9098
    %9101 = vset.pattern.permute.xlu0 8
    %9102 = vperm.xlu0 %9101, %v2214
    %v9103 = vpop.permute.xlu0 %9102
    %9105 = vset.pattern.permute.xlu0 8
    %9106 = vperm.xlu0 %9105, %v2215
    %v9107 = vpop.permute.xlu0 %9106
    %9109 = vset.pattern.permute.xlu0 8
    %9110 = vperm.xlu0 %9109, %v2216
    %v9111 = vpop.permute.xlu0 %9110
    %9113 = vset.pattern.permute.xlu0 8
    %9114 = vperm.xlu0 %9113, %v2217
    %v9115 = vpop.permute.xlu0 %9114
    %9117 = vset.pattern.permute.xlu0 8
    %9118 = vperm.xlu0 %9117, %v2218
    %v9119 = vpop.permute.xlu0 %9118
    %9121 = vset.pattern.permute.xlu0 8
    %9122 = vperm.xlu0 %9121, %v2219
    %v9123 = vpop.permute.xlu0 %9122
    %9125 = vset.pattern.permute.xlu0 8
    %9126 = vperm.xlu0 %9125, %v2220
    %v9127 = vpop.permute.xlu0 %9126
    %9129 = vset.pattern.permute.xlu0 8
    %9130 = vperm.xlu0 %9129, %v2221
    %v9131 = vpop.permute.xlu0 %9130
    %9133 = vset.pattern.permute.xlu0 8
    %9134 = vperm.xlu0 %9133, %v2222
    %v9135 = vpop.permute.xlu0 %9134
    %9137 = vset.pattern.permute.xlu0 8
    %9138 = vperm.xlu0 %9137, %v2223
    %v9139 = vpop.permute.xlu0 %9138
    %9141 = vset.pattern.permute.xlu0 8
    %9142 = vperm.xlu0 %9141, %v2224
    %v9143 = vpop.permute.xlu0 %9142
    %9145 = vset.pattern.permute.xlu0 8
    %9146 = vperm.xlu0 %9145, %v2225
    %v9147 = vpop.permute.xlu0 %9146
    %9149 = vset.pattern.permute.xlu0 8
    %9150 = vperm.xlu0 %9149, %v2226
    %v9151 = vpop.permute.xlu0 %9150
    %9153 = vset.pattern.permute.xlu0 8
    %9154 = vperm.xlu0 %9153, %v2227
    %v9155 = vpop.permute.xlu0 %9154
    %9157 = vset.pattern.permute.xlu0 8
    %9158 = vperm.xlu0 %9157, %v2228
    %v9159 = vpop.permute.xlu0 %9158
    %9161 = vset.pattern.permute.xlu0 8
    %9162 = vperm.xlu0 %9161, %v2229
    %v9163 = vpop.permute.xlu0 %9162
    %9165 = vset.pattern.permute.xlu0 8
    %9166 = vperm.xlu0 %9165, %v2230
    %v9167 = vpop.permute.xlu0 %9166
    %9169 = vset.pattern.permute.xlu0 8
    %9170 = vperm.xlu0 %9169, %v2231
    %v9171 = vpop.permute.xlu0 %9170
    %9173 = vset.pattern.permute.xlu0 8
    %9174 = vperm.xlu0 %9173, %v2232
    %v9175 = vpop.permute.xlu0 %9174
    %9177 = vset.pattern.permute.xlu0 8
    %9178 = vperm.xlu0 %9177, %v2233
    %v9179 = vpop.permute.xlu0 %9178
    %9181 = vset.pattern.permute.xlu0 8
    %9182 = vperm.xlu0 %9181, %v2234
    %v9183 = vpop.permute.xlu0 %9182
    %9185 = vset.pattern.permute.xlu0 8
    %9186 = vperm.xlu0 %9185, %v2235
    %v9187 = vpop.permute.xlu0 %9186
    %9189 = vset.pattern.permute.xlu0 8
    %9190 = vperm.xlu0 %9189, %v2236
    %v9191 = vpop.permute.xlu0 %9190
    %9193 = vset.pattern.permute.xlu0 8
    %9194 = vperm.xlu0 %9193, %v2237
    %v9195 = vpop.permute.xlu0 %9194
    %9197 = vset.pattern.permute.xlu0 8
    %9198 = vperm.xlu0 %9197, %v2238
    %v9199 = vpop.permute.xlu0 %9198
    %9201 = vset.pattern.permute.xlu0 8
    %9202 = vperm.xlu0 %9201, %v2239
    %v9203 = vpop.permute.xlu0 %9202
    %9205 = vset.pattern.permute.xlu0 8
    %9206 = vperm.xlu0 %9205, %v2240
    %v9207 = vpop.permute.xlu0 %9206
    %9209 = vset.pattern.permute.xlu0 8
    %9210 = vperm.xlu0 %9209, %v2241
    %v9211 = vpop.permute.xlu0 %9210
    %9213 = vset.pattern.permute.xlu0 8
    %9214 = vperm.xlu0 %9213, %v2242
    %v9215 = vpop.permute.xlu0 %9214
    %9217 = vset.pattern.permute.xlu0 8
    %9218 = vperm.xlu0 %9217, %v2243
    %v9219 = vpop.permute.xlu0 %9218
    %9221 = vset.pattern.permute.xlu0 8
    %9222 = vperm.xlu0 %9221, %v2244
    %v9223 = vpop.permute.xlu0 %9222
    %9225 = vset.pattern.permute.xlu0 8
    %9226 = vperm.xlu0 %9225, %v2245
    %v9227 = vpop.permute.xlu0 %9226
    %9229 = vset.pattern.permute.xlu0 8
    %9230 = vperm.xlu0 %9229, %v2246
    %v9231 = vpop.permute.xlu0 %9230
    %9233 = vset.pattern.permute.xlu0 8
    %9234 = vperm.xlu0 %9233, %v2247
    %v9235 = vpop.permute.xlu0 %9234
    %9237 = vset.pattern.permute.xlu0 8
    %9238 = vperm.xlu0 %9237, %v2248
    %v9239 = vpop.permute.xlu0 %9238
    %v9241 = vmul.f32 %v3977, %v8987
    %v9242 = vmul.f32 %v3976, %v8991
    %v9243 = vmul.f32 %v3975, %v8995
    %v9244 = vmul.f32 %v3974, %v8999
    %v9245 = vmul.f32 %v3973, %v9003
    %v9246 = vmul.f32 %v3972, %v9007
    %v9247 = vmul.f32 %v3971, %v9011
    %v9248 = vmul.f32 %v3970, %v9015
    %v9249 = vmul.f32 %v3969, %v9019
    %v9250 = vmul.f32 %v3968, %v9023
    %v9251 = vmul.f32 %v3967, %v9027
    %v9252 = vmul.f32 %v3966, %v9031
    %v9253 = vmul.f32 %v3965, %v9035
    %v9254 = vmul.f32 %v3964, %v9039
    %v9255 = vmul.f32 %v3963, %v9043
    %v9256 = vmul.f32 %v3962, %v9047
    %v9257 = vmul.f32 %v3961, %v9051
    %v9258 = vmul.f32 %v3960, %v9055
    %v9259 = vmul.f32 %v3959, %v9059
    %v9260 = vmul.f32 %v3958, %v9063
    %v9261 = vmul.f32 %v3957, %v9067
    %v9262 = vmul.f32 %v3956, %v9071
    %v9263 = vmul.f32 %v3955, %v9075
    %v9264 = vmul.f32 %v3954, %v9079
    %v9265 = vmul.f32 %v3953, %v9083
    %v9266 = vmul.f32 %v3952, %v9087
    %v9267 = vmul.f32 %v3951, %v9091
    %v9268 = vmul.f32 %v3950, %v9095
    %v9269 = vmul.f32 %v3949, %v9099
    %v9270 = vmul.f32 %v3948, %v9103
    %v9271 = vmul.f32 %v3947, %v9107
    %v9272 = vmul.f32 %v3946, %v9111
    %v9273 = vmul.f32 %v3945, %v9115
    %v9274 = vmul.f32 %v3944, %v9119
    %v9275 = vmul.f32 %v3943, %v9123
    %v9276 = vmul.f32 %v3942, %v9127
    %v9277 = vmul.f32 %v3941, %v9131
    %v9278 = vmul.f32 %v3940, %v9135
    %v9279 = vmul.f32 %v3939, %v9139
    %v9280 = vmul.f32 %v3938, %v9143
    %v9281 = vmul.f32 %v3937, %v9147
    %v9282 = vmul.f32 %v3936, %v9151
    %v9283 = vmul.f32 %v3935, %v9155
    %v9284 = vmul.f32 %v3934, %v9159
    %v9285 = vmul.f32 %v3933, %v9163
    %v9286 = vmul.f32 %v3932, %v9167
    %v9287 = vmul.f32 %v3931, %v9171
    %v9288 = vmul.f32 %v3930, %v9175
    %v9289 = vmul.f32 %v3929, %v9179
    %v9290 = vmul.f32 %v3928, %v9183
    %v9291 = vmul.f32 %v3927, %v9187
    %v9292 = vmul.f32 %v3926, %v9191
    %v9293 = vmul.f32 %v3925, %v9195
    %v9294 = vmul.f32 %v3924, %v9199
    %v9295 = vmul.f32 %v3923, %v9203
    %v9296 = vmul.f32 %v3922, %v9207
    %v9297 = vmul.f32 %v3921, %v9211
    %v9298 = vmul.f32 %v3920, %v9215
    %v9299 = vmul.f32 %v3919, %v9219
    %v9300 = vmul.f32 %v3918, %v9223
    %v9301 = vmul.f32 %v3917, %v9227
    %v9302 = vmul.f32 %v3980, %v9231
    %v9303 = vmul.f32 %v3979, %v9235
    %v9304 = vmul.f32 %v3978, %v9239
    %v9305 = vpack.c.bf16 %v9242, %v9241
    %v9306 = vpack.c.bf16 %v9244, %v9243
    %v9307 = vpack.c.bf16 %v9246, %v9245
    %v9308 = vpack.c.bf16 %v9248, %v9247
    %v9309 = vpack.c.bf16 %v9250, %v9249
    %v9310 = vpack.c.bf16 %v9252, %v9251
    %v9311 = vpack.c.bf16 %v9254, %v9253
    %v9312 = vpack.c.bf16 %v9256, %v9255
    %v9313 = vpack.c.bf16 %v9258, %v9257
    %v9314 = vpack.c.bf16 %v9260, %v9259
    %v9315 = vpack.c.bf16 %v9262, %v9261
    %v9316 = vpack.c.bf16 %v9264, %v9263
    %v9317 = vpack.c.bf16 %v9266, %v9265
    %v9318 = vpack.c.bf16 %v9268, %v9267
    %v9319 = vpack.c.bf16 %v9270, %v9269
    %v9320 = vpack.c.bf16 %v9272, %v9271
    %v9321 = vpack.c.bf16 %v9274, %v9273
    %v9322 = vpack.c.bf16 %v9276, %v9275
    %v9323 = vpack.c.bf16 %v9278, %v9277
    %v9324 = vpack.c.bf16 %v9280, %v9279
    %v9325 = vpack.c.bf16 %v9282, %v9281
    %v9326 = vpack.c.bf16 %v9284, %v9283
    %v9327 = vpack.c.bf16 %v9286, %v9285
    %v9328 = vpack.c.bf16 %v9288, %v9287
    %v9329 = vpack.c.bf16 %v9290, %v9289
    %v9330 = vpack.c.bf16 %v9292, %v9291
    %v9331 = vpack.c.bf16 %v9294, %v9293
    %v9332 = vpack.c.bf16 %v9296, %v9295
    %v9333 = vpack.c.bf16 %v9298, %v9297
    %v9334 = vpack.c.bf16 %v9300, %v9299
    %v9335 = vpack.c.bf16 %v9302, %v9301
    %v9336 = vpack.c.bf16 %v9304, %v9303
    %s9337 = scalar_lea.vmem %s8, 256
    %v9338 = vld [vmem:[%s9337] sm:$0xf]
    %v9339 = vld [vmem:[%s9337 + $0x4] sm:$0xf]
    %v9340 = vld [vmem:[%s9337 + $0x8] sm:$0xf]
    %v9341 = vld [vmem:[%s9337 + $0xc] sm:$0xf]
    %v9342 = vld [vmem:[%s9337 + $0x10] sm:$0xf]
    %v9343 = vld [vmem:[%s9337 + $0x14] sm:$0xf]
    %v9344 = vld [vmem:[%s9337 + $0x18] sm:$0xf]
    %v9345 = vld [vmem:[%s9337 + $0x1c] sm:$0xf]
    %v9354 = vunpack.c.l.b16 %v9338
    %v9355 = vunpack.c.l.b16 %v9339
    %v9356 = vunpack.c.l.b16 %v9340
    %v9357 = vunpack.c.l.b16 %v9341
    %v9358 = vunpack.c.l.b16 %v9342
    %v9359 = vunpack.c.l.b16 %v9343
    %v9360 = vunpack.c.l.b16 %v9344
    %v9361 = vunpack.c.l.b16 %v9345
    %v9362 = vpack.c.b16 %v9355, %v9354
    %v9363 = vpack.c.b16 %v9357, %v9356
    %v9364 = vpack.c.b16 %v9359, %v9358
    %v9365 = vpack.c.b16 %v9361, %v9360
    %v9371 = vsel %vm368, %v9305, 0
    %v9374 = vsel %vm368, %v9306, 0
    %v9377 = vsel %vm368, %v9307, 0
    %v9380 = vsel %vm368, %v9308, 0
    %v9383 = vsel %vm368, %v9309, 0
    %v9386 = vsel %vm368, %v9310, 0
    %v9389 = vsel %vm368, %v9311, 0
    %v9392 = vsel %vm368, %v9312, 0
    %v9395 = vsel %vm368, %v9313, 0
    %v9398 = vsel %vm368, %v9314, 0
    %v9401 = vsel %vm368, %v9315, 0
    %v9404 = vsel %vm368, %v9316, 0
    %v9407 = vsel %vm368, %v9317, 0
    %v9410 = vsel %vm368, %v9318, 0
    %v9413 = vsel %vm368, %v9319, 0
    %v9416 = vsel %vm368, %v9320, 0
    %v9419 = vsel %vm368, %v9321, 0
    %v9422 = vsel %vm368, %v9322, 0
    %v9425 = vsel %vm368, %v9323, 0
    %v9428 = vsel %vm368, %v9324, 0
    %v9431 = vsel %vm368, %v9325, 0
    %v9434 = vsel %vm368, %v9326, 0
    %v9437 = vsel %vm368, %v9327, 0
    %v9440 = vsel %vm368, %v9328, 0
    %v9443 = vsel %vm368, %v9329, 0
    %v9446 = vsel %vm368, %v9330, 0
    %v9449 = vsel %vm368, %v9331, 0
    %v9452 = vsel %vm368, %v9332, 0
    %v9455 = vsel %vm368, %v9333, 0
    %v9458 = vsel %vm368, %v9334, 0
    %v9461 = vsel %vm368, %v9335, 0
    %v9464 = vsel %vm368, %v9336, 0
    %9466 = vmatprep.subr.bf16.mxu0 0
    %9467 = vmatpush1.bf16.msra.mxu0 %v9362
    %9468 = vmatprep.subr.bf16.mxu0 0
    %9469 = vmatpush1.bf16.msra.mxu0 %v9363
    %9470 = vmatprep.subr.bf16.mxu0 0
    %9471 = vmatpush1.bf16.msra.mxu0 %v9364
    %9472 = vmatprep.subr.bf16.mxu0 0
    %9473 = vmatpush1.bf16.msra.mxu0 %v9365
    %9474 = vmatprep.subr.bf16.mxu0 0
    %9475 = vmatpush1.bf16.msra.mxu0 0
    %9476 = vmatprep.subr.bf16.mxu0 0
    %9477 = vmatpush1.bf16.msra.mxu0 0
    %9478 = vmatprep.subr.bf16.mxu0 0
    %9479 = vmatpush1.bf16.msra.mxu0 0
    %9480 = vmatprep.subr.bf16.mxu0 0
    %9481 = vmatpush1.bf16.msra.mxu0 0
    %9482 = vmatprep.subr.bf16.mxu0 0
    %9483 = vmatpush1.bf16.msra.mxu0 0
    %9484 = vmatprep.subr.bf16.mxu0 0
    %9485 = vmatpush1.bf16.msra.mxu0 0
    %9486 = vmatprep.subr.bf16.mxu0 0
    %9487 = vmatpush1.bf16.msra.mxu0 0
    %9488 = vmatprep.subr.bf16.mxu0 0
    %9489 = vmatpush1.bf16.msra.mxu0 0
    %9490 = vmatprep.subr.bf16.mxu0 0
    %9491 = vmatpush1.bf16.msra.mxu0 0
    %9492 = vmatprep.subr.bf16.mxu0 0
    %9493 = vmatpush1.bf16.msra.mxu0 0
    %9494 = vmatprep.subr.bf16.mxu0 0
    %9495 = vmatpush1.bf16.msra.mxu0 0
    %9496 = vmatprep.subr.bf16.mxu0 0
    %9497 = vmatpush1.bf16.msra.mxu0 0
    %9498 = vmatprep.mubr.bf16.mxu0 0
    %9499 = vmatmul.mubr.bf16.gmra.mrb[0].mxu0 %v9371
    %v9500 = vpop.f32.mrb[0].mxu0
    %v9501 = vadd.f32 0.0, %v9500
    %v9502 = vpop.f32.mrb[0].mxu0
    %v9503 = vpop.f32.mrb[0].mxu0
    %v9504 = vadd.f32 0.0, %v9503
    %v9505 = vpop.f32.mrb[0].mxu0
    %9506 = vmatprep.mubr.bf16.mxu0 0
    %9507 = vmatmul.mubr.bf16.gmra.mrb[0].mxu0 %v9374
    %v9508 = vpop.f32.mrb[0].mxu0
    %v9509 = vadd.f32 0.0, %v9508
    %v9510 = vpop.f32.mrb[0].mxu0
    %v9511 = vpop.f32.mrb[0].mxu0
    %v9512 = vadd.f32 0.0, %v9511
    %v9513 = vpop.f32.mrb[0].mxu0
    %9514 = vmatprep.mubr.bf16.mxu0 0
    %9515 = vmatmul.mubr.bf16.gmra.mrb[0].mxu0 %v9377
    %v9516 = vpop.f32.mrb[0].mxu0
    %v9517 = vadd.f32 0.0, %v9516
    %v9518 = vpop.f32.mrb[0].mxu0
    %v9519 = vpop.f32.mrb[0].mxu0
    %v9520 = vadd.f32 0.0, %v9519
    %v9521 = vpop.f32.mrb[0].mxu0
    %9522 = vmatprep.mubr.bf16.mxu0 0
    %9523 = vmatmul.mubr.bf16.gmra.mrb[0].mxu0 %v9380
    %v9524 = vpop.f32.mrb[0].mxu0
    %v9525 = vadd.f32 0.0, %v9524
    %v9526 = vpop.f32.mrb[0].mxu0
    %v9527 = vpop.f32.mrb[0].mxu0
    %v9528 = vadd.f32 0.0, %v9527
    %v9529 = vpop.f32.mrb[0].mxu0
    %9530 = vmatprep.mubr.bf16.mxu0 0
    %9531 = vmatmul.mubr.bf16.gmra.mrb[0].mxu0 %v9383
    %v9532 = vpop.f32.mrb[0].mxu0
    %v9533 = vadd.f32 0.0, %v9532
    %v9534 = vpop.f32.mrb[0].mxu0
    %v9535 = vpop.f32.mrb[0].mxu0
    %v9536 = vadd.f32 0.0, %v9535
    %v9537 = vpop.f32.mrb[0].mxu0
    %9538 = vmatprep.mubr.bf16.mxu0 0
    %9539 = vmatmul.mubr.bf16.gmra.mrb[0].mxu0 %v9386
    %v9540 = vpop.f32.mrb[0].mxu0
    %v9541 = vadd.f32 0.0, %v9540
    %v9542 = vpop.f32.mrb[0].mxu0
    %v9543 = vpop.f32.mrb[0].mxu0
    %v9544 = vadd.f32 0.0, %v9543
    %v9545 = vpop.f32.mrb[0].mxu0
    %9546 = vmatprep.mubr.bf16.mxu0 0
    %9547 = vmatmul.mubr.bf16.gmra.mrb[0].mxu0 %v9389
    %v9548 = vpop.f32.mrb[0].mxu0
    %v9549 = vadd.f32 0.0, %v9548
    %v9550 = vpop.f32.mrb[0].mxu0
    %v9551 = vpop.f32.mrb[0].mxu0
    %v9552 = vadd.f32 0.0, %v9551
    %v9553 = vpop.f32.mrb[0].mxu0
    %9554 = vmatprep.mubr.bf16.mxu0 0
    %9555 = vmatmul.mubr.bf16.gmra.mrb[0].mxu0 %v9392
    %v9556 = vpop.f32.mrb[0].mxu0
    %v9557 = vadd.f32 0.0, %v9556
    %v9558 = vpop.f32.mrb[0].mxu0
    %v9559 = vpop.f32.mrb[0].mxu0
    %v9560 = vadd.f32 0.0, %v9559
    %v9561 = vpop.f32.mrb[0].mxu0
    %9562 = vmatprep.mubr.bf16.mxu0 0
    %9563 = vmatmul.mubr.bf16.gmra.mrb[0].mxu0 %v9395
    %v9564 = vpop.f32.mrb[0].mxu0
    %v9565 = vadd.f32 0.0, %v9564
    %v9566 = vpop.f32.mrb[0].mxu0
    %v9567 = vpop.f32.mrb[0].mxu0
    %v9568 = vadd.f32 0.0, %v9567
    %v9569 = vpop.f32.mrb[0].mxu0
    %9570 = vmatprep.mubr.bf16.mxu0 0
    %9571 = vmatmul.mubr.bf16.gmra.mrb[0].mxu0 %v9398
    %v9572 = vpop.f32.mrb[0].mxu0
    %v9573 = vadd.f32 0.0, %v9572
    %v9574 = vpop.f32.mrb[0].mxu0
    %v9575 = vpop.f32.mrb[0].mxu0
    %v9576 = vadd.f32 0.0, %v9575
    %v9577 = vpop.f32.mrb[0].mxu0
    %9578 = vmatprep.mubr.bf16.mxu0 0
    %9579 = vmatmul.mubr.bf16.gmra.mrb[0].mxu0 %v9401
    %v9580 = vpop.f32.mrb[0].mxu0
    %v9581 = vadd.f32 0.0, %v9580
    %v9582 = vpop.f32.mrb[0].mxu0
    %v9583 = vpop.f32.mrb[0].mxu0
    %v9584 = vadd.f32 0.0, %v9583
    %v9585 = vpop.f32.mrb[0].mxu0
    %9586 = vmatprep.mubr.bf16.mxu0 0
    %9587 = vmatmul.mubr.bf16.gmra.mrb[0].mxu0 %v9404
    %v9588 = vpop.f32.mrb[0].mxu0
    %v9589 = vadd.f32 0.0, %v9588
    %v9590 = vpop.f32.mrb[0].mxu0
    %v9591 = vpop.f32.mrb[0].mxu0
    %v9592 = vadd.f32 0.0, %v9591
    %v9593 = vpop.f32.mrb[0].mxu0
    %9594 = vmatprep.mubr.bf16.mxu0 0
    %9595 = vmatmul.mubr.bf16.gmra.mrb[0].mxu0 %v9407
    %v9596 = vpop.f32.mrb[0].mxu0
    %v9597 = vadd.f32 0.0, %v9596
    %v9598 = vpop.f32.mrb[0].mxu0
    %v9599 = vpop.f32.mrb[0].mxu0
    %v9600 = vadd.f32 0.0, %v9599
    %v9601 = vpop.f32.mrb[0].mxu0
    %9602 = vmatprep.mubr.bf16.mxu0 0
    %9603 = vmatmul.mubr.bf16.gmra.mrb[0].mxu0 %v9410
    %v9604 = vpop.f32.mrb[0].mxu0
    %v9605 = vadd.f32 0.0, %v9604
    %v9606 = vpop.f32.mrb[0].mxu0
    %v9607 = vpop.f32.mrb[0].mxu0
    %v9608 = vadd.f32 0.0, %v9607
    %v9609 = vpop.f32.mrb[0].mxu0
    %9610 = vmatprep.mubr.bf16.mxu0 0
    %9611 = vmatmul.mubr.bf16.gmra.mrb[0].mxu0 %v9413
    %v9612 = vpop.f32.mrb[0].mxu0
    %v9613 = vadd.f32 0.0, %v9612
    %v9614 = vpop.f32.mrb[0].mxu0
    %v9615 = vpop.f32.mrb[0].mxu0
    %v9616 = vadd.f32 0.0, %v9615
    %v9617 = vpop.f32.mrb[0].mxu0
    %9618 = vmatprep.mubr.bf16.mxu0 0
    %9619 = vmatmul.mubr.bf16.gmra.mrb[0].mxu0 %v9416
    %v9620 = vpop.f32.mrb[0].mxu0
    %v9621 = vadd.f32 0.0, %v9620
    %v9622 = vpop.f32.mrb[0].mxu0
    %v9623 = vpop.f32.mrb[0].mxu0
    %v9624 = vadd.f32 0.0, %v9623
    %v9625 = vpop.f32.mrb[0].mxu0
    %9626 = vmatprep.mubr.bf16.mxu0 0
    %9627 = vmatmul.mubr.bf16.gmra.mrb[0].mxu0 %v9419
    %v9628 = vpop.f32.mrb[0].mxu0
    %v9629 = vadd.f32 0.0, %v9628
    %v9630 = vpop.f32.mrb[0].mxu0
    %v9631 = vpop.f32.mrb[0].mxu0
    %v9632 = vadd.f32 0.0, %v9631
    %v9633 = vpop.f32.mrb[0].mxu0
    %9634 = vmatprep.mubr.bf16.mxu0 0
    %9635 = vmatmul.mubr.bf16.gmra.mrb[0].mxu0 %v9422
    %v9636 = vpop.f32.mrb[0].mxu0
    %v9637 = vadd.f32 0.0, %v9636
    %v9638 = vpop.f32.mrb[0].mxu0
    %v9639 = vpop.f32.mrb[0].mxu0
    %v9640 = vadd.f32 0.0, %v9639
    %v9641 = vpop.f32.mrb[0].mxu0
    %9642 = vmatprep.mubr.bf16.mxu0 0
    %9643 = vmatmul.mubr.bf16.gmra.mrb[0].mxu0 %v9425
    %v9644 = vpop.f32.mrb[0].mxu0
    %v9645 = vadd.f32 0.0, %v9644
    %v9646 = vpop.f32.mrb[0].mxu0
    %v9647 = vpop.f32.mrb[0].mxu0
    %v9648 = vadd.f32 0.0, %v9647
    %v9649 = vpop.f32.mrb[0].mxu0
    %9650 = vmatprep.mubr.bf16.mxu0 0
    %9651 = vmatmul.mubr.bf16.gmra.mrb[0].mxu0 %v9428
    %v9652 = vpop.f32.mrb[0].mxu0
    %v9653 = vadd.f32 0.0, %v9652
    %v9654 = vpop.f32.mrb[0].mxu0
    %v9655 = vpop.f32.mrb[0].mxu0
    %v9656 = vadd.f32 0.0, %v9655
    %v9657 = vpop.f32.mrb[0].mxu0
    %9658 = vmatprep.mubr.bf16.mxu0 0
    %9659 = vmatmul.mubr.bf16.gmra.mrb[0].mxu0 %v9431
    %v9660 = vpop.f32.mrb[0].mxu0
    %v9661 = vadd.f32 0.0, %v9660
    %v9662 = vpop.f32.mrb[0].mxu0
    %v9663 = vpop.f32.mrb[0].mxu0
    %v9664 = vadd.f32 0.0, %v9663
    %v9665 = vpop.f32.mrb[0].mxu0
    %9666 = vmatprep.mubr.bf16.mxu0 0
    %9667 = vmatmul.mubr.bf16.gmra.mrb[0].mxu0 %v9434
    %v9668 = vpop.f32.mrb[0].mxu0
    %v9669 = vadd.f32 0.0, %v9668
    %v9670 = vpop.f32.mrb[0].mxu0
    %v9671 = vpop.f32.mrb[0].mxu0
    %v9672 = vadd.f32 0.0, %v9671
    %v9673 = vpop.f32.mrb[0].mxu0
    %9674 = vmatprep.mubr.bf16.mxu0 0
    %9675 = vmatmul.mubr.bf16.gmra.mrb[0].mxu0 %v9437
    %v9676 = vpop.f32.mrb[0].mxu0
    %v9677 = vadd.f32 0.0, %v9676
    %v9678 = vpop.f32.mrb[0].mxu0
    %v9679 = vpop.f32.mrb[0].mxu0
    %v9680 = vadd.f32 0.0, %v9679
    %v9681 = vpop.f32.mrb[0].mxu0
    %9682 = vmatprep.mubr.bf16.mxu0 0
    %9683 = vmatmul.mubr.bf16.gmra.mrb[0].mxu0 %v9440
    %v9684 = vpop.f32.mrb[0].mxu0
    %v9685 = vadd.f32 0.0, %v9684
    %v9686 = vpop.f32.mrb[0].mxu0
    %v9687 = vpop.f32.mrb[0].mxu0
    %v9688 = vadd.f32 0.0, %v9687
    %v9689 = vpop.f32.mrb[0].mxu0
    %9690 = vmatprep.mubr.bf16.mxu0 0
    %9691 = vmatmul.mubr.bf16.gmra.mrb[0].mxu0 %v9443
    %v9692 = vpop.f32.mrb[0].mxu0
    %v9693 = vadd.f32 0.0, %v9692
    %v9694 = vpop.f32.mrb[0].mxu0
    %v9695 = vpop.f32.mrb[0].mxu0
    %v9696 = vadd.f32 0.0, %v9695
    %v9697 = vpop.f32.mrb[0].mxu0
    %9698 = vmatprep.mubr.bf16.mxu0 0
    %9699 = vmatmul.mubr.bf16.gmra.mrb[0].mxu0 %v9446
    %v9700 = vpop.f32.mrb[0].mxu0
    %v9701 = vadd.f32 0.0, %v9700
    %v9702 = vpop.f32.mrb[0].mxu0
    %v9703 = vpop.f32.mrb[0].mxu0
    %v9704 = vadd.f32 0.0, %v9703
    %v9705 = vpop.f32.mrb[0].mxu0
    %9706 = vmatprep.mubr.bf16.mxu0 0
    %9707 = vmatmul.mubr.bf16.gmra.mrb[0].mxu0 %v9449
    %v9708 = vpop.f32.mrb[0].mxu0
    %v9709 = vadd.f32 0.0, %v9708
    %v9710 = vpop.f32.mrb[0].mxu0
    %v9711 = vpop.f32.mrb[0].mxu0
    %v9712 = vadd.f32 0.0, %v9711
    %v9713 = vpop.f32.mrb[0].mxu0
    %9714 = vmatprep.mubr.bf16.mxu0 0
    %9715 = vmatmul.mubr.bf16.gmra.mrb[0].mxu0 %v9452
    %v9716 = vpop.f32.mrb[0].mxu0
    %v9717 = vadd.f32 0.0, %v9716
    %v9718 = vpop.f32.mrb[0].mxu0
    %v9719 = vpop.f32.mrb[0].mxu0
    %v9720 = vadd.f32 0.0, %v9719
    %v9721 = vpop.f32.mrb[0].mxu0
    %9722 = vmatprep.mubr.bf16.mxu0 0
    %9723 = vmatmul.mubr.bf16.gmra.mrb[0].mxu0 %v9455
    %v9724 = vpop.f32.mrb[0].mxu0
    %v9725 = vadd.f32 0.0, %v9724
    %v9726 = vpop.f32.mrb[0].mxu0
    %v9727 = vpop.f32.mrb[0].mxu0
    %v9728 = vadd.f32 0.0, %v9727
    %v9729 = vpop.f32.mrb[0].mxu0
    %9730 = vmatprep.mubr.bf16.mxu0 0
    %9731 = vmatmul.mubr.bf16.gmra.mrb[0].mxu0 %v9458
    %v9732 = vpop.f32.mrb[0].mxu0
    %v9733 = vadd.f32 0.0, %v9732
    %v9734 = vpop.f32.mrb[0].mxu0
    %v9735 = vpop.f32.mrb[0].mxu0
    %v9736 = vadd.f32 0.0, %v9735
    %v9737 = vpop.f32.mrb[0].mxu0
    %9738 = vmatprep.mubr.bf16.mxu0 0
    %9739 = vmatmul.mubr.bf16.gmra.mrb[0].mxu0 %v9461
    %v9740 = vpop.f32.mrb[0].mxu0
    %v9741 = vadd.f32 0.0, %v9740
    %v9742 = vpop.f32.mrb[0].mxu0
    %v9743 = vpop.f32.mrb[0].mxu0
    %v9744 = vadd.f32 0.0, %v9743
    %v9745 = vpop.f32.mrb[0].mxu0
    %9746 = vmatprep.mubr.bf16.mxu0 0
    %9747 = vmatmul.mubr.bf16.gmra.mrb[0].mxu0 %v9464
    %v9748 = vpop.f32.mrb[0].mxu0
    %v9749 = vadd.f32 0.0, %v9748
    %v9750 = vpop.f32.mrb[0].mxu0
    %v9751 = vpop.f32.mrb[0].mxu0
    %v9752 = vadd.f32 0.0, %v9751
    %v9753 = vpop.f32.mrb[0].mxu0
    %9754 = vdwg.mxu0
    %v9755 = vadd.f32 %v8921, %v9501
    %v9756 = vadd.f32 %v8922, %v9504
    %v9757 = vadd.f32 %v8923, %v9509
    %v9758 = vadd.f32 %v8924, %v9512
    %v9759 = vadd.f32 %v8925, %v9517
    %v9760 = vadd.f32 %v8926, %v9520
    %v9761 = vadd.f32 %v8927, %v9525
    %v9762 = vadd.f32 %v8928, %v9528
    %v9763 = vadd.f32 %v8929, %v9533
    %v9764 = vadd.f32 %v8930, %v9536
    %v9765 = vadd.f32 %v8931, %v9541
    %v9766 = vadd.f32 %v8932, %v9544
    %v9767 = vadd.f32 %v8933, %v9549
    %v9768 = vadd.f32 %v8934, %v9552
    %v9769 = vadd.f32 %v8935, %v9557
    %v9770 = vadd.f32 %v8936, %v9560
    %v9771 = vadd.f32 %v8937, %v9565
    %v9772 = vadd.f32 %v8938, %v9568
    %v9773 = vadd.f32 %v8939, %v9573
    %v9774 = vadd.f32 %v8940, %v9576
    %v9775 = vadd.f32 %v8941, %v9581
    %v9776 = vadd.f32 %v8942, %v9584
    %v9777 = vadd.f32 %v8943, %v9589
    %v9778 = vadd.f32 %v8944, %v9592
    %v9779 = vadd.f32 %v8945, %v9597
    %v9780 = vadd.f32 %v8946, %v9600
    %v9781 = vadd.f32 %v8947, %v9605
    %v9782 = vadd.f32 %v8948, %v9608
    %v9783 = vadd.f32 %v8949, %v9613
    %v9784 = vadd.f32 %v8950, %v9616
    %v9785 = vadd.f32 %v8951, %v9621
    %v9786 = vadd.f32 %v8952, %v9624
    %v9787 = vadd.f32 %v8953, %v9629
    %v9788 = vadd.f32 %v8954, %v9632
    %v9789 = vadd.f32 %v8955, %v9637
    %v9790 = vadd.f32 %v8956, %v9640
    %v9791 = vadd.f32 %v8957, %v9645
    %v9792 = vadd.f32 %v8958, %v9648
    %v9793 = vadd.f32 %v8959, %v9653
    %v9794 = vadd.f32 %v8960, %v9656
    %v9795 = vadd.f32 %v8961, %v9661
    %v9796 = vadd.f32 %v8962, %v9664
    %v9797 = vadd.f32 %v8963, %v9669
    %v9798 = vadd.f32 %v8964, %v9672
    %v9799 = vadd.f32 %v8965, %v9677
    %v9800 = vadd.f32 %v8966, %v9680
    %v9801 = vadd.f32 %v8967, %v9685
    %v9802 = vadd.f32 %v8968, %v9688
    %v9803 = vadd.f32 %v8969, %v9693
    %v9804 = vadd.f32 %v8970, %v9696
    %v9805 = vadd.f32 %v8971, %v9701
    %v9806 = vadd.f32 %v8972, %v9704
    %v9807 = vadd.f32 %v8973, %v9709
    %v9808 = vadd.f32 %v8974, %v9712
    %v9809 = vadd.f32 %v8975, %v9717
    %v9810 = vadd.f32 %v8976, %v9720
    %v9811 = vadd.f32 %v8977, %v9725
    %v9812 = vadd.f32 %v8978, %v9728
    %v9813 = vadd.f32 %v8979, %v9733
    %v9814 = vadd.f32 %v8980, %v9736
    %v9815 = vadd.f32 %v8981, %v9741
    %v9816 = vadd.f32 %v8982, %v9744
    %v9817 = vadd.f32 %v8983, %v9749
    %v9818 = vadd.f32 %v8984, %v9752
    %v9819 = vld [vmem:[%s9] sm:$0x1]
    %v9820 = vld [vmem:[%s10] sm:$0x1]
    %v9821 = vsel %vm368, %v9755, 0.0
    %v9822 = vsel %vm368, %v9756, 0.0
    %v9823 = vadd.f32 %v9821, %v9822
    %v9824 = vsel %vm368, %v9757, 0.0
    %v9825 = vadd.f32 %v9823, %v9824
    %v9826 = vsel %vm368, %v9758, 0.0
    %v9827 = vadd.f32 %v9825, %v9826
    %v9828 = vsel %vm368, %v9759, 0.0
    %v9829 = vadd.f32 %v9827, %v9828
    %v9830 = vsel %vm368, %v9760, 0.0
    %v9831 = vadd.f32 %v9829, %v9830
    %v9832 = vsel %vm368, %v9761, 0.0
    %v9833 = vadd.f32 %v9831, %v9832
    %v9834 = vsel %vm368, %v9762, 0.0
    %v9835 = vadd.f32 %v9833, %v9834
    %v9836 = vsel %vm368, %v9763, 0.0
    %v9837 = vadd.f32 %v9835, %v9836
    %v9838 = vsel %vm368, %v9764, 0.0
    %v9839 = vadd.f32 %v9837, %v9838
    %v9840 = vsel %vm368, %v9765, 0.0
    %v9841 = vadd.f32 %v9839, %v9840
    %v9842 = vsel %vm368, %v9766, 0.0
    %v9843 = vadd.f32 %v9841, %v9842
    %v9844 = vsel %vm368, %v9767, 0.0
    %v9845 = vadd.f32 %v9843, %v9844
    %v9846 = vsel %vm368, %v9768, 0.0
    %v9847 = vadd.f32 %v9845, %v9846
    %v9848 = vsel %vm368, %v9769, 0.0
    %v9849 = vadd.f32 %v9847, %v9848
    %v9850 = vsel %vm368, %v9770, 0.0
    %v9851 = vadd.f32 %v9849, %v9850
    %v9852 = vsel %vm368, %v9771, 0.0
    %v9853 = vadd.f32 %v9851, %v9852
    %v9854 = vsel %vm368, %v9772, 0.0
    %v9855 = vadd.f32 %v9853, %v9854
    %v9856 = vsel %vm368, %v9773, 0.0
    %v9857 = vadd.f32 %v9855, %v9856
    %v9858 = vsel %vm368, %v9774, 0.0
    %v9859 = vadd.f32 %v9857, %v9858
    %v9860 = vsel %vm368, %v9775, 0.0
    %v9861 = vadd.f32 %v9859, %v9860
    %v9862 = vsel %vm368, %v9776, 0.0
    %v9863 = vadd.f32 %v9861, %v9862
    %v9864 = vsel %vm368, %v9777, 0.0
    %v9865 = vadd.f32 %v9863, %v9864
    %v9866 = vsel %vm368, %v9778, 0.0
    %v9867 = vadd.f32 %v9865, %v9866
    %v9868 = vsel %vm368, %v9779, 0.0
    %v9869 = vadd.f32 %v9867, %v9868
    %v9870 = vsel %vm368, %v9780, 0.0
    %v9871 = vadd.f32 %v9869, %v9870
    %v9872 = vsel %vm368, %v9781, 0.0
    %v9873 = vadd.f32 %v9871, %v9872
    %v9874 = vsel %vm368, %v9782, 0.0
    %v9875 = vadd.f32 %v9873, %v9874
    %v9876 = vsel %vm368, %v9783, 0.0
    %v9877 = vadd.f32 %v9875, %v9876
    %v9878 = vsel %vm368, %v9784, 0.0
    %v9879 = vadd.f32 %v9877, %v9878
    %v9880 = vsel %vm368, %v9785, 0.0
    %v9881 = vadd.f32 %v9879, %v9880
    %v9882 = vsel %vm368, %v9786, 0.0
    %v9883 = vadd.f32 %v9881, %v9882
    %v9884 = vsel %vm368, %v9787, 0.0
    %v9885 = vadd.f32 %v9883, %v9884
    %v9886 = vsel %vm368, %v9788, 0.0
    %v9887 = vadd.f32 %v9885, %v9886
    %v9888 = vsel %vm368, %v9789, 0.0
    %v9889 = vadd.f32 %v9887, %v9888
    %v9890 = vsel %vm368, %v9790, 0.0
    %v9891 = vadd.f32 %v9889, %v9890
    %v9892 = vsel %vm368, %v9791, 0.0
    %v9893 = vadd.f32 %v9891, %v9892
    %v9894 = vsel %vm368, %v9792, 0.0
    %v9895 = vadd.f32 %v9893, %v9894
    %v9896 = vsel %vm368, %v9793, 0.0
    %v9897 = vadd.f32 %v9895, %v9896
    %v9898 = vsel %vm368, %v9794, 0.0
    %v9899 = vadd.f32 %v9897, %v9898
    %v9900 = vsel %vm368, %v9795, 0.0
    %v9901 = vadd.f32 %v9899, %v9900
    %v9902 = vsel %vm368, %v9796, 0.0
    %v9903 = vadd.f32 %v9901, %v9902
    %v9904 = vsel %vm368, %v9797, 0.0
    %v9905 = vadd.f32 %v9903, %v9904
    %v9906 = vsel %vm368, %v9798, 0.0
    %v9907 = vadd.f32 %v9905, %v9906
    %v9908 = vsel %vm368, %v9799, 0.0
    %v9909 = vadd.f32 %v9907, %v9908
    %v9910 = vsel %vm368, %v9800, 0.0
    %v9911 = vadd.f32 %v9909, %v9910
    %v9912 = vsel %vm368, %v9801, 0.0
    %v9913 = vadd.f32 %v9911, %v9912
    %v9914 = vsel %vm368, %v9802, 0.0
    %v9915 = vadd.f32 %v9913, %v9914
    %v9916 = vsel %vm368, %v9803, 0.0
    %v9917 = vadd.f32 %v9915, %v9916
    %v9918 = vsel %vm368, %v9804, 0.0
    %v9919 = vadd.f32 %v9917, %v9918
    %v9920 = vsel %vm368, %v9805, 0.0
    %v9921 = vadd.f32 %v9919, %v9920
    %v9922 = vsel %vm368, %v9806, 0.0
    %v9923 = vadd.f32 %v9921, %v9922
    %v9924 = vsel %vm368, %v9807, 0.0
    %v9925 = vadd.f32 %v9923, %v9924
    %v9926 = vsel %vm368, %v9808, 0.0
    %v9927 = vadd.f32 %v9925, %v9926
    %v9928 = vsel %vm368, %v9809, 0.0
    %v9929 = vadd.f32 %v9927, %v9928
    %v9930 = vsel %vm368, %v9810, 0.0
    %v9931 = vadd.f32 %v9929, %v9930
    %v9932 = vsel %vm368, %v9811, 0.0
    %v9933 = vadd.f32 %v9931, %v9932
    %v9934 = vsel %vm368, %v9812, 0.0
    %v9935 = vadd.f32 %v9933, %v9934
    %v9936 = vsel %vm368, %v9813, 0.0
    %v9937 = vadd.f32 %v9935, %v9936
    %v9938 = vsel %vm368, %v9814, 0.0
    %v9939 = vadd.f32 %v9937, %v9938
    %v9940 = vsel %vm368, %v9815, 0.0
    %v9941 = vadd.f32 %v9939, %v9940
    %v9942 = vsel %vm368, %v9816, 0.0
    %v9943 = vadd.f32 %v9941, %v9942
    %v9944 = vsel %vm368, %v9817, 0.0
    %v9945 = vadd.f32 %v9943, %v9944
    %v9946 = vsel %vm368, %v9818, 0.0
    %v9947 = vadd.f32 %v9945, %v9946
    %v9948 = vrot.slane %v9947, 4
    %v9949 = vadd.f32 %v9947, %v9948
    %v9950 = vrot.slane %v9949, 2
    %v9951 = vadd.f32 %v9949, %v9950
    %v9952 = vrot.slane %v9951, 1
    %v9953 = vadd.f32 %v9951, %v9952
    %v9954 = vmul.f32 %v9953, 0.001953125
    %v9955 = vsub.f32 %v9755, %v9954
    %v9956 = vsub.f32 %v9756, %v9954
    %v9957 = vsub.f32 %v9757, %v9954
    %v9958 = vsub.f32 %v9758, %v9954
    %v9959 = vsub.f32 %v9759, %v9954
    %v9960 = vsub.f32 %v9760, %v9954
    %v9961 = vsub.f32 %v9761, %v9954
    %v9962 = vsub.f32 %v9762, %v9954
    %v9963 = vsub.f32 %v9763, %v9954
    %v9964 = vsub.f32 %v9764, %v9954
    %v9965 = vsub.f32 %v9765, %v9954
    %v9966 = vsub.f32 %v9766, %v9954
    %v9967 = vsub.f32 %v9767, %v9954
    %v9968 = vsub.f32 %v9768, %v9954
    %v9969 = vsub.f32 %v9769, %v9954
    %v9970 = vsub.f32 %v9770, %v9954
    %v9971 = vsub.f32 %v9771, %v9954
    %v9972 = vsub.f32 %v9772, %v9954
    %v9973 = vsub.f32 %v9773, %v9954
    %v9974 = vsub.f32 %v9774, %v9954
    %v9975 = vsub.f32 %v9775, %v9954
    %v9976 = vsub.f32 %v9776, %v9954
    %v9977 = vsub.f32 %v9777, %v9954
    %v9978 = vsub.f32 %v9778, %v9954
    %v9979 = vsub.f32 %v9779, %v9954
    %v9980 = vsub.f32 %v9780, %v9954
    %v9981 = vsub.f32 %v9781, %v9954
    %v9982 = vsub.f32 %v9782, %v9954
    %v9983 = vsub.f32 %v9783, %v9954
    %v9984 = vsub.f32 %v9784, %v9954
    %v9985 = vsub.f32 %v9785, %v9954
    %v9986 = vsub.f32 %v9786, %v9954
    %v9987 = vsub.f32 %v9787, %v9954
    %v9988 = vsub.f32 %v9788, %v9954
    %v9989 = vsub.f32 %v9789, %v9954
    %v9990 = vsub.f32 %v9790, %v9954
    %v9991 = vsub.f32 %v9791, %v9954
    %v9992 = vsub.f32 %v9792, %v9954
    %v9993 = vsub.f32 %v9793, %v9954
    %v9994 = vsub.f32 %v9794, %v9954
    %v9995 = vsub.f32 %v9795, %v9954
    %v9996 = vsub.f32 %v9796, %v9954
    %v9997 = vsub.f32 %v9797, %v9954
    %v9998 = vsub.f32 %v9798, %v9954
    %v9999 = vsub.f32 %v9799, %v9954
    %v10000 = vsub.f32 %v9800, %v9954
    %v10001 = vsub.f32 %v9801, %v9954
    %v10002 = vsub.f32 %v9802, %v9954
    %v10003 = vsub.f32 %v9803, %v9954
    %v10004 = vsub.f32 %v9804, %v9954
    %v10005 = vsub.f32 %v9805, %v9954
    %v10006 = vsub.f32 %v9806, %v9954
    %v10007 = vsub.f32 %v9807, %v9954
    %v10008 = vsub.f32 %v9808, %v9954
    %v10009 = vsub.f32 %v9809, %v9954
    %v10010 = vsub.f32 %v9810, %v9954
    %v10011 = vsub.f32 %v9811, %v9954
    %v10012 = vsub.f32 %v9812, %v9954
    %v10013 = vsub.f32 %v9813, %v9954
    %v10014 = vsub.f32 %v9814, %v9954
    %v10015 = vsub.f32 %v9815, %v9954
    %v10016 = vsub.f32 %v9816, %v9954
    %v10017 = vsub.f32 %v9817, %v9954
    %v10018 = vsub.f32 %v9818, %v9954
    %v10019 = vmul.f32 %v9955, %v9955
    %v10020 = vmul.f32 %v9956, %v9956
    %v10021 = vmul.f32 %v9957, %v9957
    %v10022 = vmul.f32 %v9958, %v9958
    %v10023 = vmul.f32 %v9959, %v9959
    %v10024 = vmul.f32 %v9960, %v9960
    %v10025 = vmul.f32 %v9961, %v9961
    %v10026 = vmul.f32 %v9962, %v9962
    %v10027 = vmul.f32 %v9963, %v9963
    %v10028 = vmul.f32 %v9964, %v9964
    %v10029 = vmul.f32 %v9965, %v9965
    %v10030 = vmul.f32 %v9966, %v9966
    %v10031 = vmul.f32 %v9967, %v9967
    %v10032 = vmul.f32 %v9968, %v9968
    %v10033 = vmul.f32 %v9969, %v9969
    %v10034 = vmul.f32 %v9970, %v9970
    %v10035 = vmul.f32 %v9971, %v9971
    %v10036 = vmul.f32 %v9972, %v9972
    %v10037 = vmul.f32 %v9973, %v9973
    %v10038 = vmul.f32 %v9974, %v9974
    %v10039 = vmul.f32 %v9975, %v9975
    %v10040 = vmul.f32 %v9976, %v9976
    %v10041 = vmul.f32 %v9977, %v9977
    %v10042 = vmul.f32 %v9978, %v9978
    %v10043 = vmul.f32 %v9979, %v9979
    %v10044 = vmul.f32 %v9980, %v9980
    %v10045 = vmul.f32 %v9981, %v9981
    %v10046 = vmul.f32 %v9982, %v9982
    %v10047 = vmul.f32 %v9983, %v9983
    %v10048 = vmul.f32 %v9984, %v9984
    %v10049 = vmul.f32 %v9985, %v9985
    %v10050 = vmul.f32 %v9986, %v9986
    %v10051 = vmul.f32 %v9987, %v9987
    %v10052 = vmul.f32 %v9988, %v9988
    %v10053 = vmul.f32 %v9989, %v9989
    %v10054 = vmul.f32 %v9990, %v9990
    %v10055 = vmul.f32 %v9991, %v9991
    %v10056 = vmul.f32 %v9992, %v9992
    %v10057 = vmul.f32 %v9993, %v9993
    %v10058 = vmul.f32 %v9994, %v9994
    %v10059 = vmul.f32 %v9995, %v9995
    %v10060 = vmul.f32 %v9996, %v9996
    %v10061 = vmul.f32 %v9997, %v9997
    %v10062 = vmul.f32 %v9998, %v9998
    %v10063 = vmul.f32 %v9999, %v9999
    %v10064 = vmul.f32 %v10000, %v10000
    %v10065 = vmul.f32 %v10001, %v10001
    %v10066 = vmul.f32 %v10002, %v10002
    %v10067 = vmul.f32 %v10003, %v10003
    %v10068 = vmul.f32 %v10004, %v10004
    %v10069 = vmul.f32 %v10005, %v10005
    %v10070 = vmul.f32 %v10006, %v10006
    %v10071 = vmul.f32 %v10007, %v10007
    %v10072 = vmul.f32 %v10008, %v10008
    %v10073 = vmul.f32 %v10009, %v10009
    %v10074 = vmul.f32 %v10010, %v10010
    %v10075 = vmul.f32 %v10011, %v10011
    %v10076 = vmul.f32 %v10012, %v10012
    %v10077 = vmul.f32 %v10013, %v10013
    %v10078 = vmul.f32 %v10014, %v10014
    %v10079 = vmul.f32 %v10015, %v10015
    %v10080 = vmul.f32 %v10016, %v10016
    %v10081 = vmul.f32 %v10017, %v10017
    %v10082 = vmul.f32 %v10018, %v10018
    %v10083 = vsel %vm368, %v10019, 0.0
    %v10084 = vsel %vm368, %v10020, 0.0
    %v10085 = vadd.f32 %v10083, %v10084
    %v10086 = vsel %vm368, %v10021, 0.0
    %v10087 = vadd.f32 %v10085, %v10086
    %v10088 = vsel %vm368, %v10022, 0.0
    %v10089 = vadd.f32 %v10087, %v10088
    %v10090 = vsel %vm368, %v10023, 0.0
    %v10091 = vadd.f32 %v10089, %v10090
    %v10092 = vsel %vm368, %v10024, 0.0
    %v10093 = vadd.f32 %v10091, %v10092
    %v10094 = vsel %vm368, %v10025, 0.0
    %v10095 = vadd.f32 %v10093, %v10094
    %v10096 = vsel %vm368, %v10026, 0.0
    %v10097 = vadd.f32 %v10095, %v10096
    %v10098 = vsel %vm368, %v10027, 0.0
    %v10099 = vadd.f32 %v10097, %v10098
    %v10100 = vsel %vm368, %v10028, 0.0
    %v10101 = vadd.f32 %v10099, %v10100
    %v10102 = vsel %vm368, %v10029, 0.0
    %v10103 = vadd.f32 %v10101, %v10102
    %v10104 = vsel %vm368, %v10030, 0.0
    %v10105 = vadd.f32 %v10103, %v10104
    %v10106 = vsel %vm368, %v10031, 0.0
    %v10107 = vadd.f32 %v10105, %v10106
    %v10108 = vsel %vm368, %v10032, 0.0
    %v10109 = vadd.f32 %v10107, %v10108
    %v10110 = vsel %vm368, %v10033, 0.0
    %v10111 = vadd.f32 %v10109, %v10110
    %v10112 = vsel %vm368, %v10034, 0.0
    %v10113 = vadd.f32 %v10111, %v10112
    %v10114 = vsel %vm368, %v10035, 0.0
    %v10115 = vadd.f32 %v10113, %v10114
    %v10116 = vsel %vm368, %v10036, 0.0
    %v10117 = vadd.f32 %v10115, %v10116
    %v10118 = vsel %vm368, %v10037, 0.0
    %v10119 = vadd.f32 %v10117, %v10118
    %v10120 = vsel %vm368, %v10038, 0.0
    %v10121 = vadd.f32 %v10119, %v10120
    %v10122 = vsel %vm368, %v10039, 0.0
    %v10123 = vadd.f32 %v10121, %v10122
    %v10124 = vsel %vm368, %v10040, 0.0
    %v10125 = vadd.f32 %v10123, %v10124
    %v10126 = vsel %vm368, %v10041, 0.0
    %v10127 = vadd.f32 %v10125, %v10126
    %v10128 = vsel %vm368, %v10042, 0.0
    %v10129 = vadd.f32 %v10127, %v10128
    %v10130 = vsel %vm368, %v10043, 0.0
    %v10131 = vadd.f32 %v10129, %v10130
    %v10132 = vsel %vm368, %v10044, 0.0
    %v10133 = vadd.f32 %v10131, %v10132
    %v10134 = vsel %vm368, %v10045, 0.0
    %v10135 = vadd.f32 %v10133, %v10134
    %v10136 = vsel %vm368, %v10046, 0.0
    %v10137 = vadd.f32 %v10135, %v10136
    %v10138 = vsel %vm368, %v10047, 0.0
    %v10139 = vadd.f32 %v10137, %v10138
    %v10140 = vsel %vm368, %v10048, 0.0
    %v10141 = vadd.f32 %v10139, %v10140
    %v10142 = vsel %vm368, %v10049, 0.0
    %v10143 = vadd.f32 %v10141, %v10142
    %v10144 = vsel %vm368, %v10050, 0.0
    %v10145 = vadd.f32 %v10143, %v10144
    %v10146 = vsel %vm368, %v10051, 0.0
    %v10147 = vadd.f32 %v10145, %v10146
    %v10148 = vsel %vm368, %v10052, 0.0
    %v10149 = vadd.f32 %v10147, %v10148
    %v10150 = vsel %vm368, %v10053, 0.0
    %v10151 = vadd.f32 %v10149, %v10150
    %v10152 = vsel %vm368, %v10054, 0.0
    %v10153 = vadd.f32 %v10151, %v10152
    %v10154 = vsel %vm368, %v10055, 0.0
    %v10155 = vadd.f32 %v10153, %v10154
    %v10156 = vsel %vm368, %v10056, 0.0
    %v10157 = vadd.f32 %v10155, %v10156
    %v10158 = vsel %vm368, %v10057, 0.0
    %v10159 = vadd.f32 %v10157, %v10158
    %v10160 = vsel %vm368, %v10058, 0.0
    %v10161 = vadd.f32 %v10159, %v10160
    %v10162 = vsel %vm368, %v10059, 0.0
    %v10163 = vadd.f32 %v10161, %v10162
    %v10164 = vsel %vm368, %v10060, 0.0
    %v10165 = vadd.f32 %v10163, %v10164
    %v10166 = vsel %vm368, %v10061, 0.0
    %v10167 = vadd.f32 %v10165, %v10166
    %v10168 = vsel %vm368, %v10062, 0.0
    %v10169 = vadd.f32 %v10167, %v10168
    %v10170 = vsel %vm368, %v10063, 0.0
    %v10171 = vadd.f32 %v10169, %v10170
    %v10172 = vsel %vm368, %v10064, 0.0
    %v10173 = vadd.f32 %v10171, %v10172
    %v10174 = vsel %vm368, %v10065, 0.0
    %v10175 = vadd.f32 %v10173, %v10174
    %v10176 = vsel %vm368, %v10066, 0.0
    %v10177 = vadd.f32 %v10175, %v10176
    %v10178 = vsel %vm368, %v10067, 0.0
    %v10179 = vadd.f32 %v10177, %v10178
    %v10180 = vsel %vm368, %v10068, 0.0
    %v10181 = vadd.f32 %v10179, %v10180
    %v10182 = vsel %vm368, %v10069, 0.0
    %v10183 = vadd.f32 %v10181, %v10182
    %v10184 = vsel %vm368, %v10070, 0.0
    %v10185 = vadd.f32 %v10183, %v10184
    %v10186 = vsel %vm368, %v10071, 0.0
    %v10187 = vadd.f32 %v10185, %v10186
    %v10188 = vsel %vm368, %v10072, 0.0
    %v10189 = vadd.f32 %v10187, %v10188
    %v10190 = vsel %vm368, %v10073, 0.0
    %v10191 = vadd.f32 %v10189, %v10190
    %v10192 = vsel %vm368, %v10074, 0.0
    %v10193 = vadd.f32 %v10191, %v10192
    %v10194 = vsel %vm368, %v10075, 0.0
    %v10195 = vadd.f32 %v10193, %v10194
    %v10196 = vsel %vm368, %v10076, 0.0
    %v10197 = vadd.f32 %v10195, %v10196
    %v10198 = vsel %vm368, %v10077, 0.0
    %v10199 = vadd.f32 %v10197, %v10198
    %v10200 = vsel %vm368, %v10078, 0.0
    %v10201 = vadd.f32 %v10199, %v10200
    %v10202 = vsel %vm368, %v10079, 0.0
    %v10203 = vadd.f32 %v10201, %v10202
    %v10204 = vsel %vm368, %v10080, 0.0
    %v10205 = vadd.f32 %v10203, %v10204
    %v10206 = vsel %vm368, %v10081, 0.0
    %v10207 = vadd.f32 %v10205, %v10206
    %v10208 = vsel %vm368, %v10082, 0.0
    %v10209 = vadd.f32 %v10207, %v10208
    %v10210 = vrot.slane %v10209, 4
    %v10211 = vadd.f32 %v10209, %v10210
    %v10212 = vrot.slane %v10211, 2
    %v10213 = vadd.f32 %v10211, %v10212
    %v10214 = vrot.slane %v10213, 1
    %v10215 = vadd.f32 %v10213, %v10214
    %v10216 = vmul.f32 %v10215, 0.001953125
    %v10217 = vadd.f32 %v10216, 1e-05
    %v10218 = vrsqrt.pop %v10217
    %v10219 = vmul.f32 %v10218, %v9819
    %v10220 = vlaneseq
    %v10221 = vshrl.u32 %v10220, 7
    %v10222 = vsub.s32 0, %v10221
    %v10223 = vrot.slane %v10219, %v10222
    %v10224 = vmul.f32 %v9955, %v10223
    %v10225 = vmul.f32 %v9956, %v10223
    %v10226 = vmul.f32 %v9957, %v10223
    %v10227 = vmul.f32 %v9958, %v10223
    %v10228 = vmul.f32 %v9959, %v10223
    %v10229 = vmul.f32 %v9960, %v10223
    %v10230 = vmul.f32 %v9961, %v10223
    %v10231 = vmul.f32 %v9962, %v10223
    %v10232 = vmul.f32 %v9963, %v10223
    %v10233 = vmul.f32 %v9964, %v10223
    %v10234 = vmul.f32 %v9965, %v10223
    %v10235 = vmul.f32 %v9966, %v10223
    %v10236 = vmul.f32 %v9967, %v10223
    %v10237 = vmul.f32 %v9968, %v10223
    %v10238 = vmul.f32 %v9969, %v10223
    %v10239 = vmul.f32 %v9970, %v10223
    %v10240 = vmul.f32 %v9971, %v10223
    %v10241 = vmul.f32 %v9972, %v10223
    %v10242 = vmul.f32 %v9973, %v10223
    %v10243 = vmul.f32 %v9974, %v10223
    %v10244 = vmul.f32 %v9975, %v10223
    %v10245 = vmul.f32 %v9976, %v10223
    %v10246 = vmul.f32 %v9977, %v10223
    %v10247 = vmul.f32 %v9978, %v10223
    %v10248 = vmul.f32 %v9979, %v10223
    %v10249 = vmul.f32 %v9980, %v10223
    %v10250 = vmul.f32 %v9981, %v10223
    %v10251 = vmul.f32 %v9982, %v10223
    %v10252 = vmul.f32 %v9983, %v10223
    %v10253 = vmul.f32 %v9984, %v10223
    %v10254 = vmul.f32 %v9985, %v10223
    %v10255 = vmul.f32 %v9986, %v10223
    %v10256 = vmul.f32 %v9987, %v10223
    %v10257 = vmul.f32 %v9988, %v10223
    %v10258 = vmul.f32 %v9989, %v10223
    %v10259 = vmul.f32 %v9990, %v10223
    %v10260 = vmul.f32 %v9991, %v10223
    %v10261 = vmul.f32 %v9992, %v10223
    %v10262 = vmul.f32 %v9993, %v10223
    %v10263 = vmul.f32 %v9994, %v10223
    %v10264 = vmul.f32 %v9995, %v10223
    %v10265 = vmul.f32 %v9996, %v10223
    %v10266 = vmul.f32 %v9997, %v10223
    %v10267 = vmul.f32 %v9998, %v10223
    %v10268 = vmul.f32 %v9999, %v10223
    %v10269 = vmul.f32 %v10000, %v10223
    %v10270 = vmul.f32 %v10001, %v10223
    %v10271 = vmul.f32 %v10002, %v10223
    %v10272 = vmul.f32 %v10003, %v10223
    %v10273 = vmul.f32 %v10004, %v10223
    %v10274 = vmul.f32 %v10005, %v10223
    %v10275 = vmul.f32 %v10006, %v10223
    %v10276 = vmul.f32 %v10007, %v10223
    %v10277 = vmul.f32 %v10008, %v10223
    %v10278 = vmul.f32 %v10009, %v10223
    %v10279 = vmul.f32 %v10010, %v10223
    %v10280 = vmul.f32 %v10011, %v10223
    %v10281 = vmul.f32 %v10012, %v10223
    %v10282 = vmul.f32 %v10013, %v10223
    %v10283 = vmul.f32 %v10014, %v10223
    %v10284 = vmul.f32 %v10015, %v10223
    %v10285 = vmul.f32 %v10016, %v10223
    %v10286 = vmul.f32 %v10017, %v10223
    %v10287 = vmul.f32 %v10018, %v10223
    %v10289 = vlaneseq
    %v10290 = vshrl.u32 %v10289, 7
    %v10291 = vsub.s32 0, %v10290
    %v10292 = vrot.slane %v9820, %v10291
    %v10294 = vadd.f32 %v10224, %v10292
    %v10295 = vadd.f32 %v10225, %v10292
    %v10296 = vadd.f32 %v10226, %v10292
    %v10297 = vadd.f32 %v10227, %v10292
    %v10298 = vadd.f32 %v10228, %v10292
    %v10299 = vadd.f32 %v10229, %v10292
    %v10300 = vadd.f32 %v10230, %v10292
    %v10301 = vadd.f32 %v10231, %v10292
    %v10302 = vadd.f32 %v10232, %v10292
    %v10303 = vadd.f32 %v10233, %v10292
    %v10304 = vadd.f32 %v10234, %v10292
    %v10305 = vadd.f32 %v10235, %v10292
    %v10306 = vadd.f32 %v10236, %v10292
    %v10307 = vadd.f32 %v10237, %v10292
    %v10308 = vadd.f32 %v10238, %v10292
    %v10309 = vadd.f32 %v10239, %v10292
    %v10310 = vadd.f32 %v10240, %v10292
    %v10311 = vadd.f32 %v10241, %v10292
    %v10312 = vadd.f32 %v10242, %v10292
    %v10313 = vadd.f32 %v10243, %v10292
    %v10314 = vadd.f32 %v10244, %v10292
    %v10315 = vadd.f32 %v10245, %v10292
    %v10316 = vadd.f32 %v10246, %v10292
    %v10317 = vadd.f32 %v10247, %v10292
    %v10318 = vadd.f32 %v10248, %v10292
    %v10319 = vadd.f32 %v10249, %v10292
    %v10320 = vadd.f32 %v10250, %v10292
    %v10321 = vadd.f32 %v10251, %v10292
    %v10322 = vadd.f32 %v10252, %v10292
    %v10323 = vadd.f32 %v10253, %v10292
    %v10324 = vadd.f32 %v10254, %v10292
    %v10325 = vadd.f32 %v10255, %v10292
    %v10326 = vadd.f32 %v10256, %v10292
    %v10327 = vadd.f32 %v10257, %v10292
    %v10328 = vadd.f32 %v10258, %v10292
    %v10329 = vadd.f32 %v10259, %v10292
    %v10330 = vadd.f32 %v10260, %v10292
    %v10331 = vadd.f32 %v10261, %v10292
    %v10332 = vadd.f32 %v10262, %v10292
    %v10333 = vadd.f32 %v10263, %v10292
    %v10334 = vadd.f32 %v10264, %v10292
    %v10335 = vadd.f32 %v10265, %v10292
    %v10336 = vadd.f32 %v10266, %v10292
    %v10337 = vadd.f32 %v10267, %v10292
    %v10338 = vadd.f32 %v10268, %v10292
    %v10339 = vadd.f32 %v10269, %v10292
    %v10340 = vadd.f32 %v10270, %v10292
    %v10341 = vadd.f32 %v10271, %v10292
    %v10342 = vadd.f32 %v10272, %v10292
    %v10343 = vadd.f32 %v10273, %v10292
    %v10344 = vadd.f32 %v10274, %v10292
    %v10345 = vadd.f32 %v10275, %v10292
    %v10346 = vadd.f32 %v10276, %v10292
    %v10347 = vadd.f32 %v10277, %v10292
    %v10348 = vadd.f32 %v10278, %v10292
    %v10349 = vadd.f32 %v10279, %v10292
    %v10350 = vadd.f32 %v10280, %v10292
    %v10351 = vadd.f32 %v10281, %v10292
    %v10352 = vadd.f32 %v10282, %v10292
    %v10353 = vadd.f32 %v10283, %v10292
    %v10354 = vadd.f32 %v10284, %v10292
    %v10355 = vadd.f32 %v10285, %v10292
    %v10356 = vadd.f32 %v10286, %v10292
    %v10357 = vadd.f32 %v10287, %v10292
    %v10358 = vmax.f32 %v10294, 0.0
    %v10359 = vmax.f32 %v10295, 0.0
    %v10360 = vmax.f32 %v10296, 0.0
    %v10361 = vmax.f32 %v10297, 0.0
    %v10362 = vmax.f32 %v10298, 0.0
    %v10363 = vmax.f32 %v10299, 0.0
    %v10364 = vmax.f32 %v10300, 0.0
    %v10365 = vmax.f32 %v10301, 0.0
    %v10366 = vmax.f32 %v10302, 0.0
    %v10367 = vmax.f32 %v10303, 0.0
    %v10368 = vmax.f32 %v10304, 0.0
    %v10369 = vmax.f32 %v10305, 0.0
    %v10370 = vmax.f32 %v10306, 0.0
    %v10371 = vmax.f32 %v10307, 0.0
    %v10372 = vmax.f32 %v10308, 0.0
    %v10373 = vmax.f32 %v10309, 0.0
    %v10374 = vmax.f32 %v10310, 0.0
    %v10375 = vmax.f32 %v10311, 0.0
    %v10376 = vmax.f32 %v10312, 0.0
    %v10377 = vmax.f32 %v10313, 0.0
    %v10378 = vmax.f32 %v10314, 0.0
    %v10379 = vmax.f32 %v10315, 0.0
    %v10380 = vmax.f32 %v10316, 0.0
    %v10381 = vmax.f32 %v10317, 0.0
    %v10382 = vmax.f32 %v10318, 0.0
    %v10383 = vmax.f32 %v10319, 0.0
    %v10384 = vmax.f32 %v10320, 0.0
    %v10385 = vmax.f32 %v10321, 0.0
    %v10386 = vmax.f32 %v10322, 0.0
    %v10387 = vmax.f32 %v10323, 0.0
    %v10388 = vmax.f32 %v10324, 0.0
    %v10389 = vmax.f32 %v10325, 0.0
    %v10390 = vmax.f32 %v10326, 0.0
    %v10391 = vmax.f32 %v10327, 0.0
    %v10392 = vmax.f32 %v10328, 0.0
    %v10393 = vmax.f32 %v10329, 0.0
    %v10394 = vmax.f32 %v10330, 0.0
    %v10395 = vmax.f32 %v10331, 0.0
    %v10396 = vmax.f32 %v10332, 0.0
    %v10397 = vmax.f32 %v10333, 0.0
    %v10398 = vmax.f32 %v10334, 0.0
    %v10399 = vmax.f32 %v10335, 0.0
    %v10400 = vmax.f32 %v10336, 0.0
    %v10401 = vmax.f32 %v10337, 0.0
    %v10402 = vmax.f32 %v10338, 0.0
    %v10403 = vmax.f32 %v10339, 0.0
    %v10404 = vmax.f32 %v10340, 0.0
    %v10405 = vmax.f32 %v10341, 0.0
    %v10406 = vmax.f32 %v10342, 0.0
    %v10407 = vmax.f32 %v10343, 0.0
    %v10408 = vmax.f32 %v10344, 0.0
    %v10409 = vmax.f32 %v10345, 0.0
    %v10410 = vmax.f32 %v10346, 0.0
    %v10411 = vmax.f32 %v10347, 0.0
    %v10412 = vmax.f32 %v10348, 0.0
    %v10413 = vmax.f32 %v10349, 0.0
    %v10414 = vmax.f32 %v10350, 0.0
    %v10415 = vmax.f32 %v10351, 0.0
    %v10416 = vmax.f32 %v10352, 0.0
    %v10417 = vmax.f32 %v10353, 0.0
    %v10418 = vmax.f32 %v10354, 0.0
    %v10419 = vmax.f32 %v10355, 0.0
    %v10420 = vmax.f32 %v10356, 0.0
    %v10421 = vmax.f32 %v10357, 0.0
    %10422 = vst.msk [vmem:[#allocation2] sm:$0xff] %vm368, %v10358
    %10423 = vst.msk [vmem:[#allocation2 + $0x8] sm:$0xff] %vm368, %v10359
    %10424 = vst.msk [vmem:[#allocation2 + $0x10] sm:$0xff] %vm368, %v10360
    %10425 = vst.msk [vmem:[#allocation2 + $0x18] sm:$0xff] %vm368, %v10361
    %10426 = vst.msk [vmem:[#allocation2 + $0x20] sm:$0xff] %vm368, %v10362
    %10427 = vst.msk [vmem:[#allocation2 + $0x28] sm:$0xff] %vm368, %v10363
    %10428 = vst.msk [vmem:[#allocation2 + $0x30] sm:$0xff] %vm368, %v10364
    %10429 = vst.msk [vmem:[#allocation2 + $0x38] sm:$0xff] %vm368, %v10365
    %10430 = vst.msk [vmem:[#allocation2 + $0x40] sm:$0xff] %vm368, %v10366
    %10431 = vst.msk [vmem:[#allocation2 + $0x48] sm:$0xff] %vm368, %v10367
    %10432 = vst.msk [vmem:[#allocation2 + $0x50] sm:$0xff] %vm368, %v10368
    %10433 = vst.msk [vmem:[#allocation2 + $0x58] sm:$0xff] %vm368, %v10369
    %10434 = vst.msk [vmem:[#allocation2 + $0x60] sm:$0xff] %vm368, %v10370
    %10435 = vst.msk [vmem:[#allocation2 + $0x68] sm:$0xff] %vm368, %v10371
    %10436 = vst.msk [vmem:[#allocation2 + $0x70] sm:$0xff] %vm368, %v10372
    %10437 = vst.msk [vmem:[#allocation2 + $0x78] sm:$0xff] %vm368, %v10373
    %10438 = vst.msk [vmem:[#allocation2 + $0x80] sm:$0xff] %vm368, %v10374
    %10439 = vst.msk [vmem:[#allocation2 + $0x88] sm:$0xff] %vm368, %v10375
    %10440 = vst.msk [vmem:[#allocation2 + $0x90] sm:$0xff] %vm368, %v10376
    %10441 = vst.msk [vmem:[#allocation2 + $0x98] sm:$0xff] %vm368, %v10377
    %10442 = vst.msk [vmem:[#allocation2 + $0xa0] sm:$0xff] %vm368, %v10378
    %10443 = vst.msk [vmem:[#allocation2 + $0xa8] sm:$0xff] %vm368, %v10379
    %10444 = vst.msk [vmem:[#allocation2 + $0xb0] sm:$0xff] %vm368, %v10380
    %10445 = vst.msk [vmem:[#allocation2 + $0xb8] sm:$0xff] %vm368, %v10381
    %10446 = vst.msk [vmem:[#allocation2 + $0xc0] sm:$0xff] %vm368, %v10382
    %10447 = vst.msk [vmem:[#allocation2 + $0xc8] sm:$0xff] %vm368, %v10383
    %10448 = vst.msk [vmem:[#allocation2 + $0xd0] sm:$0xff] %vm368, %v10384
    %10449 = vst.msk [vmem:[#allocation2 + $0xd8] sm:$0xff] %vm368, %v10385
    %10450 = vst.msk [vmem:[#allocation2 + $0xe0] sm:$0xff] %vm368, %v10386
    %10451 = vst.msk [vmem:[#allocation2 + $0xe8] sm:$0xff] %vm368, %v10387
    %10452 = vst.msk [vmem:[#allocation2 + $0xf0] sm:$0xff] %vm368, %v10388
    %10453 = vst.msk [vmem:[#allocation2 + $0xf8] sm:$0xff] %vm368, %v10389
    %10454 = vst.msk [vmem:[#allocation2 + $0x100] sm:$0xff] %vm368, %v10390
    %10455 = vst.msk [vmem:[#allocation2 + $0x108] sm:$0xff] %vm368, %v10391
    %10456 = vst.msk [vmem:[#allocation2 + $0x110] sm:$0xff] %vm368, %v10392
    %10457 = vst.msk [vmem:[#allocation2 + $0x118] sm:$0xff] %vm368, %v10393
    %10458 = vst.msk [vmem:[#allocation2 + $0x120] sm:$0xff] %vm368, %v10394
    %10459 = vst.msk [vmem:[#allocation2 + $0x128] sm:$0xff] %vm368, %v10395
    %10460 = vst.msk [vmem:[#allocation2 + $0x130] sm:$0xff] %vm368, %v10396
    %10461 = vst.msk [vmem:[#allocation2 + $0x138] sm:$0xff] %vm368, %v10397
    %10462 = vst.msk [vmem:[#allocation2 + $0x140] sm:$0xff] %vm368, %v10398
    %10463 = vst.msk [vmem:[#allocation2 + $0x148] sm:$0xff] %vm368, %v10399
    %10464 = vst.msk [vmem:[#allocation2 + $0x150] sm:$0xff] %vm368, %v10400
    %10465 = vst.msk [vmem:[#allocation2 + $0x158] sm:$0xff] %vm368, %v10401
    %10466 = vst.msk [vmem:[#allocation2 + $0x160] sm:$0xff] %vm368, %v10402
    %10467 = vst.msk [vmem:[#allocation2 + $0x168] sm:$0xff] %vm368, %v10403
    %10468 = vst.msk [vmem:[#allocation2 + $0x170] sm:$0xff] %vm368, %v10404
    %10469 = vst.msk [vmem:[#allocation2 + $0x178] sm:$0xff] %vm368, %v10405
    %10470 = vst.msk [vmem:[#allocation2 + $0x180] sm:$0xff] %vm368, %v10406
    %10471 = vst.msk [vmem:[#allocation2 + $0x188] sm:$0xff] %vm368, %v10407
    %10472 = vst.msk [vmem:[#allocation2 + $0x190] sm:$0xff] %vm368, %v10408
    %10473 = vst.msk [vmem:[#allocation2 + $0x198] sm:$0xff] %vm368, %v10409
    %10474 = vst.msk [vmem:[#allocation2 + $0x1a0] sm:$0xff] %vm368, %v10410
    %10475 = vst.msk [vmem:[#allocation2 + $0x1a8] sm:$0xff] %vm368, %v10411
    %10476 = vst.msk [vmem:[#allocation2 + $0x1b0] sm:$0xff] %vm368, %v10412
    %10477 = vst.msk [vmem:[#allocation2 + $0x1b8] sm:$0xff] %vm368, %v10413
    %10478 = vst.msk [vmem:[#allocation2 + $0x1c0] sm:$0xff] %vm368, %v10414
    %10479 = vst.msk [vmem:[#allocation2 + $0x1c8] sm:$0xff] %vm368, %v10415
    %10480 = vst.msk [vmem:[#allocation2 + $0x1d0] sm:$0xff] %vm368, %v10416
    %10481 = vst.msk [vmem:[#allocation2 + $0x1d8] sm:$0xff] %vm368, %v10417
    %10482 = vst.msk [vmem:[#allocation2 + $0x1e0] sm:$0xff] %vm368, %v10418
    %10483 = vst.msk [vmem:[#allocation2 + $0x1e8] sm:$0xff] %vm368, %v10419
    %10484 = vst.msk [vmem:[#allocation2 + $0x1f0] sm:$0xff] %vm368, %v10420
    %10485 = vst.msk [vmem:[#allocation2 + $0x1f8] sm:$0xff] %vm368, %v10421
    // Predicated region
    $region46: #{_lambda_.3} parent=1 // pred_check
      _
    $region47: #{_lambda_.3} parent=1 // pred_check_branch
      %10487 = sbr.rel (0) target = $region49
    $region48: #{_lambda_.3} parent=1 // pred_region
      %s10489 = ssub.s32 8192, 8192
      %10490 = vsyncadd [#allocation3], %s10489
      %s10491 = sshll.u32 [#allocation2], 4
      %s10492 = int_to_ptr.vmem [resolvable:$true] %s10491
      %10497 = dma.vmem_to_hbm [thread:$0]  %s10492, 8192, %s11, [#allocation3], 128, 128, 8
    $region49: #{_lambda_.3} parent=1 // pred_fallthru
      _
    // Predicated region
    $region50: #{_lambda_.3} parent=1 // pred_check
      _
    $region51: #{_lambda_.3} parent=1 // pred_check_branch
      %10499 = sbr.rel (0) target = $region53
    $region52: #{_lambda_.3} parent=1 // pred_region
      %10500 = dma.done [#allocation3], 8192
    $region53: #{_lambda_.3} parent=1 // pred_fallthru
      _
    %10501 = vsyncpa [#allocation3], 1

</llo_original>
